<compile_context>
chip_gen: v7x
topology: tpu7x:2x2x1
jax: 0.10.0
libtpu: 0.0.40
codegen_flags: <defaults>
</compile_context>

<pallas_src>
import functools

import jax
import jax.numpy as jnp
from jax.experimental import pallas as pl
from jax.experimental.pallas import tpu as pltpu


# ----------------------------------------------------------------------------
# Fused 4-layer MLP kernel (single pallas_call).
# Weights/biases arrive as HBM refs; we DMA all of them into VMEM scratch at
# kernel start and compute layer-by-layer, waiting only on the layer we need.
# ----------------------------------------------------------------------------
def _fused_mlp_kernel(
    x_ref,                                   # (bp, in_p) f32, VMEM
    w1h, b1h, w2h, b2h, w3h, b3h, w4h, b4h,  # HBM refs (pl.ANY)
    o_ref,                                   # (bp, out_p) f32, VMEM
    w1v, b1v, w2v, b2v, w3v, b3v, w4v, b4v,  # VMEM scratch
    sems,                                    # DMA semaphores, shape (8,)
):
    hbm = (w1h, b1h, w2h, b2h, w3h, b3h, w4h, b4h)
    vmem = (w1v, b1v, w2v, b2v, w3v, b3v, w4v, b4v)

    # Issue every weight/bias DMA up front; the DMA engine streams them
    # back-to-back so total time ~= HBM roofline for the ~15 MB of weights.
    copies = []
    for i in range(8):
        cp = pltpu.make_async_copy(hbm[i], vmem[i], sems.at[i])
        cp.start()
        copies.append(cp)

    act = x_ref[...].astype(jnp.bfloat16)    # cast once; stays on-chip
    for li in range(4):
        copies[2 * li].wait()
        copies[2 * li + 1].wait()
        w = vmem[2 * li][...]
        b = vmem[2 * li + 1][...]            # (1, N) f32 -> broadcasts
        y = jnp.dot(act, w, preferred_element_type=jnp.float32) + b
        if li < 3:
            act = jnp.maximum(y, 0.0).astype(jnp.bfloat16)
        else:
            o_ref[...] = y.astype(o_ref.dtype)


def fused_mlp_pallas(x_pad, layer_params):
    """x_pad: (bp, in_p) f32.  layer_params: 4 tuples (w bf16 (Kp,Np), b f32 (1,Np))."""
    assert len(layer_params) == 4
    bp, in_p = x_pad.shape
    (w1, b1), (w2, b2), (w3, b3), (w4, b4) = layer_params
    out_p = w4.shape[1]

    scratch_shapes = []
    for w, b in ((w1, b1), (w2, b2), (w3, b3), (w4, b4)):
        scratch_shapes.append(pltpu.VMEM(w.shape, w.dtype))
        scratch_shapes.append(pltpu.VMEM(b.shape, b.dtype))
    scratch_shapes.append(pltpu.SemaphoreType.DMA((8,)))

    any_spec = pl.BlockSpec(memory_space=pl.ANY)

    return pl.pallas_call(
        _fused_mlp_kernel,
        out_shape=jax.ShapeDtypeStruct((bp, out_p), jnp.float32),
        grid_spec=pltpu.PrefetchScalarGridSpec(
            num_scalar_prefetch=0,
            grid=(1,),
            in_specs=[pl.BlockSpec((bp, in_p), lambda i: (0, 0))] + [any_spec] * 8,
            out_specs=pl.BlockSpec((bp, out_p), lambda i: (0, 0)),
            scratch_shapes=scratch_shapes,
        ),
        compiler_params=pltpu.CompilerParams(
            dimension_semantics=("arbitrary",),
            # ~15 MB of weight scratch + tiny activations; 40 MiB leaves
            # headroom yet stays under v7x's 64 MiB physical VMEM.
            vmem_limit_bytes=40 * 1024 * 1024,
        ),
    )(x_pad, w1, b1, w2, b2, w3, b3, w4, b4)


# ----------------------------------------------------------------------------
# Fallback: tiled per-layer (matmul + bias + optional ReLU) kernel.
# Used only when the fused kernel's VMEM footprint would be too large.
# ----------------------------------------------------------------------------
def _linear_kernel(x_ref, w_ref, b_ref, o_ref, *, apply_relu):
    y = jnp.dot(
        x_ref[...].astype(jnp.bfloat16),
        w_ref[...],
        preferred_element_type=jnp.float32,
    )
    y = y + b_ref[...]
    if apply_relu:
        y = jnp.maximum(y, 0.0)
    o_ref[...] = y.astype(o_ref.dtype)


def _choose_tn(K, N, itemsize, budget_bytes=5 * 1024 * 1024):
    """Largest tn (multiple of 128, divides N) with weight tile <= budget.
    Wide layers (N >= 1024) get an EVEN tile count so the parallel N axis
    splits evenly across v7x's 2 TensorCores."""
    assert N % 128 == 0, "feature dims must be padded to a multiple of 128"
    tn = N
    while tn >= 128:
        if N % tn == 0 and tn % 128 == 0:
            tile_bytes = K * tn * itemsize
            needs_even = N >= 1024
            tiles = N // tn
            if tile_bytes <= budget_bytes and (not needs_even or tiles % 2 == 0):
                return tn
        tn -= 128
    return 128


def _choose_tm(M):
    if M <= 256:
        return M
    for tm in range(256, 7, -8):
        if M % tm == 0:
            return tm
    return 8


def linear_pallas(x, w, b, *, apply_relu):
    """y = relu?(x @ w + b).  x:(M,K) f32, w:(K,N) bf16, b:(1,N) f32."""
    M, K = x.shape
    K2, N = w.shape
    assert K == K2 and b.shape == (1, N)

    tm = _choose_tm(M)
    tn = _choose_tn(K, N, w.dtype.itemsize)
    assert M % tm == 0 and N % tn == 0

    grid = (M // tm, N // tn)
    kernel = functools.partial(_linear_kernel, apply_relu=apply_relu)

    return pl.pallas_call(
        kernel,
        out_shape=jax.ShapeDtypeStruct((M, N), jnp.float32),
        grid_spec=pltpu.PrefetchScalarGridSpec(
            num_scalar_prefetch=0,
            grid=grid,
            in_specs=[
                pl.BlockSpec((tm, K), lambda i, j: (i, 0)),   # x: full-K row slab
                pl.BlockSpec((K, tn), lambda i, j: (0, j)),   # weight column slab
                pl.BlockSpec((1, tn), lambda i, j: (0, j)),   # bias slab
            ],
            out_specs=pl.BlockSpec((tm, tn), lambda i, j: (i, j)),
        ),
        compiler_params=pltpu.CompilerParams(
            dimension_semantics=("parallel", "parallel"),
            vmem_limit_bytes=32 * 1024 * 1024,
        ),
    )(x, w, b)


# ----------------------------------------------------------------------------
# Net: parameter construction + forward
# ----------------------------------------------------------------------------
def _round_up(v, m):
    return (v + m - 1) // m * m


def init_net_params(key, inputdim, outputdim):
    """Deterministic init.  Weights stored (in, out) in bf16, zero-padded to
    multiples of 128 on both feature axes; biases kept in f32.
    NOTE: bf16 weights/activations are a deliberate precision tradeoff vs the
    f32 PyTorch Net (validated against a matching bf16 reference below)."""
    dims = [inputdim, 800, 3000, 1500, outputdim]
    params = []
    for li in range(4):
        kin, kout = dims[li], dims[li + 1]
        kin_p, kout_p = _round_up(kin, 128), _round_up(kout, 128)
        key, kw, kb = jax.random.split(key, 3)
        scale = 1.0 / jnp.sqrt(jnp.float32(kin))
        w = jax.random.uniform(kw, (kin, kout), jnp.float32, -scale, scale)
        b = jax.random.uniform(kb, (kout,), jnp.float32, -scale, scale)
        w_p = (
            jnp.zeros((kin_p, kout_p), jnp.float32).at[:kin, :kout].set(w)
        ).astype(jnp.bfloat16)
        b_p = jnp.zeros((1, kout_p), jnp.float32).at[0, :kout].set(b)
        params.append((w_p, b_p, kout))
    return params


def net_forward(params, x, *, force_tiled=False):
    """x: (batch, inputdim) f32 -> (batch, outputdim) f32."""
    batch, inputdim = x.shape
    batch_p = max(_round_up(batch, 8), 8)
    in_p = _round_up(inputdim, 128)

    h = jnp.zeros((batch_p, in_p), jnp.float32).at[:batch, :inputdim].set(x)

    # Fused single-call path whenever all weights fit comfortably in VMEM.
    weight_bytes = sum(
        w.size * w.dtype.itemsize + b.size * b.dtype.itemsize
        for (w, b, _) in params
    )
    use_fused = (not force_tiled) and weight_bytes <= 28 * 1024 * 1024

    if use_fused:
        out = fused_mlp_pallas(h, [(w, b) for (w, b, _) in params])
    else:
        for li, (w, b, _) in enumerate(params):
            h = linear_pallas(h, w, b, apply_relu=(li < len(params) - 1))
        out = h

    outputdim = params[-1][2]
    return out[:batch, :outputdim]


def net_forward_ref(params, x):
    """Pure-JAX reference performing the same math (bf16 operands, f32 acc)."""
    h = x
    num_layers = len(params)
    for li, (w, b, kout) in enumerate(params):
        kin = h.shape[1]
        h = (
            jnp.dot(
                h.astype(jnp.bfloat16),
                w[:kin, :kout],
                preferred_element_type=jnp.float32,
            )
            + b[0, :kout]
        )
        if li < num_layers - 1:
            h = jnp.maximum(h, 0.0)
    return h


# ----------------------------------------------------------------------------
if __name__ == "__main__":
    inputdim, outputdim, batch = 32, 16, 2

    key = jax.random.PRNGKey(0)
    key, kx = jax.random.split(key)
    params = init_net_params(key, inputdim, outputdim)
    x = jax.random.normal(kx, (batch, inputdim), jnp.float32)

    # Primary (fused single pallas_call) path.
    y_fused = jax.block_until_ready(net_forward(params, x))
    # Fallback (tiled per-layer) path, exercised for coverage.
    y_tiled = jax.block_until_ready(net_forward(params, x, force_tiled=True))

    y_ref = net_forward_ref(params, x)

    assert y_fused.shape == (batch, outputdim)
    assert y_tiled.shape == (batch, outputdim)
    assert jnp.allclose(y_fused, y_ref, atol=1e-2, rtol=1e-2)
    assert jnp.allclose(y_tiled, y_ref, atol=1e-2, rtol=1e-2)

    print("KERNEL_OK")
</pallas_src>

<mosaic_0001>
module attributes {stable_mosaic.version = 11 : i64} {
  func.func @_fused_mlp_kernel(%arg0: i32, %arg1: memref<8x128xf32, #tpu.memory_space<vmem>>, %arg2: memref<128x896xbf16, #tpu.memory_space<any>>, %arg3: memref<1x896xf32, #tpu.memory_space<any>>, %arg4: memref<896x3072xbf16, #tpu.memory_space<any>>, %arg5: memref<1x3072xf32, #tpu.memory_space<any>>, %arg6: memref<3072x1536xbf16, #tpu.memory_space<any>>, %arg7: memref<1x1536xf32, #tpu.memory_space<any>>, %arg8: memref<1536x128xbf16, #tpu.memory_space<any>>, %arg9: memref<1x128xf32, #tpu.memory_space<any>>, %arg10: memref<8x128xf32, #tpu.memory_space<vmem>>, %arg11: memref<128x896xbf16, #tpu.memory_space<vmem>>, %arg12: memref<1x896xf32, #tpu.memory_space<vmem>>, %arg13: memref<896x3072xbf16, #tpu.memory_space<vmem>>, %arg14: memref<1x3072xf32, #tpu.memory_space<vmem>>, %arg15: memref<3072x1536xbf16, #tpu.memory_space<vmem>>, %arg16: memref<1x1536xf32, #tpu.memory_space<vmem>>, %arg17: memref<1536x128xbf16, #tpu.memory_space<vmem>>, %arg18: memref<1x128xf32, #tpu.memory_space<vmem>>, %arg19: memref<8x!tpu.dma_semaphore, #tpu.memory_space<semaphore_mem>>) attributes {dimension_semantics = [#tpu.dimension_semantics<arbitrary>], iteration_bounds = array<i64: 1>, scalar_prefetch = 0 : i64, scratch_operands = 9 : i64, tpu.core_type = #tpu.core_type<tc>, window_params = [{pipeline_mode = #tpu.pipeline_mode<synchronous>, transform_indices = @transform_0, window_bounds = array<i64: 8, 128>}, {}, {}, {}, {}, {}, {}, {}, {}, {pipeline_mode = #tpu.pipeline_mode<synchronous>, transform_indices = @transform_9, window_bounds = array<i64: 8, 128>}]} {
    %c0_i32 = arith.constant 0 : i32
    %0 = tpu.memref_slice %arg19[%c0_i32] : memref<8x!tpu.dma_semaphore, #tpu.memory_space<semaphore_mem>> -> memref<1x!tpu.dma_semaphore, #tpu.memory_space<semaphore_mem>>
    %1 = tpu.memref_squeeze %0 : memref<1x!tpu.dma_semaphore, #tpu.memory_space<semaphore_mem>> -> memref<!tpu.dma_semaphore, #tpu.memory_space<semaphore_mem>>
    tpu.enqueue_dma source(%arg2 : memref<128x896xbf16, #tpu.memory_space<any>>) target(%arg11 : memref<128x896xbf16, #tpu.memory_space<vmem>>) target_semaphore(%1 : memref<!tpu.dma_semaphore, #tpu.memory_space<semaphore_mem>>)
    %c1_i32 = arith.constant 1 : i32
    %2 = tpu.memref_slice %arg19[%c1_i32] : memref<8x!tpu.dma_semaphore, #tpu.memory_space<semaphore_mem>> -> memref<1x!tpu.dma_semaphore, #tpu.memory_space<semaphore_mem>>
    %3 = tpu.memref_squeeze %2 : memref<1x!tpu.dma_semaphore, #tpu.memory_space<semaphore_mem>> -> memref<!tpu.dma_semaphore, #tpu.memory_space<semaphore_mem>>
    tpu.enqueue_dma source(%arg3 : memref<1x896xf32, #tpu.memory_space<any>>) target(%arg12 : memref<1x896xf32, #tpu.memory_space<vmem>>) target_semaphore(%3 : memref<!tpu.dma_semaphore, #tpu.memory_space<semaphore_mem>>)
    %c2_i32 = arith.constant 2 : i32
    %4 = tpu.memref_slice %arg19[%c2_i32] : memref<8x!tpu.dma_semaphore, #tpu.memory_space<semaphore_mem>> -> memref<1x!tpu.dma_semaphore, #tpu.memory_space<semaphore_mem>>
    %5 = tpu.memref_squeeze %4 : memref<1x!tpu.dma_semaphore, #tpu.memory_space<semaphore_mem>> -> memref<!tpu.dma_semaphore, #tpu.memory_space<semaphore_mem>>
    tpu.enqueue_dma source(%arg4 : memref<896x3072xbf16, #tpu.memory_space<any>>) target(%arg13 : memref<896x3072xbf16, #tpu.memory_space<vmem>>) target_semaphore(%5 : memref<!tpu.dma_semaphore, #tpu.memory_space<semaphore_mem>>)
    %c3_i32 = arith.constant 3 : i32
    %6 = tpu.memref_slice %arg19[%c3_i32] : memref<8x!tpu.dma_semaphore, #tpu.memory_space<semaphore_mem>> -> memref<1x!tpu.dma_semaphore, #tpu.memory_space<semaphore_mem>>
    %7 = tpu.memref_squeeze %6 : memref<1x!tpu.dma_semaphore, #tpu.memory_space<semaphore_mem>> -> memref<!tpu.dma_semaphore, #tpu.memory_space<semaphore_mem>>
    tpu.enqueue_dma source(%arg5 : memref<1x3072xf32, #tpu.memory_space<any>>) target(%arg14 : memref<1x3072xf32, #tpu.memory_space<vmem>>) target_semaphore(%7 : memref<!tpu.dma_semaphore, #tpu.memory_space<semaphore_mem>>)
    %c4_i32 = arith.constant 4 : i32
    %8 = tpu.memref_slice %arg19[%c4_i32] : memref<8x!tpu.dma_semaphore, #tpu.memory_space<semaphore_mem>> -> memref<1x!tpu.dma_semaphore, #tpu.memory_space<semaphore_mem>>
    %9 = tpu.memref_squeeze %8 : memref<1x!tpu.dma_semaphore, #tpu.memory_space<semaphore_mem>> -> memref<!tpu.dma_semaphore, #tpu.memory_space<semaphore_mem>>
    tpu.enqueue_dma source(%arg6 : memref<3072x1536xbf16, #tpu.memory_space<any>>) target(%arg15 : memref<3072x1536xbf16, #tpu.memory_space<vmem>>) target_semaphore(%9 : memref<!tpu.dma_semaphore, #tpu.memory_space<semaphore_mem>>)
    %c5_i32 = arith.constant 5 : i32
    %10 = tpu.memref_slice %arg19[%c5_i32] : memref<8x!tpu.dma_semaphore, #tpu.memory_space<semaphore_mem>> -> memref<1x!tpu.dma_semaphore, #tpu.memory_space<semaphore_mem>>
    %11 = tpu.memref_squeeze %10 : memref<1x!tpu.dma_semaphore, #tpu.memory_space<semaphore_mem>> -> memref<!tpu.dma_semaphore, #tpu.memory_space<semaphore_mem>>
    tpu.enqueue_dma source(%arg7 : memref<1x1536xf32, #tpu.memory_space<any>>) target(%arg16 : memref<1x1536xf32, #tpu.memory_space<vmem>>) target_semaphore(%11 : memref<!tpu.dma_semaphore, #tpu.memory_space<semaphore_mem>>)
    %c6_i32 = arith.constant 6 : i32
    %12 = tpu.memref_slice %arg19[%c6_i32] : memref<8x!tpu.dma_semaphore, #tpu.memory_space<semaphore_mem>> -> memref<1x!tpu.dma_semaphore, #tpu.memory_space<semaphore_mem>>
    %13 = tpu.memref_squeeze %12 : memref<1x!tpu.dma_semaphore, #tpu.memory_space<semaphore_mem>> -> memref<!tpu.dma_semaphore, #tpu.memory_space<semaphore_mem>>
    tpu.enqueue_dma source(%arg8 : memref<1536x128xbf16, #tpu.memory_space<any>>) target(%arg17 : memref<1536x128xbf16, #tpu.memory_space<vmem>>) target_semaphore(%13 : memref<!tpu.dma_semaphore, #tpu.memory_space<semaphore_mem>>)
    %c7_i32 = arith.constant 7 : i32
    %14 = tpu.memref_slice %arg19[%c7_i32] : memref<8x!tpu.dma_semaphore, #tpu.memory_space<semaphore_mem>> -> memref<1x!tpu.dma_semaphore, #tpu.memory_space<semaphore_mem>>
    %15 = tpu.memref_squeeze %14 : memref<1x!tpu.dma_semaphore, #tpu.memory_space<semaphore_mem>> -> memref<!tpu.dma_semaphore, #tpu.memory_space<semaphore_mem>>
    tpu.enqueue_dma source(%arg9 : memref<1x128xf32, #tpu.memory_space<any>>) target(%arg18 : memref<1x128xf32, #tpu.memory_space<vmem>>) target_semaphore(%15 : memref<!tpu.dma_semaphore, #tpu.memory_space<semaphore_mem>>)
    %c0 = arith.constant 0 : index
    %c0_0 = arith.constant 0 : index
    %16 = vector.load %arg1[%c0, %c0_0] : memref<8x128xf32, #tpu.memory_space<vmem>>, vector<8x128xf32>
    %17 = arith.truncf %16 : vector<8x128xf32> to vector<8x128xbf16>
    %c0_i32_1 = arith.constant 0 : i32
    %18 = tpu.memref_slice %arg19[%c0_i32_1] : memref<8x!tpu.dma_semaphore, #tpu.memory_space<semaphore_mem>> -> memref<1x!tpu.dma_semaphore, #tpu.memory_space<semaphore_mem>>
    %19 = tpu.memref_squeeze %18 : memref<1x!tpu.dma_semaphore, #tpu.memory_space<semaphore_mem>> -> memref<!tpu.dma_semaphore, #tpu.memory_space<semaphore_mem>>
    tpu.wait_dma2 semaphore(%19 : memref<!tpu.dma_semaphore, #tpu.memory_space<semaphore_mem>>) src(%arg2 : memref<128x896xbf16, #tpu.memory_space<any>>) dst(%arg11 : memref<128x896xbf16, #tpu.memory_space<vmem>>)
    %c1_i32_2 = arith.constant 1 : i32
    %20 = tpu.memref_slice %arg19[%c1_i32_2] : memref<8x!tpu.dma_semaphore, #tpu.memory_space<semaphore_mem>> -> memref<1x!tpu.dma_semaphore, #tpu.memory_space<semaphore_mem>>
    %21 = tpu.memref_squeeze %20 : memref<1x!tpu.dma_semaphore, #tpu.memory_space<semaphore_mem>> -> memref<!tpu.dma_semaphore, #tpu.memory_space<semaphore_mem>>
    tpu.wait_dma2 semaphore(%21 : memref<!tpu.dma_semaphore, #tpu.memory_space<semaphore_mem>>) src(%arg3 : memref<1x896xf32, #tpu.memory_space<any>>) dst(%arg12 : memref<1x896xf32, #tpu.memory_space<vmem>>)
    %c0_3 = arith.constant 0 : index
    %c0_4 = arith.constant 0 : index
    %22 = vector.load %arg11[%c0_3, %c0_4] : memref<128x896xbf16, #tpu.memory_space<vmem>>, vector<128x896xbf16>
    %c0_5 = arith.constant 0 : index
    %c0_6 = arith.constant 0 : index
    %23 = vector.load %arg12[%c0_5, %c0_6] : memref<1x896xf32, #tpu.memory_space<vmem>>, vector<1x896xf32>
    %cst = arith.constant dense<0.000000e+00> : vector<8x896xf32>
    %24 = tpu.matmul %17, %22, %cst {dimension_numbers = #tpu.dot_dimension_numbers<[1], [0], [0], [1], [0, 0, 1, 1], [], []>} : vector<8x128xbf16>, vector<128x896xbf16>, vector<8x896xf32> -> vector<8x896xf32>
    %25 = vector.broadcast %23 : vector<1x896xf32> to vector<8x896xf32>
    %26 = arith.addf %24, %25 : vector<8x896xf32>
    %cst_7 = arith.constant 0.000000e+00 : f32
    %27 = vector.broadcast %cst_7 : f32 to vector<8x896xf32>
    %28 = arith.maximumf %26, %27 : vector<8x896xf32>
    %29 = arith.truncf %28 : vector<8x896xf32> to vector<8x896xbf16>
    %c2_i32_8 = arith.constant 2 : i32
    %30 = tpu.memref_slice %arg19[%c2_i32_8] : memref<8x!tpu.dma_semaphore, #tpu.memory_space<semaphore_mem>> -> memref<1x!tpu.dma_semaphore, #tpu.memory_space<semaphore_mem>>
    %31 = tpu.memref_squeeze %30 : memref<1x!tpu.dma_semaphore, #tpu.memory_space<semaphore_mem>> -> memref<!tpu.dma_semaphore, #tpu.memory_space<semaphore_mem>>
    tpu.wait_dma2 semaphore(%31 : memref<!tpu.dma_semaphore, #tpu.memory_space<semaphore_mem>>) src(%arg4 : memref<896x3072xbf16, #tpu.memory_space<any>>) dst(%arg13 : memref<896x3072xbf16, #tpu.memory_space<vmem>>)
    %c3_i32_9 = arith.constant 3 : i32
    %32 = tpu.memref_slice %arg19[%c3_i32_9] : memref<8x!tpu.dma_semaphore, #tpu.memory_space<semaphore_mem>> -> memref<1x!tpu.dma_semaphore, #tpu.memory_space<semaphore_mem>>
    %33 = tpu.memref_squeeze %32 : memref<1x!tpu.dma_semaphore, #tpu.memory_space<semaphore_mem>> -> memref<!tpu.dma_semaphore, #tpu.memory_space<semaphore_mem>>
    tpu.wait_dma2 semaphore(%33 : memref<!tpu.dma_semaphore, #tpu.memory_space<semaphore_mem>>) src(%arg5 : memref<1x3072xf32, #tpu.memory_space<any>>) dst(%arg14 : memref<1x3072xf32, #tpu.memory_space<vmem>>)
    %c0_10 = arith.constant 0 : index
    %c0_11 = arith.constant 0 : index
    %34 = vector.load %arg13[%c0_10, %c0_11] : memref<896x3072xbf16, #tpu.memory_space<vmem>>, vector<896x3072xbf16>
    %c0_12 = arith.constant 0 : index
    %c0_13 = arith.constant 0 : index
    %35 = vector.load %arg14[%c0_12, %c0_13] : memref<1x3072xf32, #tpu.memory_space<vmem>>, vector<1x3072xf32>
    %cst_14 = arith.constant dense<0.000000e+00> : vector<8x3072xf32>
    %36 = tpu.matmul %29, %34, %cst_14 {dimension_numbers = #tpu.dot_dimension_numbers<[1], [0], [0], [1], [0, 0, 1, 1], [], []>} : vector<8x896xbf16>, vector<896x3072xbf16>, vector<8x3072xf32> -> vector<8x3072xf32>
    %37 = vector.broadcast %35 : vector<1x3072xf32> to vector<8x3072xf32>
    %38 = arith.addf %36, %37 : vector<8x3072xf32>
    %cst_15 = arith.constant 0.000000e+00 : f32
    %39 = vector.broadcast %cst_15 : f32 to vector<8x3072xf32>
    %40 = arith.maximumf %38, %39 : vector<8x3072xf32>
    %41 = arith.truncf %40 : vector<8x3072xf32> to vector<8x3072xbf16>
    %c4_i32_16 = arith.constant 4 : i32
    %42 = tpu.memref_slice %arg19[%c4_i32_16] : memref<8x!tpu.dma_semaphore, #tpu.memory_space<semaphore_mem>> -> memref<1x!tpu.dma_semaphore, #tpu.memory_space<semaphore_mem>>
    %43 = tpu.memref_squeeze %42 : memref<1x!tpu.dma_semaphore, #tpu.memory_space<semaphore_mem>> -> memref<!tpu.dma_semaphore, #tpu.memory_space<semaphore_mem>>
    tpu.wait_dma2 semaphore(%43 : memref<!tpu.dma_semaphore, #tpu.memory_space<semaphore_mem>>) src(%arg6 : memref<3072x1536xbf16, #tpu.memory_space<any>>) dst(%arg15 : memref<3072x1536xbf16, #tpu.memory_space<vmem>>)
    %c5_i32_17 = arith.constant 5 : i32
    %44 = tpu.memref_slice %arg19[%c5_i32_17] : memref<8x!tpu.dma_semaphore, #tpu.memory_space<semaphore_mem>> -> memref<1x!tpu.dma_semaphore, #tpu.memory_space<semaphore_mem>>
    %45 = tpu.memref_squeeze %44 : memref<1x!tpu.dma_semaphore, #tpu.memory_space<semaphore_mem>> -> memref<!tpu.dma_semaphore, #tpu.memory_space<semaphore_mem>>
    tpu.wait_dma2 semaphore(%45 : memref<!tpu.dma_semaphore, #tpu.memory_space<semaphore_mem>>) src(%arg7 : memref<1x1536xf32, #tpu.memory_space<any>>) dst(%arg16 : memref<1x1536xf32, #tpu.memory_space<vmem>>)
    %c0_18 = arith.constant 0 : index
    %c0_19 = arith.constant 0 : index
    %46 = vector.load %arg15[%c0_18, %c0_19] : memref<3072x1536xbf16, #tpu.memory_space<vmem>>, vector<3072x1536xbf16>
    %c0_20 = arith.constant 0 : index
    %c0_21 = arith.constant 0 : index
    %47 = vector.load %arg16[%c0_20, %c0_21] : memref<1x1536xf32, #tpu.memory_space<vmem>>, vector<1x1536xf32>
    %cst_22 = arith.constant dense<0.000000e+00> : vector<8x1536xf32>
    %48 = tpu.matmul %41, %46, %cst_22 {dimension_numbers = #tpu.dot_dimension_numbers<[1], [0], [0], [1], [0, 0, 1, 1], [], []>} : vector<8x3072xbf16>, vector<3072x1536xbf16>, vector<8x1536xf32> -> vector<8x1536xf32>
    %49 = vector.broadcast %47 : vector<1x1536xf32> to vector<8x1536xf32>
    %50 = arith.addf %48, %49 : vector<8x1536xf32>
    %cst_23 = arith.constant 0.000000e+00 : f32
    %51 = vector.broadcast %cst_23 : f32 to vector<8x1536xf32>
    %52 = arith.maximumf %50, %51 : vector<8x1536xf32>
    %53 = arith.truncf %52 : vector<8x1536xf32> to vector<8x1536xbf16>
    %c6_i32_24 = arith.constant 6 : i32
    %54 = tpu.memref_slice %arg19[%c6_i32_24] : memref<8x!tpu.dma_semaphore, #tpu.memory_space<semaphore_mem>> -> memref<1x!tpu.dma_semaphore, #tpu.memory_space<semaphore_mem>>
    %55 = tpu.memref_squeeze %54 : memref<1x!tpu.dma_semaphore, #tpu.memory_space<semaphore_mem>> -> memref<!tpu.dma_semaphore, #tpu.memory_space<semaphore_mem>>
    tpu.wait_dma2 semaphore(%55 : memref<!tpu.dma_semaphore, #tpu.memory_space<semaphore_mem>>) src(%arg8 : memref<1536x128xbf16, #tpu.memory_space<any>>) dst(%arg17 : memref<1536x128xbf16, #tpu.memory_space<vmem>>)
    %c7_i32_25 = arith.constant 7 : i32
    %56 = tpu.memref_slice %arg19[%c7_i32_25] : memref<8x!tpu.dma_semaphore, #tpu.memory_space<semaphore_mem>> -> memref<1x!tpu.dma_semaphore, #tpu.memory_space<semaphore_mem>>
    %57 = tpu.memref_squeeze %56 : memref<1x!tpu.dma_semaphore, #tpu.memory_space<semaphore_mem>> -> memref<!tpu.dma_semaphore, #tpu.memory_space<semaphore_mem>>
    tpu.wait_dma2 semaphore(%57 : memref<!tpu.dma_semaphore, #tpu.memory_space<semaphore_mem>>) src(%arg9 : memref<1x128xf32, #tpu.memory_space<any>>) dst(%arg18 : memref<1x128xf32, #tpu.memory_space<vmem>>)
    %c0_26 = arith.constant 0 : index
    %c0_27 = arith.constant 0 : index
    %58 = vector.load %arg17[%c0_26, %c0_27] : memref<1536x128xbf16, #tpu.memory_space<vmem>>, vector<1536x128xbf16>
    %c0_28 = arith.constant 0 : index
    %c0_29 = arith.constant 0 : index
    %59 = vector.load %arg18[%c0_28, %c0_29] : memref<1x128xf32, #tpu.memory_space<vmem>>, vector<1x128xf32>
    %cst_30 = arith.constant dense<0.000000e+00> : vector<8x128xf32>
    %60 = tpu.matmul %53, %58, %cst_30 {dimension_numbers = #tpu.dot_dimension_numbers<[1], [0], [0], [1], [0, 0, 1, 1], [], []>} : vector<8x1536xbf16>, vector<1536x128xbf16>, vector<8x128xf32> -> vector<8x128xf32>
    %61 = vector.broadcast %59 : vector<1x128xf32> to vector<8x128xf32>
    %62 = arith.addf %60, %61 : vector<8x128xf32>
    %c0_31 = arith.constant 0 : index
    %c0_32 = arith.constant 0 : index
    %63 = vector.load %arg10[%c0_31, %c0_32] : memref<8x128xf32, #tpu.memory_space<vmem>>, vector<8x128xf32>
    tpu.vector_store %arg10[%c0_31, %c0_32], %62 {strides = array<i32>} : memref<8x128xf32, #tpu.memory_space<vmem>>, vector<8x128xf32>,
    return
  }
  func.func @transform_0(%arg0: i32) -> (i32, i32) {
    %c0_i32 = arith.constant 0 : i32
    %c0_i32_0 = arith.constant 0 : i32
    %c0_i32_1 = arith.constant 0 : i32
    return %c0_i32, %c0_i32_0 : i32, i32
  }
  func.func @transform_9(%arg0: i32) -> (i32, i32) {
    %c0_i32 = arith.constant 0 : i32
    %c0_i32_0 = arith.constant 0 : i32
    %c0_i32_1 = arith.constant 0 : i32
    return %c0_i32, %c0_i32_0 : i32, i32
  }
}

</mosaic_0001>

<llo_original>
// kernel: tpu_custom_call.1
$region0: #{tpu_custom_call.1}
  #allocation0 [shape = 'u32[]', space=smem, size = 0x4, offset = 0x4, fixed_abs, tag = 'smem constant byte address 0x4 - core index']
  #allocation1 [shape = 'u32[144,128]{1,0:T(1,128)}', space=vmem, size = 0x12000, scoped, tag = 'internal scratch']
  #allocation2 [shape = 'bf16[128,896]{1,0:T(16,128)(2,1)}', space=vmem, size = 0x38000, scoped, tag = 'scratch operand']
  #allocation3 [shape = 'f32[1,896]{1,0:T(1,128)}', space=vmem, size = 0xe00, scoped, tag = 'scratch operand']
  #allocation4 [shape = 'bf16[896,3072]{1,0:T(16,128)(2,1)}', space=vmem, size = 0x540000, scoped, tag = 'scratch operand']
  #allocation5 [shape = 'f32[1,3072]{1,0:T(1,128)}', space=vmem, size = 0x3000, scoped, tag = 'scratch operand']
  #allocation6 [shape = 'bf16[3072,1536]{1,0:T(16,128)(2,1)}', space=vmem, size = 0x900000, scoped, tag = 'scratch operand']
  #allocation7 [shape = 'f32[1,1536]{1,0:T(1,128)}', space=vmem, size = 0x1800, scoped, tag = 'scratch operand']
  #allocation8 [shape = 'bf16[1536,128]{1,0:T(16,128)(2,1)}', space=vmem, size = 0x60000, scoped, tag = 'scratch operand']
  #allocation9 [shape = 'f32[1,128]{1,0:T(1,128)}', space=vmem, size = 0x200, scoped, tag = 'scratch operand']
  #allocation10 [shape = 's32[8]{0}', space=sflag, size = 0x20, scoped, tag = 'scratch operand']
  #allocation15 [shape = 's32[]', space=sflag, size = 0x4, offset = 0, fixed_abs, tag = 'sflag constant byte address 0x0 - dummy sync flag']
  #allocation17 [shape = 's32[]', space=sflag, size = 0x4, offset = 0, fixed_abs, tag = 'sflag constant byte address 0x0 - dummy sync flag']
  #allocation18 [shape = 's32[]', space=sflag, size = 0x4, offset = 0, fixed_abs, tag = 'sflag constant byte address 0x0 - dummy sync flag']
  #allocation19 [shape = 'u32[]', space=smem, size = 0x4, offset = 0x44, fixed_abs, tag = 'smem constant byte address 0x44 - assertion arg 0']
  #allocation20 [shape = 'u32[]', space=smem, size = 0x4, offset = 0x48, fixed_abs, tag = 'smem constant byte address 0x48 - assertion arg 1']
  #allocation21 [shape = 's32[]', space=sflag, size = 0x4, offset = 0, fixed_abs, tag = 'sflag constant byte address 0x0 - dummy sync flag']
  #allocation23 [shape = 's32[]', space=sflag, size = 0x4, offset = 0, fixed_abs, tag = 'sflag constant byte address 0x0 - dummy sync flag']
  #allocation24 [shape = 's32[]', space=sflag, size = 0x4, offset = 0, fixed_abs, tag = 'sflag constant byte address 0x0 - dummy sync flag']
  #allocation25 [shape = 's32[]', space=sflag, size = 0x4, offset = 0, fixed_abs, tag = 'sflag constant byte address 0x0 - dummy sync flag']
  #allocation27 [shape = 's32[]', space=sflag, size = 0x4, offset = 0, fixed_abs, tag = 'sflag constant byte address 0x0 - dummy sync flag']
  #allocation28 [shape = 's32[]', space=sflag, size = 0x4, offset = 0, fixed_abs, tag = 'sflag constant byte address 0x0 - dummy sync flag']
  #allocation29 [shape = 's32[]', space=sflag, size = 0x4, offset = 0, fixed_abs, tag = 'sflag constant byte address 0x0 - dummy sync flag']
  #allocation30 [shape = 's32[]', space=sflag, size = 0x4, offset = 0, fixed_abs, tag = 'sflag constant byte address 0x0 - dummy sync flag']
  #allocation31 [shape = 's32[]', space=sflag, size = 0x4, offset = 0, fixed_abs, tag = 'sflag constant byte address 0x0 - dummy sync flag']
  #allocation32 [shape = 's32[]', space=sflag, size = 0x4, offset = 0, fixed_abs, tag = 'sflag constant byte address 0x0 - dummy sync flag']
  %s0 = inlined_call_operand.hbm [shape: f32[8,128], index: 0, kind: input, shape index: {}]
  %s1 = inlined_call_operand.hbm [shape: bf16[128,896], index: 1, kind: input, shape index: {}]
  %s2 = inlined_call_operand.hbm [shape: f32[1,896], index: 2, kind: input, shape index: {}]
  %s3 = inlined_call_operand.hbm [shape: bf16[896,3072], index: 3, kind: input, shape index: {}]
  %s4 = inlined_call_operand.hbm [shape: f32[1,3072], index: 4, kind: input, shape index: {}]
  %s5 = inlined_call_operand.hbm [shape: bf16[3072,1536], index: 5, kind: input, shape index: {}]
  %s6 = inlined_call_operand.hbm [shape: f32[1,1536], index: 6, kind: input, shape index: {}]
  %s7 = inlined_call_operand.hbm [shape: bf16[1536,128], index: 7, kind: input, shape index: {}]
  %s8 = inlined_call_operand.hbm [shape: f32[1,128], index: 8, kind: input, shape index: {}]
  %s9 = inlined_call_operand.hbm [shape: f32[8,128], index: 9, kind: output, shape index: {}]
  %s10 = sld [smem:[#allocation0]]
  $region38: #{tpu_custom_call.1} parent=0
    _
  %s12 = ssub.s32 1, %s10
  %s13 = scalar_select 0, %s12, %s10
  $region1: #{tpu_custom_call.1} parent=0
    #allocation11 [shape = 'u8[4096]{0}', space=vmem, size = 0x1000, scoped, tag = 'input window, operand 0, single buffered']
    #allocation12 [shape = 's32[1]{0}', space=sflag, size = 0x4, scoped, tag = 'scoped memory for tpu_custom_call.1']
    #allocation13 [shape = 's32[1]{0}', space=sflag, size = 0x4, scoped, tag = 'scoped memory for tpu_custom_call.1']
    #allocation14 [shape = 'u8[4096]{0}', space=vmem, size = 0x1000, scoped, tag = 'output window, operand 0, single buffered']
    #allocation16 [shape = 'u32[9]{0}', space=smem, size = 0x24, scoped, tag = 'DMA stride descriptor']
    #allocation22 [shape = 'u32[9]{0}', space=smem, size = 0x24, scoped, tag = 'DMA stride descriptor']
    #allocation26 [shape = 'u32[9]{0}', space=smem, size = 0x24, scoped, tag = 'DMA stride descriptor']
    %14 = vsyncpa [#allocation12], 0
    %15 = vsyncpa [#allocation13], 0
    // Predicated region
    $region2: #{tpu_custom_call.1} parent=1 // pred_check
      _
    $region3: #{tpu_custom_call.1} parent=1 // pred_check_branch
      %17 = sbr.rel (0) target = $region5
    $region4: #{tpu_custom_call.1} parent=1 // pred_region
      %s19 = ssub.s32 128, 128
      %20 = vsyncadd [#allocation12], %s19
      %s22 = sshll.u32 [#allocation11], 4
      %s23 = int_to_ptr.vmem [resolvable:$true] %s22
      %25 = dma.hbm_to_vmem [thread:$0]  %s0, 128, %s23, [#allocation12]
    $region5: #{tpu_custom_call.1} parent=1 // pred_fallthru
      _
    // Predicated region
    $region6: #{tpu_custom_call.1} parent=1 // pred_check
      _
    $region7: #{tpu_custom_call.1} parent=1 // pred_check_branch
      %27 = sbr.rel (0) target = $region9
    $region8: #{tpu_custom_call.1} parent=1 // pred_region
      %28 = dma.done [#allocation12], 128
    $region9: #{tpu_custom_call.1} parent=1 // pred_fallthru
      _
    %s31 = sshll.u32 1, 14
    %s32 = sxor.u32 4294967295, %s31
    %s34 = sld [smem:[#allocation0]]
    %s35 = sadd.s32 2, %s34
    %s37 = sshll.u32 7, 26
    %s38 = sxor.u32 4294967295, %s37
    %s39 = sand.u32 0, %s38
    %s40 = sshll.u32 %s35, 26
    %s41 = sor.u32 %s39, %s40
    %s42 = sshll.u32 [#allocation2], 4
    %s43 = int_to_ptr.vmem [resolvable:$true] %s42
    %46 = sst [smem:[#allocation16]] 896
    %s47 = scalar_lea.smem [#allocation16], 1
    %48 = sst [smem:[%s47]] 896
    %s49 = scalar_lea.smem [#allocation16], 2
    %50 = sst [smem:[%s49]] 7
    %s51 = scalar_lea.smem [#allocation16], 3
    %52 = sst [smem:[%s51]] 64
    %s53 = scalar_lea.smem [#allocation16], 4
    %54 = sst [smem:[%s53]] 128
    %s55 = scalar_lea.smem [#allocation16], 5
    %56 = sst [smem:[%s55]] 2
    %s57 = scalar_lea.smem [#allocation16], 6
    %58 = sst [smem:[%s57]] 448
    %s59 = scalar_lea.smem [#allocation16], 7
    %60 = sst [smem:[%s59]] 64
    %s61 = scalar_lea.smem [#allocation16], 8
    %62 = sst [smem:[%s61]] 4
    %64 = dma.general %s1, 7168, %s43, [#allocation10], [#allocation15], [#allocation16], %s41, 0
    %s65 = scalar_lea.sflag [#allocation10], 1
    // Predicated region
    $region10: #{tpu_custom_call.1} parent=1 // pred_check
      _
    $region11: #{tpu_custom_call.1} parent=1 // pred_check_branch
      %67 = sbr.rel target = $region13
    $region12: #{tpu_custom_call.1} parent=1 // pred_region
      %68 = sst [smem:[#allocation19]] [#allocation18]
      %69 = sst [smem:[#allocation20]] [#allocation17]
    $region13: #{tpu_custom_call.1} parent=1 // pred_fallthru
      _
    %71 = shalt.err (0)
    %s73 = sshll.u32 [#allocation3], 4
    %s74 = int_to_ptr.vmem [resolvable:$true] %s73
    %76 = dma.hbm_to_vmem [thread:$0]  %s2, 112, %s74, %s65
    %s77 = scalar_lea.sflag [#allocation10], 2
    %s79 = sshll.u32 1, 14
    %s80 = sxor.u32 4294967295, %s79
    %s82 = sadd.s32 2, %s34
    %s84 = sshll.u32 7, 26
    %s85 = sxor.u32 4294967295, %s84
    %s86 = sand.u32 0, %s85
    %s87 = sshll.u32 %s82, 26
    %s88 = sor.u32 %s86, %s87
    %s89 = sshll.u32 [#allocation4], 4
    %s90 = int_to_ptr.vmem [resolvable:$true] %s89
    %93 = sst [smem:[#allocation22]] 3072
    %s94 = scalar_lea.smem [#allocation22], 1
    %95 = sst [smem:[%s94]] 3072
    %s96 = scalar_lea.smem [#allocation22], 2
    %97 = sst [smem:[%s96]] 24
    %s98 = scalar_lea.smem [#allocation22], 3
    %99 = sst [smem:[%s98]] 64
    %s100 = scalar_lea.smem [#allocation22], 4
    %101 = sst [smem:[%s100]] 128
    %s102 = scalar_lea.smem [#allocation22], 5
    %103 = sst [smem:[%s102]] 2
    %s104 = scalar_lea.smem [#allocation22], 6
    %105 = sst [smem:[%s104]] 1536
    %s106 = scalar_lea.smem [#allocation22], 7
    %107 = sst [smem:[%s106]] 64
    %s108 = scalar_lea.smem [#allocation22], 8
    %109 = sst [smem:[%s108]] 4
    %111 = dma.general %s3, 172032, %s90, %s77, [#allocation21], [#allocation22], %s88, 0
    %s112 = scalar_lea.sflag [#allocation10], 3
    // Predicated region
    $region14: #{tpu_custom_call.1} parent=1 // pred_check
      _
    $region15: #{tpu_custom_call.1} parent=1 // pred_check_branch
      %114 = sbr.rel target = $region17
    $region16: #{tpu_custom_call.1} parent=1 // pred_region
      %115 = sst [smem:[#allocation19]] [#allocation24]
      %116 = sst [smem:[#allocation20]] [#allocation23]
    $region17: #{tpu_custom_call.1} parent=1 // pred_fallthru
      _
    %118 = shalt.err (0)
    %s120 = sshll.u32 [#allocation5], 4
    %s121 = int_to_ptr.vmem [resolvable:$true] %s120
    %123 = dma.hbm_to_vmem [thread:$0]  %s4, 384, %s121, %s112
    %s124 = scalar_lea.sflag [#allocation10], 4
    %s126 = sshll.u32 1, 14
    %s127 = sxor.u32 4294967295, %s126
    %s129 = sadd.s32 2, %s34
    %s131 = sshll.u32 7, 26
    %s132 = sxor.u32 4294967295, %s131
    %s133 = sand.u32 0, %s132
    %s134 = sshll.u32 %s129, 26
    %s135 = sor.u32 %s133, %s134
    %s136 = sshll.u32 [#allocation6], 4
    %s137 = int_to_ptr.vmem [resolvable:$true] %s136
    %140 = sst [smem:[#allocation26]] 1536
    %s141 = scalar_lea.smem [#allocation26], 1
    %142 = sst [smem:[%s141]] 1536
    %s143 = scalar_lea.smem [#allocation26], 2
    %144 = sst [smem:[%s143]] 12
    %s145 = scalar_lea.smem [#allocation26], 3
    %146 = sst [smem:[%s145]] 64
    %s147 = scalar_lea.smem [#allocation26], 4
    %148 = sst [smem:[%s147]] 128
    %s149 = scalar_lea.smem [#allocation26], 5
    %150 = sst [smem:[%s149]] 2
    %s151 = scalar_lea.smem [#allocation26], 6
    %152 = sst [smem:[%s151]] 768
    %s153 = scalar_lea.smem [#allocation26], 7
    %154 = sst [smem:[%s153]] 64
    %s155 = scalar_lea.smem [#allocation26], 8
    %156 = sst [smem:[%s155]] 4
    %158 = dma.general %s5, 294912, %s137, %s124, [#allocation25], [#allocation26], %s135, 0
    %s159 = scalar_lea.sflag [#allocation10], 5
    // Predicated region
    $region18: #{tpu_custom_call.1} parent=1 // pred_check
      _
    $region19: #{tpu_custom_call.1} parent=1 // pred_check_branch
      %161 = sbr.rel target = $region21
    $region20: #{tpu_custom_call.1} parent=1 // pred_region
      %162 = sst [smem:[#allocation19]] [#allocation28]
      %163 = sst [smem:[#allocation20]] [#allocation27]
    $region21: #{tpu_custom_call.1} parent=1 // pred_fallthru
      _
    %165 = shalt.err (0)
    %s167 = sshll.u32 [#allocation7], 4
    %s168 = int_to_ptr.vmem [resolvable:$true] %s167
    %170 = dma.hbm_to_vmem [thread:$0]  %s6, 192, %s168, %s159
    %s171 = scalar_lea.sflag [#allocation10], 6
    // Predicated region
    $region22: #{tpu_custom_call.1} parent=1 // pred_check
      _
    $region23: #{tpu_custom_call.1} parent=1 // pred_check_branch
      %173 = sbr.rel target = $region25
    $region24: #{tpu_custom_call.1} parent=1 // pred_region
      %174 = sst [smem:[#allocation19]] [#allocation30]
      %175 = sst [smem:[#allocation20]] [#allocation29]
    $region25: #{tpu_custom_call.1} parent=1 // pred_fallthru
      _
    %177 = shalt.err (0)
    %s179 = sshll.u32 [#allocation8], 4
    %s180 = int_to_ptr.vmem [resolvable:$true] %s179
    %182 = dma.hbm_to_vmem [thread:$0]  %s7, 12288, %s180, %s171
    %s183 = scalar_lea.sflag [#allocation10], 7
    // Predicated region
    $region26: #{tpu_custom_call.1} parent=1 // pred_check
      _
    $region27: #{tpu_custom_call.1} parent=1 // pred_check_branch
      %185 = sbr.rel target = $region29
    $region28: #{tpu_custom_call.1} parent=1 // pred_region
      %186 = sst [smem:[#allocation19]] [#allocation32]
      %187 = sst [smem:[#allocation20]] [#allocation31]
    $region29: #{tpu_custom_call.1} parent=1 // pred_fallthru
      _
    %189 = shalt.err (0)
    %s191 = sshll.u32 [#allocation9], 4
    %s192 = int_to_ptr.vmem [resolvable:$true] %s191
    %194 = dma.hbm_to_vmem [thread:$0]  %s8, 16, %s192, %s183
    %v195 = vld [vmem:[#allocation11] sm:$0xff]
    %v196 = vpack.c.bf16 %v195, %v195
    %s197 = smul.u32 4, 16
    %s198 = smul.u32 %s197, 7
    %s199 = sshll.u32 %s198, 4
    %200 = dma.done [#allocation10], %s199
    %s201 = smul.u32 1, 7
    %s202 = sshll.u32 %s201, 4
    %203 = dma.done %s65, %s202
    %v204 = vld [vmem:[#allocation2] sm:$0xff]
    %v205 = vld [vmem:[#allocation2 + $0x8] sm:$0xff]
    %v206 = vld [vmem:[#allocation2 + $0x10] sm:$0xff]
    %v207 = vld [vmem:[#allocation2 + $0x18] sm:$0xff]
    %v208 = vld [vmem:[#allocation2 + $0x20] sm:$0xff]
    %v209 = vld [vmem:[#allocation2 + $0x28] sm:$0xff]
    %v210 = vld [vmem:[#allocation2 + $0x30] sm:$0xff]
    %v211 = vld [vmem:[#allocation2 + $0x38] sm:$0xff]
    %v212 = vld [vmem:[#allocation2 + $0x40] sm:$0xff]
    %v213 = vld [vmem:[#allocation2 + $0x48] sm:$0xff]
    %v214 = vld [vmem:[#allocation2 + $0x50] sm:$0xff]
    %v215 = vld [vmem:[#allocation2 + $0x58] sm:$0xff]
    %v216 = vld [vmem:[#allocation2 + $0x60] sm:$0xff]
    %v217 = vld [vmem:[#allocation2 + $0x68] sm:$0xff]
    %v218 = vld [vmem:[#allocation2 + $0x70] sm:$0xff]
    %v219 = vld [vmem:[#allocation2 + $0x78] sm:$0xff]
    %v220 = vld [vmem:[#allocation2 + $0x80] sm:$0xff]
    %v221 = vld [vmem:[#allocation2 + $0x88] sm:$0xff]
    %v222 = vld [vmem:[#allocation2 + $0x90] sm:$0xff]
    %v223 = vld [vmem:[#allocation2 + $0x98] sm:$0xff]
    %v224 = vld [vmem:[#allocation2 + $0xa0] sm:$0xff]
    %v225 = vld [vmem:[#allocation2 + $0xa8] sm:$0xff]
    %v226 = vld [vmem:[#allocation2 + $0xb0] sm:$0xff]
    %v227 = vld [vmem:[#allocation2 + $0xb8] sm:$0xff]
    %v228 = vld [vmem:[#allocation2 + $0xc0] sm:$0xff]
    %v229 = vld [vmem:[#allocation2 + $0xc8] sm:$0xff]
    %v230 = vld [vmem:[#allocation2 + $0xd0] sm:$0xff]
    %v231 = vld [vmem:[#allocation2 + $0xd8] sm:$0xff]
    %v232 = vld [vmem:[#allocation2 + $0xe0] sm:$0xff]
    %v233 = vld [vmem:[#allocation2 + $0xe8] sm:$0xff]
    %v234 = vld [vmem:[#allocation2 + $0xf0] sm:$0xff]
    %v235 = vld [vmem:[#allocation2 + $0xf8] sm:$0xff]
    %v236 = vld [vmem:[#allocation2 + $0x100] sm:$0xff]
    %v237 = vld [vmem:[#allocation2 + $0x108] sm:$0xff]
    %v238 = vld [vmem:[#allocation2 + $0x110] sm:$0xff]
    %v239 = vld [vmem:[#allocation2 + $0x118] sm:$0xff]
    %v240 = vld [vmem:[#allocation2 + $0x120] sm:$0xff]
    %v241 = vld [vmem:[#allocation2 + $0x128] sm:$0xff]
    %v242 = vld [vmem:[#allocation2 + $0x130] sm:$0xff]
    %v243 = vld [vmem:[#allocation2 + $0x138] sm:$0xff]
    %v244 = vld [vmem:[#allocation2 + $0x140] sm:$0xff]
    %v245 = vld [vmem:[#allocation2 + $0x148] sm:$0xff]
    %v246 = vld [vmem:[#allocation2 + $0x150] sm:$0xff]
    %v247 = vld [vmem:[#allocation2 + $0x158] sm:$0xff]
    %v248 = vld [vmem:[#allocation2 + $0x160] sm:$0xff]
    %v249 = vld [vmem:[#allocation2 + $0x168] sm:$0xff]
    %v250 = vld [vmem:[#allocation2 + $0x170] sm:$0xff]
    %v251 = vld [vmem:[#allocation2 + $0x178] sm:$0xff]
    %v252 = vld [vmem:[#allocation2 + $0x180] sm:$0xff]
    %v253 = vld [vmem:[#allocation2 + $0x188] sm:$0xff]
    %v254 = vld [vmem:[#allocation2 + $0x190] sm:$0xff]
    %v255 = vld [vmem:[#allocation2 + $0x198] sm:$0xff]
    %v256 = vld [vmem:[#allocation2 + $0x1a0] sm:$0xff]
    %v257 = vld [vmem:[#allocation2 + $0x1a8] sm:$0xff]
    %v258 = vld [vmem:[#allocation2 + $0x1b0] sm:$0xff]
    %v259 = vld [vmem:[#allocation2 + $0x1b8] sm:$0xff]
    %v260 = vld [vmem:[#allocation3] sm:$0xff]
    %v262 = vlaneseq
    %v263 = vshrl.u32 %v262, 7
    %v264 = vsub.s32 0, %v263
    %v265 = vrot.slane %v260, %v264
    %v266 = vlaneseq
    %v267 = vshrl.u32 %v266, 7
    %v268 = vsub.s32 1, %v267
    %v269 = vrot.slane %v260, %v268
    %v270 = vlaneseq
    %v271 = vshrl.u32 %v270, 7
    %v272 = vsub.s32 2, %v271
    %v273 = vrot.slane %v260, %v272
    %v274 = vlaneseq
    %v275 = vshrl.u32 %v274, 7
    %v276 = vsub.s32 3, %v275
    %v277 = vrot.slane %v260, %v276
    %v278 = vlaneseq
    %v279 = vshrl.u32 %v278, 7
    %v280 = vsub.s32 4, %v279
    %v281 = vrot.slane %v260, %v280
    %v282 = vlaneseq
    %v283 = vshrl.u32 %v282, 7
    %v284 = vsub.s32 5, %v283
    %v285 = vrot.slane %v260, %v284
    %v286 = vlaneseq
    %v287 = vshrl.u32 %v286, 7
    %v288 = vsub.s32 6, %v287
    %v289 = vrot.slane %v260, %v288
    %297 = vmatprep.subr.bf16.mxu0 %v205
    %298 = vmatpush1.bf16.msra.mxu0 %v204
    %299 = vmatprep.subr.bf16.mxu0 %v212
    %300 = vmatpush1.bf16.msra.mxu0 %v211
    %301 = vmatprep.subr.bf16.mxu0 %v219
    %302 = vmatpush1.bf16.msra.mxu0 %v218
    %303 = vmatprep.subr.bf16.mxu0 %v226
    %304 = vmatpush1.bf16.msra.mxu0 %v225
    %305 = vmatprep.subr.bf16.mxu0 %v233
    %306 = vmatpush1.bf16.msra.mxu0 %v232
    %307 = vmatprep.subr.bf16.mxu0 %v240
    %308 = vmatpush1.bf16.msra.mxu0 %v239
    %309 = vmatprep.subr.bf16.mxu0 %v247
    %310 = vmatpush1.bf16.msra.mxu0 %v246
    %311 = vmatprep.subr.bf16.mxu0 %v254
    %312 = vmatpush1.bf16.msra.mxu0 %v253
    %313 = vmatprep.subr.bf16.mxu0 0
    %314 = vmatpush1.bf16.msra.mxu0 0
    %315 = vmatprep.subr.bf16.mxu0 0
    %316 = vmatpush1.bf16.msra.mxu0 0
    %317 = vmatprep.subr.bf16.mxu0 0
    %318 = vmatpush1.bf16.msra.mxu0 0
    %319 = vmatprep.subr.bf16.mxu0 0
    %320 = vmatpush1.bf16.msra.mxu0 0
    %321 = vmatprep.subr.bf16.mxu0 0
    %322 = vmatpush1.bf16.msra.mxu0 0
    %323 = vmatprep.subr.bf16.mxu0 0
    %324 = vmatpush1.bf16.msra.mxu0 0
    %325 = vmatprep.subr.bf16.mxu0 0
    %326 = vmatpush1.bf16.msra.mxu0 0
    %327 = vmatprep.subr.bf16.mxu0 0
    %328 = vmatpush1.bf16.msra.mxu0 0
    %329 = vmatprep.mubr.bf16.mxu0 0
    %330 = vmatmul.mubr.bf16.gmra.mrb[0].mxu0 %v196
    %v331 = vpop.f32.mrb[0].mxu0
    %v332 = vadd.f32 %v265, %v331
    %v333 = vpop.f32.mrb[0].mxu0
    %v334 = vadd.f32 %v269, %v333
    %v335 = vpop.f32.mrb[0].mxu0
    %v336 = vpop.f32.mrb[0].mxu0
    %337 = vdwg.mxu0
    %338 = vmatprep.subr.bf16.mxu0 %v207
    %339 = vmatpush1.bf16.msra.mxu0 %v206
    %340 = vmatprep.subr.bf16.mxu0 %v214
    %341 = vmatpush1.bf16.msra.mxu0 %v213
    %342 = vmatprep.subr.bf16.mxu0 %v221
    %343 = vmatpush1.bf16.msra.mxu0 %v220
    %344 = vmatprep.subr.bf16.mxu0 %v228
    %345 = vmatpush1.bf16.msra.mxu0 %v227
    %346 = vmatprep.subr.bf16.mxu0 %v235
    %347 = vmatpush1.bf16.msra.mxu0 %v234
    %348 = vmatprep.subr.bf16.mxu0 %v242
    %349 = vmatpush1.bf16.msra.mxu0 %v241
    %350 = vmatprep.subr.bf16.mxu0 %v249
    %351 = vmatpush1.bf16.msra.mxu0 %v248
    %352 = vmatprep.subr.bf16.mxu0 %v256
    %353 = vmatpush1.bf16.msra.mxu0 %v255
    %354 = vmatprep.subr.bf16.mxu0 0
    %355 = vmatpush1.bf16.msra.mxu0 0
    %356 = vmatprep.subr.bf16.mxu0 0
    %357 = vmatpush1.bf16.msra.mxu0 0
    %358 = vmatprep.subr.bf16.mxu0 0
    %359 = vmatpush1.bf16.msra.mxu0 0
    %360 = vmatprep.subr.bf16.mxu0 0
    %361 = vmatpush1.bf16.msra.mxu0 0
    %362 = vmatprep.subr.bf16.mxu0 0
    %363 = vmatpush1.bf16.msra.mxu0 0
    %364 = vmatprep.subr.bf16.mxu0 0
    %365 = vmatpush1.bf16.msra.mxu0 0
    %366 = vmatprep.subr.bf16.mxu0 0
    %367 = vmatpush1.bf16.msra.mxu0 0
    %368 = vmatprep.subr.bf16.mxu0 0
    %369 = vmatpush1.bf16.msra.mxu0 0
    %370 = vmatprep.mubr.bf16.mxu0 0
    %371 = vmatmul.mubr.bf16.gmra.mrb[0].mxu0 %v196
    %v372 = vpop.f32.mrb[0].mxu0
    %v373 = vadd.f32 %v273, %v372
    %v374 = vpop.f32.mrb[0].mxu0
    %v375 = vadd.f32 %v277, %v374
    %v376 = vpop.f32.mrb[0].mxu0
    %v377 = vpop.f32.mrb[0].mxu0
    %378 = vdwg.mxu0
    %379 = vmatprep.subr.bf16.mxu0 %v209
    %380 = vmatpush1.bf16.msra.mxu0 %v208
    %381 = vmatprep.subr.bf16.mxu0 %v216
    %382 = vmatpush1.bf16.msra.mxu0 %v215
    %383 = vmatprep.subr.bf16.mxu0 %v223
    %384 = vmatpush1.bf16.msra.mxu0 %v222
    %385 = vmatprep.subr.bf16.mxu0 %v230
    %386 = vmatpush1.bf16.msra.mxu0 %v229
    %387 = vmatprep.subr.bf16.mxu0 %v237
    %388 = vmatpush1.bf16.msra.mxu0 %v236
    %389 = vmatprep.subr.bf16.mxu0 %v244
    %390 = vmatpush1.bf16.msra.mxu0 %v243
    %391 = vmatprep.subr.bf16.mxu0 %v251
    %392 = vmatpush1.bf16.msra.mxu0 %v250
    %393 = vmatprep.subr.bf16.mxu0 %v258
    %394 = vmatpush1.bf16.msra.mxu0 %v257
    %395 = vmatprep.subr.bf16.mxu0 0
    %396 = vmatpush1.bf16.msra.mxu0 0
    %397 = vmatprep.subr.bf16.mxu0 0
    %398 = vmatpush1.bf16.msra.mxu0 0
    %399 = vmatprep.subr.bf16.mxu0 0
    %400 = vmatpush1.bf16.msra.mxu0 0
    %401 = vmatprep.subr.bf16.mxu0 0
    %402 = vmatpush1.bf16.msra.mxu0 0
    %403 = vmatprep.subr.bf16.mxu0 0
    %404 = vmatpush1.bf16.msra.mxu0 0
    %405 = vmatprep.subr.bf16.mxu0 0
    %406 = vmatpush1.bf16.msra.mxu0 0
    %407 = vmatprep.subr.bf16.mxu0 0
    %408 = vmatpush1.bf16.msra.mxu0 0
    %409 = vmatprep.subr.bf16.mxu0 0
    %410 = vmatpush1.bf16.msra.mxu0 0
    %411 = vmatprep.mubr.bf16.mxu0 0
    %412 = vmatmul.mubr.bf16.gmra.mrb[0].mxu0 %v196
    %v413 = vpop.f32.mrb[0].mxu0
    %v414 = vadd.f32 %v281, %v413
    %v415 = vpop.f32.mrb[0].mxu0
    %v416 = vadd.f32 %v285, %v415
    %v417 = vpop.f32.mrb[0].mxu0
    %v418 = vpop.f32.mrb[0].mxu0
    %419 = vdwg.mxu0
    %420 = vmatprep.subr.bf16.mxu0 0
    %421 = vmatpush1.bf16.msra.mxu0 %v210
    %422 = vmatprep.subr.bf16.mxu0 0
    %423 = vmatpush1.bf16.msra.mxu0 %v217
    %424 = vmatprep.subr.bf16.mxu0 0
    %425 = vmatpush1.bf16.msra.mxu0 %v224
    %426 = vmatprep.subr.bf16.mxu0 0
    %427 = vmatpush1.bf16.msra.mxu0 %v231
    %428 = vmatprep.subr.bf16.mxu0 0
    %429 = vmatpush1.bf16.msra.mxu0 %v238
    %430 = vmatprep.subr.bf16.mxu0 0
    %431 = vmatpush1.bf16.msra.mxu0 %v245
    %432 = vmatprep.subr.bf16.mxu0 0
    %433 = vmatpush1.bf16.msra.mxu0 %v252
    %434 = vmatprep.subr.bf16.mxu0 0
    %435 = vmatpush1.bf16.msra.mxu0 %v259
    %436 = vmatprep.subr.bf16.mxu0 0
    %437 = vmatpush1.bf16.msra.mxu0 0
    %438 = vmatprep.subr.bf16.mxu0 0
    %439 = vmatpush1.bf16.msra.mxu0 0
    %440 = vmatprep.subr.bf16.mxu0 0
    %441 = vmatpush1.bf16.msra.mxu0 0
    %442 = vmatprep.subr.bf16.mxu0 0
    %443 = vmatpush1.bf16.msra.mxu0 0
    %444 = vmatprep.subr.bf16.mxu0 0
    %445 = vmatpush1.bf16.msra.mxu0 0
    %446 = vmatprep.subr.bf16.mxu0 0
    %447 = vmatpush1.bf16.msra.mxu0 0
    %448 = vmatprep.subr.bf16.mxu0 0
    %449 = vmatpush1.bf16.msra.mxu0 0
    %450 = vmatprep.subr.bf16.mxu0 0
    %451 = vmatpush1.bf16.msra.mxu0 0
    %452 = vmatprep.mubr.bf16.mxu0 0
    %453 = vmatmul.mubr.bf16.gmra.mrb[0].mxu0 %v196
    %v454 = vpop.f32.mrb[0].mxu0
    %v455 = vadd.f32 %v289, %v454
    %v456 = vpop.f32.mrb[0].mxu0
    %v457 = vpop.f32.mrb[0].mxu0
    %v458 = vpop.f32.mrb[0].mxu0
    %459 = vdwg.mxu0
    %v460 = vmax.f32 %v332, 0.0
    %v461 = vmax.f32 %v334, 0.0
    %v462 = vmax.f32 %v373, 0.0
    %v463 = vmax.f32 %v375, 0.0
    %v464 = vmax.f32 %v414, 0.0
    %v465 = vmax.f32 %v416, 0.0
    %v466 = vmax.f32 %v455, 0.0
    %v467 = vpack.c.bf16 %v460, %v460
    %v468 = vpack.c.bf16 %v461, %v461
    %v469 = vpack.c.bf16 %v462, %v462
    %v470 = vpack.c.bf16 %v463, %v463
    %v471 = vpack.c.bf16 %v464, %v464
    %v472 = vpack.c.bf16 %v465, %v465
    %v473 = vpack.c.bf16 %v466, %v466
    %s474 = smul.u32 4, 112
    %s475 = smul.u32 %s474, 24
    %s476 = sshll.u32 %s475, 4
    %477 = dma.done %s77, %s476
    %s478 = smul.u32 1, 24
    %s479 = sshll.u32 %s478, 4
    %480 = dma.done %s112, %s479
    %v481 = vld [vmem:[#allocation4] sm:$0xff]
    %v482 = vld [vmem:[#allocation4 + $0x8] sm:$0xff]
    %v483 = vld [vmem:[#allocation4 + $0x10] sm:$0xff]
    %v484 = vld [vmem:[#allocation4 + $0x18] sm:$0xff]
    %v485 = vld [vmem:[#allocation4 + $0x20] sm:$0xff]
    %v486 = vld [vmem:[#allocation4 + $0x28] sm:$0xff]
    %v487 = vld [vmem:[#allocation4 + $0x30] sm:$0xff]
    %v488 = vld [vmem:[#allocation4 + $0x38] sm:$0xff]
    %v489 = vld [vmem:[#allocation4 + $0x40] sm:$0xff]
    %v490 = vld [vmem:[#allocation4 + $0x48] sm:$0xff]
    %v491 = vld [vmem:[#allocation4 + $0x50] sm:$0xff]
    %v492 = vld [vmem:[#allocation4 + $0x58] sm:$0xff]
    %v493 = vld [vmem:[#allocation4 + $0x60] sm:$0xff]
    %v494 = vld [vmem:[#allocation4 + $0x68] sm:$0xff]
    %v495 = vld [vmem:[#allocation4 + $0x70] sm:$0xff]
    %v496 = vld [vmem:[#allocation4 + $0x78] sm:$0xff]
    %v497 = vld [vmem:[#allocation4 + $0x80] sm:$0xff]
    %v498 = vld [vmem:[#allocation4 + $0x88] sm:$0xff]
    %v499 = vld [vmem:[#allocation4 + $0x90] sm:$0xff]
    %v500 = vld [vmem:[#allocation4 + $0x98] sm:$0xff]
    %v501 = vld [vmem:[#allocation4 + $0xa0] sm:$0xff]
    %v502 = vld [vmem:[#allocation4 + $0xa8] sm:$0xff]
    %v503 = vld [vmem:[#allocation4 + $0xb0] sm:$0xff]
    %v504 = vld [vmem:[#allocation4 + $0xb8] sm:$0xff]
    %v505 = vld [vmem:[#allocation4 + $0xc0] sm:$0xff]
    %v506 = vld [vmem:[#allocation4 + $0xc8] sm:$0xff]
    %v507 = vld [vmem:[#allocation4 + $0xd0] sm:$0xff]
    %v508 = vld [vmem:[#allocation4 + $0xd8] sm:$0xff]
    %v509 = vld [vmem:[#allocation4 + $0xe0] sm:$0xff]
    %v510 = vld [vmem:[#allocation4 + $0xe8] sm:$0xff]
    %v511 = vld [vmem:[#allocation4 + $0xf0] sm:$0xff]
    %v512 = vld [vmem:[#allocation4 + $0xf8] sm:$0xff]
    %v513 = vld [vmem:[#allocation4 + $0x100] sm:$0xff]
    %v514 = vld [vmem:[#allocation4 + $0x108] sm:$0xff]
    %v515 = vld [vmem:[#allocation4 + $0x110] sm:$0xff]
    %v516 = vld [vmem:[#allocation4 + $0x118] sm:$0xff]
    %v517 = vld [vmem:[#allocation4 + $0x120] sm:$0xff]
    %v518 = vld [vmem:[#allocation4 + $0x128] sm:$0xff]
    %v519 = vld [vmem:[#allocation4 + $0x130] sm:$0xff]
    %v520 = vld [vmem:[#allocation4 + $0x138] sm:$0xff]
    %v521 = vld [vmem:[#allocation4 + $0x140] sm:$0xff]
    %v522 = vld [vmem:[#allocation4 + $0x148] sm:$0xff]
    %v523 = vld [vmem:[#allocation4 + $0x150] sm:$0xff]
    %v524 = vld [vmem:[#allocation4 + $0x158] sm:$0xff]
    %v525 = vld [vmem:[#allocation4 + $0x160] sm:$0xff]
    %v526 = vld [vmem:[#allocation4 + $0x168] sm:$0xff]
    %v527 = vld [vmem:[#allocation4 + $0x170] sm:$0xff]
    %v528 = vld [vmem:[#allocation4 + $0x178] sm:$0xff]
    %v529 = vld [vmem:[#allocation4 + $0x180] sm:$0xff]
    %v530 = vld [vmem:[#allocation4 + $0x188] sm:$0xff]
    %v531 = vld [vmem:[#allocation4 + $0x190] sm:$0xff]
    %v532 = vld [vmem:[#allocation4 + $0x198] sm:$0xff]
    %v533 = vld [vmem:[#allocation4 + $0x1a0] sm:$0xff]
    %v534 = vld [vmem:[#allocation4 + $0x1a8] sm:$0xff]
    %v535 = vld [vmem:[#allocation4 + $0x1b0] sm:$0xff]
    %v536 = vld [vmem:[#allocation4 + $0x1b8] sm:$0xff]
    %v537 = vld [vmem:[#allocation4 + $0x1c0] sm:$0xff]
    %v538 = vld [vmem:[#allocation4 + $0x1c8] sm:$0xff]
    %v539 = vld [vmem:[#allocation4 + $0x1d0] sm:$0xff]
    %v540 = vld [vmem:[#allocation4 + $0x1d8] sm:$0xff]
    %v541 = vld [vmem:[#allocation4 + $0x1e0] sm:$0xff]
    %v542 = vld [vmem:[#allocation4 + $0x1e8] sm:$0xff]
    %v543 = vld [vmem:[#allocation4 + $0x1f0] sm:$0xff]
    %v544 = vld [vmem:[#allocation4 + $0x1f8] sm:$0xff]
    %v545 = vld [vmem:[#allocation4 + $0x200] sm:$0xff]
    %v546 = vld [vmem:[#allocation4 + $0x208] sm:$0xff]
    %v547 = vld [vmem:[#allocation4 + $0x210] sm:$0xff]
    %v548 = vld [vmem:[#allocation4 + $0x218] sm:$0xff]
    %v549 = vld [vmem:[#allocation4 + $0x220] sm:$0xff]
    %v550 = vld [vmem:[#allocation4 + $0x228] sm:$0xff]
    %v551 = vld [vmem:[#allocation4 + $0x230] sm:$0xff]
    %v552 = vld [vmem:[#allocation4 + $0x238] sm:$0xff]
    %v553 = vld [vmem:[#allocation4 + $0x240] sm:$0xff]
    %v554 = vld [vmem:[#allocation4 + $0x248] sm:$0xff]
    %v555 = vld [vmem:[#allocation4 + $0x250] sm:$0xff]
    %v556 = vld [vmem:[#allocation4 + $0x258] sm:$0xff]
    %v557 = vld [vmem:[#allocation4 + $0x260] sm:$0xff]
    %v558 = vld [vmem:[#allocation4 + $0x268] sm:$0xff]
    %v559 = vld [vmem:[#allocation4 + $0x270] sm:$0xff]
    %v560 = vld [vmem:[#allocation4 + $0x278] sm:$0xff]
    %v561 = vld [vmem:[#allocation4 + $0x280] sm:$0xff]
    %v562 = vld [vmem:[#allocation4 + $0x288] sm:$0xff]
    %v563 = vld [vmem:[#allocation4 + $0x290] sm:$0xff]
    %v564 = vld [vmem:[#allocation4 + $0x298] sm:$0xff]
    %v565 = vld [vmem:[#allocation4 + $0x2a0] sm:$0xff]
    %v566 = vld [vmem:[#allocation4 + $0x2a8] sm:$0xff]
    %v567 = vld [vmem:[#allocation4 + $0x2b0] sm:$0xff]
    %v568 = vld [vmem:[#allocation4 + $0x2b8] sm:$0xff]
    %v569 = vld [vmem:[#allocation4 + $0x2c0] sm:$0xff]
    %v570 = vld [vmem:[#allocation4 + $0x2c8] sm:$0xff]
    %v571 = vld [vmem:[#allocation4 + $0x2d0] sm:$0xff]
    %v572 = vld [vmem:[#allocation4 + $0x2d8] sm:$0xff]
    %v573 = vld [vmem:[#allocation4 + $0x2e0] sm:$0xff]
    %v574 = vld [vmem:[#allocation4 + $0x2e8] sm:$0xff]
    %v575 = vld [vmem:[#allocation4 + $0x2f0] sm:$0xff]
    %v576 = vld [vmem:[#allocation4 + $0x2f8] sm:$0xff]
    %v577 = vld [vmem:[#allocation4 + $0x300] sm:$0xff]
    %v578 = vld [vmem:[#allocation4 + $0x308] sm:$0xff]
    %v579 = vld [vmem:[#allocation4 + $0x310] sm:$0xff]
    %v580 = vld [vmem:[#allocation4 + $0x318] sm:$0xff]
    %v581 = vld [vmem:[#allocation4 + $0x320] sm:$0xff]
    %v582 = vld [vmem:[#allocation4 + $0x328] sm:$0xff]
    %v583 = vld [vmem:[#allocation4 + $0x330] sm:$0xff]
    %v584 = vld [vmem:[#allocation4 + $0x338] sm:$0xff]
    %v585 = vld [vmem:[#allocation4 + $0x340] sm:$0xff]
    %v586 = vld [vmem:[#allocation4 + $0x348] sm:$0xff]
    %v587 = vld [vmem:[#allocation4 + $0x350] sm:$0xff]
    %v588 = vld [vmem:[#allocation4 + $0x358] sm:$0xff]
    %v589 = vld [vmem:[#allocation4 + $0x360] sm:$0xff]
    %v590 = vld [vmem:[#allocation4 + $0x368] sm:$0xff]
    %v591 = vld [vmem:[#allocation4 + $0x370] sm:$0xff]
    %v592 = vld [vmem:[#allocation4 + $0x378] sm:$0xff]
    %v593 = vld [vmem:[#allocation4 + $0x380] sm:$0xff]
    %v594 = vld [vmem:[#allocation4 + $0x388] sm:$0xff]
    %v595 = vld [vmem:[#allocation4 + $0x390] sm:$0xff]
    %v596 = vld [vmem:[#allocation4 + $0x398] sm:$0xff]
    %v597 = vld [vmem:[#allocation4 + $0x3a0] sm:$0xff]
    %v598 = vld [vmem:[#allocation4 + $0x3a8] sm:$0xff]
    %v599 = vld [vmem:[#allocation4 + $0x3b0] sm:$0xff]
    %v600 = vld [vmem:[#allocation4 + $0x3b8] sm:$0xff]
    %v601 = vld [vmem:[#allocation4 + $0x3c0] sm:$0xff]
    %v602 = vld [vmem:[#allocation4 + $0x3c8] sm:$0xff]
    %v603 = vld [vmem:[#allocation4 + $0x3d0] sm:$0xff]
    %v604 = vld [vmem:[#allocation4 + $0x3d8] sm:$0xff]
    %v605 = vld [vmem:[#allocation4 + $0x3e0] sm:$0xff]
    %v606 = vld [vmem:[#allocation4 + $0x3e8] sm:$0xff]
    %v607 = vld [vmem:[#allocation4 + $0x3f0] sm:$0xff]
    %v608 = vld [vmem:[#allocation4 + $0x3f8] sm:$0xff]
    %v609 = vld [vmem:[#allocation4 + $0x400] sm:$0xff]
    %v610 = vld [vmem:[#allocation4 + $0x408] sm:$0xff]
    %v611 = vld [vmem:[#allocation4 + $0x410] sm:$0xff]
    %v612 = vld [vmem:[#allocation4 + $0x418] sm:$0xff]
    %v613 = vld [vmem:[#allocation4 + $0x420] sm:$0xff]
    %v614 = vld [vmem:[#allocation4 + $0x428] sm:$0xff]
    %v615 = vld [vmem:[#allocation4 + $0x430] sm:$0xff]
    %v616 = vld [vmem:[#allocation4 + $0x438] sm:$0xff]
    %v617 = vld [vmem:[#allocation4 + $0x440] sm:$0xff]
    %v618 = vld [vmem:[#allocation4 + $0x448] sm:$0xff]
    %v619 = vld [vmem:[#allocation4 + $0x450] sm:$0xff]
    %v620 = vld [vmem:[#allocation4 + $0x458] sm:$0xff]
    %v621 = vld [vmem:[#allocation4 + $0x460] sm:$0xff]
    %v622 = vld [vmem:[#allocation4 + $0x468] sm:$0xff]
    %v623 = vld [vmem:[#allocation4 + $0x470] sm:$0xff]
    %v624 = vld [vmem:[#allocation4 + $0x478] sm:$0xff]
    %v625 = vld [vmem:[#allocation4 + $0x480] sm:$0xff]
    %v626 = vld [vmem:[#allocation4 + $0x488] sm:$0xff]
    %v627 = vld [vmem:[#allocation4 + $0x490] sm:$0xff]
    %v628 = vld [vmem:[#allocation4 + $0x498] sm:$0xff]
    %v629 = vld [vmem:[#allocation4 + $0x4a0] sm:$0xff]
    %v630 = vld [vmem:[#allocation4 + $0x4a8] sm:$0xff]
    %v631 = vld [vmem:[#allocation4 + $0x4b0] sm:$0xff]
    %v632 = vld [vmem:[#allocation4 + $0x4b8] sm:$0xff]
    %v633 = vld [vmem:[#allocation4 + $0x4c0] sm:$0xff]
    %v634 = vld [vmem:[#allocation4 + $0x4c8] sm:$0xff]
    %v635 = vld [vmem:[#allocation4 + $0x4d0] sm:$0xff]
    %v636 = vld [vmem:[#allocation4 + $0x4d8] sm:$0xff]
    %v637 = vld [vmem:[#allocation4 + $0x4e0] sm:$0xff]
    %v638 = vld [vmem:[#allocation4 + $0x4e8] sm:$0xff]
    %v639 = vld [vmem:[#allocation4 + $0x4f0] sm:$0xff]
    %v640 = vld [vmem:[#allocation4 + $0x4f8] sm:$0xff]
    %v641 = vld [vmem:[#allocation4 + $0x500] sm:$0xff]
    %v642 = vld [vmem:[#allocation4 + $0x508] sm:$0xff]
    %v643 = vld [vmem:[#allocation4 + $0x510] sm:$0xff]
    %v644 = vld [vmem:[#allocation4 + $0x518] sm:$0xff]
    %v645 = vld [vmem:[#allocation4 + $0x520] sm:$0xff]
    %v646 = vld [vmem:[#allocation4 + $0x528] sm:$0xff]
    %v647 = vld [vmem:[#allocation4 + $0x530] sm:$0xff]
    %v648 = vld [vmem:[#allocation4 + $0x538] sm:$0xff]
    %v649 = vld [vmem:[#allocation4 + $0x540] sm:$0xff]
    %v650 = vld [vmem:[#allocation4 + $0x548] sm:$0xff]
    %v651 = vld [vmem:[#allocation4 + $0x550] sm:$0xff]
    %v652 = vld [vmem:[#allocation4 + $0x558] sm:$0xff]
    %v653 = vld [vmem:[#allocation4 + $0x560] sm:$0xff]
    %v654 = vld [vmem:[#allocation4 + $0x568] sm:$0xff]
    %v655 = vld [vmem:[#allocation4 + $0x570] sm:$0xff]
    %v656 = vld [vmem:[#allocation4 + $0x578] sm:$0xff]
    %v657 = vld [vmem:[#allocation4 + $0x580] sm:$0xff]
    %v658 = vld [vmem:[#allocation4 + $0x588] sm:$0xff]
    %v659 = vld [vmem:[#allocation4 + $0x590] sm:$0xff]
    %v660 = vld [vmem:[#allocation4 + $0x598] sm:$0xff]
    %v661 = vld [vmem:[#allocation4 + $0x5a0] sm:$0xff]
    %v662 = vld [vmem:[#allocation4 + $0x5a8] sm:$0xff]
    %v663 = vld [vmem:[#allocation4 + $0x5b0] sm:$0xff]
    %v664 = vld [vmem:[#allocation4 + $0x5b8] sm:$0xff]
    %v665 = vld [vmem:[#allocation4 + $0x5c0] sm:$0xff]
    %v666 = vld [vmem:[#allocation4 + $0x5c8] sm:$0xff]
    %v667 = vld [vmem:[#allocation4 + $0x5d0] sm:$0xff]
    %v668 = vld [vmem:[#allocation4 + $0x5d8] sm:$0xff]
    %v669 = vld [vmem:[#allocation4 + $0x5e0] sm:$0xff]
    %v670 = vld [vmem:[#allocation4 + $0x5e8] sm:$0xff]
    %v671 = vld [vmem:[#allocation4 + $0x5f0] sm:$0xff]
    %v672 = vld [vmem:[#allocation4 + $0x5f8] sm:$0xff]
    %v673 = vld [vmem:[#allocation4 + $0x600] sm:$0xff]
    %v674 = vld [vmem:[#allocation4 + $0x608] sm:$0xff]
    %v675 = vld [vmem:[#allocation4 + $0x610] sm:$0xff]
    %v676 = vld [vmem:[#allocation4 + $0x618] sm:$0xff]
    %v677 = vld [vmem:[#allocation4 + $0x620] sm:$0xff]
    %v678 = vld [vmem:[#allocation4 + $0x628] sm:$0xff]
    %v679 = vld [vmem:[#allocation4 + $0x630] sm:$0xff]
    %v680 = vld [vmem:[#allocation4 + $0x638] sm:$0xff]
    %v681 = vld [vmem:[#allocation4 + $0x640] sm:$0xff]
    %v682 = vld [vmem:[#allocation4 + $0x648] sm:$0xff]
    %v683 = vld [vmem:[#allocation4 + $0x650] sm:$0xff]
    %v684 = vld [vmem:[#allocation4 + $0x658] sm:$0xff]
    %v685 = vld [vmem:[#allocation4 + $0x660] sm:$0xff]
    %v686 = vld [vmem:[#allocation4 + $0x668] sm:$0xff]
    %v687 = vld [vmem:[#allocation4 + $0x670] sm:$0xff]
    %v688 = vld [vmem:[#allocation4 + $0x678] sm:$0xff]
    %v689 = vld [vmem:[#allocation4 + $0x680] sm:$0xff]
    %v690 = vld [vmem:[#allocation4 + $0x688] sm:$0xff]
    %v691 = vld [vmem:[#allocation4 + $0x690] sm:$0xff]
    %v692 = vld [vmem:[#allocation4 + $0x698] sm:$0xff]
    %v693 = vld [vmem:[#allocation4 + $0x6a0] sm:$0xff]
    %v694 = vld [vmem:[#allocation4 + $0x6a8] sm:$0xff]
    %v695 = vld [vmem:[#allocation4 + $0x6b0] sm:$0xff]
    %v696 = vld [vmem:[#allocation4 + $0x6b8] sm:$0xff]
    %v697 = vld [vmem:[#allocation4 + $0x6c0] sm:$0xff]
    %v698 = vld [vmem:[#allocation4 + $0x6c8] sm:$0xff]
    %v699 = vld [vmem:[#allocation4 + $0x6d0] sm:$0xff]
    %v700 = vld [vmem:[#allocation4 + $0x6d8] sm:$0xff]
    %v701 = vld [vmem:[#allocation4 + $0x6e0] sm:$0xff]
    %v702 = vld [vmem:[#allocation4 + $0x6e8] sm:$0xff]
    %v703 = vld [vmem:[#allocation4 + $0x6f0] sm:$0xff]
    %v704 = vld [vmem:[#allocation4 + $0x6f8] sm:$0xff]
    %v705 = vld [vmem:[#allocation4 + $0x700] sm:$0xff]
    %v706 = vld [vmem:[#allocation4 + $0x708] sm:$0xff]
    %v707 = vld [vmem:[#allocation4 + $0x710] sm:$0xff]
    %v708 = vld [vmem:[#allocation4 + $0x718] sm:$0xff]
    %v709 = vld [vmem:[#allocation4 + $0x720] sm:$0xff]
    %v710 = vld [vmem:[#allocation4 + $0x728] sm:$0xff]
    %v711 = vld [vmem:[#allocation4 + $0x730] sm:$0xff]
    %v712 = vld [vmem:[#allocation4 + $0x738] sm:$0xff]
    %v713 = vld [vmem:[#allocation4 + $0x740] sm:$0xff]
    %v714 = vld [vmem:[#allocation4 + $0x748] sm:$0xff]
    %v715 = vld [vmem:[#allocation4 + $0x750] sm:$0xff]
    %v716 = vld [vmem:[#allocation4 + $0x758] sm:$0xff]
    %v717 = vld [vmem:[#allocation4 + $0x760] sm:$0xff]
    %v718 = vld [vmem:[#allocation4 + $0x768] sm:$0xff]
    %v719 = vld [vmem:[#allocation4 + $0x770] sm:$0xff]
    %v720 = vld [vmem:[#allocation4 + $0x778] sm:$0xff]
    %v721 = vld [vmem:[#allocation4 + $0x780] sm:$0xff]
    %v722 = vld [vmem:[#allocation4 + $0x788] sm:$0xff]
    %v723 = vld [vmem:[#allocation4 + $0x790] sm:$0xff]
    %v724 = vld [vmem:[#allocation4 + $0x798] sm:$0xff]
    %v725 = vld [vmem:[#allocation4 + $0x7a0] sm:$0xff]
    %v726 = vld [vmem:[#allocation4 + $0x7a8] sm:$0xff]
    %v727 = vld [vmem:[#allocation4 + $0x7b0] sm:$0xff]
    %v728 = vld [vmem:[#allocation4 + $0x7b8] sm:$0xff]
    %v729 = vld [vmem:[#allocation4 + $0x7c0] sm:$0xff]
    %v730 = vld [vmem:[#allocation4 + $0x7c8] sm:$0xff]
    %v731 = vld [vmem:[#allocation4 + $0x7d0] sm:$0xff]
    %v732 = vld [vmem:[#allocation4 + $0x7d8] sm:$0xff]
    %v733 = vld [vmem:[#allocation4 + $0x7e0] sm:$0xff]
    %v734 = vld [vmem:[#allocation4 + $0x7e8] sm:$0xff]
    %v735 = vld [vmem:[#allocation4 + $0x7f0] sm:$0xff]
    %v736 = vld [vmem:[#allocation4 + $0x7f8] sm:$0xff]
    %v737 = vld [vmem:[#allocation4 + $0x800] sm:$0xff]
    %v738 = vld [vmem:[#allocation4 + $0x808] sm:$0xff]
    %v739 = vld [vmem:[#allocation4 + $0x810] sm:$0xff]
    %v740 = vld [vmem:[#allocation4 + $0x818] sm:$0xff]
    %v741 = vld [vmem:[#allocation4 + $0x820] sm:$0xff]
    %v742 = vld [vmem:[#allocation4 + $0x828] sm:$0xff]
    %v743 = vld [vmem:[#allocation4 + $0x830] sm:$0xff]
    %v744 = vld [vmem:[#allocation4 + $0x838] sm:$0xff]
    %v745 = vld [vmem:[#allocation4 + $0x840] sm:$0xff]
    %v746 = vld [vmem:[#allocation4 + $0x848] sm:$0xff]
    %v747 = vld [vmem:[#allocation4 + $0x850] sm:$0xff]
    %v748 = vld [vmem:[#allocation4 + $0x858] sm:$0xff]
    %v749 = vld [vmem:[#allocation4 + $0x860] sm:$0xff]
    %v750 = vld [vmem:[#allocation4 + $0x868] sm:$0xff]
    %v751 = vld [vmem:[#allocation4 + $0x870] sm:$0xff]
    %v752 = vld [vmem:[#allocation4 + $0x878] sm:$0xff]
    %v753 = vld [vmem:[#allocation4 + $0x880] sm:$0xff]
    %v754 = vld [vmem:[#allocation4 + $0x888] sm:$0xff]
    %v755 = vld [vmem:[#allocation4 + $0x890] sm:$0xff]
    %v756 = vld [vmem:[#allocation4 + $0x898] sm:$0xff]
    %v757 = vld [vmem:[#allocation4 + $0x8a0] sm:$0xff]
    %v758 = vld [vmem:[#allocation4 + $0x8a8] sm:$0xff]
    %v759 = vld [vmem:[#allocation4 + $0x8b0] sm:$0xff]
    %v760 = vld [vmem:[#allocation4 + $0x8b8] sm:$0xff]
    %v761 = vld [vmem:[#allocation4 + $0x8c0] sm:$0xff]
    %v762 = vld [vmem:[#allocation4 + $0x8c8] sm:$0xff]
    %v763 = vld [vmem:[#allocation4 + $0x8d0] sm:$0xff]
    %v764 = vld [vmem:[#allocation4 + $0x8d8] sm:$0xff]
    %v765 = vld [vmem:[#allocation4 + $0x8e0] sm:$0xff]
    %v766 = vld [vmem:[#allocation4 + $0x8e8] sm:$0xff]
    %v767 = vld [vmem:[#allocation4 + $0x8f0] sm:$0xff]
    %v768 = vld [vmem:[#allocation4 + $0x8f8] sm:$0xff]
    %v769 = vld [vmem:[#allocation4 + $0x900] sm:$0xff]
    %v770 = vld [vmem:[#allocation4 + $0x908] sm:$0xff]
    %v771 = vld [vmem:[#allocation4 + $0x910] sm:$0xff]
    %v772 = vld [vmem:[#allocation4 + $0x918] sm:$0xff]
    %v773 = vld [vmem:[#allocation4 + $0x920] sm:$0xff]
    %v774 = vld [vmem:[#allocation4 + $0x928] sm:$0xff]
    %v775 = vld [vmem:[#allocation4 + $0x930] sm:$0xff]
    %v776 = vld [vmem:[#allocation4 + $0x938] sm:$0xff]
    %v777 = vld [vmem:[#allocation4 + $0x940] sm:$0xff]
    %v778 = vld [vmem:[#allocation4 + $0x948] sm:$0xff]
    %v779 = vld [vmem:[#allocation4 + $0x950] sm:$0xff]
    %v780 = vld [vmem:[#allocation4 + $0x958] sm:$0xff]
    %v781 = vld [vmem:[#allocation4 + $0x960] sm:$0xff]
    %v782 = vld [vmem:[#allocation4 + $0x968] sm:$0xff]
    %v783 = vld [vmem:[#allocation4 + $0x970] sm:$0xff]
    %v784 = vld [vmem:[#allocation4 + $0x978] sm:$0xff]
    %v785 = vld [vmem:[#allocation4 + $0x980] sm:$0xff]
    %v786 = vld [vmem:[#allocation4 + $0x988] sm:$0xff]
    %v787 = vld [vmem:[#allocation4 + $0x990] sm:$0xff]
    %v788 = vld [vmem:[#allocation4 + $0x998] sm:$0xff]
    %v789 = vld [vmem:[#allocation4 + $0x9a0] sm:$0xff]
    %v790 = vld [vmem:[#allocation4 + $0x9a8] sm:$0xff]
    %v791 = vld [vmem:[#allocation4 + $0x9b0] sm:$0xff]
    %v792 = vld [vmem:[#allocation4 + $0x9b8] sm:$0xff]
    %v793 = vld [vmem:[#allocation4 + $0x9c0] sm:$0xff]
    %v794 = vld [vmem:[#allocation4 + $0x9c8] sm:$0xff]
    %v795 = vld [vmem:[#allocation4 + $0x9d0] sm:$0xff]
    %v796 = vld [vmem:[#allocation4 + $0x9d8] sm:$0xff]
    %v797 = vld [vmem:[#allocation4 + $0x9e0] sm:$0xff]
    %v798 = vld [vmem:[#allocation4 + $0x9e8] sm:$0xff]
    %v799 = vld [vmem:[#allocation4 + $0x9f0] sm:$0xff]
    %v800 = vld [vmem:[#allocation4 + $0x9f8] sm:$0xff]
    %v801 = vld [vmem:[#allocation4 + $0xa00] sm:$0xff]
    %v802 = vld [vmem:[#allocation4 + $0xa08] sm:$0xff]
    %v803 = vld [vmem:[#allocation4 + $0xa10] sm:$0xff]
    %v804 = vld [vmem:[#allocation4 + $0xa18] sm:$0xff]
    %v805 = vld [vmem:[#allocation4 + $0xa20] sm:$0xff]
    %v806 = vld [vmem:[#allocation4 + $0xa28] sm:$0xff]
    %v807 = vld [vmem:[#allocation4 + $0xa30] sm:$0xff]
    %v808 = vld [vmem:[#allocation4 + $0xa38] sm:$0xff]
    %v809 = vld [vmem:[#allocation4 + $0xa40] sm:$0xff]
    %v810 = vld [vmem:[#allocation4 + $0xa48] sm:$0xff]
    %v811 = vld [vmem:[#allocation4 + $0xa50] sm:$0xff]
    %v812 = vld [vmem:[#allocation4 + $0xa58] sm:$0xff]
    %v813 = vld [vmem:[#allocation4 + $0xa60] sm:$0xff]
    %v814 = vld [vmem:[#allocation4 + $0xa68] sm:$0xff]
    %v815 = vld [vmem:[#allocation4 + $0xa70] sm:$0xff]
    %v816 = vld [vmem:[#allocation4 + $0xa78] sm:$0xff]
    %v817 = vld [vmem:[#allocation4 + $0xa80] sm:$0xff]
    %v818 = vld [vmem:[#allocation4 + $0xa88] sm:$0xff]
    %v819 = vld [vmem:[#allocation4 + $0xa90] sm:$0xff]
    %v820 = vld [vmem:[#allocation4 + $0xa98] sm:$0xff]
    %v821 = vld [vmem:[#allocation4 + $0xaa0] sm:$0xff]
    %v822 = vld [vmem:[#allocation4 + $0xaa8] sm:$0xff]
    %v823 = vld [vmem:[#allocation4 + $0xab0] sm:$0xff]
    %v824 = vld [vmem:[#allocation4 + $0xab8] sm:$0xff]
    %v825 = vld [vmem:[#allocation4 + $0xac0] sm:$0xff]
    %v826 = vld [vmem:[#allocation4 + $0xac8] sm:$0xff]
    %v827 = vld [vmem:[#allocation4 + $0xad0] sm:$0xff]
    %v828 = vld [vmem:[#allocation4 + $0xad8] sm:$0xff]
    %v829 = vld [vmem:[#allocation4 + $0xae0] sm:$0xff]
    %v830 = vld [vmem:[#allocation4 + $0xae8] sm:$0xff]
    %v831 = vld [vmem:[#allocation4 + $0xaf0] sm:$0xff]
    %v832 = vld [vmem:[#allocation4 + $0xaf8] sm:$0xff]
    %v833 = vld [vmem:[#allocation4 + $0xb00] sm:$0xff]
    %v834 = vld [vmem:[#allocation4 + $0xb08] sm:$0xff]
    %v835 = vld [vmem:[#allocation4 + $0xb10] sm:$0xff]
    %v836 = vld [vmem:[#allocation4 + $0xb18] sm:$0xff]
    %v837 = vld [vmem:[#allocation4 + $0xb20] sm:$0xff]
    %v838 = vld [vmem:[#allocation4 + $0xb28] sm:$0xff]
    %v839 = vld [vmem:[#allocation4 + $0xb30] sm:$0xff]
    %v840 = vld [vmem:[#allocation4 + $0xb38] sm:$0xff]
    %v841 = vld [vmem:[#allocation4 + $0xb40] sm:$0xff]
    %v842 = vld [vmem:[#allocation4 + $0xb48] sm:$0xff]
    %v843 = vld [vmem:[#allocation4 + $0xb50] sm:$0xff]
    %v844 = vld [vmem:[#allocation4 + $0xb58] sm:$0xff]
    %v845 = vld [vmem:[#allocation4 + $0xb60] sm:$0xff]
    %v846 = vld [vmem:[#allocation4 + $0xb68] sm:$0xff]
    %v847 = vld [vmem:[#allocation4 + $0xb70] sm:$0xff]
    %v848 = vld [vmem:[#allocation4 + $0xb78] sm:$0xff]
    %v849 = vld [vmem:[#allocation4 + $0xb80] sm:$0xff]
    %v850 = vld [vmem:[#allocation4 + $0xb88] sm:$0xff]
    %v851 = vld [vmem:[#allocation4 + $0xb90] sm:$0xff]
    %v852 = vld [vmem:[#allocation4 + $0xb98] sm:$0xff]
    %v853 = vld [vmem:[#allocation4 + $0xba0] sm:$0xff]
    %v854 = vld [vmem:[#allocation4 + $0xba8] sm:$0xff]
    %v855 = vld [vmem:[#allocation4 + $0xbb0] sm:$0xff]
    %v856 = vld [vmem:[#allocation4 + $0xbb8] sm:$0xff]
    %v857 = vld [vmem:[#allocation4 + $0xbc0] sm:$0xff]
    %v858 = vld [vmem:[#allocation4 + $0xbc8] sm:$0xff]
    %v859 = vld [vmem:[#allocation4 + $0xbd0] sm:$0xff]
    %v860 = vld [vmem:[#allocation4 + $0xbd8] sm:$0xff]
    %v861 = vld [vmem:[#allocation4 + $0xbe0] sm:$0xff]
    %v862 = vld [vmem:[#allocation4 + $0xbe8] sm:$0xff]
    %v863 = vld [vmem:[#allocation4 + $0xbf0] sm:$0xff]
    %v864 = vld [vmem:[#allocation4 + $0xbf8] sm:$0xff]
    %v865 = vld [vmem:[#allocation4 + $0xc00] sm:$0xff]
    %v866 = vld [vmem:[#allocation4 + $0xc08] sm:$0xff]
    %v867 = vld [vmem:[#allocation4 + $0xc10] sm:$0xff]
    %v868 = vld [vmem:[#allocation4 + $0xc18] sm:$0xff]
    %v869 = vld [vmem:[#allocation4 + $0xc20] sm:$0xff]
    %v870 = vld [vmem:[#allocation4 + $0xc28] sm:$0xff]
    %v871 = vld [vmem:[#allocation4 + $0xc30] sm:$0xff]
    %v872 = vld [vmem:[#allocation4 + $0xc38] sm:$0xff]
    %v873 = vld [vmem:[#allocation4 + $0xc40] sm:$0xff]
    %v874 = vld [vmem:[#allocation4 + $0xc48] sm:$0xff]
    %v875 = vld [vmem:[#allocation4 + $0xc50] sm:$0xff]
    %v876 = vld [vmem:[#allocation4 + $0xc58] sm:$0xff]
    %v877 = vld [vmem:[#allocation4 + $0xc60] sm:$0xff]
    %v878 = vld [vmem:[#allocation4 + $0xc68] sm:$0xff]
    %v879 = vld [vmem:[#allocation4 + $0xc70] sm:$0xff]
    %v880 = vld [vmem:[#allocation4 + $0xc78] sm:$0xff]
    %v881 = vld [vmem:[#allocation4 + $0xc80] sm:$0xff]
    %v882 = vld [vmem:[#allocation4 + $0xc88] sm:$0xff]
    %v883 = vld [vmem:[#allocation4 + $0xc90] sm:$0xff]
    %v884 = vld [vmem:[#allocation4 + $0xc98] sm:$0xff]
    %v885 = vld [vmem:[#allocation4 + $0xca0] sm:$0xff]
    %v886 = vld [vmem:[#allocation4 + $0xca8] sm:$0xff]
    %v887 = vld [vmem:[#allocation4 + $0xcb0] sm:$0xff]
    %v888 = vld [vmem:[#allocation4 + $0xcb8] sm:$0xff]
    %v889 = vld [vmem:[#allocation4 + $0xcc0] sm:$0xff]
    %v890 = vld [vmem:[#allocation4 + $0xcc8] sm:$0xff]
    %v891 = vld [vmem:[#allocation4 + $0xcd0] sm:$0xff]
    %v892 = vld [vmem:[#allocation4 + $0xcd8] sm:$0xff]
    %v893 = vld [vmem:[#allocation4 + $0xce0] sm:$0xff]
    %v894 = vld [vmem:[#allocation4 + $0xce8] sm:$0xff]
    %v895 = vld [vmem:[#allocation4 + $0xcf0] sm:$0xff]
    %v896 = vld [vmem:[#allocation4 + $0xcf8] sm:$0xff]
    %v897 = vld [vmem:[#allocation4 + $0xd00] sm:$0xff]
    %v898 = vld [vmem:[#allocation4 + $0xd08] sm:$0xff]
    %v899 = vld [vmem:[#allocation4 + $0xd10] sm:$0xff]
    %v900 = vld [vmem:[#allocation4 + $0xd18] sm:$0xff]
    %v901 = vld [vmem:[#allocation4 + $0xd20] sm:$0xff]
    %v902 = vld [vmem:[#allocation4 + $0xd28] sm:$0xff]
    %v903 = vld [vmem:[#allocation4 + $0xd30] sm:$0xff]
    %v904 = vld [vmem:[#allocation4 + $0xd38] sm:$0xff]
    %v905 = vld [vmem:[#allocation4 + $0xd40] sm:$0xff]
    %v906 = vld [vmem:[#allocation4 + $0xd48] sm:$0xff]
    %v907 = vld [vmem:[#allocation4 + $0xd50] sm:$0xff]
    %v908 = vld [vmem:[#allocation4 + $0xd58] sm:$0xff]
    %v909 = vld [vmem:[#allocation4 + $0xd60] sm:$0xff]
    %v910 = vld [vmem:[#allocation4 + $0xd68] sm:$0xff]
    %v911 = vld [vmem:[#allocation4 + $0xd70] sm:$0xff]
    %v912 = vld [vmem:[#allocation4 + $0xd78] sm:$0xff]
    %v913 = vld [vmem:[#allocation4 + $0xd80] sm:$0xff]
    %v914 = vld [vmem:[#allocation4 + $0xd88] sm:$0xff]
    %v915 = vld [vmem:[#allocation4 + $0xd90] sm:$0xff]
    %v916 = vld [vmem:[#allocation4 + $0xd98] sm:$0xff]
    %v917 = vld [vmem:[#allocation4 + $0xda0] sm:$0xff]
    %v918 = vld [vmem:[#allocation4 + $0xda8] sm:$0xff]
    %v919 = vld [vmem:[#allocation4 + $0xdb0] sm:$0xff]
    %v920 = vld [vmem:[#allocation4 + $0xdb8] sm:$0xff]
    %v921 = vld [vmem:[#allocation4 + $0xdc0] sm:$0xff]
    %v922 = vld [vmem:[#allocation4 + $0xdc8] sm:$0xff]
    %v923 = vld [vmem:[#allocation4 + $0xdd0] sm:$0xff]
    %v924 = vld [vmem:[#allocation4 + $0xdd8] sm:$0xff]
    %v925 = vld [vmem:[#allocation4 + $0xde0] sm:$0xff]
    %v926 = vld [vmem:[#allocation4 + $0xde8] sm:$0xff]
    %v927 = vld [vmem:[#allocation4 + $0xdf0] sm:$0xff]
    %v928 = vld [vmem:[#allocation4 + $0xdf8] sm:$0xff]
    %v929 = vld [vmem:[#allocation4 + $0xe00] sm:$0xff]
    %v930 = vld [vmem:[#allocation4 + $0xe08] sm:$0xff]
    %v931 = vld [vmem:[#allocation4 + $0xe10] sm:$0xff]
    %v932 = vld [vmem:[#allocation4 + $0xe18] sm:$0xff]
    %v933 = vld [vmem:[#allocation4 + $0xe20] sm:$0xff]
    %v934 = vld [vmem:[#allocation4 + $0xe28] sm:$0xff]
    %v935 = vld [vmem:[#allocation4 + $0xe30] sm:$0xff]
    %v936 = vld [vmem:[#allocation4 + $0xe38] sm:$0xff]
    %v937 = vld [vmem:[#allocation4 + $0xe40] sm:$0xff]
    %v938 = vld [vmem:[#allocation4 + $0xe48] sm:$0xff]
    %v939 = vld [vmem:[#allocation4 + $0xe50] sm:$0xff]
    %v940 = vld [vmem:[#allocation4 + $0xe58] sm:$0xff]
    %v941 = vld [vmem:[#allocation4 + $0xe60] sm:$0xff]
    %v942 = vld [vmem:[#allocation4 + $0xe68] sm:$0xff]
    %v943 = vld [vmem:[#allocation4 + $0xe70] sm:$0xff]
    %v944 = vld [vmem:[#allocation4 + $0xe78] sm:$0xff]
    %v945 = vld [vmem:[#allocation4 + $0xe80] sm:$0xff]
    %v946 = vld [vmem:[#allocation4 + $0xe88] sm:$0xff]
    %v947 = vld [vmem:[#allocation4 + $0xe90] sm:$0xff]
    %v948 = vld [vmem:[#allocation4 + $0xe98] sm:$0xff]
    %v949 = vld [vmem:[#allocation4 + $0xea0] sm:$0xff]
    %v950 = vld [vmem:[#allocation4 + $0xea8] sm:$0xff]
    %v951 = vld [vmem:[#allocation4 + $0xeb0] sm:$0xff]
    %v952 = vld [vmem:[#allocation4 + $0xeb8] sm:$0xff]
    %v953 = vld [vmem:[#allocation4 + $0xec0] sm:$0xff]
    %v954 = vld [vmem:[#allocation4 + $0xec8] sm:$0xff]
    %v955 = vld [vmem:[#allocation4 + $0xed0] sm:$0xff]
    %v956 = vld [vmem:[#allocation4 + $0xed8] sm:$0xff]
    %v957 = vld [vmem:[#allocation4 + $0xee0] sm:$0xff]
    %v958 = vld [vmem:[#allocation4 + $0xee8] sm:$0xff]
    %v959 = vld [vmem:[#allocation4 + $0xef0] sm:$0xff]
    %v960 = vld [vmem:[#allocation4 + $0xef8] sm:$0xff]
    %v961 = vld [vmem:[#allocation4 + $0xf00] sm:$0xff]
    %v962 = vld [vmem:[#allocation4 + $0xf08] sm:$0xff]
    %v963 = vld [vmem:[#allocation4 + $0xf10] sm:$0xff]
    %v964 = vld [vmem:[#allocation4 + $0xf18] sm:$0xff]
    %v965 = vld [vmem:[#allocation4 + $0xf20] sm:$0xff]
    %v966 = vld [vmem:[#allocation4 + $0xf28] sm:$0xff]
    %v967 = vld [vmem:[#allocation4 + $0xf30] sm:$0xff]
    %v968 = vld [vmem:[#allocation4 + $0xf38] sm:$0xff]
    %v969 = vld [vmem:[#allocation4 + $0xf40] sm:$0xff]
    %v970 = vld [vmem:[#allocation4 + $0xf48] sm:$0xff]
    %v971 = vld [vmem:[#allocation4 + $0xf50] sm:$0xff]
    %v972 = vld [vmem:[#allocation4 + $0xf58] sm:$0xff]
    %v973 = vld [vmem:[#allocation4 + $0xf60] sm:$0xff]
    %v974 = vld [vmem:[#allocation4 + $0xf68] sm:$0xff]
    %v975 = vld [vmem:[#allocation4 + $0xf70] sm:$0xff]
    %v976 = vld [vmem:[#allocation4 + $0xf78] sm:$0xff]
    %v977 = vld [vmem:[#allocation4 + $0xf80] sm:$0xff]
    %v978 = vld [vmem:[#allocation4 + $0xf88] sm:$0xff]
    %v979 = vld [vmem:[#allocation4 + $0xf90] sm:$0xff]
    %v980 = vld [vmem:[#allocation4 + $0xf98] sm:$0xff]
    %v981 = vld [vmem:[#allocation4 + $0xfa0] sm:$0xff]
    %v982 = vld [vmem:[#allocation4 + $0xfa8] sm:$0xff]
    %v983 = vld [vmem:[#allocation4 + $0xfb0] sm:$0xff]
    %v984 = vld [vmem:[#allocation4 + $0xfb8] sm:$0xff]
    %v985 = vld [vmem:[#allocation4 + $0xfc0] sm:$0xff]
    %v986 = vld [vmem:[#allocation4 + $0xfc8] sm:$0xff]
    %v987 = vld [vmem:[#allocation4 + $0xfd0] sm:$0xff]
    %v988 = vld [vmem:[#allocation4 + $0xfd8] sm:$0xff]
    %v989 = vld [vmem:[#allocation4 + $0xfe0] sm:$0xff]
    %v990 = vld [vmem:[#allocation4 + $0xfe8] sm:$0xff]
    %v991 = vld [vmem:[#allocation4 + $0xff0] sm:$0xff]
    %v992 = vld [vmem:[#allocation4 + $0xff8] sm:$0xff]
    %v993 = vld [vmem:[#allocation4 + $0x1000] sm:$0xff]
    %v994 = vld [vmem:[#allocation4 + $0x1008] sm:$0xff]
    %v995 = vld [vmem:[#allocation4 + $0x1010] sm:$0xff]
    %v996 = vld [vmem:[#allocation4 + $0x1018] sm:$0xff]
    %v997 = vld [vmem:[#allocation4 + $0x1020] sm:$0xff]
    %v998 = vld [vmem:[#allocation4 + $0x1028] sm:$0xff]
    %v999 = vld [vmem:[#allocation4 + $0x1030] sm:$0xff]
    %v1000 = vld [vmem:[#allocation4 + $0x1038] sm:$0xff]
    %v1001 = vld [vmem:[#allocation4 + $0x1040] sm:$0xff]
    %v1002 = vld [vmem:[#allocation4 + $0x1048] sm:$0xff]
    %v1003 = vld [vmem:[#allocation4 + $0x1050] sm:$0xff]
    %v1004 = vld [vmem:[#allocation4 + $0x1058] sm:$0xff]
    %v1005 = vld [vmem:[#allocation4 + $0x1060] sm:$0xff]
    %v1006 = vld [vmem:[#allocation4 + $0x1068] sm:$0xff]
    %v1007 = vld [vmem:[#allocation4 + $0x1070] sm:$0xff]
    %v1008 = vld [vmem:[#allocation4 + $0x1078] sm:$0xff]
    %v1009 = vld [vmem:[#allocation4 + $0x1080] sm:$0xff]
    %v1010 = vld [vmem:[#allocation4 + $0x1088] sm:$0xff]
    %v1011 = vld [vmem:[#allocation4 + $0x1090] sm:$0xff]
    %v1012 = vld [vmem:[#allocation4 + $0x1098] sm:$0xff]
    %v1013 = vld [vmem:[#allocation4 + $0x10a0] sm:$0xff]
    %v1014 = vld [vmem:[#allocation4 + $0x10a8] sm:$0xff]
    %v1015 = vld [vmem:[#allocation4 + $0x10b0] sm:$0xff]
    %v1016 = vld [vmem:[#allocation4 + $0x10b8] sm:$0xff]
    %v1017 = vld [vmem:[#allocation4 + $0x10c0] sm:$0xff]
    %v1018 = vld [vmem:[#allocation4 + $0x10c8] sm:$0xff]
    %v1019 = vld [vmem:[#allocation4 + $0x10d0] sm:$0xff]
    %v1020 = vld [vmem:[#allocation4 + $0x10d8] sm:$0xff]
    %v1021 = vld [vmem:[#allocation4 + $0x10e0] sm:$0xff]
    %v1022 = vld [vmem:[#allocation4 + $0x10e8] sm:$0xff]
    %v1023 = vld [vmem:[#allocation4 + $0x10f0] sm:$0xff]
    %v1024 = vld [vmem:[#allocation4 + $0x10f8] sm:$0xff]
    %v1025 = vld [vmem:[#allocation4 + $0x1100] sm:$0xff]
    %v1026 = vld [vmem:[#allocation4 + $0x1108] sm:$0xff]
    %v1027 = vld [vmem:[#allocation4 + $0x1110] sm:$0xff]
    %v1028 = vld [vmem:[#allocation4 + $0x1118] sm:$0xff]
    %v1029 = vld [vmem:[#allocation4 + $0x1120] sm:$0xff]
    %v1030 = vld [vmem:[#allocation4 + $0x1128] sm:$0xff]
    %v1031 = vld [vmem:[#allocation4 + $0x1130] sm:$0xff]
    %v1032 = vld [vmem:[#allocation4 + $0x1138] sm:$0xff]
    %v1033 = vld [vmem:[#allocation4 + $0x1140] sm:$0xff]
    %v1034 = vld [vmem:[#allocation4 + $0x1148] sm:$0xff]
    %v1035 = vld [vmem:[#allocation4 + $0x1150] sm:$0xff]
    %v1036 = vld [vmem:[#allocation4 + $0x1158] sm:$0xff]
    %v1037 = vld [vmem:[#allocation4 + $0x1160] sm:$0xff]
    %v1038 = vld [vmem:[#allocation4 + $0x1168] sm:$0xff]
    %v1039 = vld [vmem:[#allocation4 + $0x1170] sm:$0xff]
    %v1040 = vld [vmem:[#allocation4 + $0x1178] sm:$0xff]
    %v1041 = vld [vmem:[#allocation4 + $0x1180] sm:$0xff]
    %v1042 = vld [vmem:[#allocation4 + $0x1188] sm:$0xff]
    %v1043 = vld [vmem:[#allocation4 + $0x1190] sm:$0xff]
    %v1044 = vld [vmem:[#allocation4 + $0x1198] sm:$0xff]
    %v1045 = vld [vmem:[#allocation4 + $0x11a0] sm:$0xff]
    %v1046 = vld [vmem:[#allocation4 + $0x11a8] sm:$0xff]
    %v1047 = vld [vmem:[#allocation4 + $0x11b0] sm:$0xff]
    %v1048 = vld [vmem:[#allocation4 + $0x11b8] sm:$0xff]
    %v1049 = vld [vmem:[#allocation4 + $0x11c0] sm:$0xff]
    %v1050 = vld [vmem:[#allocation4 + $0x11c8] sm:$0xff]
    %v1051 = vld [vmem:[#allocation4 + $0x11d0] sm:$0xff]
    %v1052 = vld [vmem:[#allocation4 + $0x11d8] sm:$0xff]
    %v1053 = vld [vmem:[#allocation4 + $0x11e0] sm:$0xff]
    %v1054 = vld [vmem:[#allocation4 + $0x11e8] sm:$0xff]
    %v1055 = vld [vmem:[#allocation4 + $0x11f0] sm:$0xff]
    %v1056 = vld [vmem:[#allocation4 + $0x11f8] sm:$0xff]
    %v1057 = vld [vmem:[#allocation4 + $0x1200] sm:$0xff]
    %v1058 = vld [vmem:[#allocation4 + $0x1208] sm:$0xff]
    %v1059 = vld [vmem:[#allocation4 + $0x1210] sm:$0xff]
    %v1060 = vld [vmem:[#allocation4 + $0x1218] sm:$0xff]
    %v1061 = vld [vmem:[#allocation4 + $0x1220] sm:$0xff]
    %v1062 = vld [vmem:[#allocation4 + $0x1228] sm:$0xff]
    %v1063 = vld [vmem:[#allocation4 + $0x1230] sm:$0xff]
    %v1064 = vld [vmem:[#allocation4 + $0x1238] sm:$0xff]
    %v1065 = vld [vmem:[#allocation4 + $0x1240] sm:$0xff]
    %v1066 = vld [vmem:[#allocation4 + $0x1248] sm:$0xff]
    %v1067 = vld [vmem:[#allocation4 + $0x1250] sm:$0xff]
    %v1068 = vld [vmem:[#allocation4 + $0x1258] sm:$0xff]
    %v1069 = vld [vmem:[#allocation4 + $0x1260] sm:$0xff]
    %v1070 = vld [vmem:[#allocation4 + $0x1268] sm:$0xff]
    %v1071 = vld [vmem:[#allocation4 + $0x1270] sm:$0xff]
    %v1072 = vld [vmem:[#allocation4 + $0x1278] sm:$0xff]
    %v1073 = vld [vmem:[#allocation4 + $0x1280] sm:$0xff]
    %v1074 = vld [vmem:[#allocation4 + $0x1288] sm:$0xff]
    %v1075 = vld [vmem:[#allocation4 + $0x1290] sm:$0xff]
    %v1076 = vld [vmem:[#allocation4 + $0x1298] sm:$0xff]
    %v1077 = vld [vmem:[#allocation4 + $0x12a0] sm:$0xff]
    %v1078 = vld [vmem:[#allocation4 + $0x12a8] sm:$0xff]
    %v1079 = vld [vmem:[#allocation4 + $0x12b0] sm:$0xff]
    %v1080 = vld [vmem:[#allocation4 + $0x12b8] sm:$0xff]
    %v1081 = vld [vmem:[#allocation4 + $0x12c0] sm:$0xff]
    %v1082 = vld [vmem:[#allocation4 + $0x12c8] sm:$0xff]
    %v1083 = vld [vmem:[#allocation4 + $0x12d0] sm:$0xff]
    %v1084 = vld [vmem:[#allocation4 + $0x12d8] sm:$0xff]
    %v1085 = vld [vmem:[#allocation4 + $0x12e0] sm:$0xff]
    %v1086 = vld [vmem:[#allocation4 + $0x12e8] sm:$0xff]
    %v1087 = vld [vmem:[#allocation4 + $0x12f0] sm:$0xff]
    %v1088 = vld [vmem:[#allocation4 + $0x12f8] sm:$0xff]
    %v1089 = vld [vmem:[#allocation4 + $0x1300] sm:$0xff]
    %v1090 = vld [vmem:[#allocation4 + $0x1308] sm:$0xff]
    %v1091 = vld [vmem:[#allocation4 + $0x1310] sm:$0xff]
    %v1092 = vld [vmem:[#allocation4 + $0x1318] sm:$0xff]
    %v1093 = vld [vmem:[#allocation4 + $0x1320] sm:$0xff]
    %v1094 = vld [vmem:[#allocation4 + $0x1328] sm:$0xff]
    %v1095 = vld [vmem:[#allocation4 + $0x1330] sm:$0xff]
    %v1096 = vld [vmem:[#allocation4 + $0x1338] sm:$0xff]
    %v1097 = vld [vmem:[#allocation4 + $0x1340] sm:$0xff]
    %v1098 = vld [vmem:[#allocation4 + $0x1348] sm:$0xff]
    %v1099 = vld [vmem:[#allocation4 + $0x1350] sm:$0xff]
    %v1100 = vld [vmem:[#allocation4 + $0x1358] sm:$0xff]
    %v1101 = vld [vmem:[#allocation4 + $0x1360] sm:$0xff]
    %v1102 = vld [vmem:[#allocation4 + $0x1368] sm:$0xff]
    %v1103 = vld [vmem:[#allocation4 + $0x1370] sm:$0xff]
    %v1104 = vld [vmem:[#allocation4 + $0x1378] sm:$0xff]
    %v1105 = vld [vmem:[#allocation4 + $0x1380] sm:$0xff]
    %v1106 = vld [vmem:[#allocation4 + $0x1388] sm:$0xff]
    %v1107 = vld [vmem:[#allocation4 + $0x1390] sm:$0xff]
    %v1108 = vld [vmem:[#allocation4 + $0x1398] sm:$0xff]
    %v1109 = vld [vmem:[#allocation4 + $0x13a0] sm:$0xff]
    %v1110 = vld [vmem:[#allocation4 + $0x13a8] sm:$0xff]
    %v1111 = vld [vmem:[#allocation4 + $0x13b0] sm:$0xff]
    %v1112 = vld [vmem:[#allocation4 + $0x13b8] sm:$0xff]
    %v1113 = vld [vmem:[#allocation4 + $0x13c0] sm:$0xff]
    %v1114 = vld [vmem:[#allocation4 + $0x13c8] sm:$0xff]
    %v1115 = vld [vmem:[#allocation4 + $0x13d0] sm:$0xff]
    %v1116 = vld [vmem:[#allocation4 + $0x13d8] sm:$0xff]
    %v1117 = vld [vmem:[#allocation4 + $0x13e0] sm:$0xff]
    %v1118 = vld [vmem:[#allocation4 + $0x13e8] sm:$0xff]
    %v1119 = vld [vmem:[#allocation4 + $0x13f0] sm:$0xff]
    %v1120 = vld [vmem:[#allocation4 + $0x13f8] sm:$0xff]
    %v1121 = vld [vmem:[#allocation4 + $0x1400] sm:$0xff]
    %v1122 = vld [vmem:[#allocation4 + $0x1408] sm:$0xff]
    %v1123 = vld [vmem:[#allocation4 + $0x1410] sm:$0xff]
    %v1124 = vld [vmem:[#allocation4 + $0x1418] sm:$0xff]
    %v1125 = vld [vmem:[#allocation4 + $0x1420] sm:$0xff]
    %v1126 = vld [vmem:[#allocation4 + $0x1428] sm:$0xff]
    %v1127 = vld [vmem:[#allocation4 + $0x1430] sm:$0xff]
    %v1128 = vld [vmem:[#allocation4 + $0x1438] sm:$0xff]
    %v1129 = vld [vmem:[#allocation4 + $0x1440] sm:$0xff]
    %v1130 = vld [vmem:[#allocation4 + $0x1448] sm:$0xff]
    %v1131 = vld [vmem:[#allocation4 + $0x1450] sm:$0xff]
    %v1132 = vld [vmem:[#allocation4 + $0x1458] sm:$0xff]
    %v1133 = vld [vmem:[#allocation4 + $0x1460] sm:$0xff]
    %v1134 = vld [vmem:[#allocation4 + $0x1468] sm:$0xff]
    %v1135 = vld [vmem:[#allocation4 + $0x1470] sm:$0xff]
    %v1136 = vld [vmem:[#allocation4 + $0x1478] sm:$0xff]
    %v1137 = vld [vmem:[#allocation4 + $0x1480] sm:$0xff]
    %v1138 = vld [vmem:[#allocation4 + $0x1488] sm:$0xff]
    %v1139 = vld [vmem:[#allocation4 + $0x1490] sm:$0xff]
    %v1140 = vld [vmem:[#allocation4 + $0x1498] sm:$0xff]
    %v1141 = vld [vmem:[#allocation4 + $0x14a0] sm:$0xff]
    %v1142 = vld [vmem:[#allocation4 + $0x14a8] sm:$0xff]
    %v1143 = vld [vmem:[#allocation4 + $0x14b0] sm:$0xff]
    %v1144 = vld [vmem:[#allocation4 + $0x14b8] sm:$0xff]
    %v1145 = vld [vmem:[#allocation4 + $0x14c0] sm:$0xff]
    %v1146 = vld [vmem:[#allocation4 + $0x14c8] sm:$0xff]
    %v1147 = vld [vmem:[#allocation4 + $0x14d0] sm:$0xff]
    %v1148 = vld [vmem:[#allocation4 + $0x14d8] sm:$0xff]
    %v1149 = vld [vmem:[#allocation4 + $0x14e0] sm:$0xff]
    %v1150 = vld [vmem:[#allocation4 + $0x14e8] sm:$0xff]
    %v1151 = vld [vmem:[#allocation4 + $0x14f0] sm:$0xff]
    %v1152 = vld [vmem:[#allocation4 + $0x14f8] sm:$0xff]
    %v1153 = vld [vmem:[#allocation4 + $0x1500] sm:$0xff]
    %v1154 = vld [vmem:[#allocation4 + $0x1508] sm:$0xff]
    %v1155 = vld [vmem:[#allocation4 + $0x1510] sm:$0xff]
    %v1156 = vld [vmem:[#allocation4 + $0x1518] sm:$0xff]
    %v1157 = vld [vmem:[#allocation4 + $0x1520] sm:$0xff]
    %v1158 = vld [vmem:[#allocation4 + $0x1528] sm:$0xff]
    %v1159 = vld [vmem:[#allocation4 + $0x1530] sm:$0xff]
    %v1160 = vld [vmem:[#allocation4 + $0x1538] sm:$0xff]
    %v1161 = vld [vmem:[#allocation4 + $0x1540] sm:$0xff]
    %v1162 = vld [vmem:[#allocation4 + $0x1548] sm:$0xff]
    %v1163 = vld [vmem:[#allocation4 + $0x1550] sm:$0xff]
    %v1164 = vld [vmem:[#allocation4 + $0x1558] sm:$0xff]
    %v1165 = vld [vmem:[#allocation4 + $0x1560] sm:$0xff]
    %v1166 = vld [vmem:[#allocation4 + $0x1568] sm:$0xff]
    %v1167 = vld [vmem:[#allocation4 + $0x1570] sm:$0xff]
    %v1168 = vld [vmem:[#allocation4 + $0x1578] sm:$0xff]
    %v1169 = vld [vmem:[#allocation4 + $0x1580] sm:$0xff]
    %v1170 = vld [vmem:[#allocation4 + $0x1588] sm:$0xff]
    %v1171 = vld [vmem:[#allocation4 + $0x1590] sm:$0xff]
    %v1172 = vld [vmem:[#allocation4 + $0x1598] sm:$0xff]
    %v1173 = vld [vmem:[#allocation4 + $0x15a0] sm:$0xff]
    %v1174 = vld [vmem:[#allocation4 + $0x15a8] sm:$0xff]
    %v1175 = vld [vmem:[#allocation4 + $0x15b0] sm:$0xff]
    %v1176 = vld [vmem:[#allocation4 + $0x15b8] sm:$0xff]
    %v1177 = vld [vmem:[#allocation4 + $0x15c0] sm:$0xff]
    %v1178 = vld [vmem:[#allocation4 + $0x15c8] sm:$0xff]
    %v1179 = vld [vmem:[#allocation4 + $0x15d0] sm:$0xff]
    %v1180 = vld [vmem:[#allocation4 + $0x15d8] sm:$0xff]
    %v1181 = vld [vmem:[#allocation4 + $0x15e0] sm:$0xff]
    %v1182 = vld [vmem:[#allocation4 + $0x15e8] sm:$0xff]
    %v1183 = vld [vmem:[#allocation4 + $0x15f0] sm:$0xff]
    %v1184 = vld [vmem:[#allocation4 + $0x15f8] sm:$0xff]
    %v1185 = vld [vmem:[#allocation4 + $0x1600] sm:$0xff]
    %v1186 = vld [vmem:[#allocation4 + $0x1608] sm:$0xff]
    %v1187 = vld [vmem:[#allocation4 + $0x1610] sm:$0xff]
    %v1188 = vld [vmem:[#allocation4 + $0x1618] sm:$0xff]
    %v1189 = vld [vmem:[#allocation4 + $0x1620] sm:$0xff]
    %v1190 = vld [vmem:[#allocation4 + $0x1628] sm:$0xff]
    %v1191 = vld [vmem:[#allocation4 + $0x1630] sm:$0xff]
    %v1192 = vld [vmem:[#allocation4 + $0x1638] sm:$0xff]
    %v1193 = vld [vmem:[#allocation4 + $0x1640] sm:$0xff]
    %v1194 = vld [vmem:[#allocation4 + $0x1648] sm:$0xff]
    %v1195 = vld [vmem:[#allocation4 + $0x1650] sm:$0xff]
    %v1196 = vld [vmem:[#allocation4 + $0x1658] sm:$0xff]
    %v1197 = vld [vmem:[#allocation4 + $0x1660] sm:$0xff]
    %v1198 = vld [vmem:[#allocation4 + $0x1668] sm:$0xff]
    %v1199 = vld [vmem:[#allocation4 + $0x1670] sm:$0xff]
    %v1200 = vld [vmem:[#allocation4 + $0x1678] sm:$0xff]
    %v1201 = vld [vmem:[#allocation4 + $0x1680] sm:$0xff]
    %v1202 = vld [vmem:[#allocation4 + $0x1688] sm:$0xff]
    %v1203 = vld [vmem:[#allocation4 + $0x1690] sm:$0xff]
    %v1204 = vld [vmem:[#allocation4 + $0x1698] sm:$0xff]
    %v1205 = vld [vmem:[#allocation4 + $0x16a0] sm:$0xff]
    %v1206 = vld [vmem:[#allocation4 + $0x16a8] sm:$0xff]
    %v1207 = vld [vmem:[#allocation4 + $0x16b0] sm:$0xff]
    %v1208 = vld [vmem:[#allocation4 + $0x16b8] sm:$0xff]
    %v1209 = vld [vmem:[#allocation4 + $0x16c0] sm:$0xff]
    %v1210 = vld [vmem:[#allocation4 + $0x16c8] sm:$0xff]
    %v1211 = vld [vmem:[#allocation4 + $0x16d0] sm:$0xff]
    %v1212 = vld [vmem:[#allocation4 + $0x16d8] sm:$0xff]
    %v1213 = vld [vmem:[#allocation4 + $0x16e0] sm:$0xff]
    %v1214 = vld [vmem:[#allocation4 + $0x16e8] sm:$0xff]
    %v1215 = vld [vmem:[#allocation4 + $0x16f0] sm:$0xff]
    %v1216 = vld [vmem:[#allocation4 + $0x16f8] sm:$0xff]
    %v1217 = vld [vmem:[#allocation4 + $0x1700] sm:$0xff]
    %v1218 = vld [vmem:[#allocation4 + $0x1708] sm:$0xff]
    %v1219 = vld [vmem:[#allocation4 + $0x1710] sm:$0xff]
    %v1220 = vld [vmem:[#allocation4 + $0x1718] sm:$0xff]
    %v1221 = vld [vmem:[#allocation4 + $0x1720] sm:$0xff]
    %v1222 = vld [vmem:[#allocation4 + $0x1728] sm:$0xff]
    %v1223 = vld [vmem:[#allocation4 + $0x1730] sm:$0xff]
    %v1224 = vld [vmem:[#allocation4 + $0x1738] sm:$0xff]
    %v1225 = vld [vmem:[#allocation4 + $0x1740] sm:$0xff]
    %v1226 = vld [vmem:[#allocation4 + $0x1748] sm:$0xff]
    %v1227 = vld [vmem:[#allocation4 + $0x1750] sm:$0xff]
    %v1228 = vld [vmem:[#allocation4 + $0x1758] sm:$0xff]
    %v1229 = vld [vmem:[#allocation4 + $0x1760] sm:$0xff]
    %v1230 = vld [vmem:[#allocation4 + $0x1768] sm:$0xff]
    %v1231 = vld [vmem:[#allocation4 + $0x1770] sm:$0xff]
    %v1232 = vld [vmem:[#allocation4 + $0x1778] sm:$0xff]
    %v1233 = vld [vmem:[#allocation4 + $0x1780] sm:$0xff]
    %v1234 = vld [vmem:[#allocation4 + $0x1788] sm:$0xff]
    %v1235 = vld [vmem:[#allocation4 + $0x1790] sm:$0xff]
    %v1236 = vld [vmem:[#allocation4 + $0x1798] sm:$0xff]
    %v1237 = vld [vmem:[#allocation4 + $0x17a0] sm:$0xff]
    %v1238 = vld [vmem:[#allocation4 + $0x17a8] sm:$0xff]
    %v1239 = vld [vmem:[#allocation4 + $0x17b0] sm:$0xff]
    %v1240 = vld [vmem:[#allocation4 + $0x17b8] sm:$0xff]
    %v1241 = vld [vmem:[#allocation4 + $0x17c0] sm:$0xff]
    %v1242 = vld [vmem:[#allocation4 + $0x17c8] sm:$0xff]
    %v1243 = vld [vmem:[#allocation4 + $0x17d0] sm:$0xff]
    %v1244 = vld [vmem:[#allocation4 + $0x17d8] sm:$0xff]
    %v1245 = vld [vmem:[#allocation4 + $0x17e0] sm:$0xff]
    %v1246 = vld [vmem:[#allocation4 + $0x17e8] sm:$0xff]
    %v1247 = vld [vmem:[#allocation4 + $0x17f0] sm:$0xff]
    %v1248 = vld [vmem:[#allocation4 + $0x17f8] sm:$0xff]
    %v1249 = vld [vmem:[#allocation4 + $0x1800] sm:$0xff]
    %v1250 = vld [vmem:[#allocation4 + $0x1808] sm:$0xff]
    %v1251 = vld [vmem:[#allocation4 + $0x1810] sm:$0xff]
    %v1252 = vld [vmem:[#allocation4 + $0x1818] sm:$0xff]
    %v1253 = vld [vmem:[#allocation4 + $0x1820] sm:$0xff]
    %v1254 = vld [vmem:[#allocation4 + $0x1828] sm:$0xff]
    %v1255 = vld [vmem:[#allocation4 + $0x1830] sm:$0xff]
    %v1256 = vld [vmem:[#allocation4 + $0x1838] sm:$0xff]
    %v1257 = vld [vmem:[#allocation4 + $0x1840] sm:$0xff]
    %v1258 = vld [vmem:[#allocation4 + $0x1848] sm:$0xff]
    %v1259 = vld [vmem:[#allocation4 + $0x1850] sm:$0xff]
    %v1260 = vld [vmem:[#allocation4 + $0x1858] sm:$0xff]
    %v1261 = vld [vmem:[#allocation4 + $0x1860] sm:$0xff]
    %v1262 = vld [vmem:[#allocation4 + $0x1868] sm:$0xff]
    %v1263 = vld [vmem:[#allocation4 + $0x1870] sm:$0xff]
    %v1264 = vld [vmem:[#allocation4 + $0x1878] sm:$0xff]
    %v1265 = vld [vmem:[#allocation4 + $0x1880] sm:$0xff]
    %v1266 = vld [vmem:[#allocation4 + $0x1888] sm:$0xff]
    %v1267 = vld [vmem:[#allocation4 + $0x1890] sm:$0xff]
    %v1268 = vld [vmem:[#allocation4 + $0x1898] sm:$0xff]
    %v1269 = vld [vmem:[#allocation4 + $0x18a0] sm:$0xff]
    %v1270 = vld [vmem:[#allocation4 + $0x18a8] sm:$0xff]
    %v1271 = vld [vmem:[#allocation4 + $0x18b0] sm:$0xff]
    %v1272 = vld [vmem:[#allocation4 + $0x18b8] sm:$0xff]
    %v1273 = vld [vmem:[#allocation4 + $0x18c0] sm:$0xff]
    %v1274 = vld [vmem:[#allocation4 + $0x18c8] sm:$0xff]
    %v1275 = vld [vmem:[#allocation4 + $0x18d0] sm:$0xff]
    %v1276 = vld [vmem:[#allocation4 + $0x18d8] sm:$0xff]
    %v1277 = vld [vmem:[#allocation4 + $0x18e0] sm:$0xff]
    %v1278 = vld [vmem:[#allocation4 + $0x18e8] sm:$0xff]
    %v1279 = vld [vmem:[#allocation4 + $0x18f0] sm:$0xff]
    %v1280 = vld [vmem:[#allocation4 + $0x18f8] sm:$0xff]
    %v1281 = vld [vmem:[#allocation4 + $0x1900] sm:$0xff]
    %v1282 = vld [vmem:[#allocation4 + $0x1908] sm:$0xff]
    %v1283 = vld [vmem:[#allocation4 + $0x1910] sm:$0xff]
    %v1284 = vld [vmem:[#allocation4 + $0x1918] sm:$0xff]
    %v1285 = vld [vmem:[#allocation4 + $0x1920] sm:$0xff]
    %v1286 = vld [vmem:[#allocation4 + $0x1928] sm:$0xff]
    %v1287 = vld [vmem:[#allocation4 + $0x1930] sm:$0xff]
    %v1288 = vld [vmem:[#allocation4 + $0x1938] sm:$0xff]
    %v1289 = vld [vmem:[#allocation4 + $0x1940] sm:$0xff]
    %v1290 = vld [vmem:[#allocation4 + $0x1948] sm:$0xff]
    %v1291 = vld [vmem:[#allocation4 + $0x1950] sm:$0xff]
    %v1292 = vld [vmem:[#allocation4 + $0x1958] sm:$0xff]
    %v1293 = vld [vmem:[#allocation4 + $0x1960] sm:$0xff]
    %v1294 = vld [vmem:[#allocation4 + $0x1968] sm:$0xff]
    %v1295 = vld [vmem:[#allocation4 + $0x1970] sm:$0xff]
    %v1296 = vld [vmem:[#allocation4 + $0x1978] sm:$0xff]
    %v1297 = vld [vmem:[#allocation4 + $0x1980] sm:$0xff]
    %v1298 = vld [vmem:[#allocation4 + $0x1988] sm:$0xff]
    %v1299 = vld [vmem:[#allocation4 + $0x1990] sm:$0xff]
    %v1300 = vld [vmem:[#allocation4 + $0x1998] sm:$0xff]
    %v1301 = vld [vmem:[#allocation4 + $0x19a0] sm:$0xff]
    %v1302 = vld [vmem:[#allocation4 + $0x19a8] sm:$0xff]
    %v1303 = vld [vmem:[#allocation4 + $0x19b0] sm:$0xff]
    %v1304 = vld [vmem:[#allocation4 + $0x19b8] sm:$0xff]
    %v1305 = vld [vmem:[#allocation4 + $0x19c0] sm:$0xff]
    %v1306 = vld [vmem:[#allocation4 + $0x19c8] sm:$0xff]
    %v1307 = vld [vmem:[#allocation4 + $0x19d0] sm:$0xff]
    %v1308 = vld [vmem:[#allocation4 + $0x19d8] sm:$0xff]
    %v1309 = vld [vmem:[#allocation4 + $0x19e0] sm:$0xff]
    %v1310 = vld [vmem:[#allocation4 + $0x19e8] sm:$0xff]
    %v1311 = vld [vmem:[#allocation4 + $0x19f0] sm:$0xff]
    %v1312 = vld [vmem:[#allocation4 + $0x19f8] sm:$0xff]
    %v1313 = vld [vmem:[#allocation4 + $0x1a00] sm:$0xff]
    %v1314 = vld [vmem:[#allocation4 + $0x1a08] sm:$0xff]
    %v1315 = vld [vmem:[#allocation4 + $0x1a10] sm:$0xff]
    %v1316 = vld [vmem:[#allocation4 + $0x1a18] sm:$0xff]
    %v1317 = vld [vmem:[#allocation4 + $0x1a20] sm:$0xff]
    %v1318 = vld [vmem:[#allocation4 + $0x1a28] sm:$0xff]
    %v1319 = vld [vmem:[#allocation4 + $0x1a30] sm:$0xff]
    %v1320 = vld [vmem:[#allocation4 + $0x1a38] sm:$0xff]
    %v1321 = vld [vmem:[#allocation4 + $0x1a40] sm:$0xff]
    %v1322 = vld [vmem:[#allocation4 + $0x1a48] sm:$0xff]
    %v1323 = vld [vmem:[#allocation4 + $0x1a50] sm:$0xff]
    %v1324 = vld [vmem:[#allocation4 + $0x1a58] sm:$0xff]
    %v1325 = vld [vmem:[#allocation4 + $0x1a60] sm:$0xff]
    %v1326 = vld [vmem:[#allocation4 + $0x1a68] sm:$0xff]
    %v1327 = vld [vmem:[#allocation4 + $0x1a70] sm:$0xff]
    %v1328 = vld [vmem:[#allocation4 + $0x1a78] sm:$0xff]
    %v1329 = vld [vmem:[#allocation4 + $0x1a80] sm:$0xff]
    %v1330 = vld [vmem:[#allocation4 + $0x1a88] sm:$0xff]
    %v1331 = vld [vmem:[#allocation4 + $0x1a90] sm:$0xff]
    %v1332 = vld [vmem:[#allocation4 + $0x1a98] sm:$0xff]
    %v1333 = vld [vmem:[#allocation4 + $0x1aa0] sm:$0xff]
    %v1334 = vld [vmem:[#allocation4 + $0x1aa8] sm:$0xff]
    %v1335 = vld [vmem:[#allocation4 + $0x1ab0] sm:$0xff]
    %v1336 = vld [vmem:[#allocation4 + $0x1ab8] sm:$0xff]
    %v1337 = vld [vmem:[#allocation4 + $0x1ac0] sm:$0xff]
    %v1338 = vld [vmem:[#allocation4 + $0x1ac8] sm:$0xff]
    %v1339 = vld [vmem:[#allocation4 + $0x1ad0] sm:$0xff]
    %v1340 = vld [vmem:[#allocation4 + $0x1ad8] sm:$0xff]
    %v1341 = vld [vmem:[#allocation4 + $0x1ae0] sm:$0xff]
    %v1342 = vld [vmem:[#allocation4 + $0x1ae8] sm:$0xff]
    %v1343 = vld [vmem:[#allocation4 + $0x1af0] sm:$0xff]
    %v1344 = vld [vmem:[#allocation4 + $0x1af8] sm:$0xff]
    %v1345 = vld [vmem:[#allocation4 + $0x1b00] sm:$0xff]
    %v1346 = vld [vmem:[#allocation4 + $0x1b08] sm:$0xff]
    %v1347 = vld [vmem:[#allocation4 + $0x1b10] sm:$0xff]
    %v1348 = vld [vmem:[#allocation4 + $0x1b18] sm:$0xff]
    %v1349 = vld [vmem:[#allocation4 + $0x1b20] sm:$0xff]
    %v1350 = vld [vmem:[#allocation4 + $0x1b28] sm:$0xff]
    %v1351 = vld [vmem:[#allocation4 + $0x1b30] sm:$0xff]
    %v1352 = vld [vmem:[#allocation4 + $0x1b38] sm:$0xff]
    %v1353 = vld [vmem:[#allocation4 + $0x1b40] sm:$0xff]
    %v1354 = vld [vmem:[#allocation4 + $0x1b48] sm:$0xff]
    %v1355 = vld [vmem:[#allocation4 + $0x1b50] sm:$0xff]
    %v1356 = vld [vmem:[#allocation4 + $0x1b58] sm:$0xff]
    %v1357 = vld [vmem:[#allocation4 + $0x1b60] sm:$0xff]
    %v1358 = vld [vmem:[#allocation4 + $0x1b68] sm:$0xff]
    %v1359 = vld [vmem:[#allocation4 + $0x1b70] sm:$0xff]
    %v1360 = vld [vmem:[#allocation4 + $0x1b78] sm:$0xff]
    %v1361 = vld [vmem:[#allocation4 + $0x1b80] sm:$0xff]
    %v1362 = vld [vmem:[#allocation4 + $0x1b88] sm:$0xff]
    %v1363 = vld [vmem:[#allocation4 + $0x1b90] sm:$0xff]
    %v1364 = vld [vmem:[#allocation4 + $0x1b98] sm:$0xff]
    %v1365 = vld [vmem:[#allocation4 + $0x1ba0] sm:$0xff]
    %v1366 = vld [vmem:[#allocation4 + $0x1ba8] sm:$0xff]
    %v1367 = vld [vmem:[#allocation4 + $0x1bb0] sm:$0xff]
    %v1368 = vld [vmem:[#allocation4 + $0x1bb8] sm:$0xff]
    %v1369 = vld [vmem:[#allocation4 + $0x1bc0] sm:$0xff]
    %v1370 = vld [vmem:[#allocation4 + $0x1bc8] sm:$0xff]
    %v1371 = vld [vmem:[#allocation4 + $0x1bd0] sm:$0xff]
    %v1372 = vld [vmem:[#allocation4 + $0x1bd8] sm:$0xff]
    %v1373 = vld [vmem:[#allocation4 + $0x1be0] sm:$0xff]
    %v1374 = vld [vmem:[#allocation4 + $0x1be8] sm:$0xff]
    %v1375 = vld [vmem:[#allocation4 + $0x1bf0] sm:$0xff]
    %v1376 = vld [vmem:[#allocation4 + $0x1bf8] sm:$0xff]
    %v1377 = vld [vmem:[#allocation4 + $0x1c00] sm:$0xff]
    %v1378 = vld [vmem:[#allocation4 + $0x1c08] sm:$0xff]
    %v1379 = vld [vmem:[#allocation4 + $0x1c10] sm:$0xff]
    %v1380 = vld [vmem:[#allocation4 + $0x1c18] sm:$0xff]
    %v1381 = vld [vmem:[#allocation4 + $0x1c20] sm:$0xff]
    %v1382 = vld [vmem:[#allocation4 + $0x1c28] sm:$0xff]
    %v1383 = vld [vmem:[#allocation4 + $0x1c30] sm:$0xff]
    %v1384 = vld [vmem:[#allocation4 + $0x1c38] sm:$0xff]
    %v1385 = vld [vmem:[#allocation4 + $0x1c40] sm:$0xff]
    %v1386 = vld [vmem:[#allocation4 + $0x1c48] sm:$0xff]
    %v1387 = vld [vmem:[#allocation4 + $0x1c50] sm:$0xff]
    %v1388 = vld [vmem:[#allocation4 + $0x1c58] sm:$0xff]
    %v1389 = vld [vmem:[#allocation4 + $0x1c60] sm:$0xff]
    %v1390 = vld [vmem:[#allocation4 + $0x1c68] sm:$0xff]
    %v1391 = vld [vmem:[#allocation4 + $0x1c70] sm:$0xff]
    %v1392 = vld [vmem:[#allocation4 + $0x1c78] sm:$0xff]
    %v1393 = vld [vmem:[#allocation4 + $0x1c80] sm:$0xff]
    %v1394 = vld [vmem:[#allocation4 + $0x1c88] sm:$0xff]
    %v1395 = vld [vmem:[#allocation4 + $0x1c90] sm:$0xff]
    %v1396 = vld [vmem:[#allocation4 + $0x1c98] sm:$0xff]
    %v1397 = vld [vmem:[#allocation4 + $0x1ca0] sm:$0xff]
    %v1398 = vld [vmem:[#allocation4 + $0x1ca8] sm:$0xff]
    %v1399 = vld [vmem:[#allocation4 + $0x1cb0] sm:$0xff]
    %v1400 = vld [vmem:[#allocation4 + $0x1cb8] sm:$0xff]
    %v1401 = vld [vmem:[#allocation4 + $0x1cc0] sm:$0xff]
    %v1402 = vld [vmem:[#allocation4 + $0x1cc8] sm:$0xff]
    %v1403 = vld [vmem:[#allocation4 + $0x1cd0] sm:$0xff]
    %v1404 = vld [vmem:[#allocation4 + $0x1cd8] sm:$0xff]
    %v1405 = vld [vmem:[#allocation4 + $0x1ce0] sm:$0xff]
    %v1406 = vld [vmem:[#allocation4 + $0x1ce8] sm:$0xff]
    %v1407 = vld [vmem:[#allocation4 + $0x1cf0] sm:$0xff]
    %v1408 = vld [vmem:[#allocation4 + $0x1cf8] sm:$0xff]
    %v1409 = vld [vmem:[#allocation4 + $0x1d00] sm:$0xff]
    %v1410 = vld [vmem:[#allocation4 + $0x1d08] sm:$0xff]
    %v1411 = vld [vmem:[#allocation4 + $0x1d10] sm:$0xff]
    %v1412 = vld [vmem:[#allocation4 + $0x1d18] sm:$0xff]
    %v1413 = vld [vmem:[#allocation4 + $0x1d20] sm:$0xff]
    %v1414 = vld [vmem:[#allocation4 + $0x1d28] sm:$0xff]
    %v1415 = vld [vmem:[#allocation4 + $0x1d30] sm:$0xff]
    %v1416 = vld [vmem:[#allocation4 + $0x1d38] sm:$0xff]
    %v1417 = vld [vmem:[#allocation4 + $0x1d40] sm:$0xff]
    %v1418 = vld [vmem:[#allocation4 + $0x1d48] sm:$0xff]
    %v1419 = vld [vmem:[#allocation4 + $0x1d50] sm:$0xff]
    %v1420 = vld [vmem:[#allocation4 + $0x1d58] sm:$0xff]
    %v1421 = vld [vmem:[#allocation4 + $0x1d60] sm:$0xff]
    %v1422 = vld [vmem:[#allocation4 + $0x1d68] sm:$0xff]
    %v1423 = vld [vmem:[#allocation4 + $0x1d70] sm:$0xff]
    %v1424 = vld [vmem:[#allocation4 + $0x1d78] sm:$0xff]
    %v1425 = vld [vmem:[#allocation4 + $0x1d80] sm:$0xff]
    %v1426 = vld [vmem:[#allocation4 + $0x1d88] sm:$0xff]
    %v1427 = vld [vmem:[#allocation4 + $0x1d90] sm:$0xff]
    %v1428 = vld [vmem:[#allocation4 + $0x1d98] sm:$0xff]
    %v1429 = vld [vmem:[#allocation4 + $0x1da0] sm:$0xff]
    %v1430 = vld [vmem:[#allocation4 + $0x1da8] sm:$0xff]
    %v1431 = vld [vmem:[#allocation4 + $0x1db0] sm:$0xff]
    %v1432 = vld [vmem:[#allocation4 + $0x1db8] sm:$0xff]
    %v1433 = vld [vmem:[#allocation4 + $0x1dc0] sm:$0xff]
    %v1434 = vld [vmem:[#allocation4 + $0x1dc8] sm:$0xff]
    %v1435 = vld [vmem:[#allocation4 + $0x1dd0] sm:$0xff]
    %v1436 = vld [vmem:[#allocation4 + $0x1dd8] sm:$0xff]
    %v1437 = vld [vmem:[#allocation4 + $0x1de0] sm:$0xff]
    %v1438 = vld [vmem:[#allocation4 + $0x1de8] sm:$0xff]
    %v1439 = vld [vmem:[#allocation4 + $0x1df0] sm:$0xff]
    %v1440 = vld [vmem:[#allocation4 + $0x1df8] sm:$0xff]
    %v1441 = vld [vmem:[#allocation4 + $0x1e00] sm:$0xff]
    %v1442 = vld [vmem:[#allocation4 + $0x1e08] sm:$0xff]
    %v1443 = vld [vmem:[#allocation4 + $0x1e10] sm:$0xff]
    %v1444 = vld [vmem:[#allocation4 + $0x1e18] sm:$0xff]
    %v1445 = vld [vmem:[#allocation4 + $0x1e20] sm:$0xff]
    %v1446 = vld [vmem:[#allocation4 + $0x1e28] sm:$0xff]
    %v1447 = vld [vmem:[#allocation4 + $0x1e30] sm:$0xff]
    %v1448 = vld [vmem:[#allocation4 + $0x1e38] sm:$0xff]
    %v1449 = vld [vmem:[#allocation4 + $0x1e40] sm:$0xff]
    %v1450 = vld [vmem:[#allocation4 + $0x1e48] sm:$0xff]
    %v1451 = vld [vmem:[#allocation4 + $0x1e50] sm:$0xff]
    %v1452 = vld [vmem:[#allocation4 + $0x1e58] sm:$0xff]
    %v1453 = vld [vmem:[#allocation4 + $0x1e60] sm:$0xff]
    %v1454 = vld [vmem:[#allocation4 + $0x1e68] sm:$0xff]
    %v1455 = vld [vmem:[#allocation4 + $0x1e70] sm:$0xff]
    %v1456 = vld [vmem:[#allocation4 + $0x1e78] sm:$0xff]
    %v1457 = vld [vmem:[#allocation4 + $0x1e80] sm:$0xff]
    %v1458 = vld [vmem:[#allocation4 + $0x1e88] sm:$0xff]
    %v1459 = vld [vmem:[#allocation4 + $0x1e90] sm:$0xff]
    %v1460 = vld [vmem:[#allocation4 + $0x1e98] sm:$0xff]
    %v1461 = vld [vmem:[#allocation4 + $0x1ea0] sm:$0xff]
    %v1462 = vld [vmem:[#allocation4 + $0x1ea8] sm:$0xff]
    %v1463 = vld [vmem:[#allocation4 + $0x1eb0] sm:$0xff]
    %v1464 = vld [vmem:[#allocation4 + $0x1eb8] sm:$0xff]
    %v1465 = vld [vmem:[#allocation4 + $0x1ec0] sm:$0xff]
    %v1466 = vld [vmem:[#allocation4 + $0x1ec8] sm:$0xff]
    %v1467 = vld [vmem:[#allocation4 + $0x1ed0] sm:$0xff]
    %v1468 = vld [vmem:[#allocation4 + $0x1ed8] sm:$0xff]
    %v1469 = vld [vmem:[#allocation4 + $0x1ee0] sm:$0xff]
    %v1470 = vld [vmem:[#allocation4 + $0x1ee8] sm:$0xff]
    %v1471 = vld [vmem:[#allocation4 + $0x1ef0] sm:$0xff]
    %v1472 = vld [vmem:[#allocation4 + $0x1ef8] sm:$0xff]
    %v1473 = vld [vmem:[#allocation4 + $0x1f00] sm:$0xff]
    %v1474 = vld [vmem:[#allocation4 + $0x1f08] sm:$0xff]
    %v1475 = vld [vmem:[#allocation4 + $0x1f10] sm:$0xff]
    %v1476 = vld [vmem:[#allocation4 + $0x1f18] sm:$0xff]
    %v1477 = vld [vmem:[#allocation4 + $0x1f20] sm:$0xff]
    %v1478 = vld [vmem:[#allocation4 + $0x1f28] sm:$0xff]
    %v1479 = vld [vmem:[#allocation4 + $0x1f30] sm:$0xff]
    %v1480 = vld [vmem:[#allocation4 + $0x1f38] sm:$0xff]
    %v1481 = vld [vmem:[#allocation4 + $0x1f40] sm:$0xff]
    %v1482 = vld [vmem:[#allocation4 + $0x1f48] sm:$0xff]
    %v1483 = vld [vmem:[#allocation4 + $0x1f50] sm:$0xff]
    %v1484 = vld [vmem:[#allocation4 + $0x1f58] sm:$0xff]
    %v1485 = vld [vmem:[#allocation4 + $0x1f60] sm:$0xff]
    %v1486 = vld [vmem:[#allocation4 + $0x1f68] sm:$0xff]
    %v1487 = vld [vmem:[#allocation4 + $0x1f70] sm:$0xff]
    %v1488 = vld [vmem:[#allocation4 + $0x1f78] sm:$0xff]
    %v1489 = vld [vmem:[#allocation4 + $0x1f80] sm:$0xff]
    %v1490 = vld [vmem:[#allocation4 + $0x1f88] sm:$0xff]
    %v1491 = vld [vmem:[#allocation4 + $0x1f90] sm:$0xff]
    %v1492 = vld [vmem:[#allocation4 + $0x1f98] sm:$0xff]
    %v1493 = vld [vmem:[#allocation4 + $0x1fa0] sm:$0xff]
    %v1494 = vld [vmem:[#allocation4 + $0x1fa8] sm:$0xff]
    %v1495 = vld [vmem:[#allocation4 + $0x1fb0] sm:$0xff]
    %v1496 = vld [vmem:[#allocation4 + $0x1fb8] sm:$0xff]
    %v1497 = vld [vmem:[#allocation4 + $0x1fc0] sm:$0xff]
    %v1498 = vld [vmem:[#allocation4 + $0x1fc8] sm:$0xff]
    %v1499 = vld [vmem:[#allocation4 + $0x1fd0] sm:$0xff]
    %v1500 = vld [vmem:[#allocation4 + $0x1fd8] sm:$0xff]
    %v1501 = vld [vmem:[#allocation4 + $0x1fe0] sm:$0xff]
    %v1502 = vld [vmem:[#allocation4 + $0x1fe8] sm:$0xff]
    %v1503 = vld [vmem:[#allocation4 + $0x1ff0] sm:$0xff]
    %v1504 = vld [vmem:[#allocation4 + $0x1ff8] sm:$0xff]
    %v1505 = vld [vmem:[#allocation4 + $0x2000] sm:$0xff]
    %v1506 = vld [vmem:[#allocation4 + $0x2008] sm:$0xff]
    %v1507 = vld [vmem:[#allocation4 + $0x2010] sm:$0xff]
    %v1508 = vld [vmem:[#allocation4 + $0x2018] sm:$0xff]
    %v1509 = vld [vmem:[#allocation4 + $0x2020] sm:$0xff]
    %v1510 = vld [vmem:[#allocation4 + $0x2028] sm:$0xff]
    %v1511 = vld [vmem:[#allocation4 + $0x2030] sm:$0xff]
    %v1512 = vld [vmem:[#allocation4 + $0x2038] sm:$0xff]
    %v1513 = vld [vmem:[#allocation4 + $0x2040] sm:$0xff]
    %v1514 = vld [vmem:[#allocation4 + $0x2048] sm:$0xff]
    %v1515 = vld [vmem:[#allocation4 + $0x2050] sm:$0xff]
    %v1516 = vld [vmem:[#allocation4 + $0x2058] sm:$0xff]
    %v1517 = vld [vmem:[#allocation4 + $0x2060] sm:$0xff]
    %v1518 = vld [vmem:[#allocation4 + $0x2068] sm:$0xff]
    %v1519 = vld [vmem:[#allocation4 + $0x2070] sm:$0xff]
    %v1520 = vld [vmem:[#allocation4 + $0x2078] sm:$0xff]
    %v1521 = vld [vmem:[#allocation4 + $0x2080] sm:$0xff]
    %v1522 = vld [vmem:[#allocation4 + $0x2088] sm:$0xff]
    %v1523 = vld [vmem:[#allocation4 + $0x2090] sm:$0xff]
    %v1524 = vld [vmem:[#allocation4 + $0x2098] sm:$0xff]
    %v1525 = vld [vmem:[#allocation4 + $0x20a0] sm:$0xff]
    %v1526 = vld [vmem:[#allocation4 + $0x20a8] sm:$0xff]
    %v1527 = vld [vmem:[#allocation4 + $0x20b0] sm:$0xff]
    %v1528 = vld [vmem:[#allocation4 + $0x20b8] sm:$0xff]
    %v1529 = vld [vmem:[#allocation4 + $0x20c0] sm:$0xff]
    %v1530 = vld [vmem:[#allocation4 + $0x20c8] sm:$0xff]
    %v1531 = vld [vmem:[#allocation4 + $0x20d0] sm:$0xff]
    %v1532 = vld [vmem:[#allocation4 + $0x20d8] sm:$0xff]
    %v1533 = vld [vmem:[#allocation4 + $0x20e0] sm:$0xff]
    %v1534 = vld [vmem:[#allocation4 + $0x20e8] sm:$0xff]
    %v1535 = vld [vmem:[#allocation4 + $0x20f0] sm:$0xff]
    %v1536 = vld [vmem:[#allocation4 + $0x20f8] sm:$0xff]
    %v1537 = vld [vmem:[#allocation4 + $0x2100] sm:$0xff]
    %v1538 = vld [vmem:[#allocation4 + $0x2108] sm:$0xff]
    %v1539 = vld [vmem:[#allocation4 + $0x2110] sm:$0xff]
    %v1540 = vld [vmem:[#allocation4 + $0x2118] sm:$0xff]
    %v1541 = vld [vmem:[#allocation4 + $0x2120] sm:$0xff]
    %v1542 = vld [vmem:[#allocation4 + $0x2128] sm:$0xff]
    %v1543 = vld [vmem:[#allocation4 + $0x2130] sm:$0xff]
    %v1544 = vld [vmem:[#allocation4 + $0x2138] sm:$0xff]
    %v1545 = vld [vmem:[#allocation4 + $0x2140] sm:$0xff]
    %v1546 = vld [vmem:[#allocation4 + $0x2148] sm:$0xff]
    %v1547 = vld [vmem:[#allocation4 + $0x2150] sm:$0xff]
    %v1548 = vld [vmem:[#allocation4 + $0x2158] sm:$0xff]
    %v1549 = vld [vmem:[#allocation4 + $0x2160] sm:$0xff]
    %v1550 = vld [vmem:[#allocation4 + $0x2168] sm:$0xff]
    %v1551 = vld [vmem:[#allocation4 + $0x2170] sm:$0xff]
    %v1552 = vld [vmem:[#allocation4 + $0x2178] sm:$0xff]
    %v1553 = vld [vmem:[#allocation4 + $0x2180] sm:$0xff]
    %v1554 = vld [vmem:[#allocation4 + $0x2188] sm:$0xff]
    %v1555 = vld [vmem:[#allocation4 + $0x2190] sm:$0xff]
    %v1556 = vld [vmem:[#allocation4 + $0x2198] sm:$0xff]
    %v1557 = vld [vmem:[#allocation4 + $0x21a0] sm:$0xff]
    %v1558 = vld [vmem:[#allocation4 + $0x21a8] sm:$0xff]
    %v1559 = vld [vmem:[#allocation4 + $0x21b0] sm:$0xff]
    %v1560 = vld [vmem:[#allocation4 + $0x21b8] sm:$0xff]
    %v1561 = vld [vmem:[#allocation4 + $0x21c0] sm:$0xff]
    %v1562 = vld [vmem:[#allocation4 + $0x21c8] sm:$0xff]
    %v1563 = vld [vmem:[#allocation4 + $0x21d0] sm:$0xff]
    %v1564 = vld [vmem:[#allocation4 + $0x21d8] sm:$0xff]
    %v1565 = vld [vmem:[#allocation4 + $0x21e0] sm:$0xff]
    %v1566 = vld [vmem:[#allocation4 + $0x21e8] sm:$0xff]
    %v1567 = vld [vmem:[#allocation4 + $0x21f0] sm:$0xff]
    %v1568 = vld [vmem:[#allocation4 + $0x21f8] sm:$0xff]
    %v1569 = vld [vmem:[#allocation4 + $0x2200] sm:$0xff]
    %v1570 = vld [vmem:[#allocation4 + $0x2208] sm:$0xff]
    %v1571 = vld [vmem:[#allocation4 + $0x2210] sm:$0xff]
    %v1572 = vld [vmem:[#allocation4 + $0x2218] sm:$0xff]
    %v1573 = vld [vmem:[#allocation4 + $0x2220] sm:$0xff]
    %v1574 = vld [vmem:[#allocation4 + $0x2228] sm:$0xff]
    %v1575 = vld [vmem:[#allocation4 + $0x2230] sm:$0xff]
    %v1576 = vld [vmem:[#allocation4 + $0x2238] sm:$0xff]
    %v1577 = vld [vmem:[#allocation4 + $0x2240] sm:$0xff]
    %v1578 = vld [vmem:[#allocation4 + $0x2248] sm:$0xff]
    %v1579 = vld [vmem:[#allocation4 + $0x2250] sm:$0xff]
    %v1580 = vld [vmem:[#allocation4 + $0x2258] sm:$0xff]
    %v1581 = vld [vmem:[#allocation4 + $0x2260] sm:$0xff]
    %v1582 = vld [vmem:[#allocation4 + $0x2268] sm:$0xff]
    %v1583 = vld [vmem:[#allocation4 + $0x2270] sm:$0xff]
    %v1584 = vld [vmem:[#allocation4 + $0x2278] sm:$0xff]
    %v1585 = vld [vmem:[#allocation4 + $0x2280] sm:$0xff]
    %v1586 = vld [vmem:[#allocation4 + $0x2288] sm:$0xff]
    %v1587 = vld [vmem:[#allocation4 + $0x2290] sm:$0xff]
    %v1588 = vld [vmem:[#allocation4 + $0x2298] sm:$0xff]
    %v1589 = vld [vmem:[#allocation4 + $0x22a0] sm:$0xff]
    %v1590 = vld [vmem:[#allocation4 + $0x22a8] sm:$0xff]
    %v1591 = vld [vmem:[#allocation4 + $0x22b0] sm:$0xff]
    %v1592 = vld [vmem:[#allocation4 + $0x22b8] sm:$0xff]
    %v1593 = vld [vmem:[#allocation4 + $0x22c0] sm:$0xff]
    %v1594 = vld [vmem:[#allocation4 + $0x22c8] sm:$0xff]
    %v1595 = vld [vmem:[#allocation4 + $0x22d0] sm:$0xff]
    %v1596 = vld [vmem:[#allocation4 + $0x22d8] sm:$0xff]
    %v1597 = vld [vmem:[#allocation4 + $0x22e0] sm:$0xff]
    %v1598 = vld [vmem:[#allocation4 + $0x22e8] sm:$0xff]
    %v1599 = vld [vmem:[#allocation4 + $0x22f0] sm:$0xff]
    %v1600 = vld [vmem:[#allocation4 + $0x22f8] sm:$0xff]
    %v1601 = vld [vmem:[#allocation4 + $0x2300] sm:$0xff]
    %v1602 = vld [vmem:[#allocation4 + $0x2308] sm:$0xff]
    %v1603 = vld [vmem:[#allocation4 + $0x2310] sm:$0xff]
    %v1604 = vld [vmem:[#allocation4 + $0x2318] sm:$0xff]
    %v1605 = vld [vmem:[#allocation4 + $0x2320] sm:$0xff]
    %v1606 = vld [vmem:[#allocation4 + $0x2328] sm:$0xff]
    %v1607 = vld [vmem:[#allocation4 + $0x2330] sm:$0xff]
    %v1608 = vld [vmem:[#allocation4 + $0x2338] sm:$0xff]
    %v1609 = vld [vmem:[#allocation4 + $0x2340] sm:$0xff]
    %v1610 = vld [vmem:[#allocation4 + $0x2348] sm:$0xff]
    %v1611 = vld [vmem:[#allocation4 + $0x2350] sm:$0xff]
    %v1612 = vld [vmem:[#allocation4 + $0x2358] sm:$0xff]
    %v1613 = vld [vmem:[#allocation4 + $0x2360] sm:$0xff]
    %v1614 = vld [vmem:[#allocation4 + $0x2368] sm:$0xff]
    %v1615 = vld [vmem:[#allocation4 + $0x2370] sm:$0xff]
    %v1616 = vld [vmem:[#allocation4 + $0x2378] sm:$0xff]
    %v1617 = vld [vmem:[#allocation4 + $0x2380] sm:$0xff]
    %v1618 = vld [vmem:[#allocation4 + $0x2388] sm:$0xff]
    %v1619 = vld [vmem:[#allocation4 + $0x2390] sm:$0xff]
    %v1620 = vld [vmem:[#allocation4 + $0x2398] sm:$0xff]
    %v1621 = vld [vmem:[#allocation4 + $0x23a0] sm:$0xff]
    %v1622 = vld [vmem:[#allocation4 + $0x23a8] sm:$0xff]
    %v1623 = vld [vmem:[#allocation4 + $0x23b0] sm:$0xff]
    %v1624 = vld [vmem:[#allocation4 + $0x23b8] sm:$0xff]
    %v1625 = vld [vmem:[#allocation4 + $0x23c0] sm:$0xff]
    %v1626 = vld [vmem:[#allocation4 + $0x23c8] sm:$0xff]
    %v1627 = vld [vmem:[#allocation4 + $0x23d0] sm:$0xff]
    %v1628 = vld [vmem:[#allocation4 + $0x23d8] sm:$0xff]
    %v1629 = vld [vmem:[#allocation4 + $0x23e0] sm:$0xff]
    %v1630 = vld [vmem:[#allocation4 + $0x23e8] sm:$0xff]
    %v1631 = vld [vmem:[#allocation4 + $0x23f0] sm:$0xff]
    %v1632 = vld [vmem:[#allocation4 + $0x23f8] sm:$0xff]
    %v1633 = vld [vmem:[#allocation4 + $0x2400] sm:$0xff]
    %v1634 = vld [vmem:[#allocation4 + $0x2408] sm:$0xff]
    %v1635 = vld [vmem:[#allocation4 + $0x2410] sm:$0xff]
    %v1636 = vld [vmem:[#allocation4 + $0x2418] sm:$0xff]
    %v1637 = vld [vmem:[#allocation4 + $0x2420] sm:$0xff]
    %v1638 = vld [vmem:[#allocation4 + $0x2428] sm:$0xff]
    %v1639 = vld [vmem:[#allocation4 + $0x2430] sm:$0xff]
    %v1640 = vld [vmem:[#allocation4 + $0x2438] sm:$0xff]
    %v1641 = vld [vmem:[#allocation4 + $0x2440] sm:$0xff]
    %v1642 = vld [vmem:[#allocation4 + $0x2448] sm:$0xff]
    %v1643 = vld [vmem:[#allocation4 + $0x2450] sm:$0xff]
    %v1644 = vld [vmem:[#allocation4 + $0x2458] sm:$0xff]
    %v1645 = vld [vmem:[#allocation4 + $0x2460] sm:$0xff]
    %v1646 = vld [vmem:[#allocation4 + $0x2468] sm:$0xff]
    %v1647 = vld [vmem:[#allocation4 + $0x2470] sm:$0xff]
    %v1648 = vld [vmem:[#allocation4 + $0x2478] sm:$0xff]
    %v1649 = vld [vmem:[#allocation4 + $0x2480] sm:$0xff]
    %v1650 = vld [vmem:[#allocation4 + $0x2488] sm:$0xff]
    %v1651 = vld [vmem:[#allocation4 + $0x2490] sm:$0xff]
    %v1652 = vld [vmem:[#allocation4 + $0x2498] sm:$0xff]
    %v1653 = vld [vmem:[#allocation4 + $0x24a0] sm:$0xff]
    %v1654 = vld [vmem:[#allocation4 + $0x24a8] sm:$0xff]
    %v1655 = vld [vmem:[#allocation4 + $0x24b0] sm:$0xff]
    %v1656 = vld [vmem:[#allocation4 + $0x24b8] sm:$0xff]
    %v1657 = vld [vmem:[#allocation4 + $0x24c0] sm:$0xff]
    %v1658 = vld [vmem:[#allocation4 + $0x24c8] sm:$0xff]
    %v1659 = vld [vmem:[#allocation4 + $0x24d0] sm:$0xff]
    %v1660 = vld [vmem:[#allocation4 + $0x24d8] sm:$0xff]
    %v1661 = vld [vmem:[#allocation4 + $0x24e0] sm:$0xff]
    %v1662 = vld [vmem:[#allocation4 + $0x24e8] sm:$0xff]
    %v1663 = vld [vmem:[#allocation4 + $0x24f0] sm:$0xff]
    %v1664 = vld [vmem:[#allocation4 + $0x24f8] sm:$0xff]
    %v1665 = vld [vmem:[#allocation4 + $0x2500] sm:$0xff]
    %v1666 = vld [vmem:[#allocation4 + $0x2508] sm:$0xff]
    %v1667 = vld [vmem:[#allocation4 + $0x2510] sm:$0xff]
    %v1668 = vld [vmem:[#allocation4 + $0x2518] sm:$0xff]
    %v1669 = vld [vmem:[#allocation4 + $0x2520] sm:$0xff]
    %v1670 = vld [vmem:[#allocation4 + $0x2528] sm:$0xff]
    %v1671 = vld [vmem:[#allocation4 + $0x2530] sm:$0xff]
    %v1672 = vld [vmem:[#allocation4 + $0x2538] sm:$0xff]
    %v1673 = vld [vmem:[#allocation4 + $0x2540] sm:$0xff]
    %v1674 = vld [vmem:[#allocation4 + $0x2548] sm:$0xff]
    %v1675 = vld [vmem:[#allocation4 + $0x2550] sm:$0xff]
    %v1676 = vld [vmem:[#allocation4 + $0x2558] sm:$0xff]
    %v1677 = vld [vmem:[#allocation4 + $0x2560] sm:$0xff]
    %v1678 = vld [vmem:[#allocation4 + $0x2568] sm:$0xff]
    %v1679 = vld [vmem:[#allocation4 + $0x2570] sm:$0xff]
    %v1680 = vld [vmem:[#allocation4 + $0x2578] sm:$0xff]
    %v1681 = vld [vmem:[#allocation4 + $0x2580] sm:$0xff]
    %v1682 = vld [vmem:[#allocation4 + $0x2588] sm:$0xff]
    %v1683 = vld [vmem:[#allocation4 + $0x2590] sm:$0xff]
    %v1684 = vld [vmem:[#allocation4 + $0x2598] sm:$0xff]
    %v1685 = vld [vmem:[#allocation4 + $0x25a0] sm:$0xff]
    %v1686 = vld [vmem:[#allocation4 + $0x25a8] sm:$0xff]
    %v1687 = vld [vmem:[#allocation4 + $0x25b0] sm:$0xff]
    %v1688 = vld [vmem:[#allocation4 + $0x25b8] sm:$0xff]
    %v1689 = vld [vmem:[#allocation4 + $0x25c0] sm:$0xff]
    %v1690 = vld [vmem:[#allocation4 + $0x25c8] sm:$0xff]
    %v1691 = vld [vmem:[#allocation4 + $0x25d0] sm:$0xff]
    %v1692 = vld [vmem:[#allocation4 + $0x25d8] sm:$0xff]
    %v1693 = vld [vmem:[#allocation4 + $0x25e0] sm:$0xff]
    %v1694 = vld [vmem:[#allocation4 + $0x25e8] sm:$0xff]
    %v1695 = vld [vmem:[#allocation4 + $0x25f0] sm:$0xff]
    %v1696 = vld [vmem:[#allocation4 + $0x25f8] sm:$0xff]
    %v1697 = vld [vmem:[#allocation4 + $0x2600] sm:$0xff]
    %v1698 = vld [vmem:[#allocation4 + $0x2608] sm:$0xff]
    %v1699 = vld [vmem:[#allocation4 + $0x2610] sm:$0xff]
    %v1700 = vld [vmem:[#allocation4 + $0x2618] sm:$0xff]
    %v1701 = vld [vmem:[#allocation4 + $0x2620] sm:$0xff]
    %v1702 = vld [vmem:[#allocation4 + $0x2628] sm:$0xff]
    %v1703 = vld [vmem:[#allocation4 + $0x2630] sm:$0xff]
    %v1704 = vld [vmem:[#allocation4 + $0x2638] sm:$0xff]
    %v1705 = vld [vmem:[#allocation4 + $0x2640] sm:$0xff]
    %v1706 = vld [vmem:[#allocation4 + $0x2648] sm:$0xff]
    %v1707 = vld [vmem:[#allocation4 + $0x2650] sm:$0xff]
    %v1708 = vld [vmem:[#allocation4 + $0x2658] sm:$0xff]
    %v1709 = vld [vmem:[#allocation4 + $0x2660] sm:$0xff]
    %v1710 = vld [vmem:[#allocation4 + $0x2668] sm:$0xff]
    %v1711 = vld [vmem:[#allocation4 + $0x2670] sm:$0xff]
    %v1712 = vld [vmem:[#allocation4 + $0x2678] sm:$0xff]
    %v1713 = vld [vmem:[#allocation4 + $0x2680] sm:$0xff]
    %v1714 = vld [vmem:[#allocation4 + $0x2688] sm:$0xff]
    %v1715 = vld [vmem:[#allocation4 + $0x2690] sm:$0xff]
    %v1716 = vld [vmem:[#allocation4 + $0x2698] sm:$0xff]
    %v1717 = vld [vmem:[#allocation4 + $0x26a0] sm:$0xff]
    %v1718 = vld [vmem:[#allocation4 + $0x26a8] sm:$0xff]
    %v1719 = vld [vmem:[#allocation4 + $0x26b0] sm:$0xff]
    %v1720 = vld [vmem:[#allocation4 + $0x26b8] sm:$0xff]
    %v1721 = vld [vmem:[#allocation4 + $0x26c0] sm:$0xff]
    %v1722 = vld [vmem:[#allocation4 + $0x26c8] sm:$0xff]
    %v1723 = vld [vmem:[#allocation4 + $0x26d0] sm:$0xff]
    %v1724 = vld [vmem:[#allocation4 + $0x26d8] sm:$0xff]
    %v1725 = vld [vmem:[#allocation4 + $0x26e0] sm:$0xff]
    %v1726 = vld [vmem:[#allocation4 + $0x26e8] sm:$0xff]
    %v1727 = vld [vmem:[#allocation4 + $0x26f0] sm:$0xff]
    %v1728 = vld [vmem:[#allocation4 + $0x26f8] sm:$0xff]
    %v1729 = vld [vmem:[#allocation4 + $0x2700] sm:$0xff]
    %v1730 = vld [vmem:[#allocation4 + $0x2708] sm:$0xff]
    %v1731 = vld [vmem:[#allocation4 + $0x2710] sm:$0xff]
    %v1732 = vld [vmem:[#allocation4 + $0x2718] sm:$0xff]
    %v1733 = vld [vmem:[#allocation4 + $0x2720] sm:$0xff]
    %v1734 = vld [vmem:[#allocation4 + $0x2728] sm:$0xff]
    %v1735 = vld [vmem:[#allocation4 + $0x2730] sm:$0xff]
    %v1736 = vld [vmem:[#allocation4 + $0x2738] sm:$0xff]
    %v1737 = vld [vmem:[#allocation4 + $0x2740] sm:$0xff]
    %v1738 = vld [vmem:[#allocation4 + $0x2748] sm:$0xff]
    %v1739 = vld [vmem:[#allocation4 + $0x2750] sm:$0xff]
    %v1740 = vld [vmem:[#allocation4 + $0x2758] sm:$0xff]
    %v1741 = vld [vmem:[#allocation4 + $0x2760] sm:$0xff]
    %v1742 = vld [vmem:[#allocation4 + $0x2768] sm:$0xff]
    %v1743 = vld [vmem:[#allocation4 + $0x2770] sm:$0xff]
    %v1744 = vld [vmem:[#allocation4 + $0x2778] sm:$0xff]
    %v1745 = vld [vmem:[#allocation4 + $0x2780] sm:$0xff]
    %v1746 = vld [vmem:[#allocation4 + $0x2788] sm:$0xff]
    %v1747 = vld [vmem:[#allocation4 + $0x2790] sm:$0xff]
    %v1748 = vld [vmem:[#allocation4 + $0x2798] sm:$0xff]
    %v1749 = vld [vmem:[#allocation4 + $0x27a0] sm:$0xff]
    %v1750 = vld [vmem:[#allocation4 + $0x27a8] sm:$0xff]
    %v1751 = vld [vmem:[#allocation4 + $0x27b0] sm:$0xff]
    %v1752 = vld [vmem:[#allocation4 + $0x27b8] sm:$0xff]
    %v1753 = vld [vmem:[#allocation4 + $0x27c0] sm:$0xff]
    %v1754 = vld [vmem:[#allocation4 + $0x27c8] sm:$0xff]
    %v1755 = vld [vmem:[#allocation4 + $0x27d0] sm:$0xff]
    %v1756 = vld [vmem:[#allocation4 + $0x27d8] sm:$0xff]
    %v1757 = vld [vmem:[#allocation4 + $0x27e0] sm:$0xff]
    %v1758 = vld [vmem:[#allocation4 + $0x27e8] sm:$0xff]
    %v1759 = vld [vmem:[#allocation4 + $0x27f0] sm:$0xff]
    %v1760 = vld [vmem:[#allocation4 + $0x27f8] sm:$0xff]
    %v1761 = vld [vmem:[#allocation4 + $0x2800] sm:$0xff]
    %v1762 = vld [vmem:[#allocation4 + $0x2808] sm:$0xff]
    %v1763 = vld [vmem:[#allocation4 + $0x2810] sm:$0xff]
    %v1764 = vld [vmem:[#allocation4 + $0x2818] sm:$0xff]
    %v1765 = vld [vmem:[#allocation4 + $0x2820] sm:$0xff]
    %v1766 = vld [vmem:[#allocation4 + $0x2828] sm:$0xff]
    %v1767 = vld [vmem:[#allocation4 + $0x2830] sm:$0xff]
    %v1768 = vld [vmem:[#allocation4 + $0x2838] sm:$0xff]
    %v1769 = vld [vmem:[#allocation4 + $0x2840] sm:$0xff]
    %v1770 = vld [vmem:[#allocation4 + $0x2848] sm:$0xff]
    %v1771 = vld [vmem:[#allocation4 + $0x2850] sm:$0xff]
    %v1772 = vld [vmem:[#allocation4 + $0x2858] sm:$0xff]
    %v1773 = vld [vmem:[#allocation4 + $0x2860] sm:$0xff]
    %v1774 = vld [vmem:[#allocation4 + $0x2868] sm:$0xff]
    %v1775 = vld [vmem:[#allocation4 + $0x2870] sm:$0xff]
    %v1776 = vld [vmem:[#allocation4 + $0x2878] sm:$0xff]
    %v1777 = vld [vmem:[#allocation4 + $0x2880] sm:$0xff]
    %v1778 = vld [vmem:[#allocation4 + $0x2888] sm:$0xff]
    %v1779 = vld [vmem:[#allocation4 + $0x2890] sm:$0xff]
    %v1780 = vld [vmem:[#allocation4 + $0x2898] sm:$0xff]
    %v1781 = vld [vmem:[#allocation4 + $0x28a0] sm:$0xff]
    %v1782 = vld [vmem:[#allocation4 + $0x28a8] sm:$0xff]
    %v1783 = vld [vmem:[#allocation4 + $0x28b0] sm:$0xff]
    %v1784 = vld [vmem:[#allocation4 + $0x28b8] sm:$0xff]
    %v1785 = vld [vmem:[#allocation4 + $0x28c0] sm:$0xff]
    %v1786 = vld [vmem:[#allocation4 + $0x28c8] sm:$0xff]
    %v1787 = vld [vmem:[#allocation4 + $0x28d0] sm:$0xff]
    %v1788 = vld [vmem:[#allocation4 + $0x28d8] sm:$0xff]
    %v1789 = vld [vmem:[#allocation4 + $0x28e0] sm:$0xff]
    %v1790 = vld [vmem:[#allocation4 + $0x28e8] sm:$0xff]
    %v1791 = vld [vmem:[#allocation4 + $0x28f0] sm:$0xff]
    %v1792 = vld [vmem:[#allocation4 + $0x28f8] sm:$0xff]
    %v1793 = vld [vmem:[#allocation4 + $0x2900] sm:$0xff]
    %v1794 = vld [vmem:[#allocation4 + $0x2908] sm:$0xff]
    %v1795 = vld [vmem:[#allocation4 + $0x2910] sm:$0xff]
    %v1796 = vld [vmem:[#allocation4 + $0x2918] sm:$0xff]
    %v1797 = vld [vmem:[#allocation4 + $0x2920] sm:$0xff]
    %v1798 = vld [vmem:[#allocation4 + $0x2928] sm:$0xff]
    %v1799 = vld [vmem:[#allocation4 + $0x2930] sm:$0xff]
    %v1800 = vld [vmem:[#allocation4 + $0x2938] sm:$0xff]
    %v1801 = vld [vmem:[#allocation4 + $0x2940] sm:$0xff]
    %v1802 = vld [vmem:[#allocation4 + $0x2948] sm:$0xff]
    %v1803 = vld [vmem:[#allocation4 + $0x2950] sm:$0xff]
    %v1804 = vld [vmem:[#allocation4 + $0x2958] sm:$0xff]
    %v1805 = vld [vmem:[#allocation4 + $0x2960] sm:$0xff]
    %v1806 = vld [vmem:[#allocation4 + $0x2968] sm:$0xff]
    %v1807 = vld [vmem:[#allocation4 + $0x2970] sm:$0xff]
    %v1808 = vld [vmem:[#allocation4 + $0x2978] sm:$0xff]
    %v1809 = vld [vmem:[#allocation4 + $0x2980] sm:$0xff]
    %v1810 = vld [vmem:[#allocation4 + $0x2988] sm:$0xff]
    %v1811 = vld [vmem:[#allocation4 + $0x2990] sm:$0xff]
    %v1812 = vld [vmem:[#allocation4 + $0x2998] sm:$0xff]
    %v1813 = vld [vmem:[#allocation4 + $0x29a0] sm:$0xff]
    %v1814 = vld [vmem:[#allocation4 + $0x29a8] sm:$0xff]
    %v1815 = vld [vmem:[#allocation4 + $0x29b0] sm:$0xff]
    %v1816 = vld [vmem:[#allocation4 + $0x29b8] sm:$0xff]
    %v1817 = vld [vmem:[#allocation4 + $0x29c0] sm:$0xff]
    %v1818 = vld [vmem:[#allocation4 + $0x29c8] sm:$0xff]
    %v1819 = vld [vmem:[#allocation4 + $0x29d0] sm:$0xff]
    %v1820 = vld [vmem:[#allocation4 + $0x29d8] sm:$0xff]
    %v1821 = vld [vmem:[#allocation4 + $0x29e0] sm:$0xff]
    %v1822 = vld [vmem:[#allocation4 + $0x29e8] sm:$0xff]
    %v1823 = vld [vmem:[#allocation4 + $0x29f0] sm:$0xff]
    %v1824 = vld [vmem:[#allocation4 + $0x29f8] sm:$0xff]
    %v1825 = vld [vmem:[#allocation5] sm:$0xff]
    %v1826 = vld [vmem:[#allocation5 + $0x8] sm:$0xff]
    %v1827 = vld [vmem:[#allocation5 + $0x10] sm:$0xff]
    %v1831 = vlaneseq
    %v1832 = vshrl.u32 %v1831, 7
    %v1833 = vsub.s32 0, %v1832
    %v1834 = vrot.slane %v1825, %v1833
    %v1835 = vlaneseq
    %v1836 = vshrl.u32 %v1835, 7
    %v1837 = vsub.s32 1, %v1836
    %v1838 = vrot.slane %v1825, %v1837
    %v1839 = vlaneseq
    %v1840 = vshrl.u32 %v1839, 7
    %v1841 = vsub.s32 2, %v1840
    %v1842 = vrot.slane %v1825, %v1841
    %v1843 = vlaneseq
    %v1844 = vshrl.u32 %v1843, 7
    %v1845 = vsub.s32 3, %v1844
    %v1846 = vrot.slane %v1825, %v1845
    %v1847 = vlaneseq
    %v1848 = vshrl.u32 %v1847, 7
    %v1849 = vsub.s32 4, %v1848
    %v1850 = vrot.slane %v1825, %v1849
    %v1851 = vlaneseq
    %v1852 = vshrl.u32 %v1851, 7
    %v1853 = vsub.s32 5, %v1852
    %v1854 = vrot.slane %v1825, %v1853
    %v1855 = vlaneseq
    %v1856 = vshrl.u32 %v1855, 7
    %v1857 = vsub.s32 6, %v1856
    %v1858 = vrot.slane %v1825, %v1857
    %v1859 = vlaneseq
    %v1860 = vshrl.u32 %v1859, 7
    %v1861 = vsub.s32 7, %v1860
    %v1862 = vrot.slane %v1825, %v1861
    %v1863 = vlaneseq
    %v1864 = vshrl.u32 %v1863, 7
    %v1865 = vsub.s32 0, %v1864
    %v1866 = vrot.slane %v1826, %v1865
    %v1867 = vlaneseq
    %v1868 = vshrl.u32 %v1867, 7
    %v1869 = vsub.s32 1, %v1868
    %v1870 = vrot.slane %v1826, %v1869
    %v1871 = vlaneseq
    %v1872 = vshrl.u32 %v1871, 7
    %v1873 = vsub.s32 2, %v1872
    %v1874 = vrot.slane %v1826, %v1873
    %v1875 = vlaneseq
    %v1876 = vshrl.u32 %v1875, 7
    %v1877 = vsub.s32 3, %v1876
    %v1878 = vrot.slane %v1826, %v1877
    %v1879 = vlaneseq
    %v1880 = vshrl.u32 %v1879, 7
    %v1881 = vsub.s32 4, %v1880
    %v1882 = vrot.slane %v1826, %v1881
    %v1883 = vlaneseq
    %v1884 = vshrl.u32 %v1883, 7
    %v1885 = vsub.s32 5, %v1884
    %v1886 = vrot.slane %v1826, %v1885
    %v1887 = vlaneseq
    %v1888 = vshrl.u32 %v1887, 7
    %v1889 = vsub.s32 6, %v1888
    %v1890 = vrot.slane %v1826, %v1889
    %v1891 = vlaneseq
    %v1892 = vshrl.u32 %v1891, 7
    %v1893 = vsub.s32 7, %v1892
    %v1894 = vrot.slane %v1826, %v1893
    %v1895 = vlaneseq
    %v1896 = vshrl.u32 %v1895, 7
    %v1897 = vsub.s32 0, %v1896
    %v1898 = vrot.slane %v1827, %v1897
    %v1899 = vlaneseq
    %v1900 = vshrl.u32 %v1899, 7
    %v1901 = vsub.s32 1, %v1900
    %v1902 = vrot.slane %v1827, %v1901
    %v1903 = vlaneseq
    %v1904 = vshrl.u32 %v1903, 7
    %v1905 = vsub.s32 2, %v1904
    %v1906 = vrot.slane %v1827, %v1905
    %v1907 = vlaneseq
    %v1908 = vshrl.u32 %v1907, 7
    %v1909 = vsub.s32 3, %v1908
    %v1910 = vrot.slane %v1827, %v1909
    %v1911 = vlaneseq
    %v1912 = vshrl.u32 %v1911, 7
    %v1913 = vsub.s32 4, %v1912
    %v1914 = vrot.slane %v1827, %v1913
    %v1915 = vlaneseq
    %v1916 = vshrl.u32 %v1915, 7
    %v1917 = vsub.s32 5, %v1916
    %v1918 = vrot.slane %v1827, %v1917
    %v1919 = vlaneseq
    %v1920 = vshrl.u32 %v1919, 7
    %v1921 = vsub.s32 6, %v1920
    %v1922 = vrot.slane %v1827, %v1921
    %v1923 = vlaneseq
    %v1924 = vshrl.u32 %v1923, 7
    %v1925 = vsub.s32 7, %v1924
    %v1926 = vrot.slane %v1827, %v1925
    %1951 = vmatprep.subr.bf16.mxu0 %v482
    %1952 = vmatpush1.bf16.msra.mxu0 %v481
    %1953 = vmatprep.subr.bf16.mxu0 %v506
    %1954 = vmatpush1.bf16.msra.mxu0 %v505
    %1955 = vmatprep.subr.bf16.mxu0 %v530
    %1956 = vmatpush1.bf16.msra.mxu0 %v529
    %1957 = vmatprep.subr.bf16.mxu0 %v554
    %1958 = vmatpush1.bf16.msra.mxu0 %v553
    %1959 = vmatprep.subr.bf16.mxu0 %v578
    %1960 = vmatpush1.bf16.msra.mxu0 %v577
    %1961 = vmatprep.subr.bf16.mxu0 %v602
    %1962 = vmatpush1.bf16.msra.mxu0 %v601
    %1963 = vmatprep.subr.bf16.mxu0 %v626
    %1964 = vmatpush1.bf16.msra.mxu0 %v625
    %1965 = vmatprep.subr.bf16.mxu0 %v650
    %1966 = vmatpush1.bf16.msra.mxu0 %v649
    %1967 = vmatprep.subr.bf16.mxu0 %v674
    %1968 = vmatpush1.bf16.msra.mxu0 %v673
    %1969 = vmatprep.subr.bf16.mxu0 %v698
    %1970 = vmatpush1.bf16.msra.mxu0 %v697
    %1971 = vmatprep.subr.bf16.mxu0 %v722
    %1972 = vmatpush1.bf16.msra.mxu0 %v721
    %1973 = vmatprep.subr.bf16.mxu0 %v746
    %1974 = vmatpush1.bf16.msra.mxu0 %v745
    %1975 = vmatprep.subr.bf16.mxu0 %v770
    %1976 = vmatpush1.bf16.msra.mxu0 %v769
    %1977 = vmatprep.subr.bf16.mxu0 %v794
    %1978 = vmatpush1.bf16.msra.mxu0 %v793
    %1979 = vmatprep.subr.bf16.mxu0 %v818
    %1980 = vmatpush1.bf16.msra.mxu0 %v817
    %1981 = vmatprep.subr.bf16.mxu0 %v842
    %1982 = vmatpush1.bf16.msra.mxu0 %v841
    %1983 = vmatprep.mubr.bf16.mxu0 %v468
    %1984 = vmatmul.mubr.bf16.gmra.mrb[0].mxu0 %v467
    %v1985 = vpop.f32.mrb[0].mxu0
    %v1986 = vadd.f32 %v1834, %v1985
    %v1987 = vpop.f32.mrb[0].mxu0
    %v1988 = vadd.f32 %v1838, %v1987
    %v1989 = vpop.f32.mrb[0].mxu0
    %v1990 = vpop.f32.mrb[0].mxu0
    %1991 = vdwg.mxu0
    %1992 = vmatprep.subr.bf16.mxu0 %v866
    %1993 = vmatpush1.bf16.msra.mxu0 %v865
    %1994 = vmatprep.subr.bf16.mxu0 %v890
    %1995 = vmatpush1.bf16.msra.mxu0 %v889
    %1996 = vmatprep.subr.bf16.mxu0 %v914
    %1997 = vmatpush1.bf16.msra.mxu0 %v913
    %1998 = vmatprep.subr.bf16.mxu0 %v938
    %1999 = vmatpush1.bf16.msra.mxu0 %v937
    %2000 = vmatprep.subr.bf16.mxu0 %v962
    %2001 = vmatpush1.bf16.msra.mxu0 %v961
    %2002 = vmatprep.subr.bf16.mxu0 %v986
    %2003 = vmatpush1.bf16.msra.mxu0 %v985
    %2004 = vmatprep.subr.bf16.mxu0 %v1010
    %2005 = vmatpush1.bf16.msra.mxu0 %v1009
    %2006 = vmatprep.subr.bf16.mxu0 %v1034
    %2007 = vmatpush1.bf16.msra.mxu0 %v1033
    %2008 = vmatprep.subr.bf16.mxu0 %v1058
    %2009 = vmatpush1.bf16.msra.mxu0 %v1057
    %2010 = vmatprep.subr.bf16.mxu0 %v1082
    %2011 = vmatpush1.bf16.msra.mxu0 %v1081
    %2012 = vmatprep.subr.bf16.mxu0 %v1106
    %2013 = vmatpush1.bf16.msra.mxu0 %v1105
    %2014 = vmatprep.subr.bf16.mxu0 %v1130
    %2015 = vmatpush1.bf16.msra.mxu0 %v1129
    %2016 = vmatprep.subr.bf16.mxu0 %v1154
    %2017 = vmatpush1.bf16.msra.mxu0 %v1153
    %2018 = vmatprep.subr.bf16.mxu0 %v1178
    %2019 = vmatpush1.bf16.msra.mxu0 %v1177
    %2020 = vmatprep.subr.bf16.mxu0 %v1202
    %2021 = vmatpush1.bf16.msra.mxu0 %v1201
    %2022 = vmatprep.subr.bf16.mxu0 %v1226
    %2023 = vmatpush1.bf16.msra.mxu0 %v1225
    %2024 = vmatprep.mubr.bf16.mxu0 %v470
    %2025 = vmatmul.mubr.bf16.gmra.mrb[0].mxu0 %v469
    %v2026 = vpop.f32.mrb[0].mxu0
    %v2027 = vadd.f32 %v1986, %v2026
    %v2028 = vpop.f32.mrb[0].mxu0
    %v2029 = vadd.f32 %v1988, %v2028
    %v2030 = vpop.f32.mrb[0].mxu0
    %v2031 = vpop.f32.mrb[0].mxu0
    %2032 = vdwg.mxu0
    %2033 = vmatprep.subr.bf16.mxu0 %v1250
    %2034 = vmatpush1.bf16.msra.mxu0 %v1249
    %2035 = vmatprep.subr.bf16.mxu0 %v1274
    %2036 = vmatpush1.bf16.msra.mxu0 %v1273
    %2037 = vmatprep.subr.bf16.mxu0 %v1298
    %2038 = vmatpush1.bf16.msra.mxu0 %v1297
    %2039 = vmatprep.subr.bf16.mxu0 %v1322
    %2040 = vmatpush1.bf16.msra.mxu0 %v1321
    %2041 = vmatprep.subr.bf16.mxu0 %v1346
    %2042 = vmatpush1.bf16.msra.mxu0 %v1345
    %2043 = vmatprep.subr.bf16.mxu0 %v1370
    %2044 = vmatpush1.bf16.msra.mxu0 %v1369
    %2045 = vmatprep.subr.bf16.mxu0 %v1394
    %2046 = vmatpush1.bf16.msra.mxu0 %v1393
    %2047 = vmatprep.subr.bf16.mxu0 %v1418
    %2048 = vmatpush1.bf16.msra.mxu0 %v1417
    %2049 = vmatprep.subr.bf16.mxu0 %v1442
    %2050 = vmatpush1.bf16.msra.mxu0 %v1441
    %2051 = vmatprep.subr.bf16.mxu0 %v1466
    %2052 = vmatpush1.bf16.msra.mxu0 %v1465
    %2053 = vmatprep.subr.bf16.mxu0 %v1490
    %2054 = vmatpush1.bf16.msra.mxu0 %v1489
    %2055 = vmatprep.subr.bf16.mxu0 %v1514
    %2056 = vmatpush1.bf16.msra.mxu0 %v1513
    %2057 = vmatprep.subr.bf16.mxu0 %v1538
    %2058 = vmatpush1.bf16.msra.mxu0 %v1537
    %2059 = vmatprep.subr.bf16.mxu0 %v1562
    %2060 = vmatpush1.bf16.msra.mxu0 %v1561
    %2061 = vmatprep.subr.bf16.mxu0 %v1586
    %2062 = vmatpush1.bf16.msra.mxu0 %v1585
    %2063 = vmatprep.subr.bf16.mxu0 %v1610
    %2064 = vmatpush1.bf16.msra.mxu0 %v1609
    %2065 = vmatprep.mubr.bf16.mxu0 %v472
    %2066 = vmatmul.mubr.bf16.gmra.mrb[0].mxu0 %v471
    %v2067 = vpop.f32.mrb[0].mxu0
    %v2068 = vadd.f32 %v2027, %v2067
    %v2069 = vpop.f32.mrb[0].mxu0
    %v2070 = vadd.f32 %v2029, %v2069
    %v2071 = vpop.f32.mrb[0].mxu0
    %v2072 = vpop.f32.mrb[0].mxu0
    %2073 = vdwg.mxu0
    %2074 = vmatprep.subr.bf16.mxu0 %v1634
    %2075 = vmatpush1.bf16.msra.mxu0 %v1633
    %2076 = vmatprep.subr.bf16.mxu0 %v1658
    %2077 = vmatpush1.bf16.msra.mxu0 %v1657
    %2078 = vmatprep.subr.bf16.mxu0 %v1682
    %2079 = vmatpush1.bf16.msra.mxu0 %v1681
    %2080 = vmatprep.subr.bf16.mxu0 %v1706
    %2081 = vmatpush1.bf16.msra.mxu0 %v1705
    %2082 = vmatprep.subr.bf16.mxu0 %v1730
    %2083 = vmatpush1.bf16.msra.mxu0 %v1729
    %2084 = vmatprep.subr.bf16.mxu0 %v1754
    %2085 = vmatpush1.bf16.msra.mxu0 %v1753
    %2086 = vmatprep.subr.bf16.mxu0 %v1778
    %2087 = vmatpush1.bf16.msra.mxu0 %v1777
    %2088 = vmatprep.subr.bf16.mxu0 %v1802
    %2089 = vmatpush1.bf16.msra.mxu0 %v1801
    %2090 = vmatprep.subr.bf16.mxu0 0
    %2091 = vmatpush1.bf16.msra.mxu0 0
    %2092 = vmatprep.subr.bf16.mxu0 0
    %2093 = vmatpush1.bf16.msra.mxu0 0
    %2094 = vmatprep.subr.bf16.mxu0 0
    %2095 = vmatpush1.bf16.msra.mxu0 0
    %2096 = vmatprep.subr.bf16.mxu0 0
    %2097 = vmatpush1.bf16.msra.mxu0 0
    %2098 = vmatprep.subr.bf16.mxu0 0
    %2099 = vmatpush1.bf16.msra.mxu0 0
    %2100 = vmatprep.subr.bf16.mxu0 0
    %2101 = vmatpush1.bf16.msra.mxu0 0
    %2102 = vmatprep.subr.bf16.mxu0 0
    %2103 = vmatpush1.bf16.msra.mxu0 0
    %2104 = vmatprep.subr.bf16.mxu0 0
    %2105 = vmatpush1.bf16.msra.mxu0 0
    %2106 = vmatprep.mubr.bf16.mxu0 0
    %2107 = vmatmul.mubr.bf16.gmra.mrb[0].mxu0 %v473
    %v2108 = vpop.f32.mrb[0].mxu0
    %v2109 = vadd.f32 %v2068, %v2108
    %v2110 = vpop.f32.mrb[0].mxu0
    %v2111 = vadd.f32 %v2070, %v2110
    %v2112 = vpop.f32.mrb[0].mxu0
    %v2113 = vpop.f32.mrb[0].mxu0
    %2114 = vdwg.mxu0
    %2115 = vmatprep.subr.bf16.mxu0 %v484
    %2116 = vmatpush1.bf16.msra.mxu0 %v483
    %2117 = vmatprep.subr.bf16.mxu0 %v508
    %2118 = vmatpush1.bf16.msra.mxu0 %v507
    %2119 = vmatprep.subr.bf16.mxu0 %v532
    %2120 = vmatpush1.bf16.msra.mxu0 %v531
    %2121 = vmatprep.subr.bf16.mxu0 %v556
    %2122 = vmatpush1.bf16.msra.mxu0 %v555
    %2123 = vmatprep.subr.bf16.mxu0 %v580
    %2124 = vmatpush1.bf16.msra.mxu0 %v579
    %2125 = vmatprep.subr.bf16.mxu0 %v604
    %2126 = vmatpush1.bf16.msra.mxu0 %v603
    %2127 = vmatprep.subr.bf16.mxu0 %v628
    %2128 = vmatpush1.bf16.msra.mxu0 %v627
    %2129 = vmatprep.subr.bf16.mxu0 %v652
    %2130 = vmatpush1.bf16.msra.mxu0 %v651
    %2131 = vmatprep.subr.bf16.mxu0 %v676
    %2132 = vmatpush1.bf16.msra.mxu0 %v675
    %2133 = vmatprep.subr.bf16.mxu0 %v700
    %2134 = vmatpush1.bf16.msra.mxu0 %v699
    %2135 = vmatprep.subr.bf16.mxu0 %v724
    %2136 = vmatpush1.bf16.msra.mxu0 %v723
    %2137 = vmatprep.subr.bf16.mxu0 %v748
    %2138 = vmatpush1.bf16.msra.mxu0 %v747
    %2139 = vmatprep.subr.bf16.mxu0 %v772
    %2140 = vmatpush1.bf16.msra.mxu0 %v771
    %2141 = vmatprep.subr.bf16.mxu0 %v796
    %2142 = vmatpush1.bf16.msra.mxu0 %v795
    %2143 = vmatprep.subr.bf16.mxu0 %v820
    %2144 = vmatpush1.bf16.msra.mxu0 %v819
    %2145 = vmatprep.subr.bf16.mxu0 %v844
    %2146 = vmatpush1.bf16.msra.mxu0 %v843
    %2147 = vmatprep.mubr.bf16.mxu0 %v468
    %2148 = vmatmul.mubr.bf16.gmra.mrb[0].mxu0 %v467
    %v2149 = vpop.f32.mrb[0].mxu0
    %v2150 = vadd.f32 %v1842, %v2149
    %v2151 = vpop.f32.mrb[0].mxu0
    %v2152 = vadd.f32 %v1846, %v2151
    %v2153 = vpop.f32.mrb[0].mxu0
    %v2154 = vpop.f32.mrb[0].mxu0
    %2155 = vdwg.mxu0
    %2156 = vmatprep.subr.bf16.mxu0 %v868
    %2157 = vmatpush1.bf16.msra.mxu0 %v867
    %2158 = vmatprep.subr.bf16.mxu0 %v892
    %2159 = vmatpush1.bf16.msra.mxu0 %v891
    %2160 = vmatprep.subr.bf16.mxu0 %v916
    %2161 = vmatpush1.bf16.msra.mxu0 %v915
    %2162 = vmatprep.subr.bf16.mxu0 %v940
    %2163 = vmatpush1.bf16.msra.mxu0 %v939
    %2164 = vmatprep.subr.bf16.mxu0 %v964
    %2165 = vmatpush1.bf16.msra.mxu0 %v963
    %2166 = vmatprep.subr.bf16.mxu0 %v988
    %2167 = vmatpush1.bf16.msra.mxu0 %v987
    %2168 = vmatprep.subr.bf16.mxu0 %v1012
    %2169 = vmatpush1.bf16.msra.mxu0 %v1011
    %2170 = vmatprep.subr.bf16.mxu0 %v1036
    %2171 = vmatpush1.bf16.msra.mxu0 %v1035
    %2172 = vmatprep.subr.bf16.mxu0 %v1060
    %2173 = vmatpush1.bf16.msra.mxu0 %v1059
    %2174 = vmatprep.subr.bf16.mxu0 %v1084
    %2175 = vmatpush1.bf16.msra.mxu0 %v1083
    %2176 = vmatprep.subr.bf16.mxu0 %v1108
    %2177 = vmatpush1.bf16.msra.mxu0 %v1107
    %2178 = vmatprep.subr.bf16.mxu0 %v1132
    %2179 = vmatpush1.bf16.msra.mxu0 %v1131
    %2180 = vmatprep.subr.bf16.mxu0 %v1156
    %2181 = vmatpush1.bf16.msra.mxu0 %v1155
    %2182 = vmatprep.subr.bf16.mxu0 %v1180
    %2183 = vmatpush1.bf16.msra.mxu0 %v1179
    %2184 = vmatprep.subr.bf16.mxu0 %v1204
    %2185 = vmatpush1.bf16.msra.mxu0 %v1203
    %2186 = vmatprep.subr.bf16.mxu0 %v1228
    %2187 = vmatpush1.bf16.msra.mxu0 %v1227
    %2188 = vmatprep.mubr.bf16.mxu0 %v470
    %2189 = vmatmul.mubr.bf16.gmra.mrb[0].mxu0 %v469
    %v2190 = vpop.f32.mrb[0].mxu0
    %v2191 = vadd.f32 %v2150, %v2190
    %v2192 = vpop.f32.mrb[0].mxu0
    %v2193 = vadd.f32 %v2152, %v2192
    %v2194 = vpop.f32.mrb[0].mxu0
    %v2195 = vpop.f32.mrb[0].mxu0
    %2196 = vdwg.mxu0
    %2197 = vmatprep.subr.bf16.mxu0 %v1252
    %2198 = vmatpush1.bf16.msra.mxu0 %v1251
    %2199 = vmatprep.subr.bf16.mxu0 %v1276
    %2200 = vmatpush1.bf16.msra.mxu0 %v1275
    %2201 = vmatprep.subr.bf16.mxu0 %v1300
    %2202 = vmatpush1.bf16.msra.mxu0 %v1299
    %2203 = vmatprep.subr.bf16.mxu0 %v1324
    %2204 = vmatpush1.bf16.msra.mxu0 %v1323
    %2205 = vmatprep.subr.bf16.mxu0 %v1348
    %2206 = vmatpush1.bf16.msra.mxu0 %v1347
    %2207 = vmatprep.subr.bf16.mxu0 %v1372
    %2208 = vmatpush1.bf16.msra.mxu0 %v1371
    %2209 = vmatprep.subr.bf16.mxu0 %v1396
    %2210 = vmatpush1.bf16.msra.mxu0 %v1395
    %2211 = vmatprep.subr.bf16.mxu0 %v1420
    %2212 = vmatpush1.bf16.msra.mxu0 %v1419
    %2213 = vmatprep.subr.bf16.mxu0 %v1444
    %2214 = vmatpush1.bf16.msra.mxu0 %v1443
    %2215 = vmatprep.subr.bf16.mxu0 %v1468
    %2216 = vmatpush1.bf16.msra.mxu0 %v1467
    %2217 = vmatprep.subr.bf16.mxu0 %v1492
    %2218 = vmatpush1.bf16.msra.mxu0 %v1491
    %2219 = vmatprep.subr.bf16.mxu0 %v1516
    %2220 = vmatpush1.bf16.msra.mxu0 %v1515
    %2221 = vmatprep.subr.bf16.mxu0 %v1540
    %2222 = vmatpush1.bf16.msra.mxu0 %v1539
    %2223 = vmatprep.subr.bf16.mxu0 %v1564
    %2224 = vmatpush1.bf16.msra.mxu0 %v1563
    %2225 = vmatprep.subr.bf16.mxu0 %v1588
    %2226 = vmatpush1.bf16.msra.mxu0 %v1587
    %2227 = vmatprep.subr.bf16.mxu0 %v1612
    %2228 = vmatpush1.bf16.msra.mxu0 %v1611
    %2229 = vmatprep.mubr.bf16.mxu0 %v472
    %2230 = vmatmul.mubr.bf16.gmra.mrb[0].mxu0 %v471
    %v2231 = vpop.f32.mrb[0].mxu0
    %v2232 = vadd.f32 %v2191, %v2231
    %v2233 = vpop.f32.mrb[0].mxu0
    %v2234 = vadd.f32 %v2193, %v2233
    %v2235 = vpop.f32.mrb[0].mxu0
    %v2236 = vpop.f32.mrb[0].mxu0
    %2237 = vdwg.mxu0
    %2238 = vmatprep.subr.bf16.mxu0 %v1636
    %2239 = vmatpush1.bf16.msra.mxu0 %v1635
    %2240 = vmatprep.subr.bf16.mxu0 %v1660
    %2241 = vmatpush1.bf16.msra.mxu0 %v1659
    %2242 = vmatprep.subr.bf16.mxu0 %v1684
    %2243 = vmatpush1.bf16.msra.mxu0 %v1683
    %2244 = vmatprep.subr.bf16.mxu0 %v1708
    %2245 = vmatpush1.bf16.msra.mxu0 %v1707
    %2246 = vmatprep.subr.bf16.mxu0 %v1732
    %2247 = vmatpush1.bf16.msra.mxu0 %v1731
    %2248 = vmatprep.subr.bf16.mxu0 %v1756
    %2249 = vmatpush1.bf16.msra.mxu0 %v1755
    %2250 = vmatprep.subr.bf16.mxu0 %v1780
    %2251 = vmatpush1.bf16.msra.mxu0 %v1779
    %2252 = vmatprep.subr.bf16.mxu0 %v1804
    %2253 = vmatpush1.bf16.msra.mxu0 %v1803
    %2254 = vmatprep.subr.bf16.mxu0 0
    %2255 = vmatpush1.bf16.msra.mxu0 0
    %2256 = vmatprep.subr.bf16.mxu0 0
    %2257 = vmatpush1.bf16.msra.mxu0 0
    %2258 = vmatprep.subr.bf16.mxu0 0
    %2259 = vmatpush1.bf16.msra.mxu0 0
    %2260 = vmatprep.subr.bf16.mxu0 0
    %2261 = vmatpush1.bf16.msra.mxu0 0
    %2262 = vmatprep.subr.bf16.mxu0 0
    %2263 = vmatpush1.bf16.msra.mxu0 0
    %2264 = vmatprep.subr.bf16.mxu0 0
    %2265 = vmatpush1.bf16.msra.mxu0 0
    %2266 = vmatprep.subr.bf16.mxu0 0
    %2267 = vmatpush1.bf16.msra.mxu0 0
    %2268 = vmatprep.subr.bf16.mxu0 0
    %2269 = vmatpush1.bf16.msra.mxu0 0
    %2270 = vmatprep.mubr.bf16.mxu0 0
    %2271 = vmatmul.mubr.bf16.gmra.mrb[0].mxu0 %v473
    %v2272 = vpop.f32.mrb[0].mxu0
    %v2273 = vadd.f32 %v2232, %v2272
    %v2274 = vpop.f32.mrb[0].mxu0
    %v2275 = vadd.f32 %v2234, %v2274
    %v2276 = vpop.f32.mrb[0].mxu0
    %v2277 = vpop.f32.mrb[0].mxu0
    %2278 = vdwg.mxu0
    %2279 = vmatprep.subr.bf16.mxu0 %v486
    %2280 = vmatpush1.bf16.msra.mxu0 %v485
    %2281 = vmatprep.subr.bf16.mxu0 %v510
    %2282 = vmatpush1.bf16.msra.mxu0 %v509
    %2283 = vmatprep.subr.bf16.mxu0 %v534
    %2284 = vmatpush1.bf16.msra.mxu0 %v533
    %2285 = vmatprep.subr.bf16.mxu0 %v558
    %2286 = vmatpush1.bf16.msra.mxu0 %v557
    %2287 = vmatprep.subr.bf16.mxu0 %v582
    %2288 = vmatpush1.bf16.msra.mxu0 %v581
    %2289 = vmatprep.subr.bf16.mxu0 %v606
    %2290 = vmatpush1.bf16.msra.mxu0 %v605
    %2291 = vmatprep.subr.bf16.mxu0 %v630
    %2292 = vmatpush1.bf16.msra.mxu0 %v629
    %2293 = vmatprep.subr.bf16.mxu0 %v654
    %2294 = vmatpush1.bf16.msra.mxu0 %v653
    %2295 = vmatprep.subr.bf16.mxu0 %v678
    %2296 = vmatpush1.bf16.msra.mxu0 %v677
    %2297 = vmatprep.subr.bf16.mxu0 %v702
    %2298 = vmatpush1.bf16.msra.mxu0 %v701
    %2299 = vmatprep.subr.bf16.mxu0 %v726
    %2300 = vmatpush1.bf16.msra.mxu0 %v725
    %2301 = vmatprep.subr.bf16.mxu0 %v750
    %2302 = vmatpush1.bf16.msra.mxu0 %v749
    %2303 = vmatprep.subr.bf16.mxu0 %v774
    %2304 = vmatpush1.bf16.msra.mxu0 %v773
    %2305 = vmatprep.subr.bf16.mxu0 %v798
    %2306 = vmatpush1.bf16.msra.mxu0 %v797
    %2307 = vmatprep.subr.bf16.mxu0 %v822
    %2308 = vmatpush1.bf16.msra.mxu0 %v821
    %2309 = vmatprep.subr.bf16.mxu0 %v846
    %2310 = vmatpush1.bf16.msra.mxu0 %v845
    %2311 = vmatprep.mubr.bf16.mxu0 %v468
    %2312 = vmatmul.mubr.bf16.gmra.mrb[0].mxu0 %v467
    %v2313 = vpop.f32.mrb[0].mxu0
    %v2314 = vadd.f32 %v1850, %v2313
    %v2315 = vpop.f32.mrb[0].mxu0
    %v2316 = vadd.f32 %v1854, %v2315
    %v2317 = vpop.f32.mrb[0].mxu0
    %v2318 = vpop.f32.mrb[0].mxu0
    %2319 = vdwg.mxu0
    %2320 = vmatprep.subr.bf16.mxu0 %v870
    %2321 = vmatpush1.bf16.msra.mxu0 %v869
    %2322 = vmatprep.subr.bf16.mxu0 %v894
    %2323 = vmatpush1.bf16.msra.mxu0 %v893
    %2324 = vmatprep.subr.bf16.mxu0 %v918
    %2325 = vmatpush1.bf16.msra.mxu0 %v917
    %2326 = vmatprep.subr.bf16.mxu0 %v942
    %2327 = vmatpush1.bf16.msra.mxu0 %v941
    %2328 = vmatprep.subr.bf16.mxu0 %v966
    %2329 = vmatpush1.bf16.msra.mxu0 %v965
    %2330 = vmatprep.subr.bf16.mxu0 %v990
    %2331 = vmatpush1.bf16.msra.mxu0 %v989
    %2332 = vmatprep.subr.bf16.mxu0 %v1014
    %2333 = vmatpush1.bf16.msra.mxu0 %v1013
    %2334 = vmatprep.subr.bf16.mxu0 %v1038
    %2335 = vmatpush1.bf16.msra.mxu0 %v1037
    %2336 = vmatprep.subr.bf16.mxu0 %v1062
    %2337 = vmatpush1.bf16.msra.mxu0 %v1061
    %2338 = vmatprep.subr.bf16.mxu0 %v1086
    %2339 = vmatpush1.bf16.msra.mxu0 %v1085
    %2340 = vmatprep.subr.bf16.mxu0 %v1110
    %2341 = vmatpush1.bf16.msra.mxu0 %v1109
    %2342 = vmatprep.subr.bf16.mxu0 %v1134
    %2343 = vmatpush1.bf16.msra.mxu0 %v1133
    %2344 = vmatprep.subr.bf16.mxu0 %v1158
    %2345 = vmatpush1.bf16.msra.mxu0 %v1157
    %2346 = vmatprep.subr.bf16.mxu0 %v1182
    %2347 = vmatpush1.bf16.msra.mxu0 %v1181
    %2348 = vmatprep.subr.bf16.mxu0 %v1206
    %2349 = vmatpush1.bf16.msra.mxu0 %v1205
    %2350 = vmatprep.subr.bf16.mxu0 %v1230
    %2351 = vmatpush1.bf16.msra.mxu0 %v1229
    %2352 = vmatprep.mubr.bf16.mxu0 %v470
    %2353 = vmatmul.mubr.bf16.gmra.mrb[0].mxu0 %v469
    %v2354 = vpop.f32.mrb[0].mxu0
    %v2355 = vadd.f32 %v2314, %v2354
    %v2356 = vpop.f32.mrb[0].mxu0
    %v2357 = vadd.f32 %v2316, %v2356
    %v2358 = vpop.f32.mrb[0].mxu0
    %v2359 = vpop.f32.mrb[0].mxu0
    %2360 = vdwg.mxu0
    %2361 = vmatprep.subr.bf16.mxu0 %v1254
    %2362 = vmatpush1.bf16.msra.mxu0 %v1253
    %2363 = vmatprep.subr.bf16.mxu0 %v1278
    %2364 = vmatpush1.bf16.msra.mxu0 %v1277
    %2365 = vmatprep.subr.bf16.mxu0 %v1302
    %2366 = vmatpush1.bf16.msra.mxu0 %v1301
    %2367 = vmatprep.subr.bf16.mxu0 %v1326
    %2368 = vmatpush1.bf16.msra.mxu0 %v1325
    %2369 = vmatprep.subr.bf16.mxu0 %v1350
    %2370 = vmatpush1.bf16.msra.mxu0 %v1349
    %2371 = vmatprep.subr.bf16.mxu0 %v1374
    %2372 = vmatpush1.bf16.msra.mxu0 %v1373
    %2373 = vmatprep.subr.bf16.mxu0 %v1398
    %2374 = vmatpush1.bf16.msra.mxu0 %v1397
    %2375 = vmatprep.subr.bf16.mxu0 %v1422
    %2376 = vmatpush1.bf16.msra.mxu0 %v1421
    %2377 = vmatprep.subr.bf16.mxu0 %v1446
    %2378 = vmatpush1.bf16.msra.mxu0 %v1445
    %2379 = vmatprep.subr.bf16.mxu0 %v1470
    %2380 = vmatpush1.bf16.msra.mxu0 %v1469
    %2381 = vmatprep.subr.bf16.mxu0 %v1494
    %2382 = vmatpush1.bf16.msra.mxu0 %v1493
    %2383 = vmatprep.subr.bf16.mxu0 %v1518
    %2384 = vmatpush1.bf16.msra.mxu0 %v1517
    %2385 = vmatprep.subr.bf16.mxu0 %v1542
    %2386 = vmatpush1.bf16.msra.mxu0 %v1541
    %2387 = vmatprep.subr.bf16.mxu0 %v1566
    %2388 = vmatpush1.bf16.msra.mxu0 %v1565
    %2389 = vmatprep.subr.bf16.mxu0 %v1590
    %2390 = vmatpush1.bf16.msra.mxu0 %v1589
    %2391 = vmatprep.subr.bf16.mxu0 %v1614
    %2392 = vmatpush1.bf16.msra.mxu0 %v1613
    %2393 = vmatprep.mubr.bf16.mxu0 %v472
    %2394 = vmatmul.mubr.bf16.gmra.mrb[0].mxu0 %v471
    %v2395 = vpop.f32.mrb[0].mxu0
    %v2396 = vadd.f32 %v2355, %v2395
    %v2397 = vpop.f32.mrb[0].mxu0
    %v2398 = vadd.f32 %v2357, %v2397
    %v2399 = vpop.f32.mrb[0].mxu0
    %v2400 = vpop.f32.mrb[0].mxu0
    %2401 = vdwg.mxu0
    %2402 = vmatprep.subr.bf16.mxu0 %v1638
    %2403 = vmatpush1.bf16.msra.mxu0 %v1637
    %2404 = vmatprep.subr.bf16.mxu0 %v1662
    %2405 = vmatpush1.bf16.msra.mxu0 %v1661
    %2406 = vmatprep.subr.bf16.mxu0 %v1686
    %2407 = vmatpush1.bf16.msra.mxu0 %v1685
    %2408 = vmatprep.subr.bf16.mxu0 %v1710
    %2409 = vmatpush1.bf16.msra.mxu0 %v1709
    %2410 = vmatprep.subr.bf16.mxu0 %v1734
    %2411 = vmatpush1.bf16.msra.mxu0 %v1733
    %2412 = vmatprep.subr.bf16.mxu0 %v1758
    %2413 = vmatpush1.bf16.msra.mxu0 %v1757
    %2414 = vmatprep.subr.bf16.mxu0 %v1782
    %2415 = vmatpush1.bf16.msra.mxu0 %v1781
    %2416 = vmatprep.subr.bf16.mxu0 %v1806
    %2417 = vmatpush1.bf16.msra.mxu0 %v1805
    %2418 = vmatprep.subr.bf16.mxu0 0
    %2419 = vmatpush1.bf16.msra.mxu0 0
    %2420 = vmatprep.subr.bf16.mxu0 0
    %2421 = vmatpush1.bf16.msra.mxu0 0
    %2422 = vmatprep.subr.bf16.mxu0 0
    %2423 = vmatpush1.bf16.msra.mxu0 0
    %2424 = vmatprep.subr.bf16.mxu0 0
    %2425 = vmatpush1.bf16.msra.mxu0 0
    %2426 = vmatprep.subr.bf16.mxu0 0
    %2427 = vmatpush1.bf16.msra.mxu0 0
    %2428 = vmatprep.subr.bf16.mxu0 0
    %2429 = vmatpush1.bf16.msra.mxu0 0
    %2430 = vmatprep.subr.bf16.mxu0 0
    %2431 = vmatpush1.bf16.msra.mxu0 0
    %2432 = vmatprep.subr.bf16.mxu0 0
    %2433 = vmatpush1.bf16.msra.mxu0 0
    %2434 = vmatprep.mubr.bf16.mxu0 0
    %2435 = vmatmul.mubr.bf16.gmra.mrb[0].mxu0 %v473
    %v2436 = vpop.f32.mrb[0].mxu0
    %v2437 = vadd.f32 %v2396, %v2436
    %v2438 = vpop.f32.mrb[0].mxu0
    %v2439 = vadd.f32 %v2398, %v2438
    %v2440 = vpop.f32.mrb[0].mxu0
    %v2441 = vpop.f32.mrb[0].mxu0
    %2442 = vdwg.mxu0
    %2443 = vmatprep.subr.bf16.mxu0 %v488
    %2444 = vmatpush1.bf16.msra.mxu0 %v487
    %2445 = vmatprep.subr.bf16.mxu0 %v512
    %2446 = vmatpush1.bf16.msra.mxu0 %v511
    %2447 = vmatprep.subr.bf16.mxu0 %v536
    %2448 = vmatpush1.bf16.msra.mxu0 %v535
    %2449 = vmatprep.subr.bf16.mxu0 %v560
    %2450 = vmatpush1.bf16.msra.mxu0 %v559
    %2451 = vmatprep.subr.bf16.mxu0 %v584
    %2452 = vmatpush1.bf16.msra.mxu0 %v583
    %2453 = vmatprep.subr.bf16.mxu0 %v608
    %2454 = vmatpush1.bf16.msra.mxu0 %v607
    %2455 = vmatprep.subr.bf16.mxu0 %v632
    %2456 = vmatpush1.bf16.msra.mxu0 %v631
    %2457 = vmatprep.subr.bf16.mxu0 %v656
    %2458 = vmatpush1.bf16.msra.mxu0 %v655
    %2459 = vmatprep.subr.bf16.mxu0 %v680
    %2460 = vmatpush1.bf16.msra.mxu0 %v679
    %2461 = vmatprep.subr.bf16.mxu0 %v704
    %2462 = vmatpush1.bf16.msra.mxu0 %v703
    %2463 = vmatprep.subr.bf16.mxu0 %v728
    %2464 = vmatpush1.bf16.msra.mxu0 %v727
    %2465 = vmatprep.subr.bf16.mxu0 %v752
    %2466 = vmatpush1.bf16.msra.mxu0 %v751
    %2467 = vmatprep.subr.bf16.mxu0 %v776
    %2468 = vmatpush1.bf16.msra.mxu0 %v775
    %2469 = vmatprep.subr.bf16.mxu0 %v800
    %2470 = vmatpush1.bf16.msra.mxu0 %v799
    %2471 = vmatprep.subr.bf16.mxu0 %v824
    %2472 = vmatpush1.bf16.msra.mxu0 %v823
    %2473 = vmatprep.subr.bf16.mxu0 %v848
    %2474 = vmatpush1.bf16.msra.mxu0 %v847
    %2475 = vmatprep.mubr.bf16.mxu0 %v468
    %2476 = vmatmul.mubr.bf16.gmra.mrb[0].mxu0 %v467
    %v2477 = vpop.f32.mrb[0].mxu0
    %v2478 = vadd.f32 %v1858, %v2477
    %v2479 = vpop.f32.mrb[0].mxu0
    %v2480 = vadd.f32 %v1862, %v2479
    %v2481 = vpop.f32.mrb[0].mxu0
    %v2482 = vpop.f32.mrb[0].mxu0
    %2483 = vdwg.mxu0
    %2484 = vmatprep.subr.bf16.mxu0 %v872
    %2485 = vmatpush1.bf16.msra.mxu0 %v871
    %2486 = vmatprep.subr.bf16.mxu0 %v896
    %2487 = vmatpush1.bf16.msra.mxu0 %v895
    %2488 = vmatprep.subr.bf16.mxu0 %v920
    %2489 = vmatpush1.bf16.msra.mxu0 %v919
    %2490 = vmatprep.subr.bf16.mxu0 %v944
    %2491 = vmatpush1.bf16.msra.mxu0 %v943
    %2492 = vmatprep.subr.bf16.mxu0 %v968
    %2493 = vmatpush1.bf16.msra.mxu0 %v967
    %2494 = vmatprep.subr.bf16.mxu0 %v992
    %2495 = vmatpush1.bf16.msra.mxu0 %v991
    %2496 = vmatprep.subr.bf16.mxu0 %v1016
    %2497 = vmatpush1.bf16.msra.mxu0 %v1015
    %2498 = vmatprep.subr.bf16.mxu0 %v1040
    %2499 = vmatpush1.bf16.msra.mxu0 %v1039
    %2500 = vmatprep.subr.bf16.mxu0 %v1064
    %2501 = vmatpush1.bf16.msra.mxu0 %v1063
    %2502 = vmatprep.subr.bf16.mxu0 %v1088
    %2503 = vmatpush1.bf16.msra.mxu0 %v1087
    %2504 = vmatprep.subr.bf16.mxu0 %v1112
    %2505 = vmatpush1.bf16.msra.mxu0 %v1111
    %2506 = vmatprep.subr.bf16.mxu0 %v1136
    %2507 = vmatpush1.bf16.msra.mxu0 %v1135
    %2508 = vmatprep.subr.bf16.mxu0 %v1160
    %2509 = vmatpush1.bf16.msra.mxu0 %v1159
    %2510 = vmatprep.subr.bf16.mxu0 %v1184
    %2511 = vmatpush1.bf16.msra.mxu0 %v1183
    %2512 = vmatprep.subr.bf16.mxu0 %v1208
    %2513 = vmatpush1.bf16.msra.mxu0 %v1207
    %2514 = vmatprep.subr.bf16.mxu0 %v1232
    %2515 = vmatpush1.bf16.msra.mxu0 %v1231
    %2516 = vmatprep.mubr.bf16.mxu0 %v470
    %2517 = vmatmul.mubr.bf16.gmra.mrb[0].mxu0 %v469
    %v2518 = vpop.f32.mrb[0].mxu0
    %v2519 = vadd.f32 %v2478, %v2518
    %v2520 = vpop.f32.mrb[0].mxu0
    %v2521 = vadd.f32 %v2480, %v2520
    %v2522 = vpop.f32.mrb[0].mxu0
    %v2523 = vpop.f32.mrb[0].mxu0
    %2524 = vdwg.mxu0
    %2525 = vmatprep.subr.bf16.mxu0 %v1256
    %2526 = vmatpush1.bf16.msra.mxu0 %v1255
    %2527 = vmatprep.subr.bf16.mxu0 %v1280
    %2528 = vmatpush1.bf16.msra.mxu0 %v1279
    %2529 = vmatprep.subr.bf16.mxu0 %v1304
    %2530 = vmatpush1.bf16.msra.mxu0 %v1303
    %2531 = vmatprep.subr.bf16.mxu0 %v1328
    %2532 = vmatpush1.bf16.msra.mxu0 %v1327
    %2533 = vmatprep.subr.bf16.mxu0 %v1352
    %2534 = vmatpush1.bf16.msra.mxu0 %v1351
    %2535 = vmatprep.subr.bf16.mxu0 %v1376
    %2536 = vmatpush1.bf16.msra.mxu0 %v1375
    %2537 = vmatprep.subr.bf16.mxu0 %v1400
    %2538 = vmatpush1.bf16.msra.mxu0 %v1399
    %2539 = vmatprep.subr.bf16.mxu0 %v1424
    %2540 = vmatpush1.bf16.msra.mxu0 %v1423
    %2541 = vmatprep.subr.bf16.mxu0 %v1448
    %2542 = vmatpush1.bf16.msra.mxu0 %v1447
    %2543 = vmatprep.subr.bf16.mxu0 %v1472
    %2544 = vmatpush1.bf16.msra.mxu0 %v1471
    %2545 = vmatprep.subr.bf16.mxu0 %v1496
    %2546 = vmatpush1.bf16.msra.mxu0 %v1495
    %2547 = vmatprep.subr.bf16.mxu0 %v1520
    %2548 = vmatpush1.bf16.msra.mxu0 %v1519
    %2549 = vmatprep.subr.bf16.mxu0 %v1544
    %2550 = vmatpush1.bf16.msra.mxu0 %v1543
    %2551 = vmatprep.subr.bf16.mxu0 %v1568
    %2552 = vmatpush1.bf16.msra.mxu0 %v1567
    %2553 = vmatprep.subr.bf16.mxu0 %v1592
    %2554 = vmatpush1.bf16.msra.mxu0 %v1591
    %2555 = vmatprep.subr.bf16.mxu0 %v1616
    %2556 = vmatpush1.bf16.msra.mxu0 %v1615
    %2557 = vmatprep.mubr.bf16.mxu0 %v472
    %2558 = vmatmul.mubr.bf16.gmra.mrb[0].mxu0 %v471
    %v2559 = vpop.f32.mrb[0].mxu0
    %v2560 = vadd.f32 %v2519, %v2559
    %v2561 = vpop.f32.mrb[0].mxu0
    %v2562 = vadd.f32 %v2521, %v2561
    %v2563 = vpop.f32.mrb[0].mxu0
    %v2564 = vpop.f32.mrb[0].mxu0
    %2565 = vdwg.mxu0
    %2566 = vmatprep.subr.bf16.mxu0 %v1640
    %2567 = vmatpush1.bf16.msra.mxu0 %v1639
    %2568 = vmatprep.subr.bf16.mxu0 %v1664
    %2569 = vmatpush1.bf16.msra.mxu0 %v1663
    %2570 = vmatprep.subr.bf16.mxu0 %v1688
    %2571 = vmatpush1.bf16.msra.mxu0 %v1687
    %2572 = vmatprep.subr.bf16.mxu0 %v1712
    %2573 = vmatpush1.bf16.msra.mxu0 %v1711
    %2574 = vmatprep.subr.bf16.mxu0 %v1736
    %2575 = vmatpush1.bf16.msra.mxu0 %v1735
    %2576 = vmatprep.subr.bf16.mxu0 %v1760
    %2577 = vmatpush1.bf16.msra.mxu0 %v1759
    %2578 = vmatprep.subr.bf16.mxu0 %v1784
    %2579 = vmatpush1.bf16.msra.mxu0 %v1783
    %2580 = vmatprep.subr.bf16.mxu0 %v1808
    %2581 = vmatpush1.bf16.msra.mxu0 %v1807
    %2582 = vmatprep.subr.bf16.mxu0 0
    %2583 = vmatpush1.bf16.msra.mxu0 0
    %2584 = vmatprep.subr.bf16.mxu0 0
    %2585 = vmatpush1.bf16.msra.mxu0 0
    %2586 = vmatprep.subr.bf16.mxu0 0
    %2587 = vmatpush1.bf16.msra.mxu0 0
    %2588 = vmatprep.subr.bf16.mxu0 0
    %2589 = vmatpush1.bf16.msra.mxu0 0
    %2590 = vmatprep.subr.bf16.mxu0 0
    %2591 = vmatpush1.bf16.msra.mxu0 0
    %2592 = vmatprep.subr.bf16.mxu0 0
    %2593 = vmatpush1.bf16.msra.mxu0 0
    %2594 = vmatprep.subr.bf16.mxu0 0
    %2595 = vmatpush1.bf16.msra.mxu0 0
    %2596 = vmatprep.subr.bf16.mxu0 0
    %2597 = vmatpush1.bf16.msra.mxu0 0
    %2598 = vmatprep.mubr.bf16.mxu0 0
    %2599 = vmatmul.mubr.bf16.gmra.mrb[0].mxu0 %v473
    %v2600 = vpop.f32.mrb[0].mxu0
    %v2601 = vadd.f32 %v2560, %v2600
    %v2602 = vpop.f32.mrb[0].mxu0
    %v2603 = vadd.f32 %v2562, %v2602
    %v2604 = vpop.f32.mrb[0].mxu0
    %v2605 = vpop.f32.mrb[0].mxu0
    %2606 = vdwg.mxu0
    %2607 = vmatprep.subr.bf16.mxu0 %v490
    %2608 = vmatpush1.bf16.msra.mxu0 %v489
    %2609 = vmatprep.subr.bf16.mxu0 %v514
    %2610 = vmatpush1.bf16.msra.mxu0 %v513
    %2611 = vmatprep.subr.bf16.mxu0 %v538
    %2612 = vmatpush1.bf16.msra.mxu0 %v537
    %2613 = vmatprep.subr.bf16.mxu0 %v562
    %2614 = vmatpush1.bf16.msra.mxu0 %v561
    %2615 = vmatprep.subr.bf16.mxu0 %v586
    %2616 = vmatpush1.bf16.msra.mxu0 %v585
    %2617 = vmatprep.subr.bf16.mxu0 %v610
    %2618 = vmatpush1.bf16.msra.mxu0 %v609
    %2619 = vmatprep.subr.bf16.mxu0 %v634
    %2620 = vmatpush1.bf16.msra.mxu0 %v633
    %2621 = vmatprep.subr.bf16.mxu0 %v658
    %2622 = vmatpush1.bf16.msra.mxu0 %v657
    %2623 = vmatprep.subr.bf16.mxu0 %v682
    %2624 = vmatpush1.bf16.msra.mxu0 %v681
    %2625 = vmatprep.subr.bf16.mxu0 %v706
    %2626 = vmatpush1.bf16.msra.mxu0 %v705
    %2627 = vmatprep.subr.bf16.mxu0 %v730
    %2628 = vmatpush1.bf16.msra.mxu0 %v729
    %2629 = vmatprep.subr.bf16.mxu0 %v754
    %2630 = vmatpush1.bf16.msra.mxu0 %v753
    %2631 = vmatprep.subr.bf16.mxu0 %v778
    %2632 = vmatpush1.bf16.msra.mxu0 %v777
    %2633 = vmatprep.subr.bf16.mxu0 %v802
    %2634 = vmatpush1.bf16.msra.mxu0 %v801
    %2635 = vmatprep.subr.bf16.mxu0 %v826
    %2636 = vmatpush1.bf16.msra.mxu0 %v825
    %2637 = vmatprep.subr.bf16.mxu0 %v850
    %2638 = vmatpush1.bf16.msra.mxu0 %v849
    %2639 = vmatprep.mubr.bf16.mxu0 %v468
    %2640 = vmatmul.mubr.bf16.gmra.mrb[0].mxu0 %v467
    %v2641 = vpop.f32.mrb[0].mxu0
    %v2642 = vadd.f32 %v1866, %v2641
    %v2643 = vpop.f32.mrb[0].mxu0
    %v2644 = vadd.f32 %v1870, %v2643
    %v2645 = vpop.f32.mrb[0].mxu0
    %v2646 = vpop.f32.mrb[0].mxu0
    %2647 = vdwg.mxu0
    %2648 = vmatprep.subr.bf16.mxu0 %v874
    %2649 = vmatpush1.bf16.msra.mxu0 %v873
    %2650 = vmatprep.subr.bf16.mxu0 %v898
    %2651 = vmatpush1.bf16.msra.mxu0 %v897
    %2652 = vmatprep.subr.bf16.mxu0 %v922
    %2653 = vmatpush1.bf16.msra.mxu0 %v921
    %2654 = vmatprep.subr.bf16.mxu0 %v946
    %2655 = vmatpush1.bf16.msra.mxu0 %v945
    %2656 = vmatprep.subr.bf16.mxu0 %v970
    %2657 = vmatpush1.bf16.msra.mxu0 %v969
    %2658 = vmatprep.subr.bf16.mxu0 %v994
    %2659 = vmatpush1.bf16.msra.mxu0 %v993
    %2660 = vmatprep.subr.bf16.mxu0 %v1018
    %2661 = vmatpush1.bf16.msra.mxu0 %v1017
    %2662 = vmatprep.subr.bf16.mxu0 %v1042
    %2663 = vmatpush1.bf16.msra.mxu0 %v1041
    %2664 = vmatprep.subr.bf16.mxu0 %v1066
    %2665 = vmatpush1.bf16.msra.mxu0 %v1065
    %2666 = vmatprep.subr.bf16.mxu0 %v1090
    %2667 = vmatpush1.bf16.msra.mxu0 %v1089
    %2668 = vmatprep.subr.bf16.mxu0 %v1114
    %2669 = vmatpush1.bf16.msra.mxu0 %v1113
    %2670 = vmatprep.subr.bf16.mxu0 %v1138
    %2671 = vmatpush1.bf16.msra.mxu0 %v1137
    %2672 = vmatprep.subr.bf16.mxu0 %v1162
    %2673 = vmatpush1.bf16.msra.mxu0 %v1161
    %2674 = vmatprep.subr.bf16.mxu0 %v1186
    %2675 = vmatpush1.bf16.msra.mxu0 %v1185
    %2676 = vmatprep.subr.bf16.mxu0 %v1210
    %2677 = vmatpush1.bf16.msra.mxu0 %v1209
    %2678 = vmatprep.subr.bf16.mxu0 %v1234
    %2679 = vmatpush1.bf16.msra.mxu0 %v1233
    %2680 = vmatprep.mubr.bf16.mxu0 %v470
    %2681 = vmatmul.mubr.bf16.gmra.mrb[0].mxu0 %v469
    %v2682 = vpop.f32.mrb[0].mxu0
    %v2683 = vadd.f32 %v2642, %v2682
    %v2684 = vpop.f32.mrb[0].mxu0
    %v2685 = vadd.f32 %v2644, %v2684
    %v2686 = vpop.f32.mrb[0].mxu0
    %v2687 = vpop.f32.mrb[0].mxu0
    %2688 = vdwg.mxu0
    %2689 = vmatprep.subr.bf16.mxu0 %v1258
    %2690 = vmatpush1.bf16.msra.mxu0 %v1257
    %2691 = vmatprep.subr.bf16.mxu0 %v1282
    %2692 = vmatpush1.bf16.msra.mxu0 %v1281
    %2693 = vmatprep.subr.bf16.mxu0 %v1306
    %2694 = vmatpush1.bf16.msra.mxu0 %v1305
    %2695 = vmatprep.subr.bf16.mxu0 %v1330
    %2696 = vmatpush1.bf16.msra.mxu0 %v1329
    %2697 = vmatprep.subr.bf16.mxu0 %v1354
    %2698 = vmatpush1.bf16.msra.mxu0 %v1353
    %2699 = vmatprep.subr.bf16.mxu0 %v1378
    %2700 = vmatpush1.bf16.msra.mxu0 %v1377
    %2701 = vmatprep.subr.bf16.mxu0 %v1402
    %2702 = vmatpush1.bf16.msra.mxu0 %v1401
    %2703 = vmatprep.subr.bf16.mxu0 %v1426
    %2704 = vmatpush1.bf16.msra.mxu0 %v1425
    %2705 = vmatprep.subr.bf16.mxu0 %v1450
    %2706 = vmatpush1.bf16.msra.mxu0 %v1449
    %2707 = vmatprep.subr.bf16.mxu0 %v1474
    %2708 = vmatpush1.bf16.msra.mxu0 %v1473
    %2709 = vmatprep.subr.bf16.mxu0 %v1498
    %2710 = vmatpush1.bf16.msra.mxu0 %v1497
    %2711 = vmatprep.subr.bf16.mxu0 %v1522
    %2712 = vmatpush1.bf16.msra.mxu0 %v1521
    %2713 = vmatprep.subr.bf16.mxu0 %v1546
    %2714 = vmatpush1.bf16.msra.mxu0 %v1545
    %2715 = vmatprep.subr.bf16.mxu0 %v1570
    %2716 = vmatpush1.bf16.msra.mxu0 %v1569
    %2717 = vmatprep.subr.bf16.mxu0 %v1594
    %2718 = vmatpush1.bf16.msra.mxu0 %v1593
    %2719 = vmatprep.subr.bf16.mxu0 %v1618
    %2720 = vmatpush1.bf16.msra.mxu0 %v1617
    %2721 = vmatprep.mubr.bf16.mxu0 %v472
    %2722 = vmatmul.mubr.bf16.gmra.mrb[0].mxu0 %v471
    %v2723 = vpop.f32.mrb[0].mxu0
    %v2724 = vadd.f32 %v2683, %v2723
    %v2725 = vpop.f32.mrb[0].mxu0
    %v2726 = vadd.f32 %v2685, %v2725
    %v2727 = vpop.f32.mrb[0].mxu0
    %v2728 = vpop.f32.mrb[0].mxu0
    %2729 = vdwg.mxu0
    %2730 = vmatprep.subr.bf16.mxu0 %v1642
    %2731 = vmatpush1.bf16.msra.mxu0 %v1641
    %2732 = vmatprep.subr.bf16.mxu0 %v1666
    %2733 = vmatpush1.bf16.msra.mxu0 %v1665
    %2734 = vmatprep.subr.bf16.mxu0 %v1690
    %2735 = vmatpush1.bf16.msra.mxu0 %v1689
    %2736 = vmatprep.subr.bf16.mxu0 %v1714
    %2737 = vmatpush1.bf16.msra.mxu0 %v1713
    %2738 = vmatprep.subr.bf16.mxu0 %v1738
    %2739 = vmatpush1.bf16.msra.mxu0 %v1737
    %2740 = vmatprep.subr.bf16.mxu0 %v1762
    %2741 = vmatpush1.bf16.msra.mxu0 %v1761
    %2742 = vmatprep.subr.bf16.mxu0 %v1786
    %2743 = vmatpush1.bf16.msra.mxu0 %v1785
    %2744 = vmatprep.subr.bf16.mxu0 %v1810
    %2745 = vmatpush1.bf16.msra.mxu0 %v1809
    %2746 = vmatprep.subr.bf16.mxu0 0
    %2747 = vmatpush1.bf16.msra.mxu0 0
    %2748 = vmatprep.subr.bf16.mxu0 0
    %2749 = vmatpush1.bf16.msra.mxu0 0
    %2750 = vmatprep.subr.bf16.mxu0 0
    %2751 = vmatpush1.bf16.msra.mxu0 0
    %2752 = vmatprep.subr.bf16.mxu0 0
    %2753 = vmatpush1.bf16.msra.mxu0 0
    %2754 = vmatprep.subr.bf16.mxu0 0
    %2755 = vmatpush1.bf16.msra.mxu0 0
    %2756 = vmatprep.subr.bf16.mxu0 0
    %2757 = vmatpush1.bf16.msra.mxu0 0
    %2758 = vmatprep.subr.bf16.mxu0 0
    %2759 = vmatpush1.bf16.msra.mxu0 0
    %2760 = vmatprep.subr.bf16.mxu0 0
    %2761 = vmatpush1.bf16.msra.mxu0 0
    %2762 = vmatprep.mubr.bf16.mxu0 0
    %2763 = vmatmul.mubr.bf16.gmra.mrb[0].mxu0 %v473
    %v2764 = vpop.f32.mrb[0].mxu0
    %v2765 = vadd.f32 %v2724, %v2764
    %v2766 = vpop.f32.mrb[0].mxu0
    %v2767 = vadd.f32 %v2726, %v2766
    %v2768 = vpop.f32.mrb[0].mxu0
    %v2769 = vpop.f32.mrb[0].mxu0
    %2770 = vdwg.mxu0
    %2771 = vmatprep.subr.bf16.mxu0 %v492
    %2772 = vmatpush1.bf16.msra.mxu0 %v491
    %2773 = vmatprep.subr.bf16.mxu0 %v516
    %2774 = vmatpush1.bf16.msra.mxu0 %v515
    %2775 = vmatprep.subr.bf16.mxu0 %v540
    %2776 = vmatpush1.bf16.msra.mxu0 %v539
    %2777 = vmatprep.subr.bf16.mxu0 %v564
    %2778 = vmatpush1.bf16.msra.mxu0 %v563
    %2779 = vmatprep.subr.bf16.mxu0 %v588
    %2780 = vmatpush1.bf16.msra.mxu0 %v587
    %2781 = vmatprep.subr.bf16.mxu0 %v612
    %2782 = vmatpush1.bf16.msra.mxu0 %v611
    %2783 = vmatprep.subr.bf16.mxu0 %v636
    %2784 = vmatpush1.bf16.msra.mxu0 %v635
    %2785 = vmatprep.subr.bf16.mxu0 %v660
    %2786 = vmatpush1.bf16.msra.mxu0 %v659
    %2787 = vmatprep.subr.bf16.mxu0 %v684
    %2788 = vmatpush1.bf16.msra.mxu0 %v683
    %2789 = vmatprep.subr.bf16.mxu0 %v708
    %2790 = vmatpush1.bf16.msra.mxu0 %v707
    %2791 = vmatprep.subr.bf16.mxu0 %v732
    %2792 = vmatpush1.bf16.msra.mxu0 %v731
    %2793 = vmatprep.subr.bf16.mxu0 %v756
    %2794 = vmatpush1.bf16.msra.mxu0 %v755
    %2795 = vmatprep.subr.bf16.mxu0 %v780
    %2796 = vmatpush1.bf16.msra.mxu0 %v779
    %2797 = vmatprep.subr.bf16.mxu0 %v804
    %2798 = vmatpush1.bf16.msra.mxu0 %v803
    %2799 = vmatprep.subr.bf16.mxu0 %v828
    %2800 = vmatpush1.bf16.msra.mxu0 %v827
    %2801 = vmatprep.subr.bf16.mxu0 %v852
    %2802 = vmatpush1.bf16.msra.mxu0 %v851
    %2803 = vmatprep.mubr.bf16.mxu0 %v468
    %2804 = vmatmul.mubr.bf16.gmra.mrb[0].mxu0 %v467
    %v2805 = vpop.f32.mrb[0].mxu0
    %v2806 = vadd.f32 %v1874, %v2805
    %v2807 = vpop.f32.mrb[0].mxu0
    %v2808 = vadd.f32 %v1878, %v2807
    %v2809 = vpop.f32.mrb[0].mxu0
    %v2810 = vpop.f32.mrb[0].mxu0
    %2811 = vdwg.mxu0
    %2812 = vmatprep.subr.bf16.mxu0 %v876
    %2813 = vmatpush1.bf16.msra.mxu0 %v875
    %2814 = vmatprep.subr.bf16.mxu0 %v900
    %2815 = vmatpush1.bf16.msra.mxu0 %v899
    %2816 = vmatprep.subr.bf16.mxu0 %v924
    %2817 = vmatpush1.bf16.msra.mxu0 %v923
    %2818 = vmatprep.subr.bf16.mxu0 %v948
    %2819 = vmatpush1.bf16.msra.mxu0 %v947
    %2820 = vmatprep.subr.bf16.mxu0 %v972
    %2821 = vmatpush1.bf16.msra.mxu0 %v971
    %2822 = vmatprep.subr.bf16.mxu0 %v996
    %2823 = vmatpush1.bf16.msra.mxu0 %v995
    %2824 = vmatprep.subr.bf16.mxu0 %v1020
    %2825 = vmatpush1.bf16.msra.mxu0 %v1019
    %2826 = vmatprep.subr.bf16.mxu0 %v1044
    %2827 = vmatpush1.bf16.msra.mxu0 %v1043
    %2828 = vmatprep.subr.bf16.mxu0 %v1068
    %2829 = vmatpush1.bf16.msra.mxu0 %v1067
    %2830 = vmatprep.subr.bf16.mxu0 %v1092
    %2831 = vmatpush1.bf16.msra.mxu0 %v1091
    %2832 = vmatprep.subr.bf16.mxu0 %v1116
    %2833 = vmatpush1.bf16.msra.mxu0 %v1115
    %2834 = vmatprep.subr.bf16.mxu0 %v1140
    %2835 = vmatpush1.bf16.msra.mxu0 %v1139
    %2836 = vmatprep.subr.bf16.mxu0 %v1164
    %2837 = vmatpush1.bf16.msra.mxu0 %v1163
    %2838 = vmatprep.subr.bf16.mxu0 %v1188
    %2839 = vmatpush1.bf16.msra.mxu0 %v1187
    %2840 = vmatprep.subr.bf16.mxu0 %v1212
    %2841 = vmatpush1.bf16.msra.mxu0 %v1211
    %2842 = vmatprep.subr.bf16.mxu0 %v1236
    %2843 = vmatpush1.bf16.msra.mxu0 %v1235
    %2844 = vmatprep.mubr.bf16.mxu0 %v470
    %2845 = vmatmul.mubr.bf16.gmra.mrb[0].mxu0 %v469
    %v2846 = vpop.f32.mrb[0].mxu0
    %v2847 = vadd.f32 %v2806, %v2846
    %v2848 = vpop.f32.mrb[0].mxu0
    %v2849 = vadd.f32 %v2808, %v2848
    %v2850 = vpop.f32.mrb[0].mxu0
    %v2851 = vpop.f32.mrb[0].mxu0
    %2852 = vdwg.mxu0
    %2853 = vmatprep.subr.bf16.mxu0 %v1260
    %2854 = vmatpush1.bf16.msra.mxu0 %v1259
    %2855 = vmatprep.subr.bf16.mxu0 %v1284
    %2856 = vmatpush1.bf16.msra.mxu0 %v1283
    %2857 = vmatprep.subr.bf16.mxu0 %v1308
    %2858 = vmatpush1.bf16.msra.mxu0 %v1307
    %2859 = vmatprep.subr.bf16.mxu0 %v1332
    %2860 = vmatpush1.bf16.msra.mxu0 %v1331
    %2861 = vmatprep.subr.bf16.mxu0 %v1356
    %2862 = vmatpush1.bf16.msra.mxu0 %v1355
    %2863 = vmatprep.subr.bf16.mxu0 %v1380
    %2864 = vmatpush1.bf16.msra.mxu0 %v1379
    %2865 = vmatprep.subr.bf16.mxu0 %v1404
    %2866 = vmatpush1.bf16.msra.mxu0 %v1403
    %2867 = vmatprep.subr.bf16.mxu0 %v1428
    %2868 = vmatpush1.bf16.msra.mxu0 %v1427
    %2869 = vmatprep.subr.bf16.mxu0 %v1452
    %2870 = vmatpush1.bf16.msra.mxu0 %v1451
    %2871 = vmatprep.subr.bf16.mxu0 %v1476
    %2872 = vmatpush1.bf16.msra.mxu0 %v1475
    %2873 = vmatprep.subr.bf16.mxu0 %v1500
    %2874 = vmatpush1.bf16.msra.mxu0 %v1499
    %2875 = vmatprep.subr.bf16.mxu0 %v1524
    %2876 = vmatpush1.bf16.msra.mxu0 %v1523
    %2877 = vmatprep.subr.bf16.mxu0 %v1548
    %2878 = vmatpush1.bf16.msra.mxu0 %v1547
    %2879 = vmatprep.subr.bf16.mxu0 %v1572
    %2880 = vmatpush1.bf16.msra.mxu0 %v1571
    %2881 = vmatprep.subr.bf16.mxu0 %v1596
    %2882 = vmatpush1.bf16.msra.mxu0 %v1595
    %2883 = vmatprep.subr.bf16.mxu0 %v1620
    %2884 = vmatpush1.bf16.msra.mxu0 %v1619
    %2885 = vmatprep.mubr.bf16.mxu0 %v472
    %2886 = vmatmul.mubr.bf16.gmra.mrb[0].mxu0 %v471
    %v2887 = vpop.f32.mrb[0].mxu0
    %v2888 = vadd.f32 %v2847, %v2887
    %v2889 = vpop.f32.mrb[0].mxu0
    %v2890 = vadd.f32 %v2849, %v2889
    %v2891 = vpop.f32.mrb[0].mxu0
    %v2892 = vpop.f32.mrb[0].mxu0
    %2893 = vdwg.mxu0
    %2894 = vmatprep.subr.bf16.mxu0 %v1644
    %2895 = vmatpush1.bf16.msra.mxu0 %v1643
    %2896 = vmatprep.subr.bf16.mxu0 %v1668
    %2897 = vmatpush1.bf16.msra.mxu0 %v1667
    %2898 = vmatprep.subr.bf16.mxu0 %v1692
    %2899 = vmatpush1.bf16.msra.mxu0 %v1691
    %2900 = vmatprep.subr.bf16.mxu0 %v1716
    %2901 = vmatpush1.bf16.msra.mxu0 %v1715
    %2902 = vmatprep.subr.bf16.mxu0 %v1740
    %2903 = vmatpush1.bf16.msra.mxu0 %v1739
    %2904 = vmatprep.subr.bf16.mxu0 %v1764
    %2905 = vmatpush1.bf16.msra.mxu0 %v1763
    %2906 = vmatprep.subr.bf16.mxu0 %v1788
    %2907 = vmatpush1.bf16.msra.mxu0 %v1787
    %2908 = vmatprep.subr.bf16.mxu0 %v1812
    %2909 = vmatpush1.bf16.msra.mxu0 %v1811
    %2910 = vmatprep.subr.bf16.mxu0 0
    %2911 = vmatpush1.bf16.msra.mxu0 0
    %2912 = vmatprep.subr.bf16.mxu0 0
    %2913 = vmatpush1.bf16.msra.mxu0 0
    %2914 = vmatprep.subr.bf16.mxu0 0
    %2915 = vmatpush1.bf16.msra.mxu0 0
    %2916 = vmatprep.subr.bf16.mxu0 0
    %2917 = vmatpush1.bf16.msra.mxu0 0
    %2918 = vmatprep.subr.bf16.mxu0 0
    %2919 = vmatpush1.bf16.msra.mxu0 0
    %2920 = vmatprep.subr.bf16.mxu0 0
    %2921 = vmatpush1.bf16.msra.mxu0 0
    %2922 = vmatprep.subr.bf16.mxu0 0
    %2923 = vmatpush1.bf16.msra.mxu0 0
    %2924 = vmatprep.subr.bf16.mxu0 0
    %2925 = vmatpush1.bf16.msra.mxu0 0
    %2926 = vmatprep.mubr.bf16.mxu0 0
    %2927 = vmatmul.mubr.bf16.gmra.mrb[0].mxu0 %v473
    %v2928 = vpop.f32.mrb[0].mxu0
    %v2929 = vadd.f32 %v2888, %v2928
    %v2930 = vpop.f32.mrb[0].mxu0
    %v2931 = vadd.f32 %v2890, %v2930
    %v2932 = vpop.f32.mrb[0].mxu0
    %v2933 = vpop.f32.mrb[0].mxu0
    %2934 = vdwg.mxu0
    %2935 = vmatprep.subr.bf16.mxu0 %v494
    %2936 = vmatpush1.bf16.msra.mxu0 %v493
    %2937 = vmatprep.subr.bf16.mxu0 %v518
    %2938 = vmatpush1.bf16.msra.mxu0 %v517
    %2939 = vmatprep.subr.bf16.mxu0 %v542
    %2940 = vmatpush1.bf16.msra.mxu0 %v541
    %2941 = vmatprep.subr.bf16.mxu0 %v566
    %2942 = vmatpush1.bf16.msra.mxu0 %v565
    %2943 = vmatprep.subr.bf16.mxu0 %v590
    %2944 = vmatpush1.bf16.msra.mxu0 %v589
    %2945 = vmatprep.subr.bf16.mxu0 %v614
    %2946 = vmatpush1.bf16.msra.mxu0 %v613
    %2947 = vmatprep.subr.bf16.mxu0 %v638
    %2948 = vmatpush1.bf16.msra.mxu0 %v637
    %2949 = vmatprep.subr.bf16.mxu0 %v662
    %2950 = vmatpush1.bf16.msra.mxu0 %v661
    %2951 = vmatprep.subr.bf16.mxu0 %v686
    %2952 = vmatpush1.bf16.msra.mxu0 %v685
    %2953 = vmatprep.subr.bf16.mxu0 %v710
    %2954 = vmatpush1.bf16.msra.mxu0 %v709
    %2955 = vmatprep.subr.bf16.mxu0 %v734
    %2956 = vmatpush1.bf16.msra.mxu0 %v733
    %2957 = vmatprep.subr.bf16.mxu0 %v758
    %2958 = vmatpush1.bf16.msra.mxu0 %v757
    %2959 = vmatprep.subr.bf16.mxu0 %v782
    %2960 = vmatpush1.bf16.msra.mxu0 %v781
    %2961 = vmatprep.subr.bf16.mxu0 %v806
    %2962 = vmatpush1.bf16.msra.mxu0 %v805
    %2963 = vmatprep.subr.bf16.mxu0 %v830
    %2964 = vmatpush1.bf16.msra.mxu0 %v829
    %2965 = vmatprep.subr.bf16.mxu0 %v854
    %2966 = vmatpush1.bf16.msra.mxu0 %v853
    %2967 = vmatprep.mubr.bf16.mxu0 %v468
    %2968 = vmatmul.mubr.bf16.gmra.mrb[0].mxu0 %v467
    %v2969 = vpop.f32.mrb[0].mxu0
    %v2970 = vadd.f32 %v1882, %v2969
    %v2971 = vpop.f32.mrb[0].mxu0
    %v2972 = vadd.f32 %v1886, %v2971
    %v2973 = vpop.f32.mrb[0].mxu0
    %v2974 = vpop.f32.mrb[0].mxu0
    %2975 = vdwg.mxu0
    %2976 = vmatprep.subr.bf16.mxu0 %v878
    %2977 = vmatpush1.bf16.msra.mxu0 %v877
    %2978 = vmatprep.subr.bf16.mxu0 %v902
    %2979 = vmatpush1.bf16.msra.mxu0 %v901
    %2980 = vmatprep.subr.bf16.mxu0 %v926
    %2981 = vmatpush1.bf16.msra.mxu0 %v925
    %2982 = vmatprep.subr.bf16.mxu0 %v950
    %2983 = vmatpush1.bf16.msra.mxu0 %v949
    %2984 = vmatprep.subr.bf16.mxu0 %v974
    %2985 = vmatpush1.bf16.msra.mxu0 %v973
    %2986 = vmatprep.subr.bf16.mxu0 %v998
    %2987 = vmatpush1.bf16.msra.mxu0 %v997
    %2988 = vmatprep.subr.bf16.mxu0 %v1022
    %2989 = vmatpush1.bf16.msra.mxu0 %v1021
    %2990 = vmatprep.subr.bf16.mxu0 %v1046
    %2991 = vmatpush1.bf16.msra.mxu0 %v1045
    %2992 = vmatprep.subr.bf16.mxu0 %v1070
    %2993 = vmatpush1.bf16.msra.mxu0 %v1069
    %2994 = vmatprep.subr.bf16.mxu0 %v1094
    %2995 = vmatpush1.bf16.msra.mxu0 %v1093
    %2996 = vmatprep.subr.bf16.mxu0 %v1118
    %2997 = vmatpush1.bf16.msra.mxu0 %v1117
    %2998 = vmatprep.subr.bf16.mxu0 %v1142
    %2999 = vmatpush1.bf16.msra.mxu0 %v1141
    %3000 = vmatprep.subr.bf16.mxu0 %v1166
    %3001 = vmatpush1.bf16.msra.mxu0 %v1165
    %3002 = vmatprep.subr.bf16.mxu0 %v1190
    %3003 = vmatpush1.bf16.msra.mxu0 %v1189
    %3004 = vmatprep.subr.bf16.mxu0 %v1214
    %3005 = vmatpush1.bf16.msra.mxu0 %v1213
    %3006 = vmatprep.subr.bf16.mxu0 %v1238
    %3007 = vmatpush1.bf16.msra.mxu0 %v1237
    %3008 = vmatprep.mubr.bf16.mxu0 %v470
    %3009 = vmatmul.mubr.bf16.gmra.mrb[0].mxu0 %v469
    %v3010 = vpop.f32.mrb[0].mxu0
    %v3011 = vadd.f32 %v2970, %v3010
    %v3012 = vpop.f32.mrb[0].mxu0
    %v3013 = vadd.f32 %v2972, %v3012
    %v3014 = vpop.f32.mrb[0].mxu0
    %v3015 = vpop.f32.mrb[0].mxu0
    %3016 = vdwg.mxu0
    %3017 = vmatprep.subr.bf16.mxu0 %v1262
    %3018 = vmatpush1.bf16.msra.mxu0 %v1261
    %3019 = vmatprep.subr.bf16.mxu0 %v1286
    %3020 = vmatpush1.bf16.msra.mxu0 %v1285
    %3021 = vmatprep.subr.bf16.mxu0 %v1310
    %3022 = vmatpush1.bf16.msra.mxu0 %v1309
    %3023 = vmatprep.subr.bf16.mxu0 %v1334
    %3024 = vmatpush1.bf16.msra.mxu0 %v1333
    %3025 = vmatprep.subr.bf16.mxu0 %v1358
    %3026 = vmatpush1.bf16.msra.mxu0 %v1357
    %3027 = vmatprep.subr.bf16.mxu0 %v1382
    %3028 = vmatpush1.bf16.msra.mxu0 %v1381
    %3029 = vmatprep.subr.bf16.mxu0 %v1406
    %3030 = vmatpush1.bf16.msra.mxu0 %v1405
    %3031 = vmatprep.subr.bf16.mxu0 %v1430
    %3032 = vmatpush1.bf16.msra.mxu0 %v1429
    %3033 = vmatprep.subr.bf16.mxu0 %v1454
    %3034 = vmatpush1.bf16.msra.mxu0 %v1453
    %3035 = vmatprep.subr.bf16.mxu0 %v1478
    %3036 = vmatpush1.bf16.msra.mxu0 %v1477
    %3037 = vmatprep.subr.bf16.mxu0 %v1502
    %3038 = vmatpush1.bf16.msra.mxu0 %v1501
    %3039 = vmatprep.subr.bf16.mxu0 %v1526
    %3040 = vmatpush1.bf16.msra.mxu0 %v1525
    %3041 = vmatprep.subr.bf16.mxu0 %v1550
    %3042 = vmatpush1.bf16.msra.mxu0 %v1549
    %3043 = vmatprep.subr.bf16.mxu0 %v1574
    %3044 = vmatpush1.bf16.msra.mxu0 %v1573
    %3045 = vmatprep.subr.bf16.mxu0 %v1598
    %3046 = vmatpush1.bf16.msra.mxu0 %v1597
    %3047 = vmatprep.subr.bf16.mxu0 %v1622
    %3048 = vmatpush1.bf16.msra.mxu0 %v1621
    %3049 = vmatprep.mubr.bf16.mxu0 %v472
    %3050 = vmatmul.mubr.bf16.gmra.mrb[0].mxu0 %v471
    %v3051 = vpop.f32.mrb[0].mxu0
    %v3052 = vadd.f32 %v3011, %v3051
    %v3053 = vpop.f32.mrb[0].mxu0
    %v3054 = vadd.f32 %v3013, %v3053
    %v3055 = vpop.f32.mrb[0].mxu0
    %v3056 = vpop.f32.mrb[0].mxu0
    %3057 = vdwg.mxu0
    %3058 = vmatprep.subr.bf16.mxu0 %v1646
    %3059 = vmatpush1.bf16.msra.mxu0 %v1645
    %3060 = vmatprep.subr.bf16.mxu0 %v1670
    %3061 = vmatpush1.bf16.msra.mxu0 %v1669
    %3062 = vmatprep.subr.bf16.mxu0 %v1694
    %3063 = vmatpush1.bf16.msra.mxu0 %v1693
    %3064 = vmatprep.subr.bf16.mxu0 %v1718
    %3065 = vmatpush1.bf16.msra.mxu0 %v1717
    %3066 = vmatprep.subr.bf16.mxu0 %v1742
    %3067 = vmatpush1.bf16.msra.mxu0 %v1741
    %3068 = vmatprep.subr.bf16.mxu0 %v1766
    %3069 = vmatpush1.bf16.msra.mxu0 %v1765
    %3070 = vmatprep.subr.bf16.mxu0 %v1790
    %3071 = vmatpush1.bf16.msra.mxu0 %v1789
    %3072 = vmatprep.subr.bf16.mxu0 %v1814
    %3073 = vmatpush1.bf16.msra.mxu0 %v1813
    %3074 = vmatprep.subr.bf16.mxu0 0
    %3075 = vmatpush1.bf16.msra.mxu0 0
    %3076 = vmatprep.subr.bf16.mxu0 0
    %3077 = vmatpush1.bf16.msra.mxu0 0
    %3078 = vmatprep.subr.bf16.mxu0 0
    %3079 = vmatpush1.bf16.msra.mxu0 0
    %3080 = vmatprep.subr.bf16.mxu0 0
    %3081 = vmatpush1.bf16.msra.mxu0 0
    %3082 = vmatprep.subr.bf16.mxu0 0
    %3083 = vmatpush1.bf16.msra.mxu0 0
    %3084 = vmatprep.subr.bf16.mxu0 0
    %3085 = vmatpush1.bf16.msra.mxu0 0
    %3086 = vmatprep.subr.bf16.mxu0 0
    %3087 = vmatpush1.bf16.msra.mxu0 0
    %3088 = vmatprep.subr.bf16.mxu0 0
    %3089 = vmatpush1.bf16.msra.mxu0 0
    %3090 = vmatprep.mubr.bf16.mxu0 0
    %3091 = vmatmul.mubr.bf16.gmra.mrb[0].mxu0 %v473
    %v3092 = vpop.f32.mrb[0].mxu0
    %v3093 = vadd.f32 %v3052, %v3092
    %v3094 = vpop.f32.mrb[0].mxu0
    %v3095 = vadd.f32 %v3054, %v3094
    %v3096 = vpop.f32.mrb[0].mxu0
    %v3097 = vpop.f32.mrb[0].mxu0
    %3098 = vdwg.mxu0
    %3099 = vmatprep.subr.bf16.mxu0 %v496
    %3100 = vmatpush1.bf16.msra.mxu0 %v495
    %3101 = vmatprep.subr.bf16.mxu0 %v520
    %3102 = vmatpush1.bf16.msra.mxu0 %v519
    %3103 = vmatprep.subr.bf16.mxu0 %v544
    %3104 = vmatpush1.bf16.msra.mxu0 %v543
    %3105 = vmatprep.subr.bf16.mxu0 %v568
    %3106 = vmatpush1.bf16.msra.mxu0 %v567
    %3107 = vmatprep.subr.bf16.mxu0 %v592
    %3108 = vmatpush1.bf16.msra.mxu0 %v591
    %3109 = vmatprep.subr.bf16.mxu0 %v616
    %3110 = vmatpush1.bf16.msra.mxu0 %v615
    %3111 = vmatprep.subr.bf16.mxu0 %v640
    %3112 = vmatpush1.bf16.msra.mxu0 %v639
    %3113 = vmatprep.subr.bf16.mxu0 %v664
    %3114 = vmatpush1.bf16.msra.mxu0 %v663
    %3115 = vmatprep.subr.bf16.mxu0 %v688
    %3116 = vmatpush1.bf16.msra.mxu0 %v687
    %3117 = vmatprep.subr.bf16.mxu0 %v712
    %3118 = vmatpush1.bf16.msra.mxu0 %v711
    %3119 = vmatprep.subr.bf16.mxu0 %v736
    %3120 = vmatpush1.bf16.msra.mxu0 %v735
    %3121 = vmatprep.subr.bf16.mxu0 %v760
    %3122 = vmatpush1.bf16.msra.mxu0 %v759
    %3123 = vmatprep.subr.bf16.mxu0 %v784
    %3124 = vmatpush1.bf16.msra.mxu0 %v783
    %3125 = vmatprep.subr.bf16.mxu0 %v808
    %3126 = vmatpush1.bf16.msra.mxu0 %v807
    %3127 = vmatprep.subr.bf16.mxu0 %v832
    %3128 = vmatpush1.bf16.msra.mxu0 %v831
    %3129 = vmatprep.subr.bf16.mxu0 %v856
    %3130 = vmatpush1.bf16.msra.mxu0 %v855
    %3131 = vmatprep.mubr.bf16.mxu0 %v468
    %3132 = vmatmul.mubr.bf16.gmra.mrb[0].mxu0 %v467
    %v3133 = vpop.f32.mrb[0].mxu0
    %v3134 = vadd.f32 %v1890, %v3133
    %v3135 = vpop.f32.mrb[0].mxu0
    %v3136 = vadd.f32 %v1894, %v3135
    %v3137 = vpop.f32.mrb[0].mxu0
    %v3138 = vpop.f32.mrb[0].mxu0
    %3139 = vdwg.mxu0
    %3140 = vmatprep.subr.bf16.mxu0 %v880
    %3141 = vmatpush1.bf16.msra.mxu0 %v879
    %3142 = vmatprep.subr.bf16.mxu0 %v904
    %3143 = vmatpush1.bf16.msra.mxu0 %v903
    %3144 = vmatprep.subr.bf16.mxu0 %v928
    %3145 = vmatpush1.bf16.msra.mxu0 %v927
    %3146 = vmatprep.subr.bf16.mxu0 %v952
    %3147 = vmatpush1.bf16.msra.mxu0 %v951
    %3148 = vmatprep.subr.bf16.mxu0 %v976
    %3149 = vmatpush1.bf16.msra.mxu0 %v975
    %3150 = vmatprep.subr.bf16.mxu0 %v1000
    %3151 = vmatpush1.bf16.msra.mxu0 %v999
    %3152 = vmatprep.subr.bf16.mxu0 %v1024
    %3153 = vmatpush1.bf16.msra.mxu0 %v1023
    %3154 = vmatprep.subr.bf16.mxu0 %v1048
    %3155 = vmatpush1.bf16.msra.mxu0 %v1047
    %3156 = vmatprep.subr.bf16.mxu0 %v1072
    %3157 = vmatpush1.bf16.msra.mxu0 %v1071
    %3158 = vmatprep.subr.bf16.mxu0 %v1096
    %3159 = vmatpush1.bf16.msra.mxu0 %v1095
    %3160 = vmatprep.subr.bf16.mxu0 %v1120
    %3161 = vmatpush1.bf16.msra.mxu0 %v1119
    %3162 = vmatprep.subr.bf16.mxu0 %v1144
    %3163 = vmatpush1.bf16.msra.mxu0 %v1143
    %3164 = vmatprep.subr.bf16.mxu0 %v1168
    %3165 = vmatpush1.bf16.msra.mxu0 %v1167
    %3166 = vmatprep.subr.bf16.mxu0 %v1192
    %3167 = vmatpush1.bf16.msra.mxu0 %v1191
    %3168 = vmatprep.subr.bf16.mxu0 %v1216
    %3169 = vmatpush1.bf16.msra.mxu0 %v1215
    %3170 = vmatprep.subr.bf16.mxu0 %v1240
    %3171 = vmatpush1.bf16.msra.mxu0 %v1239
    %3172 = vmatprep.mubr.bf16.mxu0 %v470
    %3173 = vmatmul.mubr.bf16.gmra.mrb[0].mxu0 %v469
    %v3174 = vpop.f32.mrb[0].mxu0
    %v3175 = vadd.f32 %v3134, %v3174
    %v3176 = vpop.f32.mrb[0].mxu0
    %v3177 = vadd.f32 %v3136, %v3176
    %v3178 = vpop.f32.mrb[0].mxu0
    %v3179 = vpop.f32.mrb[0].mxu0
    %3180 = vdwg.mxu0
    %3181 = vmatprep.subr.bf16.mxu0 %v1264
    %3182 = vmatpush1.bf16.msra.mxu0 %v1263
    %3183 = vmatprep.subr.bf16.mxu0 %v1288
    %3184 = vmatpush1.bf16.msra.mxu0 %v1287
    %3185 = vmatprep.subr.bf16.mxu0 %v1312
    %3186 = vmatpush1.bf16.msra.mxu0 %v1311
    %3187 = vmatprep.subr.bf16.mxu0 %v1336
    %3188 = vmatpush1.bf16.msra.mxu0 %v1335
    %3189 = vmatprep.subr.bf16.mxu0 %v1360
    %3190 = vmatpush1.bf16.msra.mxu0 %v1359
    %3191 = vmatprep.subr.bf16.mxu0 %v1384
    %3192 = vmatpush1.bf16.msra.mxu0 %v1383
    %3193 = vmatprep.subr.bf16.mxu0 %v1408
    %3194 = vmatpush1.bf16.msra.mxu0 %v1407
    %3195 = vmatprep.subr.bf16.mxu0 %v1432
    %3196 = vmatpush1.bf16.msra.mxu0 %v1431
    %3197 = vmatprep.subr.bf16.mxu0 %v1456
    %3198 = vmatpush1.bf16.msra.mxu0 %v1455
    %3199 = vmatprep.subr.bf16.mxu0 %v1480
    %3200 = vmatpush1.bf16.msra.mxu0 %v1479
    %3201 = vmatprep.subr.bf16.mxu0 %v1504
    %3202 = vmatpush1.bf16.msra.mxu0 %v1503
    %3203 = vmatprep.subr.bf16.mxu0 %v1528
    %3204 = vmatpush1.bf16.msra.mxu0 %v1527
    %3205 = vmatprep.subr.bf16.mxu0 %v1552
    %3206 = vmatpush1.bf16.msra.mxu0 %v1551
    %3207 = vmatprep.subr.bf16.mxu0 %v1576
    %3208 = vmatpush1.bf16.msra.mxu0 %v1575
    %3209 = vmatprep.subr.bf16.mxu0 %v1600
    %3210 = vmatpush1.bf16.msra.mxu0 %v1599
    %3211 = vmatprep.subr.bf16.mxu0 %v1624
    %3212 = vmatpush1.bf16.msra.mxu0 %v1623
    %3213 = vmatprep.mubr.bf16.mxu0 %v472
    %3214 = vmatmul.mubr.bf16.gmra.mrb[0].mxu0 %v471
    %v3215 = vpop.f32.mrb[0].mxu0
    %v3216 = vadd.f32 %v3175, %v3215
    %v3217 = vpop.f32.mrb[0].mxu0
    %v3218 = vadd.f32 %v3177, %v3217
    %v3219 = vpop.f32.mrb[0].mxu0
    %v3220 = vpop.f32.mrb[0].mxu0
    %3221 = vdwg.mxu0
    %3222 = vmatprep.subr.bf16.mxu0 %v1648
    %3223 = vmatpush1.bf16.msra.mxu0 %v1647
    %3224 = vmatprep.subr.bf16.mxu0 %v1672
    %3225 = vmatpush1.bf16.msra.mxu0 %v1671
    %3226 = vmatprep.subr.bf16.mxu0 %v1696
    %3227 = vmatpush1.bf16.msra.mxu0 %v1695
    %3228 = vmatprep.subr.bf16.mxu0 %v1720
    %3229 = vmatpush1.bf16.msra.mxu0 %v1719
    %3230 = vmatprep.subr.bf16.mxu0 %v1744
    %3231 = vmatpush1.bf16.msra.mxu0 %v1743
    %3232 = vmatprep.subr.bf16.mxu0 %v1768
    %3233 = vmatpush1.bf16.msra.mxu0 %v1767
    %3234 = vmatprep.subr.bf16.mxu0 %v1792
    %3235 = vmatpush1.bf16.msra.mxu0 %v1791
    %3236 = vmatprep.subr.bf16.mxu0 %v1816
    %3237 = vmatpush1.bf16.msra.mxu0 %v1815
    %3238 = vmatprep.subr.bf16.mxu0 0
    %3239 = vmatpush1.bf16.msra.mxu0 0
    %3240 = vmatprep.subr.bf16.mxu0 0
    %3241 = vmatpush1.bf16.msra.mxu0 0
    %3242 = vmatprep.subr.bf16.mxu0 0
    %3243 = vmatpush1.bf16.msra.mxu0 0
    %3244 = vmatprep.subr.bf16.mxu0 0
    %3245 = vmatpush1.bf16.msra.mxu0 0
    %3246 = vmatprep.subr.bf16.mxu0 0
    %3247 = vmatpush1.bf16.msra.mxu0 0
    %3248 = vmatprep.subr.bf16.mxu0 0
    %3249 = vmatpush1.bf16.msra.mxu0 0
    %3250 = vmatprep.subr.bf16.mxu0 0
    %3251 = vmatpush1.bf16.msra.mxu0 0
    %3252 = vmatprep.subr.bf16.mxu0 0
    %3253 = vmatpush1.bf16.msra.mxu0 0
    %3254 = vmatprep.mubr.bf16.mxu0 0
    %3255 = vmatmul.mubr.bf16.gmra.mrb[0].mxu0 %v473
    %v3256 = vpop.f32.mrb[0].mxu0
    %v3257 = vadd.f32 %v3216, %v3256
    %v3258 = vpop.f32.mrb[0].mxu0
    %v3259 = vadd.f32 %v3218, %v3258
    %v3260 = vpop.f32.mrb[0].mxu0
    %v3261 = vpop.f32.mrb[0].mxu0
    %3262 = vdwg.mxu0
    %3263 = vmatprep.subr.bf16.mxu0 %v498
    %3264 = vmatpush1.bf16.msra.mxu0 %v497
    %3265 = vmatprep.subr.bf16.mxu0 %v522
    %3266 = vmatpush1.bf16.msra.mxu0 %v521
    %3267 = vmatprep.subr.bf16.mxu0 %v546
    %3268 = vmatpush1.bf16.msra.mxu0 %v545
    %3269 = vmatprep.subr.bf16.mxu0 %v570
    %3270 = vmatpush1.bf16.msra.mxu0 %v569
    %3271 = vmatprep.subr.bf16.mxu0 %v594
    %3272 = vmatpush1.bf16.msra.mxu0 %v593
    %3273 = vmatprep.subr.bf16.mxu0 %v618
    %3274 = vmatpush1.bf16.msra.mxu0 %v617
    %3275 = vmatprep.subr.bf16.mxu0 %v642
    %3276 = vmatpush1.bf16.msra.mxu0 %v641
    %3277 = vmatprep.subr.bf16.mxu0 %v666
    %3278 = vmatpush1.bf16.msra.mxu0 %v665
    %3279 = vmatprep.subr.bf16.mxu0 %v690
    %3280 = vmatpush1.bf16.msra.mxu0 %v689
    %3281 = vmatprep.subr.bf16.mxu0 %v714
    %3282 = vmatpush1.bf16.msra.mxu0 %v713
    %3283 = vmatprep.subr.bf16.mxu0 %v738
    %3284 = vmatpush1.bf16.msra.mxu0 %v737
    %3285 = vmatprep.subr.bf16.mxu0 %v762
    %3286 = vmatpush1.bf16.msra.mxu0 %v761
    %3287 = vmatprep.subr.bf16.mxu0 %v786
    %3288 = vmatpush1.bf16.msra.mxu0 %v785
    %3289 = vmatprep.subr.bf16.mxu0 %v810
    %3290 = vmatpush1.bf16.msra.mxu0 %v809
    %3291 = vmatprep.subr.bf16.mxu0 %v834
    %3292 = vmatpush1.bf16.msra.mxu0 %v833
    %3293 = vmatprep.subr.bf16.mxu0 %v858
    %3294 = vmatpush1.bf16.msra.mxu0 %v857
    %3295 = vmatprep.mubr.bf16.mxu0 %v468
    %3296 = vmatmul.mubr.bf16.gmra.mrb[0].mxu0 %v467
    %v3297 = vpop.f32.mrb[0].mxu0
    %v3298 = vadd.f32 %v1898, %v3297
    %v3299 = vpop.f32.mrb[0].mxu0
    %v3300 = vadd.f32 %v1902, %v3299
    %v3301 = vpop.f32.mrb[0].mxu0
    %v3302 = vpop.f32.mrb[0].mxu0
    %3303 = vdwg.mxu0
    %3304 = vmatprep.subr.bf16.mxu0 %v882
    %3305 = vmatpush1.bf16.msra.mxu0 %v881
    %3306 = vmatprep.subr.bf16.mxu0 %v906
    %3307 = vmatpush1.bf16.msra.mxu0 %v905
    %3308 = vmatprep.subr.bf16.mxu0 %v930
    %3309 = vmatpush1.bf16.msra.mxu0 %v929
    %3310 = vmatprep.subr.bf16.mxu0 %v954
    %3311 = vmatpush1.bf16.msra.mxu0 %v953
    %3312 = vmatprep.subr.bf16.mxu0 %v978
    %3313 = vmatpush1.bf16.msra.mxu0 %v977
    %3314 = vmatprep.subr.bf16.mxu0 %v1002
    %3315 = vmatpush1.bf16.msra.mxu0 %v1001
    %3316 = vmatprep.subr.bf16.mxu0 %v1026
    %3317 = vmatpush1.bf16.msra.mxu0 %v1025
    %3318 = vmatprep.subr.bf16.mxu0 %v1050
    %3319 = vmatpush1.bf16.msra.mxu0 %v1049
    %3320 = vmatprep.subr.bf16.mxu0 %v1074
    %3321 = vmatpush1.bf16.msra.mxu0 %v1073
    %3322 = vmatprep.subr.bf16.mxu0 %v1098
    %3323 = vmatpush1.bf16.msra.mxu0 %v1097
    %3324 = vmatprep.subr.bf16.mxu0 %v1122
    %3325 = vmatpush1.bf16.msra.mxu0 %v1121
    %3326 = vmatprep.subr.bf16.mxu0 %v1146
    %3327 = vmatpush1.bf16.msra.mxu0 %v1145
    %3328 = vmatprep.subr.bf16.mxu0 %v1170
    %3329 = vmatpush1.bf16.msra.mxu0 %v1169
    %3330 = vmatprep.subr.bf16.mxu0 %v1194
    %3331 = vmatpush1.bf16.msra.mxu0 %v1193
    %3332 = vmatprep.subr.bf16.mxu0 %v1218
    %3333 = vmatpush1.bf16.msra.mxu0 %v1217
    %3334 = vmatprep.subr.bf16.mxu0 %v1242
    %3335 = vmatpush1.bf16.msra.mxu0 %v1241
    %3336 = vmatprep.mubr.bf16.mxu0 %v470
    %3337 = vmatmul.mubr.bf16.gmra.mrb[0].mxu0 %v469
    %v3338 = vpop.f32.mrb[0].mxu0
    %v3339 = vadd.f32 %v3298, %v3338
    %v3340 = vpop.f32.mrb[0].mxu0
    %v3341 = vadd.f32 %v3300, %v3340
    %v3342 = vpop.f32.mrb[0].mxu0
    %v3343 = vpop.f32.mrb[0].mxu0
    %3344 = vdwg.mxu0
    %3345 = vmatprep.subr.bf16.mxu0 %v1266
    %3346 = vmatpush1.bf16.msra.mxu0 %v1265
    %3347 = vmatprep.subr.bf16.mxu0 %v1290
    %3348 = vmatpush1.bf16.msra.mxu0 %v1289
    %3349 = vmatprep.subr.bf16.mxu0 %v1314
    %3350 = vmatpush1.bf16.msra.mxu0 %v1313
    %3351 = vmatprep.subr.bf16.mxu0 %v1338
    %3352 = vmatpush1.bf16.msra.mxu0 %v1337
    %3353 = vmatprep.subr.bf16.mxu0 %v1362
    %3354 = vmatpush1.bf16.msra.mxu0 %v1361
    %3355 = vmatprep.subr.bf16.mxu0 %v1386
    %3356 = vmatpush1.bf16.msra.mxu0 %v1385
    %3357 = vmatprep.subr.bf16.mxu0 %v1410
    %3358 = vmatpush1.bf16.msra.mxu0 %v1409
    %3359 = vmatprep.subr.bf16.mxu0 %v1434
    %3360 = vmatpush1.bf16.msra.mxu0 %v1433
    %3361 = vmatprep.subr.bf16.mxu0 %v1458
    %3362 = vmatpush1.bf16.msra.mxu0 %v1457
    %3363 = vmatprep.subr.bf16.mxu0 %v1482
    %3364 = vmatpush1.bf16.msra.mxu0 %v1481
    %3365 = vmatprep.subr.bf16.mxu0 %v1506
    %3366 = vmatpush1.bf16.msra.mxu0 %v1505
    %3367 = vmatprep.subr.bf16.mxu0 %v1530
    %3368 = vmatpush1.bf16.msra.mxu0 %v1529
    %3369 = vmatprep.subr.bf16.mxu0 %v1554
    %3370 = vmatpush1.bf16.msra.mxu0 %v1553
    %3371 = vmatprep.subr.bf16.mxu0 %v1578
    %3372 = vmatpush1.bf16.msra.mxu0 %v1577
    %3373 = vmatprep.subr.bf16.mxu0 %v1602
    %3374 = vmatpush1.bf16.msra.mxu0 %v1601
    %3375 = vmatprep.subr.bf16.mxu0 %v1626
    %3376 = vmatpush1.bf16.msra.mxu0 %v1625
    %3377 = vmatprep.mubr.bf16.mxu0 %v472
    %3378 = vmatmul.mubr.bf16.gmra.mrb[0].mxu0 %v471
    %v3379 = vpop.f32.mrb[0].mxu0
    %v3380 = vadd.f32 %v3339, %v3379
    %v3381 = vpop.f32.mrb[0].mxu0
    %v3382 = vadd.f32 %v3341, %v3381
    %v3383 = vpop.f32.mrb[0].mxu0
    %v3384 = vpop.f32.mrb[0].mxu0
    %3385 = vdwg.mxu0
    %3386 = vmatprep.subr.bf16.mxu0 %v1650
    %3387 = vmatpush1.bf16.msra.mxu0 %v1649
    %3388 = vmatprep.subr.bf16.mxu0 %v1674
    %3389 = vmatpush1.bf16.msra.mxu0 %v1673
    %3390 = vmatprep.subr.bf16.mxu0 %v1698
    %3391 = vmatpush1.bf16.msra.mxu0 %v1697
    %3392 = vmatprep.subr.bf16.mxu0 %v1722
    %3393 = vmatpush1.bf16.msra.mxu0 %v1721
    %3394 = vmatprep.subr.bf16.mxu0 %v1746
    %3395 = vmatpush1.bf16.msra.mxu0 %v1745
    %3396 = vmatprep.subr.bf16.mxu0 %v1770
    %3397 = vmatpush1.bf16.msra.mxu0 %v1769
    %3398 = vmatprep.subr.bf16.mxu0 %v1794
    %3399 = vmatpush1.bf16.msra.mxu0 %v1793
    %3400 = vmatprep.subr.bf16.mxu0 %v1818
    %3401 = vmatpush1.bf16.msra.mxu0 %v1817
    %3402 = vmatprep.subr.bf16.mxu0 0
    %3403 = vmatpush1.bf16.msra.mxu0 0
    %3404 = vmatprep.subr.bf16.mxu0 0
    %3405 = vmatpush1.bf16.msra.mxu0 0
    %3406 = vmatprep.subr.bf16.mxu0 0
    %3407 = vmatpush1.bf16.msra.mxu0 0
    %3408 = vmatprep.subr.bf16.mxu0 0
    %3409 = vmatpush1.bf16.msra.mxu0 0
    %3410 = vmatprep.subr.bf16.mxu0 0
    %3411 = vmatpush1.bf16.msra.mxu0 0
    %3412 = vmatprep.subr.bf16.mxu0 0
    %3413 = vmatpush1.bf16.msra.mxu0 0
    %3414 = vmatprep.subr.bf16.mxu0 0
    %3415 = vmatpush1.bf16.msra.mxu0 0
    %3416 = vmatprep.subr.bf16.mxu0 0
    %3417 = vmatpush1.bf16.msra.mxu0 0
    %3418 = vmatprep.mubr.bf16.mxu0 0
    %3419 = vmatmul.mubr.bf16.gmra.mrb[0].mxu0 %v473
    %v3420 = vpop.f32.mrb[0].mxu0
    %v3421 = vadd.f32 %v3380, %v3420
    %v3422 = vpop.f32.mrb[0].mxu0
    %v3423 = vadd.f32 %v3382, %v3422
    %v3424 = vpop.f32.mrb[0].mxu0
    %v3425 = vpop.f32.mrb[0].mxu0
    %3426 = vdwg.mxu0
    %3427 = vmatprep.subr.bf16.mxu0 %v500
    %3428 = vmatpush1.bf16.msra.mxu0 %v499
    %3429 = vmatprep.subr.bf16.mxu0 %v524
    %3430 = vmatpush1.bf16.msra.mxu0 %v523
    %3431 = vmatprep.subr.bf16.mxu0 %v548
    %3432 = vmatpush1.bf16.msra.mxu0 %v547
    %3433 = vmatprep.subr.bf16.mxu0 %v572
    %3434 = vmatpush1.bf16.msra.mxu0 %v571
    %3435 = vmatprep.subr.bf16.mxu0 %v596
    %3436 = vmatpush1.bf16.msra.mxu0 %v595
    %3437 = vmatprep.subr.bf16.mxu0 %v620
    %3438 = vmatpush1.bf16.msra.mxu0 %v619
    %3439 = vmatprep.subr.bf16.mxu0 %v644
    %3440 = vmatpush1.bf16.msra.mxu0 %v643
    %3441 = vmatprep.subr.bf16.mxu0 %v668
    %3442 = vmatpush1.bf16.msra.mxu0 %v667
    %3443 = vmatprep.subr.bf16.mxu0 %v692
    %3444 = vmatpush1.bf16.msra.mxu0 %v691
    %3445 = vmatprep.subr.bf16.mxu0 %v716
    %3446 = vmatpush1.bf16.msra.mxu0 %v715
    %3447 = vmatprep.subr.bf16.mxu0 %v740
    %3448 = vmatpush1.bf16.msra.mxu0 %v739
    %3449 = vmatprep.subr.bf16.mxu0 %v764
    %3450 = vmatpush1.bf16.msra.mxu0 %v763
    %3451 = vmatprep.subr.bf16.mxu0 %v788
    %3452 = vmatpush1.bf16.msra.mxu0 %v787
    %3453 = vmatprep.subr.bf16.mxu0 %v812
    %3454 = vmatpush1.bf16.msra.mxu0 %v811
    %3455 = vmatprep.subr.bf16.mxu0 %v836
    %3456 = vmatpush1.bf16.msra.mxu0 %v835
    %3457 = vmatprep.subr.bf16.mxu0 %v860
    %3458 = vmatpush1.bf16.msra.mxu0 %v859
    %3459 = vmatprep.mubr.bf16.mxu0 %v468
    %3460 = vmatmul.mubr.bf16.gmra.mrb[0].mxu0 %v467
    %v3461 = vpop.f32.mrb[0].mxu0
    %v3462 = vadd.f32 %v1906, %v3461
    %v3463 = vpop.f32.mrb[0].mxu0
    %v3464 = vadd.f32 %v1910, %v3463
    %v3465 = vpop.f32.mrb[0].mxu0
    %v3466 = vpop.f32.mrb[0].mxu0
    %3467 = vdwg.mxu0
    %3468 = vmatprep.subr.bf16.mxu0 %v884
    %3469 = vmatpush1.bf16.msra.mxu0 %v883
    %3470 = vmatprep.subr.bf16.mxu0 %v908
    %3471 = vmatpush1.bf16.msra.mxu0 %v907
    %3472 = vmatprep.subr.bf16.mxu0 %v932
    %3473 = vmatpush1.bf16.msra.mxu0 %v931
    %3474 = vmatprep.subr.bf16.mxu0 %v956
    %3475 = vmatpush1.bf16.msra.mxu0 %v955
    %3476 = vmatprep.subr.bf16.mxu0 %v980
    %3477 = vmatpush1.bf16.msra.mxu0 %v979
    %3478 = vmatprep.subr.bf16.mxu0 %v1004
    %3479 = vmatpush1.bf16.msra.mxu0 %v1003
    %3480 = vmatprep.subr.bf16.mxu0 %v1028
    %3481 = vmatpush1.bf16.msra.mxu0 %v1027
    %3482 = vmatprep.subr.bf16.mxu0 %v1052
    %3483 = vmatpush1.bf16.msra.mxu0 %v1051
    %3484 = vmatprep.subr.bf16.mxu0 %v1076
    %3485 = vmatpush1.bf16.msra.mxu0 %v1075
    %3486 = vmatprep.subr.bf16.mxu0 %v1100
    %3487 = vmatpush1.bf16.msra.mxu0 %v1099
    %3488 = vmatprep.subr.bf16.mxu0 %v1124
    %3489 = vmatpush1.bf16.msra.mxu0 %v1123
    %3490 = vmatprep.subr.bf16.mxu0 %v1148
    %3491 = vmatpush1.bf16.msra.mxu0 %v1147
    %3492 = vmatprep.subr.bf16.mxu0 %v1172
    %3493 = vmatpush1.bf16.msra.mxu0 %v1171
    %3494 = vmatprep.subr.bf16.mxu0 %v1196
    %3495 = vmatpush1.bf16.msra.mxu0 %v1195
    %3496 = vmatprep.subr.bf16.mxu0 %v1220
    %3497 = vmatpush1.bf16.msra.mxu0 %v1219
    %3498 = vmatprep.subr.bf16.mxu0 %v1244
    %3499 = vmatpush1.bf16.msra.mxu0 %v1243
    %3500 = vmatprep.mubr.bf16.mxu0 %v470
    %3501 = vmatmul.mubr.bf16.gmra.mrb[0].mxu0 %v469
    %v3502 = vpop.f32.mrb[0].mxu0
    %v3503 = vadd.f32 %v3462, %v3502
    %v3504 = vpop.f32.mrb[0].mxu0
    %v3505 = vadd.f32 %v3464, %v3504
    %v3506 = vpop.f32.mrb[0].mxu0
    %v3507 = vpop.f32.mrb[0].mxu0
    %3508 = vdwg.mxu0
    %3509 = vmatprep.subr.bf16.mxu0 %v1268
    %3510 = vmatpush1.bf16.msra.mxu0 %v1267
    %3511 = vmatprep.subr.bf16.mxu0 %v1292
    %3512 = vmatpush1.bf16.msra.mxu0 %v1291
    %3513 = vmatprep.subr.bf16.mxu0 %v1316
    %3514 = vmatpush1.bf16.msra.mxu0 %v1315
    %3515 = vmatprep.subr.bf16.mxu0 %v1340
    %3516 = vmatpush1.bf16.msra.mxu0 %v1339
    %3517 = vmatprep.subr.bf16.mxu0 %v1364
    %3518 = vmatpush1.bf16.msra.mxu0 %v1363
    %3519 = vmatprep.subr.bf16.mxu0 %v1388
    %3520 = vmatpush1.bf16.msra.mxu0 %v1387
    %3521 = vmatprep.subr.bf16.mxu0 %v1412
    %3522 = vmatpush1.bf16.msra.mxu0 %v1411
    %3523 = vmatprep.subr.bf16.mxu0 %v1436
    %3524 = vmatpush1.bf16.msra.mxu0 %v1435
    %3525 = vmatprep.subr.bf16.mxu0 %v1460
    %3526 = vmatpush1.bf16.msra.mxu0 %v1459
    %3527 = vmatprep.subr.bf16.mxu0 %v1484
    %3528 = vmatpush1.bf16.msra.mxu0 %v1483
    %3529 = vmatprep.subr.bf16.mxu0 %v1508
    %3530 = vmatpush1.bf16.msra.mxu0 %v1507
    %3531 = vmatprep.subr.bf16.mxu0 %v1532
    %3532 = vmatpush1.bf16.msra.mxu0 %v1531
    %3533 = vmatprep.subr.bf16.mxu0 %v1556
    %3534 = vmatpush1.bf16.msra.mxu0 %v1555
    %3535 = vmatprep.subr.bf16.mxu0 %v1580
    %3536 = vmatpush1.bf16.msra.mxu0 %v1579
    %3537 = vmatprep.subr.bf16.mxu0 %v1604
    %3538 = vmatpush1.bf16.msra.mxu0 %v1603
    %3539 = vmatprep.subr.bf16.mxu0 %v1628
    %3540 = vmatpush1.bf16.msra.mxu0 %v1627
    %3541 = vmatprep.mubr.bf16.mxu0 %v472
    %3542 = vmatmul.mubr.bf16.gmra.mrb[0].mxu0 %v471
    %v3543 = vpop.f32.mrb[0].mxu0
    %v3544 = vadd.f32 %v3503, %v3543
    %v3545 = vpop.f32.mrb[0].mxu0
    %v3546 = vadd.f32 %v3505, %v3545
    %v3547 = vpop.f32.mrb[0].mxu0
    %v3548 = vpop.f32.mrb[0].mxu0
    %3549 = vdwg.mxu0
    %3550 = vmatprep.subr.bf16.mxu0 %v1652
    %3551 = vmatpush1.bf16.msra.mxu0 %v1651
    %3552 = vmatprep.subr.bf16.mxu0 %v1676
    %3553 = vmatpush1.bf16.msra.mxu0 %v1675
    %3554 = vmatprep.subr.bf16.mxu0 %v1700
    %3555 = vmatpush1.bf16.msra.mxu0 %v1699
    %3556 = vmatprep.subr.bf16.mxu0 %v1724
    %3557 = vmatpush1.bf16.msra.mxu0 %v1723
    %3558 = vmatprep.subr.bf16.mxu0 %v1748
    %3559 = vmatpush1.bf16.msra.mxu0 %v1747
    %3560 = vmatprep.subr.bf16.mxu0 %v1772
    %3561 = vmatpush1.bf16.msra.mxu0 %v1771
    %3562 = vmatprep.subr.bf16.mxu0 %v1796
    %3563 = vmatpush1.bf16.msra.mxu0 %v1795
    %3564 = vmatprep.subr.bf16.mxu0 %v1820
    %3565 = vmatpush1.bf16.msra.mxu0 %v1819
    %3566 = vmatprep.subr.bf16.mxu0 0
    %3567 = vmatpush1.bf16.msra.mxu0 0
    %3568 = vmatprep.subr.bf16.mxu0 0
    %3569 = vmatpush1.bf16.msra.mxu0 0
    %3570 = vmatprep.subr.bf16.mxu0 0
    %3571 = vmatpush1.bf16.msra.mxu0 0
    %3572 = vmatprep.subr.bf16.mxu0 0
    %3573 = vmatpush1.bf16.msra.mxu0 0
    %3574 = vmatprep.subr.bf16.mxu0 0
    %3575 = vmatpush1.bf16.msra.mxu0 0
    %3576 = vmatprep.subr.bf16.mxu0 0
    %3577 = vmatpush1.bf16.msra.mxu0 0
    %3578 = vmatprep.subr.bf16.mxu0 0
    %3579 = vmatpush1.bf16.msra.mxu0 0
    %3580 = vmatprep.subr.bf16.mxu0 0
    %3581 = vmatpush1.bf16.msra.mxu0 0
    %3582 = vmatprep.mubr.bf16.mxu0 0
    %3583 = vmatmul.mubr.bf16.gmra.mrb[0].mxu0 %v473
    %v3584 = vpop.f32.mrb[0].mxu0
    %v3585 = vadd.f32 %v3544, %v3584
    %v3586 = vpop.f32.mrb[0].mxu0
    %v3587 = vadd.f32 %v3546, %v3586
    %v3588 = vpop.f32.mrb[0].mxu0
    %v3589 = vpop.f32.mrb[0].mxu0
    %3590 = vdwg.mxu0
    %3591 = vmatprep.subr.bf16.mxu0 %v502
    %3592 = vmatpush1.bf16.msra.mxu0 %v501
    %3593 = vmatprep.subr.bf16.mxu0 %v526
    %3594 = vmatpush1.bf16.msra.mxu0 %v525
    %3595 = vmatprep.subr.bf16.mxu0 %v550
    %3596 = vmatpush1.bf16.msra.mxu0 %v549
    %3597 = vmatprep.subr.bf16.mxu0 %v574
    %3598 = vmatpush1.bf16.msra.mxu0 %v573
    %3599 = vmatprep.subr.bf16.mxu0 %v598
    %3600 = vmatpush1.bf16.msra.mxu0 %v597
    %3601 = vmatprep.subr.bf16.mxu0 %v622
    %3602 = vmatpush1.bf16.msra.mxu0 %v621
    %3603 = vmatprep.subr.bf16.mxu0 %v646
    %3604 = vmatpush1.bf16.msra.mxu0 %v645
    %3605 = vmatprep.subr.bf16.mxu0 %v670
    %3606 = vmatpush1.bf16.msra.mxu0 %v669
    %3607 = vmatprep.subr.bf16.mxu0 %v694
    %3608 = vmatpush1.bf16.msra.mxu0 %v693
    %3609 = vmatprep.subr.bf16.mxu0 %v718
    %3610 = vmatpush1.bf16.msra.mxu0 %v717
    %3611 = vmatprep.subr.bf16.mxu0 %v742
    %3612 = vmatpush1.bf16.msra.mxu0 %v741
    %3613 = vmatprep.subr.bf16.mxu0 %v766
    %3614 = vmatpush1.bf16.msra.mxu0 %v765
    %3615 = vmatprep.subr.bf16.mxu0 %v790
    %3616 = vmatpush1.bf16.msra.mxu0 %v789
    %3617 = vmatprep.subr.bf16.mxu0 %v814
    %3618 = vmatpush1.bf16.msra.mxu0 %v813
    %3619 = vmatprep.subr.bf16.mxu0 %v838
    %3620 = vmatpush1.bf16.msra.mxu0 %v837
    %3621 = vmatprep.subr.bf16.mxu0 %v862
    %3622 = vmatpush1.bf16.msra.mxu0 %v861
    %3623 = vmatprep.mubr.bf16.mxu0 %v468
    %3624 = vmatmul.mubr.bf16.gmra.mrb[0].mxu0 %v467
    %v3625 = vpop.f32.mrb[0].mxu0
    %v3626 = vadd.f32 %v1914, %v3625
    %v3627 = vpop.f32.mrb[0].mxu0
    %v3628 = vadd.f32 %v1918, %v3627
    %v3629 = vpop.f32.mrb[0].mxu0
    %v3630 = vpop.f32.mrb[0].mxu0
    %3631 = vdwg.mxu0
    %3632 = vmatprep.subr.bf16.mxu0 %v886
    %3633 = vmatpush1.bf16.msra.mxu0 %v885
    %3634 = vmatprep.subr.bf16.mxu0 %v910
    %3635 = vmatpush1.bf16.msra.mxu0 %v909
    %3636 = vmatprep.subr.bf16.mxu0 %v934
    %3637 = vmatpush1.bf16.msra.mxu0 %v933
    %3638 = vmatprep.subr.bf16.mxu0 %v958
    %3639 = vmatpush1.bf16.msra.mxu0 %v957
    %3640 = vmatprep.subr.bf16.mxu0 %v982
    %3641 = vmatpush1.bf16.msra.mxu0 %v981
    %3642 = vmatprep.subr.bf16.mxu0 %v1006
    %3643 = vmatpush1.bf16.msra.mxu0 %v1005
    %3644 = vmatprep.subr.bf16.mxu0 %v1030
    %3645 = vmatpush1.bf16.msra.mxu0 %v1029
    %3646 = vmatprep.subr.bf16.mxu0 %v1054
    %3647 = vmatpush1.bf16.msra.mxu0 %v1053
    %3648 = vmatprep.subr.bf16.mxu0 %v1078
    %3649 = vmatpush1.bf16.msra.mxu0 %v1077
    %3650 = vmatprep.subr.bf16.mxu0 %v1102
    %3651 = vmatpush1.bf16.msra.mxu0 %v1101
    %3652 = vmatprep.subr.bf16.mxu0 %v1126
    %3653 = vmatpush1.bf16.msra.mxu0 %v1125
    %3654 = vmatprep.subr.bf16.mxu0 %v1150
    %3655 = vmatpush1.bf16.msra.mxu0 %v1149
    %3656 = vmatprep.subr.bf16.mxu0 %v1174
    %3657 = vmatpush1.bf16.msra.mxu0 %v1173
    %3658 = vmatprep.subr.bf16.mxu0 %v1198
    %3659 = vmatpush1.bf16.msra.mxu0 %v1197
    %3660 = vmatprep.subr.bf16.mxu0 %v1222
    %3661 = vmatpush1.bf16.msra.mxu0 %v1221
    %3662 = vmatprep.subr.bf16.mxu0 %v1246
    %3663 = vmatpush1.bf16.msra.mxu0 %v1245
    %3664 = vmatprep.mubr.bf16.mxu0 %v470
    %3665 = vmatmul.mubr.bf16.gmra.mrb[0].mxu0 %v469
    %v3666 = vpop.f32.mrb[0].mxu0
    %v3667 = vadd.f32 %v3626, %v3666
    %v3668 = vpop.f32.mrb[0].mxu0
    %v3669 = vadd.f32 %v3628, %v3668
    %v3670 = vpop.f32.mrb[0].mxu0
    %v3671 = vpop.f32.mrb[0].mxu0
    %3672 = vdwg.mxu0
    %3673 = vmatprep.subr.bf16.mxu0 %v1270
    %3674 = vmatpush1.bf16.msra.mxu0 %v1269
    %3675 = vmatprep.subr.bf16.mxu0 %v1294
    %3676 = vmatpush1.bf16.msra.mxu0 %v1293
    %3677 = vmatprep.subr.bf16.mxu0 %v1318
    %3678 = vmatpush1.bf16.msra.mxu0 %v1317
    %3679 = vmatprep.subr.bf16.mxu0 %v1342
    %3680 = vmatpush1.bf16.msra.mxu0 %v1341
    %3681 = vmatprep.subr.bf16.mxu0 %v1366
    %3682 = vmatpush1.bf16.msra.mxu0 %v1365
    %3683 = vmatprep.subr.bf16.mxu0 %v1390
    %3684 = vmatpush1.bf16.msra.mxu0 %v1389
    %3685 = vmatprep.subr.bf16.mxu0 %v1414
    %3686 = vmatpush1.bf16.msra.mxu0 %v1413
    %3687 = vmatprep.subr.bf16.mxu0 %v1438
    %3688 = vmatpush1.bf16.msra.mxu0 %v1437
    %3689 = vmatprep.subr.bf16.mxu0 %v1462
    %3690 = vmatpush1.bf16.msra.mxu0 %v1461
    %3691 = vmatprep.subr.bf16.mxu0 %v1486
    %3692 = vmatpush1.bf16.msra.mxu0 %v1485
    %3693 = vmatprep.subr.bf16.mxu0 %v1510
    %3694 = vmatpush1.bf16.msra.mxu0 %v1509
    %3695 = vmatprep.subr.bf16.mxu0 %v1534
    %3696 = vmatpush1.bf16.msra.mxu0 %v1533
    %3697 = vmatprep.subr.bf16.mxu0 %v1558
    %3698 = vmatpush1.bf16.msra.mxu0 %v1557
    %3699 = vmatprep.subr.bf16.mxu0 %v1582
    %3700 = vmatpush1.bf16.msra.mxu0 %v1581
    %3701 = vmatprep.subr.bf16.mxu0 %v1606
    %3702 = vmatpush1.bf16.msra.mxu0 %v1605
    %3703 = vmatprep.subr.bf16.mxu0 %v1630
    %3704 = vmatpush1.bf16.msra.mxu0 %v1629
    %3705 = vmatprep.mubr.bf16.mxu0 %v472
    %3706 = vmatmul.mubr.bf16.gmra.mrb[0].mxu0 %v471
    %v3707 = vpop.f32.mrb[0].mxu0
    %v3708 = vadd.f32 %v3667, %v3707
    %v3709 = vpop.f32.mrb[0].mxu0
    %v3710 = vadd.f32 %v3669, %v3709
    %v3711 = vpop.f32.mrb[0].mxu0
    %v3712 = vpop.f32.mrb[0].mxu0
    %3713 = vdwg.mxu0
    %3714 = vmatprep.subr.bf16.mxu0 %v1654
    %3715 = vmatpush1.bf16.msra.mxu0 %v1653
    %3716 = vmatprep.subr.bf16.mxu0 %v1678
    %3717 = vmatpush1.bf16.msra.mxu0 %v1677
    %3718 = vmatprep.subr.bf16.mxu0 %v1702
    %3719 = vmatpush1.bf16.msra.mxu0 %v1701
    %3720 = vmatprep.subr.bf16.mxu0 %v1726
    %3721 = vmatpush1.bf16.msra.mxu0 %v1725
    %3722 = vmatprep.subr.bf16.mxu0 %v1750
    %3723 = vmatpush1.bf16.msra.mxu0 %v1749
    %3724 = vmatprep.subr.bf16.mxu0 %v1774
    %3725 = vmatpush1.bf16.msra.mxu0 %v1773
    %3726 = vmatprep.subr.bf16.mxu0 %v1798
    %3727 = vmatpush1.bf16.msra.mxu0 %v1797
    %3728 = vmatprep.subr.bf16.mxu0 %v1822
    %3729 = vmatpush1.bf16.msra.mxu0 %v1821
    %3730 = vmatprep.subr.bf16.mxu0 0
    %3731 = vmatpush1.bf16.msra.mxu0 0
    %3732 = vmatprep.subr.bf16.mxu0 0
    %3733 = vmatpush1.bf16.msra.mxu0 0
    %3734 = vmatprep.subr.bf16.mxu0 0
    %3735 = vmatpush1.bf16.msra.mxu0 0
    %3736 = vmatprep.subr.bf16.mxu0 0
    %3737 = vmatpush1.bf16.msra.mxu0 0
    %3738 = vmatprep.subr.bf16.mxu0 0
    %3739 = vmatpush1.bf16.msra.mxu0 0
    %3740 = vmatprep.subr.bf16.mxu0 0
    %3741 = vmatpush1.bf16.msra.mxu0 0
    %3742 = vmatprep.subr.bf16.mxu0 0
    %3743 = vmatpush1.bf16.msra.mxu0 0
    %3744 = vmatprep.subr.bf16.mxu0 0
    %3745 = vmatpush1.bf16.msra.mxu0 0
    %3746 = vmatprep.mubr.bf16.mxu0 0
    %3747 = vmatmul.mubr.bf16.gmra.mrb[0].mxu0 %v473
    %v3748 = vpop.f32.mrb[0].mxu0
    %v3749 = vadd.f32 %v3708, %v3748
    %v3750 = vpop.f32.mrb[0].mxu0
    %v3751 = vadd.f32 %v3710, %v3750
    %v3752 = vpop.f32.mrb[0].mxu0
    %v3753 = vpop.f32.mrb[0].mxu0
    %3754 = vdwg.mxu0
    %3755 = vmatprep.subr.bf16.mxu0 %v504
    %3756 = vmatpush1.bf16.msra.mxu0 %v503
    %3757 = vmatprep.subr.bf16.mxu0 %v528
    %3758 = vmatpush1.bf16.msra.mxu0 %v527
    %3759 = vmatprep.subr.bf16.mxu0 %v552
    %3760 = vmatpush1.bf16.msra.mxu0 %v551
    %3761 = vmatprep.subr.bf16.mxu0 %v576
    %3762 = vmatpush1.bf16.msra.mxu0 %v575
    %3763 = vmatprep.subr.bf16.mxu0 %v600
    %3764 = vmatpush1.bf16.msra.mxu0 %v599
    %3765 = vmatprep.subr.bf16.mxu0 %v624
    %3766 = vmatpush1.bf16.msra.mxu0 %v623
    %3767 = vmatprep.subr.bf16.mxu0 %v648
    %3768 = vmatpush1.bf16.msra.mxu0 %v647
    %3769 = vmatprep.subr.bf16.mxu0 %v672
    %3770 = vmatpush1.bf16.msra.mxu0 %v671
    %3771 = vmatprep.subr.bf16.mxu0 %v696
    %3772 = vmatpush1.bf16.msra.mxu0 %v695
    %3773 = vmatprep.subr.bf16.mxu0 %v720
    %3774 = vmatpush1.bf16.msra.mxu0 %v719
    %3775 = vmatprep.subr.bf16.mxu0 %v744
    %3776 = vmatpush1.bf16.msra.mxu0 %v743
    %3777 = vmatprep.subr.bf16.mxu0 %v768
    %3778 = vmatpush1.bf16.msra.mxu0 %v767
    %3779 = vmatprep.subr.bf16.mxu0 %v792
    %3780 = vmatpush1.bf16.msra.mxu0 %v791
    %3781 = vmatprep.subr.bf16.mxu0 %v816
    %3782 = vmatpush1.bf16.msra.mxu0 %v815
    %3783 = vmatprep.subr.bf16.mxu0 %v840
    %3784 = vmatpush1.bf16.msra.mxu0 %v839
    %3785 = vmatprep.subr.bf16.mxu0 %v864
    %3786 = vmatpush1.bf16.msra.mxu0 %v863
    %3787 = vmatprep.mubr.bf16.mxu0 %v468
    %3788 = vmatmul.mubr.bf16.gmra.mrb[0].mxu0 %v467
    %v3789 = vpop.f32.mrb[0].mxu0
    %v3790 = vadd.f32 %v1922, %v3789
    %v3791 = vpop.f32.mrb[0].mxu0
    %v3792 = vadd.f32 %v1926, %v3791
    %v3793 = vpop.f32.mrb[0].mxu0
    %v3794 = vpop.f32.mrb[0].mxu0
    %3795 = vdwg.mxu0
    %3796 = vmatprep.subr.bf16.mxu0 %v888
    %3797 = vmatpush1.bf16.msra.mxu0 %v887
    %3798 = vmatprep.subr.bf16.mxu0 %v912
    %3799 = vmatpush1.bf16.msra.mxu0 %v911
    %3800 = vmatprep.subr.bf16.mxu0 %v936
    %3801 = vmatpush1.bf16.msra.mxu0 %v935
    %3802 = vmatprep.subr.bf16.mxu0 %v960
    %3803 = vmatpush1.bf16.msra.mxu0 %v959
    %3804 = vmatprep.subr.bf16.mxu0 %v984
    %3805 = vmatpush1.bf16.msra.mxu0 %v983
    %3806 = vmatprep.subr.bf16.mxu0 %v1008
    %3807 = vmatpush1.bf16.msra.mxu0 %v1007
    %3808 = vmatprep.subr.bf16.mxu0 %v1032
    %3809 = vmatpush1.bf16.msra.mxu0 %v1031
    %3810 = vmatprep.subr.bf16.mxu0 %v1056
    %3811 = vmatpush1.bf16.msra.mxu0 %v1055
    %3812 = vmatprep.subr.bf16.mxu0 %v1080
    %3813 = vmatpush1.bf16.msra.mxu0 %v1079
    %3814 = vmatprep.subr.bf16.mxu0 %v1104
    %3815 = vmatpush1.bf16.msra.mxu0 %v1103
    %3816 = vmatprep.subr.bf16.mxu0 %v1128
    %3817 = vmatpush1.bf16.msra.mxu0 %v1127
    %3818 = vmatprep.subr.bf16.mxu0 %v1152
    %3819 = vmatpush1.bf16.msra.mxu0 %v1151
    %3820 = vmatprep.subr.bf16.mxu0 %v1176
    %3821 = vmatpush1.bf16.msra.mxu0 %v1175
    %3822 = vmatprep.subr.bf16.mxu0 %v1200
    %3823 = vmatpush1.bf16.msra.mxu0 %v1199
    %3824 = vmatprep.subr.bf16.mxu0 %v1224
    %3825 = vmatpush1.bf16.msra.mxu0 %v1223
    %3826 = vmatprep.subr.bf16.mxu0 %v1248
    %3827 = vmatpush1.bf16.msra.mxu0 %v1247
    %3828 = vmatprep.mubr.bf16.mxu0 %v470
    %3829 = vmatmul.mubr.bf16.gmra.mrb[0].mxu0 %v469
    %v3830 = vpop.f32.mrb[0].mxu0
    %v3831 = vadd.f32 %v3790, %v3830
    %v3832 = vpop.f32.mrb[0].mxu0
    %v3833 = vadd.f32 %v3792, %v3832
    %v3834 = vpop.f32.mrb[0].mxu0
    %v3835 = vpop.f32.mrb[0].mxu0
    %3836 = vdwg.mxu0
    %3837 = vmatprep.subr.bf16.mxu0 %v1272
    %3838 = vmatpush1.bf16.msra.mxu0 %v1271
    %3839 = vmatprep.subr.bf16.mxu0 %v1296
    %3840 = vmatpush1.bf16.msra.mxu0 %v1295
    %3841 = vmatprep.subr.bf16.mxu0 %v1320
    %3842 = vmatpush1.bf16.msra.mxu0 %v1319
    %3843 = vmatprep.subr.bf16.mxu0 %v1344
    %3844 = vmatpush1.bf16.msra.mxu0 %v1343
    %3845 = vmatprep.subr.bf16.mxu0 %v1368
    %3846 = vmatpush1.bf16.msra.mxu0 %v1367
    %3847 = vmatprep.subr.bf16.mxu0 %v1392
    %3848 = vmatpush1.bf16.msra.mxu0 %v1391
    %3849 = vmatprep.subr.bf16.mxu0 %v1416
    %3850 = vmatpush1.bf16.msra.mxu0 %v1415
    %3851 = vmatprep.subr.bf16.mxu0 %v1440
    %3852 = vmatpush1.bf16.msra.mxu0 %v1439
    %3853 = vmatprep.subr.bf16.mxu0 %v1464
    %3854 = vmatpush1.bf16.msra.mxu0 %v1463
    %3855 = vmatprep.subr.bf16.mxu0 %v1488
    %3856 = vmatpush1.bf16.msra.mxu0 %v1487
    %3857 = vmatprep.subr.bf16.mxu0 %v1512
    %3858 = vmatpush1.bf16.msra.mxu0 %v1511
    %3859 = vmatprep.subr.bf16.mxu0 %v1536
    %3860 = vmatpush1.bf16.msra.mxu0 %v1535
    %3861 = vmatprep.subr.bf16.mxu0 %v1560
    %3862 = vmatpush1.bf16.msra.mxu0 %v1559
    %3863 = vmatprep.subr.bf16.mxu0 %v1584
    %3864 = vmatpush1.bf16.msra.mxu0 %v1583
    %3865 = vmatprep.subr.bf16.mxu0 %v1608
    %3866 = vmatpush1.bf16.msra.mxu0 %v1607
    %3867 = vmatprep.subr.bf16.mxu0 %v1632
    %3868 = vmatpush1.bf16.msra.mxu0 %v1631
    %3869 = vmatprep.mubr.bf16.mxu0 %v472
    %3870 = vmatmul.mubr.bf16.gmra.mrb[0].mxu0 %v471
    %v3871 = vpop.f32.mrb[0].mxu0
    %v3872 = vadd.f32 %v3831, %v3871
    %v3873 = vpop.f32.mrb[0].mxu0
    %v3874 = vadd.f32 %v3833, %v3873
    %v3875 = vpop.f32.mrb[0].mxu0
    %v3876 = vpop.f32.mrb[0].mxu0
    %3877 = vdwg.mxu0
    %3878 = vmatprep.subr.bf16.mxu0 %v1656
    %3879 = vmatpush1.bf16.msra.mxu0 %v1655
    %3880 = vmatprep.subr.bf16.mxu0 %v1680
    %3881 = vmatpush1.bf16.msra.mxu0 %v1679
    %3882 = vmatprep.subr.bf16.mxu0 %v1704
    %3883 = vmatpush1.bf16.msra.mxu0 %v1703
    %3884 = vmatprep.subr.bf16.mxu0 %v1728
    %3885 = vmatpush1.bf16.msra.mxu0 %v1727
    %3886 = vmatprep.subr.bf16.mxu0 %v1752
    %3887 = vmatpush1.bf16.msra.mxu0 %v1751
    %3888 = vmatprep.subr.bf16.mxu0 %v1776
    %3889 = vmatpush1.bf16.msra.mxu0 %v1775
    %3890 = vmatprep.subr.bf16.mxu0 %v1800
    %3891 = vmatpush1.bf16.msra.mxu0 %v1799
    %3892 = vmatprep.subr.bf16.mxu0 %v1824
    %3893 = vmatpush1.bf16.msra.mxu0 %v1823
    %3894 = vmatprep.subr.bf16.mxu0 0
    %3895 = vmatpush1.bf16.msra.mxu0 0
    %3896 = vmatprep.subr.bf16.mxu0 0
    %3897 = vmatpush1.bf16.msra.mxu0 0
    %3898 = vmatprep.subr.bf16.mxu0 0
    %3899 = vmatpush1.bf16.msra.mxu0 0
    %3900 = vmatprep.subr.bf16.mxu0 0
    %3901 = vmatpush1.bf16.msra.mxu0 0
    %3902 = vmatprep.subr.bf16.mxu0 0
    %3903 = vmatpush1.bf16.msra.mxu0 0
    %3904 = vmatprep.subr.bf16.mxu0 0
    %3905 = vmatpush1.bf16.msra.mxu0 0
    %3906 = vmatprep.subr.bf16.mxu0 0
    %3907 = vmatpush1.bf16.msra.mxu0 0
    %3908 = vmatprep.subr.bf16.mxu0 0
    %3909 = vmatpush1.bf16.msra.mxu0 0
    %3910 = vmatprep.mubr.bf16.mxu0 0
    %3911 = vmatmul.mubr.bf16.gmra.mrb[0].mxu0 %v473
    %v3912 = vpop.f32.mrb[0].mxu0
    %v3913 = vadd.f32 %v3872, %v3912
    %v3914 = vpop.f32.mrb[0].mxu0
    %v3915 = vadd.f32 %v3874, %v3914
    %v3916 = vpop.f32.mrb[0].mxu0
    %v3917 = vpop.f32.mrb[0].mxu0
    %3918 = vdwg.mxu0
    %v3919 = vmax.f32 %v2109, 0.0
    %v3920 = vmax.f32 %v2111, 0.0
    %v3921 = vmax.f32 %v2273, 0.0
    %v3922 = vmax.f32 %v2275, 0.0
    %v3923 = vmax.f32 %v2437, 0.0
    %v3924 = vmax.f32 %v2439, 0.0
    %v3925 = vmax.f32 %v2601, 0.0
    %v3926 = vmax.f32 %v2603, 0.0
    %v3927 = vmax.f32 %v2765, 0.0
    %v3928 = vmax.f32 %v2767, 0.0
    %v3929 = vmax.f32 %v2929, 0.0
    %v3930 = vmax.f32 %v2931, 0.0
    %v3931 = vmax.f32 %v3093, 0.0
    %v3932 = vmax.f32 %v3095, 0.0
    %v3933 = vmax.f32 %v3257, 0.0
    %v3934 = vmax.f32 %v3259, 0.0
    %v3935 = vmax.f32 %v3421, 0.0
    %v3936 = vmax.f32 %v3423, 0.0
    %v3937 = vmax.f32 %v3585, 0.0
    %v3938 = vmax.f32 %v3587, 0.0
    %v3939 = vmax.f32 %v3749, 0.0
    %v3940 = vmax.f32 %v3751, 0.0
    %v3941 = vmax.f32 %v3913, 0.0
    %v3942 = vmax.f32 %v3915, 0.0
    %v3943 = vpack.c.bf16 %v3919, %v3919
    %v3944 = vpack.c.bf16 %v3920, %v3920
    %v3945 = vpack.c.bf16 %v3921, %v3921
    %v3946 = vpack.c.bf16 %v3922, %v3922
    %v3947 = vpack.c.bf16 %v3923, %v3923
    %v3948 = vpack.c.bf16 %v3924, %v3924
    %v3949 = vpack.c.bf16 %v3925, %v3925
    %v3950 = vpack.c.bf16 %v3926, %v3926
    %v3951 = vpack.c.bf16 %v3927, %v3927
    %v3952 = vpack.c.bf16 %v3928, %v3928
    %v3953 = vpack.c.bf16 %v3929, %v3929
    %v3954 = vpack.c.bf16 %v3930, %v3930
    %v3955 = vpack.c.bf16 %v3931, %v3931
    %v3956 = vpack.c.bf16 %v3932, %v3932
    %v3957 = vpack.c.bf16 %v3933, %v3933
    %v3958 = vpack.c.bf16 %v3934, %v3934
    %v3959 = vpack.c.bf16 %v3935, %v3935
    %v3960 = vpack.c.bf16 %v3936, %v3936
    %v3961 = vpack.c.bf16 %v3937, %v3937
    %v3962 = vpack.c.bf16 %v3938, %v3938
    %v3963 = vpack.c.bf16 %v3939, %v3939
    %v3964 = vpack.c.bf16 %v3940, %v3940
    %v3965 = vpack.c.bf16 %v3941, %v3941
    %v3966 = vpack.c.bf16 %v3942, %v3942
    %s3967 = smul.u32 4, 384
    %s3968 = smul.u32 %s3967, 12
    %s3969 = sshll.u32 %s3968, 4
    %3970 = dma.done %s124, %s3969
    %s3971 = smul.u32 1, 12
    %s3972 = sshll.u32 %s3971, 4
    %3973 = dma.done %s159, %s3972
    %v3974 = vld [vmem:[#allocation6] sm:$0xff]
    %v3975 = vld [vmem:[#allocation6 + $0x8] sm:$0xff]
    %v3976 = vld [vmem:[#allocation6 + $0x10] sm:$0xff]
    %v3977 = vld [vmem:[#allocation6 + $0x18] sm:$0xff]
    %v3978 = vld [vmem:[#allocation6 + $0x20] sm:$0xff]
    %v3979 = vld [vmem:[#allocation6 + $0x28] sm:$0xff]
    %v3980 = vld [vmem:[#allocation6 + $0x30] sm:$0xff]
    %v3981 = vld [vmem:[#allocation6 + $0x38] sm:$0xff]
    %v3982 = vld [vmem:[#allocation6 + $0x40] sm:$0xff]
    %v3983 = vld [vmem:[#allocation6 + $0x48] sm:$0xff]
    %v3984 = vld [vmem:[#allocation6 + $0x50] sm:$0xff]
    %v3985 = vld [vmem:[#allocation6 + $0x58] sm:$0xff]
    %v3986 = vld [vmem:[#allocation6 + $0x60] sm:$0xff]
    %v3987 = vld [vmem:[#allocation6 + $0x68] sm:$0xff]
    %v3988 = vld [vmem:[#allocation6 + $0x70] sm:$0xff]
    %v3989 = vld [vmem:[#allocation6 + $0x78] sm:$0xff]
    %v3990 = vld [vmem:[#allocation6 + $0x80] sm:$0xff]
    %v3991 = vld [vmem:[#allocation6 + $0x88] sm:$0xff]
    %v3992 = vld [vmem:[#allocation6 + $0x90] sm:$0xff]
    %v3993 = vld [vmem:[#allocation6 + $0x98] sm:$0xff]
    %v3994 = vld [vmem:[#allocation6 + $0xa0] sm:$0xff]
    %v3995 = vld [vmem:[#allocation6 + $0xa8] sm:$0xff]
    %v3996 = vld [vmem:[#allocation6 + $0xb0] sm:$0xff]
    %v3997 = vld [vmem:[#allocation6 + $0xb8] sm:$0xff]
    %v3998 = vld [vmem:[#allocation6 + $0xc0] sm:$0xff]
    %v3999 = vld [vmem:[#allocation6 + $0xc8] sm:$0xff]
    %v4000 = vld [vmem:[#allocation6 + $0xd0] sm:$0xff]
    %v4001 = vld [vmem:[#allocation6 + $0xd8] sm:$0xff]
    %v4002 = vld [vmem:[#allocation6 + $0xe0] sm:$0xff]
    %v4003 = vld [vmem:[#allocation6 + $0xe8] sm:$0xff]
    %v4004 = vld [vmem:[#allocation6 + $0xf0] sm:$0xff]
    %v4005 = vld [vmem:[#allocation6 + $0xf8] sm:$0xff]
    %v4006 = vld [vmem:[#allocation6 + $0x100] sm:$0xff]
    %v4007 = vld [vmem:[#allocation6 + $0x108] sm:$0xff]
    %v4008 = vld [vmem:[#allocation6 + $0x110] sm:$0xff]
    %v4009 = vld [vmem:[#allocation6 + $0x118] sm:$0xff]
    %v4010 = vld [vmem:[#allocation6 + $0x120] sm:$0xff]
    %v4011 = vld [vmem:[#allocation6 + $0x128] sm:$0xff]
    %v4012 = vld [vmem:[#allocation6 + $0x130] sm:$0xff]
    %v4013 = vld [vmem:[#allocation6 + $0x138] sm:$0xff]
    %v4014 = vld [vmem:[#allocation6 + $0x140] sm:$0xff]
    %v4015 = vld [vmem:[#allocation6 + $0x148] sm:$0xff]
    %v4016 = vld [vmem:[#allocation6 + $0x150] sm:$0xff]
    %v4017 = vld [vmem:[#allocation6 + $0x158] sm:$0xff]
    %v4018 = vld [vmem:[#allocation6 + $0x160] sm:$0xff]
    %v4019 = vld [vmem:[#allocation6 + $0x168] sm:$0xff]
    %v4020 = vld [vmem:[#allocation6 + $0x170] sm:$0xff]
    %v4021 = vld [vmem:[#allocation6 + $0x178] sm:$0xff]
    %v4022 = vld [vmem:[#allocation6 + $0x180] sm:$0xff]
    %v4023 = vld [vmem:[#allocation6 + $0x188] sm:$0xff]
    %v4024 = vld [vmem:[#allocation6 + $0x190] sm:$0xff]
    %v4025 = vld [vmem:[#allocation6 + $0x198] sm:$0xff]
    %v4026 = vld [vmem:[#allocation6 + $0x1a0] sm:$0xff]
    %v4027 = vld [vmem:[#allocation6 + $0x1a8] sm:$0xff]
    %v4028 = vld [vmem:[#allocation6 + $0x1b0] sm:$0xff]
    %v4029 = vld [vmem:[#allocation6 + $0x1b8] sm:$0xff]
    %v4030 = vld [vmem:[#allocation6 + $0x1c0] sm:$0xff]
    %v4031 = vld [vmem:[#allocation6 + $0x1c8] sm:$0xff]
    %v4032 = vld [vmem:[#allocation6 + $0x1d0] sm:$0xff]
    %v4033 = vld [vmem:[#allocation6 + $0x1d8] sm:$0xff]
    %v4034 = vld [vmem:[#allocation6 + $0x1e0] sm:$0xff]
    %v4035 = vld [vmem:[#allocation6 + $0x1e8] sm:$0xff]
    %v4036 = vld [vmem:[#allocation6 + $0x1f0] sm:$0xff]
    %v4037 = vld [vmem:[#allocation6 + $0x1f8] sm:$0xff]
    %v4038 = vld [vmem:[#allocation6 + $0x200] sm:$0xff]
    %v4039 = vld [vmem:[#allocation6 + $0x208] sm:$0xff]
    %v4040 = vld [vmem:[#allocation6 + $0x210] sm:$0xff]
    %v4041 = vld [vmem:[#allocation6 + $0x218] sm:$0xff]
    %v4042 = vld [vmem:[#allocation6 + $0x220] sm:$0xff]
    %v4043 = vld [vmem:[#allocation6 + $0x228] sm:$0xff]
    %v4044 = vld [vmem:[#allocation6 + $0x230] sm:$0xff]
    %v4045 = vld [vmem:[#allocation6 + $0x238] sm:$0xff]
    %v4046 = vld [vmem:[#allocation6 + $0x240] sm:$0xff]
    %v4047 = vld [vmem:[#allocation6 + $0x248] sm:$0xff]
    %v4048 = vld [vmem:[#allocation6 + $0x250] sm:$0xff]
    %v4049 = vld [vmem:[#allocation6 + $0x258] sm:$0xff]
    %v4050 = vld [vmem:[#allocation6 + $0x260] sm:$0xff]
    %v4051 = vld [vmem:[#allocation6 + $0x268] sm:$0xff]
    %v4052 = vld [vmem:[#allocation6 + $0x270] sm:$0xff]
    %v4053 = vld [vmem:[#allocation6 + $0x278] sm:$0xff]
    %v4054 = vld [vmem:[#allocation6 + $0x280] sm:$0xff]
    %v4055 = vld [vmem:[#allocation6 + $0x288] sm:$0xff]
    %v4056 = vld [vmem:[#allocation6 + $0x290] sm:$0xff]
    %v4057 = vld [vmem:[#allocation6 + $0x298] sm:$0xff]
    %v4058 = vld [vmem:[#allocation6 + $0x2a0] sm:$0xff]
    %v4059 = vld [vmem:[#allocation6 + $0x2a8] sm:$0xff]
    %v4060 = vld [vmem:[#allocation6 + $0x2b0] sm:$0xff]
    %v4061 = vld [vmem:[#allocation6 + $0x2b8] sm:$0xff]
    %v4062 = vld [vmem:[#allocation6 + $0x2c0] sm:$0xff]
    %v4063 = vld [vmem:[#allocation6 + $0x2c8] sm:$0xff]
    %v4064 = vld [vmem:[#allocation6 + $0x2d0] sm:$0xff]
    %v4065 = vld [vmem:[#allocation6 + $0x2d8] sm:$0xff]
    %v4066 = vld [vmem:[#allocation6 + $0x2e0] sm:$0xff]
    %v4067 = vld [vmem:[#allocation6 + $0x2e8] sm:$0xff]
    %v4068 = vld [vmem:[#allocation6 + $0x2f0] sm:$0xff]
    %v4069 = vld [vmem:[#allocation6 + $0x2f8] sm:$0xff]
    %v4070 = vld [vmem:[#allocation6 + $0x300] sm:$0xff]
    %v4071 = vld [vmem:[#allocation6 + $0x308] sm:$0xff]
    %v4072 = vld [vmem:[#allocation6 + $0x310] sm:$0xff]
    %v4073 = vld [vmem:[#allocation6 + $0x318] sm:$0xff]
    %v4074 = vld [vmem:[#allocation6 + $0x320] sm:$0xff]
    %v4075 = vld [vmem:[#allocation6 + $0x328] sm:$0xff]
    %v4076 = vld [vmem:[#allocation6 + $0x330] sm:$0xff]
    %v4077 = vld [vmem:[#allocation6 + $0x338] sm:$0xff]
    %v4078 = vld [vmem:[#allocation6 + $0x340] sm:$0xff]
    %v4079 = vld [vmem:[#allocation6 + $0x348] sm:$0xff]
    %v4080 = vld [vmem:[#allocation6 + $0x350] sm:$0xff]
    %v4081 = vld [vmem:[#allocation6 + $0x358] sm:$0xff]
    %v4082 = vld [vmem:[#allocation6 + $0x360] sm:$0xff]
    %v4083 = vld [vmem:[#allocation6 + $0x368] sm:$0xff]
    %v4084 = vld [vmem:[#allocation6 + $0x370] sm:$0xff]
    %v4085 = vld [vmem:[#allocation6 + $0x378] sm:$0xff]
    %v4086 = vld [vmem:[#allocation6 + $0x380] sm:$0xff]
    %v4087 = vld [vmem:[#allocation6 + $0x388] sm:$0xff]
    %v4088 = vld [vmem:[#allocation6 + $0x390] sm:$0xff]
    %v4089 = vld [vmem:[#allocation6 + $0x398] sm:$0xff]
    %v4090 = vld [vmem:[#allocation6 + $0x3a0] sm:$0xff]
    %v4091 = vld [vmem:[#allocation6 + $0x3a8] sm:$0xff]
    %v4092 = vld [vmem:[#allocation6 + $0x3b0] sm:$0xff]
    %v4093 = vld [vmem:[#allocation6 + $0x3b8] sm:$0xff]
    %v4094 = vld [vmem:[#allocation6 + $0x3c0] sm:$0xff]
    %v4095 = vld [vmem:[#allocation6 + $0x3c8] sm:$0xff]
    %v4096 = vld [vmem:[#allocation6 + $0x3d0] sm:$0xff]
    %v4097 = vld [vmem:[#allocation6 + $0x3d8] sm:$0xff]
    %v4098 = vld [vmem:[#allocation6 + $0x3e0] sm:$0xff]
    %v4099 = vld [vmem:[#allocation6 + $0x3e8] sm:$0xff]
    %v4100 = vld [vmem:[#allocation6 + $0x3f0] sm:$0xff]
    %v4101 = vld [vmem:[#allocation6 + $0x3f8] sm:$0xff]
    %v4102 = vld [vmem:[#allocation6 + $0x400] sm:$0xff]
    %v4103 = vld [vmem:[#allocation6 + $0x408] sm:$0xff]
    %v4104 = vld [vmem:[#allocation6 + $0x410] sm:$0xff]
    %v4105 = vld [vmem:[#allocation6 + $0x418] sm:$0xff]
    %v4106 = vld [vmem:[#allocation6 + $0x420] sm:$0xff]
    %v4107 = vld [vmem:[#allocation6 + $0x428] sm:$0xff]
    %v4108 = vld [vmem:[#allocation6 + $0x430] sm:$0xff]
    %v4109 = vld [vmem:[#allocation6 + $0x438] sm:$0xff]
    %v4110 = vld [vmem:[#allocation6 + $0x440] sm:$0xff]
    %v4111 = vld [vmem:[#allocation6 + $0x448] sm:$0xff]
    %v4112 = vld [vmem:[#allocation6 + $0x450] sm:$0xff]
    %v4113 = vld [vmem:[#allocation6 + $0x458] sm:$0xff]
    %v4114 = vld [vmem:[#allocation6 + $0x460] sm:$0xff]
    %v4115 = vld [vmem:[#allocation6 + $0x468] sm:$0xff]
    %v4116 = vld [vmem:[#allocation6 + $0x470] sm:$0xff]
    %v4117 = vld [vmem:[#allocation6 + $0x478] sm:$0xff]
    %v4118 = vld [vmem:[#allocation6 + $0x480] sm:$0xff]
    %v4119 = vld [vmem:[#allocation6 + $0x488] sm:$0xff]
    %v4120 = vld [vmem:[#allocation6 + $0x490] sm:$0xff]
    %v4121 = vld [vmem:[#allocation6 + $0x498] sm:$0xff]
    %v4122 = vld [vmem:[#allocation6 + $0x4a0] sm:$0xff]
    %v4123 = vld [vmem:[#allocation6 + $0x4a8] sm:$0xff]
    %v4124 = vld [vmem:[#allocation6 + $0x4b0] sm:$0xff]
    %v4125 = vld [vmem:[#allocation6 + $0x4b8] sm:$0xff]
    %v4126 = vld [vmem:[#allocation6 + $0x4c0] sm:$0xff]
    %v4127 = vld [vmem:[#allocation6 + $0x4c8] sm:$0xff]
    %v4128 = vld [vmem:[#allocation6 + $0x4d0] sm:$0xff]
    %v4129 = vld [vmem:[#allocation6 + $0x4d8] sm:$0xff]
    %v4130 = vld [vmem:[#allocation6 + $0x4e0] sm:$0xff]
    %v4131 = vld [vmem:[#allocation6 + $0x4e8] sm:$0xff]
    %v4132 = vld [vmem:[#allocation6 + $0x4f0] sm:$0xff]
    %v4133 = vld [vmem:[#allocation6 + $0x4f8] sm:$0xff]
    %v4134 = vld [vmem:[#allocation6 + $0x500] sm:$0xff]
    %v4135 = vld [vmem:[#allocation6 + $0x508] sm:$0xff]
    %v4136 = vld [vmem:[#allocation6 + $0x510] sm:$0xff]
    %v4137 = vld [vmem:[#allocation6 + $0x518] sm:$0xff]
    %v4138 = vld [vmem:[#allocation6 + $0x520] sm:$0xff]
    %v4139 = vld [vmem:[#allocation6 + $0x528] sm:$0xff]
    %v4140 = vld [vmem:[#allocation6 + $0x530] sm:$0xff]
    %v4141 = vld [vmem:[#allocation6 + $0x538] sm:$0xff]
    %v4142 = vld [vmem:[#allocation6 + $0x540] sm:$0xff]
    %v4143 = vld [vmem:[#allocation6 + $0x548] sm:$0xff]
    %v4144 = vld [vmem:[#allocation6 + $0x550] sm:$0xff]
    %v4145 = vld [vmem:[#allocation6 + $0x558] sm:$0xff]
    %v4146 = vld [vmem:[#allocation6 + $0x560] sm:$0xff]
    %v4147 = vld [vmem:[#allocation6 + $0x568] sm:$0xff]
    %v4148 = vld [vmem:[#allocation6 + $0x570] sm:$0xff]
    %v4149 = vld [vmem:[#allocation6 + $0x578] sm:$0xff]
    %v4150 = vld [vmem:[#allocation6 + $0x580] sm:$0xff]
    %v4151 = vld [vmem:[#allocation6 + $0x588] sm:$0xff]
    %v4152 = vld [vmem:[#allocation6 + $0x590] sm:$0xff]
    %v4153 = vld [vmem:[#allocation6 + $0x598] sm:$0xff]
    %v4154 = vld [vmem:[#allocation6 + $0x5a0] sm:$0xff]
    %v4155 = vld [vmem:[#allocation6 + $0x5a8] sm:$0xff]
    %v4156 = vld [vmem:[#allocation6 + $0x5b0] sm:$0xff]
    %v4157 = vld [vmem:[#allocation6 + $0x5b8] sm:$0xff]
    %v4158 = vld [vmem:[#allocation6 + $0x5c0] sm:$0xff]
    %v4159 = vld [vmem:[#allocation6 + $0x5c8] sm:$0xff]
    %v4160 = vld [vmem:[#allocation6 + $0x5d0] sm:$0xff]
    %v4161 = vld [vmem:[#allocation6 + $0x5d8] sm:$0xff]
    %v4162 = vld [vmem:[#allocation6 + $0x5e0] sm:$0xff]
    %v4163 = vld [vmem:[#allocation6 + $0x5e8] sm:$0xff]
    %v4164 = vld [vmem:[#allocation6 + $0x5f0] sm:$0xff]
    %v4165 = vld [vmem:[#allocation6 + $0x5f8] sm:$0xff]
    %v4166 = vld [vmem:[#allocation6 + $0x600] sm:$0xff]
    %v4167 = vld [vmem:[#allocation6 + $0x608] sm:$0xff]
    %v4168 = vld [vmem:[#allocation6 + $0x610] sm:$0xff]
    %v4169 = vld [vmem:[#allocation6 + $0x618] sm:$0xff]
    %v4170 = vld [vmem:[#allocation6 + $0x620] sm:$0xff]
    %v4171 = vld [vmem:[#allocation6 + $0x628] sm:$0xff]
    %v4172 = vld [vmem:[#allocation6 + $0x630] sm:$0xff]
    %v4173 = vld [vmem:[#allocation6 + $0x638] sm:$0xff]
    %v4174 = vld [vmem:[#allocation6 + $0x640] sm:$0xff]
    %v4175 = vld [vmem:[#allocation6 + $0x648] sm:$0xff]
    %v4176 = vld [vmem:[#allocation6 + $0x650] sm:$0xff]
    %v4177 = vld [vmem:[#allocation6 + $0x658] sm:$0xff]
    %v4178 = vld [vmem:[#allocation6 + $0x660] sm:$0xff]
    %v4179 = vld [vmem:[#allocation6 + $0x668] sm:$0xff]
    %v4180 = vld [vmem:[#allocation6 + $0x670] sm:$0xff]
    %v4181 = vld [vmem:[#allocation6 + $0x678] sm:$0xff]
    %v4182 = vld [vmem:[#allocation6 + $0x680] sm:$0xff]
    %v4183 = vld [vmem:[#allocation6 + $0x688] sm:$0xff]
    %v4184 = vld [vmem:[#allocation6 + $0x690] sm:$0xff]
    %v4185 = vld [vmem:[#allocation6 + $0x698] sm:$0xff]
    %v4186 = vld [vmem:[#allocation6 + $0x6a0] sm:$0xff]
    %v4187 = vld [vmem:[#allocation6 + $0x6a8] sm:$0xff]
    %v4188 = vld [vmem:[#allocation6 + $0x6b0] sm:$0xff]
    %v4189 = vld [vmem:[#allocation6 + $0x6b8] sm:$0xff]
    %v4190 = vld [vmem:[#allocation6 + $0x6c0] sm:$0xff]
    %v4191 = vld [vmem:[#allocation6 + $0x6c8] sm:$0xff]
    %v4192 = vld [vmem:[#allocation6 + $0x6d0] sm:$0xff]
    %v4193 = vld [vmem:[#allocation6 + $0x6d8] sm:$0xff]
    %v4194 = vld [vmem:[#allocation6 + $0x6e0] sm:$0xff]
    %v4195 = vld [vmem:[#allocation6 + $0x6e8] sm:$0xff]
    %v4196 = vld [vmem:[#allocation6 + $0x6f0] sm:$0xff]
    %v4197 = vld [vmem:[#allocation6 + $0x6f8] sm:$0xff]
    %v4198 = vld [vmem:[#allocation6 + $0x700] sm:$0xff]
    %v4199 = vld [vmem:[#allocation6 + $0x708] sm:$0xff]
    %v4200 = vld [vmem:[#allocation6 + $0x710] sm:$0xff]
    %v4201 = vld [vmem:[#allocation6 + $0x718] sm:$0xff]
    %v4202 = vld [vmem:[#allocation6 + $0x720] sm:$0xff]
    %v4203 = vld [vmem:[#allocation6 + $0x728] sm:$0xff]
    %v4204 = vld [vmem:[#allocation6 + $0x730] sm:$0xff]
    %v4205 = vld [vmem:[#allocation6 + $0x738] sm:$0xff]
    %v4206 = vld [vmem:[#allocation6 + $0x740] sm:$0xff]
    %v4207 = vld [vmem:[#allocation6 + $0x748] sm:$0xff]
    %v4208 = vld [vmem:[#allocation6 + $0x750] sm:$0xff]
    %v4209 = vld [vmem:[#allocation6 + $0x758] sm:$0xff]
    %v4210 = vld [vmem:[#allocation6 + $0x760] sm:$0xff]
    %v4211 = vld [vmem:[#allocation6 + $0x768] sm:$0xff]
    %v4212 = vld [vmem:[#allocation6 + $0x770] sm:$0xff]
    %v4213 = vld [vmem:[#allocation6 + $0x778] sm:$0xff]
    %v4214 = vld [vmem:[#allocation6 + $0x780] sm:$0xff]
    %v4215 = vld [vmem:[#allocation6 + $0x788] sm:$0xff]
    %v4216 = vld [vmem:[#allocation6 + $0x790] sm:$0xff]
    %v4217 = vld [vmem:[#allocation6 + $0x798] sm:$0xff]
    %v4218 = vld [vmem:[#allocation6 + $0x7a0] sm:$0xff]
    %v4219 = vld [vmem:[#allocation6 + $0x7a8] sm:$0xff]
    %v4220 = vld [vmem:[#allocation6 + $0x7b0] sm:$0xff]
    %v4221 = vld [vmem:[#allocation6 + $0x7b8] sm:$0xff]
    %v4222 = vld [vmem:[#allocation6 + $0x7c0] sm:$0xff]
    %v4223 = vld [vmem:[#allocation6 + $0x7c8] sm:$0xff]
    %v4224 = vld [vmem:[#allocation6 + $0x7d0] sm:$0xff]
    %v4225 = vld [vmem:[#allocation6 + $0x7d8] sm:$0xff]
    %v4226 = vld [vmem:[#allocation6 + $0x7e0] sm:$0xff]
    %v4227 = vld [vmem:[#allocation6 + $0x7e8] sm:$0xff]
    %v4228 = vld [vmem:[#allocation6 + $0x7f0] sm:$0xff]
    %v4229 = vld [vmem:[#allocation6 + $0x7f8] sm:$0xff]
    %v4230 = vld [vmem:[#allocation6 + $0x800] sm:$0xff]
    %v4231 = vld [vmem:[#allocation6 + $0x808] sm:$0xff]
    %v4232 = vld [vmem:[#allocation6 + $0x810] sm:$0xff]
    %v4233 = vld [vmem:[#allocation6 + $0x818] sm:$0xff]
    %v4234 = vld [vmem:[#allocation6 + $0x820] sm:$0xff]
    %v4235 = vld [vmem:[#allocation6 + $0x828] sm:$0xff]
    %v4236 = vld [vmem:[#allocation6 + $0x830] sm:$0xff]
    %v4237 = vld [vmem:[#allocation6 + $0x838] sm:$0xff]
    %v4238 = vld [vmem:[#allocation6 + $0x840] sm:$0xff]
    %v4239 = vld [vmem:[#allocation6 + $0x848] sm:$0xff]
    %v4240 = vld [vmem:[#allocation6 + $0x850] sm:$0xff]
    %v4241 = vld [vmem:[#allocation6 + $0x858] sm:$0xff]
    %v4242 = vld [vmem:[#allocation6 + $0x860] sm:$0xff]
    %v4243 = vld [vmem:[#allocation6 + $0x868] sm:$0xff]
    %v4244 = vld [vmem:[#allocation6 + $0x870] sm:$0xff]
    %v4245 = vld [vmem:[#allocation6 + $0x878] sm:$0xff]
    %v4246 = vld [vmem:[#allocation6 + $0x880] sm:$0xff]
    %v4247 = vld [vmem:[#allocation6 + $0x888] sm:$0xff]
    %v4248 = vld [vmem:[#allocation6 + $0x890] sm:$0xff]
    %v4249 = vld [vmem:[#allocation6 + $0x898] sm:$0xff]
    %v4250 = vld [vmem:[#allocation6 + $0x8a0] sm:$0xff]
    %v4251 = vld [vmem:[#allocation6 + $0x8a8] sm:$0xff]
    %v4252 = vld [vmem:[#allocation6 + $0x8b0] sm:$0xff]
    %v4253 = vld [vmem:[#allocation6 + $0x8b8] sm:$0xff]
    %v4254 = vld [vmem:[#allocation6 + $0x8c0] sm:$0xff]
    %v4255 = vld [vmem:[#allocation6 + $0x8c8] sm:$0xff]
    %v4256 = vld [vmem:[#allocation6 + $0x8d0] sm:$0xff]
    %v4257 = vld [vmem:[#allocation6 + $0x8d8] sm:$0xff]
    %v4258 = vld [vmem:[#allocation6 + $0x8e0] sm:$0xff]
    %v4259 = vld [vmem:[#allocation6 + $0x8e8] sm:$0xff]
    %v4260 = vld [vmem:[#allocation6 + $0x8f0] sm:$0xff]
    %v4261 = vld [vmem:[#allocation6 + $0x8f8] sm:$0xff]
    %v4262 = vld [vmem:[#allocation6 + $0x900] sm:$0xff]
    %v4263 = vld [vmem:[#allocation6 + $0x908] sm:$0xff]
    %v4264 = vld [vmem:[#allocation6 + $0x910] sm:$0xff]
    %v4265 = vld [vmem:[#allocation6 + $0x918] sm:$0xff]
    %v4266 = vld [vmem:[#allocation6 + $0x920] sm:$0xff]
    %v4267 = vld [vmem:[#allocation6 + $0x928] sm:$0xff]
    %v4268 = vld [vmem:[#allocation6 + $0x930] sm:$0xff]
    %v4269 = vld [vmem:[#allocation6 + $0x938] sm:$0xff]
    %v4270 = vld [vmem:[#allocation6 + $0x940] sm:$0xff]
    %v4271 = vld [vmem:[#allocation6 + $0x948] sm:$0xff]
    %v4272 = vld [vmem:[#allocation6 + $0x950] sm:$0xff]
    %v4273 = vld [vmem:[#allocation6 + $0x958] sm:$0xff]
    %v4274 = vld [vmem:[#allocation6 + $0x960] sm:$0xff]
    %v4275 = vld [vmem:[#allocation6 + $0x968] sm:$0xff]
    %v4276 = vld [vmem:[#allocation6 + $0x970] sm:$0xff]
    %v4277 = vld [vmem:[#allocation6 + $0x978] sm:$0xff]
    %v4278 = vld [vmem:[#allocation6 + $0x980] sm:$0xff]
    %v4279 = vld [vmem:[#allocation6 + $0x988] sm:$0xff]
    %v4280 = vld [vmem:[#allocation6 + $0x990] sm:$0xff]
    %v4281 = vld [vmem:[#allocation6 + $0x998] sm:$0xff]
    %v4282 = vld [vmem:[#allocation6 + $0x9a0] sm:$0xff]
    %v4283 = vld [vmem:[#allocation6 + $0x9a8] sm:$0xff]
    %v4284 = vld [vmem:[#allocation6 + $0x9b0] sm:$0xff]
    %v4285 = vld [vmem:[#allocation6 + $0x9b8] sm:$0xff]
    %v4286 = vld [vmem:[#allocation6 + $0x9c0] sm:$0xff]
    %v4287 = vld [vmem:[#allocation6 + $0x9c8] sm:$0xff]
    %v4288 = vld [vmem:[#allocation6 + $0x9d0] sm:$0xff]
    %v4289 = vld [vmem:[#allocation6 + $0x9d8] sm:$0xff]
    %v4290 = vld [vmem:[#allocation6 + $0x9e0] sm:$0xff]
    %v4291 = vld [vmem:[#allocation6 + $0x9e8] sm:$0xff]
    %v4292 = vld [vmem:[#allocation6 + $0x9f0] sm:$0xff]
    %v4293 = vld [vmem:[#allocation6 + $0x9f8] sm:$0xff]
    %v4294 = vld [vmem:[#allocation6 + $0xa00] sm:$0xff]
    %v4295 = vld [vmem:[#allocation6 + $0xa08] sm:$0xff]
    %v4296 = vld [vmem:[#allocation6 + $0xa10] sm:$0xff]
    %v4297 = vld [vmem:[#allocation6 + $0xa18] sm:$0xff]
    %v4298 = vld [vmem:[#allocation6 + $0xa20] sm:$0xff]
    %v4299 = vld [vmem:[#allocation6 + $0xa28] sm:$0xff]
    %v4300 = vld [vmem:[#allocation6 + $0xa30] sm:$0xff]
    %v4301 = vld [vmem:[#allocation6 + $0xa38] sm:$0xff]
    %v4302 = vld [vmem:[#allocation6 + $0xa40] sm:$0xff]
    %v4303 = vld [vmem:[#allocation6 + $0xa48] sm:$0xff]
    %v4304 = vld [vmem:[#allocation6 + $0xa50] sm:$0xff]
    %v4305 = vld [vmem:[#allocation6 + $0xa58] sm:$0xff]
    %v4306 = vld [vmem:[#allocation6 + $0xa60] sm:$0xff]
    %v4307 = vld [vmem:[#allocation6 + $0xa68] sm:$0xff]
    %v4308 = vld [vmem:[#allocation6 + $0xa70] sm:$0xff]
    %v4309 = vld [vmem:[#allocation6 + $0xa78] sm:$0xff]
    %v4310 = vld [vmem:[#allocation6 + $0xa80] sm:$0xff]
    %v4311 = vld [vmem:[#allocation6 + $0xa88] sm:$0xff]
    %v4312 = vld [vmem:[#allocation6 + $0xa90] sm:$0xff]
    %v4313 = vld [vmem:[#allocation6 + $0xa98] sm:$0xff]
    %v4314 = vld [vmem:[#allocation6 + $0xaa0] sm:$0xff]
    %v4315 = vld [vmem:[#allocation6 + $0xaa8] sm:$0xff]
    %v4316 = vld [vmem:[#allocation6 + $0xab0] sm:$0xff]
    %v4317 = vld [vmem:[#allocation6 + $0xab8] sm:$0xff]
    %v4318 = vld [vmem:[#allocation6 + $0xac0] sm:$0xff]
    %v4319 = vld [vmem:[#allocation6 + $0xac8] sm:$0xff]
    %v4320 = vld [vmem:[#allocation6 + $0xad0] sm:$0xff]
    %v4321 = vld [vmem:[#allocation6 + $0xad8] sm:$0xff]
    %v4322 = vld [vmem:[#allocation6 + $0xae0] sm:$0xff]
    %v4323 = vld [vmem:[#allocation6 + $0xae8] sm:$0xff]
    %v4324 = vld [vmem:[#allocation6 + $0xaf0] sm:$0xff]
    %v4325 = vld [vmem:[#allocation6 + $0xaf8] sm:$0xff]
    %v4326 = vld [vmem:[#allocation6 + $0xb00] sm:$0xff]
    %v4327 = vld [vmem:[#allocation6 + $0xb08] sm:$0xff]
    %v4328 = vld [vmem:[#allocation6 + $0xb10] sm:$0xff]
    %v4329 = vld [vmem:[#allocation6 + $0xb18] sm:$0xff]
    %v4330 = vld [vmem:[#allocation6 + $0xb20] sm:$0xff]
    %v4331 = vld [vmem:[#allocation6 + $0xb28] sm:$0xff]
    %v4332 = vld [vmem:[#allocation6 + $0xb30] sm:$0xff]
    %v4333 = vld [vmem:[#allocation6 + $0xb38] sm:$0xff]
    %v4334 = vld [vmem:[#allocation6 + $0xb40] sm:$0xff]
    %v4335 = vld [vmem:[#allocation6 + $0xb48] sm:$0xff]
    %v4336 = vld [vmem:[#allocation6 + $0xb50] sm:$0xff]
    %v4337 = vld [vmem:[#allocation6 + $0xb58] sm:$0xff]
    %v4338 = vld [vmem:[#allocation6 + $0xb60] sm:$0xff]
    %v4339 = vld [vmem:[#allocation6 + $0xb68] sm:$0xff]
    %v4340 = vld [vmem:[#allocation6 + $0xb70] sm:$0xff]
    %v4341 = vld [vmem:[#allocation6 + $0xb78] sm:$0xff]
    %v4342 = vld [vmem:[#allocation6 + $0xb80] sm:$0xff]
    %v4343 = vld [vmem:[#allocation6 + $0xb88] sm:$0xff]
    %v4344 = vld [vmem:[#allocation6 + $0xb90] sm:$0xff]
    %v4345 = vld [vmem:[#allocation6 + $0xb98] sm:$0xff]
    %v4346 = vld [vmem:[#allocation6 + $0xba0] sm:$0xff]
    %v4347 = vld [vmem:[#allocation6 + $0xba8] sm:$0xff]
    %v4348 = vld [vmem:[#allocation6 + $0xbb0] sm:$0xff]
    %v4349 = vld [vmem:[#allocation6 + $0xbb8] sm:$0xff]
    %v4350 = vld [vmem:[#allocation6 + $0xbc0] sm:$0xff]
    %v4351 = vld [vmem:[#allocation6 + $0xbc8] sm:$0xff]
    %v4352 = vld [vmem:[#allocation6 + $0xbd0] sm:$0xff]
    %v4353 = vld [vmem:[#allocation6 + $0xbd8] sm:$0xff]
    %v4354 = vld [vmem:[#allocation6 + $0xbe0] sm:$0xff]
    %v4355 = vld [vmem:[#allocation6 + $0xbe8] sm:$0xff]
    %v4356 = vld [vmem:[#allocation6 + $0xbf0] sm:$0xff]
    %v4357 = vld [vmem:[#allocation6 + $0xbf8] sm:$0xff]
    %v4358 = vld [vmem:[#allocation6 + $0xc00] sm:$0xff]
    %v4359 = vld [vmem:[#allocation6 + $0xc08] sm:$0xff]
    %v4360 = vld [vmem:[#allocation6 + $0xc10] sm:$0xff]
    %v4361 = vld [vmem:[#allocation6 + $0xc18] sm:$0xff]
    %v4362 = vld [vmem:[#allocation6 + $0xc20] sm:$0xff]
    %v4363 = vld [vmem:[#allocation6 + $0xc28] sm:$0xff]
    %v4364 = vld [vmem:[#allocation6 + $0xc30] sm:$0xff]
    %v4365 = vld [vmem:[#allocation6 + $0xc38] sm:$0xff]
    %v4366 = vld [vmem:[#allocation6 + $0xc40] sm:$0xff]
    %v4367 = vld [vmem:[#allocation6 + $0xc48] sm:$0xff]
    %v4368 = vld [vmem:[#allocation6 + $0xc50] sm:$0xff]
    %v4369 = vld [vmem:[#allocation6 + $0xc58] sm:$0xff]
    %v4370 = vld [vmem:[#allocation6 + $0xc60] sm:$0xff]
    %v4371 = vld [vmem:[#allocation6 + $0xc68] sm:$0xff]
    %v4372 = vld [vmem:[#allocation6 + $0xc70] sm:$0xff]
    %v4373 = vld [vmem:[#allocation6 + $0xc78] sm:$0xff]
    %v4374 = vld [vmem:[#allocation6 + $0xc80] sm:$0xff]
    %v4375 = vld [vmem:[#allocation6 + $0xc88] sm:$0xff]
    %v4376 = vld [vmem:[#allocation6 + $0xc90] sm:$0xff]
    %v4377 = vld [vmem:[#allocation6 + $0xc98] sm:$0xff]
    %v4378 = vld [vmem:[#allocation6 + $0xca0] sm:$0xff]
    %v4379 = vld [vmem:[#allocation6 + $0xca8] sm:$0xff]
    %v4380 = vld [vmem:[#allocation6 + $0xcb0] sm:$0xff]
    %v4381 = vld [vmem:[#allocation6 + $0xcb8] sm:$0xff]
    %v4382 = vld [vmem:[#allocation6 + $0xcc0] sm:$0xff]
    %v4383 = vld [vmem:[#allocation6 + $0xcc8] sm:$0xff]
    %v4384 = vld [vmem:[#allocation6 + $0xcd0] sm:$0xff]
    %v4385 = vld [vmem:[#allocation6 + $0xcd8] sm:$0xff]
    %v4386 = vld [vmem:[#allocation6 + $0xce0] sm:$0xff]
    %v4387 = vld [vmem:[#allocation6 + $0xce8] sm:$0xff]
    %v4388 = vld [vmem:[#allocation6 + $0xcf0] sm:$0xff]
    %v4389 = vld [vmem:[#allocation6 + $0xcf8] sm:$0xff]
    %v4390 = vld [vmem:[#allocation6 + $0xd00] sm:$0xff]
    %v4391 = vld [vmem:[#allocation6 + $0xd08] sm:$0xff]
    %v4392 = vld [vmem:[#allocation6 + $0xd10] sm:$0xff]
    %v4393 = vld [vmem:[#allocation6 + $0xd18] sm:$0xff]
    %v4394 = vld [vmem:[#allocation6 + $0xd20] sm:$0xff]
    %v4395 = vld [vmem:[#allocation6 + $0xd28] sm:$0xff]
    %v4396 = vld [vmem:[#allocation6 + $0xd30] sm:$0xff]
    %v4397 = vld [vmem:[#allocation6 + $0xd38] sm:$0xff]
    %v4398 = vld [vmem:[#allocation6 + $0xd40] sm:$0xff]
    %v4399 = vld [vmem:[#allocation6 + $0xd48] sm:$0xff]
    %v4400 = vld [vmem:[#allocation6 + $0xd50] sm:$0xff]
    %v4401 = vld [vmem:[#allocation6 + $0xd58] sm:$0xff]
    %v4402 = vld [vmem:[#allocation6 + $0xd60] sm:$0xff]
    %v4403 = vld [vmem:[#allocation6 + $0xd68] sm:$0xff]
    %v4404 = vld [vmem:[#allocation6 + $0xd70] sm:$0xff]
    %v4405 = vld [vmem:[#allocation6 + $0xd78] sm:$0xff]
    %v4406 = vld [vmem:[#allocation6 + $0xd80] sm:$0xff]
    %v4407 = vld [vmem:[#allocation6 + $0xd88] sm:$0xff]
    %v4408 = vld [vmem:[#allocation6 + $0xd90] sm:$0xff]
    %v4409 = vld [vmem:[#allocation6 + $0xd98] sm:$0xff]
    %v4410 = vld [vmem:[#allocation6 + $0xda0] sm:$0xff]
    %v4411 = vld [vmem:[#allocation6 + $0xda8] sm:$0xff]
    %v4412 = vld [vmem:[#allocation6 + $0xdb0] sm:$0xff]
    %v4413 = vld [vmem:[#allocation6 + $0xdb8] sm:$0xff]
    %v4414 = vld [vmem:[#allocation6 + $0xdc0] sm:$0xff]
    %v4415 = vld [vmem:[#allocation6 + $0xdc8] sm:$0xff]
    %v4416 = vld [vmem:[#allocation6 + $0xdd0] sm:$0xff]
    %v4417 = vld [vmem:[#allocation6 + $0xdd8] sm:$0xff]
    %v4418 = vld [vmem:[#allocation6 + $0xde0] sm:$0xff]
    %v4419 = vld [vmem:[#allocation6 + $0xde8] sm:$0xff]
    %v4420 = vld [vmem:[#allocation6 + $0xdf0] sm:$0xff]
    %v4421 = vld [vmem:[#allocation6 + $0xdf8] sm:$0xff]
    %v4422 = vld [vmem:[#allocation6 + $0xe00] sm:$0xff]
    %v4423 = vld [vmem:[#allocation6 + $0xe08] sm:$0xff]
    %v4424 = vld [vmem:[#allocation6 + $0xe10] sm:$0xff]
    %v4425 = vld [vmem:[#allocation6 + $0xe18] sm:$0xff]
    %v4426 = vld [vmem:[#allocation6 + $0xe20] sm:$0xff]
    %v4427 = vld [vmem:[#allocation6 + $0xe28] sm:$0xff]
    %v4428 = vld [vmem:[#allocation6 + $0xe30] sm:$0xff]
    %v4429 = vld [vmem:[#allocation6 + $0xe38] sm:$0xff]
    %v4430 = vld [vmem:[#allocation6 + $0xe40] sm:$0xff]
    %v4431 = vld [vmem:[#allocation6 + $0xe48] sm:$0xff]
    %v4432 = vld [vmem:[#allocation6 + $0xe50] sm:$0xff]
    %v4433 = vld [vmem:[#allocation6 + $0xe58] sm:$0xff]
    %v4434 = vld [vmem:[#allocation6 + $0xe60] sm:$0xff]
    %v4435 = vld [vmem:[#allocation6 + $0xe68] sm:$0xff]
    %v4436 = vld [vmem:[#allocation6 + $0xe70] sm:$0xff]
    %v4437 = vld [vmem:[#allocation6 + $0xe78] sm:$0xff]
    %v4438 = vld [vmem:[#allocation6 + $0xe80] sm:$0xff]
    %v4439 = vld [vmem:[#allocation6 + $0xe88] sm:$0xff]
    %v4440 = vld [vmem:[#allocation6 + $0xe90] sm:$0xff]
    %v4441 = vld [vmem:[#allocation6 + $0xe98] sm:$0xff]
    %v4442 = vld [vmem:[#allocation6 + $0xea0] sm:$0xff]
    %v4443 = vld [vmem:[#allocation6 + $0xea8] sm:$0xff]
    %v4444 = vld [vmem:[#allocation6 + $0xeb0] sm:$0xff]
    %v4445 = vld [vmem:[#allocation6 + $0xeb8] sm:$0xff]
    %v4446 = vld [vmem:[#allocation6 + $0xec0] sm:$0xff]
    %v4447 = vld [vmem:[#allocation6 + $0xec8] sm:$0xff]
    %v4448 = vld [vmem:[#allocation6 + $0xed0] sm:$0xff]
    %v4449 = vld [vmem:[#allocation6 + $0xed8] sm:$0xff]
    %v4450 = vld [vmem:[#allocation6 + $0xee0] sm:$0xff]
    %v4451 = vld [vmem:[#allocation6 + $0xee8] sm:$0xff]
    %v4452 = vld [vmem:[#allocation6 + $0xef0] sm:$0xff]
    %v4453 = vld [vmem:[#allocation6 + $0xef8] sm:$0xff]
    %v4454 = vld [vmem:[#allocation6 + $0xf00] sm:$0xff]
    %v4455 = vld [vmem:[#allocation6 + $0xf08] sm:$0xff]
    %v4456 = vld [vmem:[#allocation6 + $0xf10] sm:$0xff]
    %v4457 = vld [vmem:[#allocation6 + $0xf18] sm:$0xff]
    %v4458 = vld [vmem:[#allocation6 + $0xf20] sm:$0xff]
    %v4459 = vld [vmem:[#allocation6 + $0xf28] sm:$0xff]
    %v4460 = vld [vmem:[#allocation6 + $0xf30] sm:$0xff]
    %v4461 = vld [vmem:[#allocation6 + $0xf38] sm:$0xff]
    %v4462 = vld [vmem:[#allocation6 + $0xf40] sm:$0xff]
    %v4463 = vld [vmem:[#allocation6 + $0xf48] sm:$0xff]
    %v4464 = vld [vmem:[#allocation6 + $0xf50] sm:$0xff]
    %v4465 = vld [vmem:[#allocation6 + $0xf58] sm:$0xff]
    %v4466 = vld [vmem:[#allocation6 + $0xf60] sm:$0xff]
    %v4467 = vld [vmem:[#allocation6 + $0xf68] sm:$0xff]
    %v4468 = vld [vmem:[#allocation6 + $0xf70] sm:$0xff]
    %v4469 = vld [vmem:[#allocation6 + $0xf78] sm:$0xff]
    %v4470 = vld [vmem:[#allocation6 + $0xf80] sm:$0xff]
    %v4471 = vld [vmem:[#allocation6 + $0xf88] sm:$0xff]
    %v4472 = vld [vmem:[#allocation6 + $0xf90] sm:$0xff]
    %v4473 = vld [vmem:[#allocation6 + $0xf98] sm:$0xff]
    %v4474 = vld [vmem:[#allocation6 + $0xfa0] sm:$0xff]
    %v4475 = vld [vmem:[#allocation6 + $0xfa8] sm:$0xff]
    %v4476 = vld [vmem:[#allocation6 + $0xfb0] sm:$0xff]
    %v4477 = vld [vmem:[#allocation6 + $0xfb8] sm:$0xff]
    %v4478 = vld [vmem:[#allocation6 + $0xfc0] sm:$0xff]
    %v4479 = vld [vmem:[#allocation6 + $0xfc8] sm:$0xff]
    %v4480 = vld [vmem:[#allocation6 + $0xfd0] sm:$0xff]
    %v4481 = vld [vmem:[#allocation6 + $0xfd8] sm:$0xff]
    %v4482 = vld [vmem:[#allocation6 + $0xfe0] sm:$0xff]
    %v4483 = vld [vmem:[#allocation6 + $0xfe8] sm:$0xff]
    %v4484 = vld [vmem:[#allocation6 + $0xff0] sm:$0xff]
    %v4485 = vld [vmem:[#allocation6 + $0xff8] sm:$0xff]
    %v4486 = vld [vmem:[#allocation6 + $0x1000] sm:$0xff]
    %v4487 = vld [vmem:[#allocation6 + $0x1008] sm:$0xff]
    %v4488 = vld [vmem:[#allocation6 + $0x1010] sm:$0xff]
    %v4489 = vld [vmem:[#allocation6 + $0x1018] sm:$0xff]
    %v4490 = vld [vmem:[#allocation6 + $0x1020] sm:$0xff]
    %v4491 = vld [vmem:[#allocation6 + $0x1028] sm:$0xff]
    %v4492 = vld [vmem:[#allocation6 + $0x1030] sm:$0xff]
    %v4493 = vld [vmem:[#allocation6 + $0x1038] sm:$0xff]
    %v4494 = vld [vmem:[#allocation6 + $0x1040] sm:$0xff]
    %v4495 = vld [vmem:[#allocation6 + $0x1048] sm:$0xff]
    %v4496 = vld [vmem:[#allocation6 + $0x1050] sm:$0xff]
    %v4497 = vld [vmem:[#allocation6 + $0x1058] sm:$0xff]
    %v4498 = vld [vmem:[#allocation6 + $0x1060] sm:$0xff]
    %v4499 = vld [vmem:[#allocation6 + $0x1068] sm:$0xff]
    %v4500 = vld [vmem:[#allocation6 + $0x1070] sm:$0xff]
    %v4501 = vld [vmem:[#allocation6 + $0x1078] sm:$0xff]
    %v4502 = vld [vmem:[#allocation6 + $0x1080] sm:$0xff]
    %v4503 = vld [vmem:[#allocation6 + $0x1088] sm:$0xff]
    %v4504 = vld [vmem:[#allocation6 + $0x1090] sm:$0xff]
    %v4505 = vld [vmem:[#allocation6 + $0x1098] sm:$0xff]
    %v4506 = vld [vmem:[#allocation6 + $0x10a0] sm:$0xff]
    %v4507 = vld [vmem:[#allocation6 + $0x10a8] sm:$0xff]
    %v4508 = vld [vmem:[#allocation6 + $0x10b0] sm:$0xff]
    %v4509 = vld [vmem:[#allocation6 + $0x10b8] sm:$0xff]
    %v4510 = vld [vmem:[#allocation6 + $0x10c0] sm:$0xff]
    %v4511 = vld [vmem:[#allocation6 + $0x10c8] sm:$0xff]
    %v4512 = vld [vmem:[#allocation6 + $0x10d0] sm:$0xff]
    %v4513 = vld [vmem:[#allocation6 + $0x10d8] sm:$0xff]
    %v4514 = vld [vmem:[#allocation6 + $0x10e0] sm:$0xff]
    %v4515 = vld [vmem:[#allocation6 + $0x10e8] sm:$0xff]
    %v4516 = vld [vmem:[#allocation6 + $0x10f0] sm:$0xff]
    %v4517 = vld [vmem:[#allocation6 + $0x10f8] sm:$0xff]
    %v4518 = vld [vmem:[#allocation6 + $0x1100] sm:$0xff]
    %v4519 = vld [vmem:[#allocation6 + $0x1108] sm:$0xff]
    %v4520 = vld [vmem:[#allocation6 + $0x1110] sm:$0xff]
    %v4521 = vld [vmem:[#allocation6 + $0x1118] sm:$0xff]
    %v4522 = vld [vmem:[#allocation6 + $0x1120] sm:$0xff]
    %v4523 = vld [vmem:[#allocation6 + $0x1128] sm:$0xff]
    %v4524 = vld [vmem:[#allocation6 + $0x1130] sm:$0xff]
    %v4525 = vld [vmem:[#allocation6 + $0x1138] sm:$0xff]
    %v4526 = vld [vmem:[#allocation6 + $0x1140] sm:$0xff]
    %v4527 = vld [vmem:[#allocation6 + $0x1148] sm:$0xff]
    %v4528 = vld [vmem:[#allocation6 + $0x1150] sm:$0xff]
    %v4529 = vld [vmem:[#allocation6 + $0x1158] sm:$0xff]
    %v4530 = vld [vmem:[#allocation6 + $0x1160] sm:$0xff]
    %v4531 = vld [vmem:[#allocation6 + $0x1168] sm:$0xff]
    %v4532 = vld [vmem:[#allocation6 + $0x1170] sm:$0xff]
    %v4533 = vld [vmem:[#allocation6 + $0x1178] sm:$0xff]
    %v4534 = vld [vmem:[#allocation6 + $0x1180] sm:$0xff]
    %v4535 = vld [vmem:[#allocation6 + $0x1188] sm:$0xff]
    %v4536 = vld [vmem:[#allocation6 + $0x1190] sm:$0xff]
    %v4537 = vld [vmem:[#allocation6 + $0x1198] sm:$0xff]
    %v4538 = vld [vmem:[#allocation6 + $0x11a0] sm:$0xff]
    %v4539 = vld [vmem:[#allocation6 + $0x11a8] sm:$0xff]
    %v4540 = vld [vmem:[#allocation6 + $0x11b0] sm:$0xff]
    %v4541 = vld [vmem:[#allocation6 + $0x11b8] sm:$0xff]
    %v4542 = vld [vmem:[#allocation6 + $0x11c0] sm:$0xff]
    %v4543 = vld [vmem:[#allocation6 + $0x11c8] sm:$0xff]
    %v4544 = vld [vmem:[#allocation6 + $0x11d0] sm:$0xff]
    %v4545 = vld [vmem:[#allocation6 + $0x11d8] sm:$0xff]
    %v4546 = vld [vmem:[#allocation6 + $0x11e0] sm:$0xff]
    %v4547 = vld [vmem:[#allocation6 + $0x11e8] sm:$0xff]
    %v4548 = vld [vmem:[#allocation6 + $0x11f0] sm:$0xff]
    %v4549 = vld [vmem:[#allocation6 + $0x11f8] sm:$0xff]
    %v4550 = vld [vmem:[#allocation6 + $0x1200] sm:$0xff]
    %v4551 = vld [vmem:[#allocation6 + $0x1208] sm:$0xff]
    %v4552 = vld [vmem:[#allocation6 + $0x1210] sm:$0xff]
    %v4553 = vld [vmem:[#allocation6 + $0x1218] sm:$0xff]
    %v4554 = vld [vmem:[#allocation6 + $0x1220] sm:$0xff]
    %v4555 = vld [vmem:[#allocation6 + $0x1228] sm:$0xff]
    %v4556 = vld [vmem:[#allocation6 + $0x1230] sm:$0xff]
    %v4557 = vld [vmem:[#allocation6 + $0x1238] sm:$0xff]
    %v4558 = vld [vmem:[#allocation6 + $0x1240] sm:$0xff]
    %v4559 = vld [vmem:[#allocation6 + $0x1248] sm:$0xff]
    %v4560 = vld [vmem:[#allocation6 + $0x1250] sm:$0xff]
    %v4561 = vld [vmem:[#allocation6 + $0x1258] sm:$0xff]
    %v4562 = vld [vmem:[#allocation6 + $0x1260] sm:$0xff]
    %v4563 = vld [vmem:[#allocation6 + $0x1268] sm:$0xff]
    %v4564 = vld [vmem:[#allocation6 + $0x1270] sm:$0xff]
    %v4565 = vld [vmem:[#allocation6 + $0x1278] sm:$0xff]
    %v4566 = vld [vmem:[#allocation6 + $0x1280] sm:$0xff]
    %v4567 = vld [vmem:[#allocation6 + $0x1288] sm:$0xff]
    %v4568 = vld [vmem:[#allocation6 + $0x1290] sm:$0xff]
    %v4569 = vld [vmem:[#allocation6 + $0x1298] sm:$0xff]
    %v4570 = vld [vmem:[#allocation6 + $0x12a0] sm:$0xff]
    %v4571 = vld [vmem:[#allocation6 + $0x12a8] sm:$0xff]
    %v4572 = vld [vmem:[#allocation6 + $0x12b0] sm:$0xff]
    %v4573 = vld [vmem:[#allocation6 + $0x12b8] sm:$0xff]
    %v4574 = vld [vmem:[#allocation6 + $0x12c0] sm:$0xff]
    %v4575 = vld [vmem:[#allocation6 + $0x12c8] sm:$0xff]
    %v4576 = vld [vmem:[#allocation6 + $0x12d0] sm:$0xff]
    %v4577 = vld [vmem:[#allocation6 + $0x12d8] sm:$0xff]
    %v4578 = vld [vmem:[#allocation6 + $0x12e0] sm:$0xff]
    %v4579 = vld [vmem:[#allocation6 + $0x12e8] sm:$0xff]
    %v4580 = vld [vmem:[#allocation6 + $0x12f0] sm:$0xff]
    %v4581 = vld [vmem:[#allocation6 + $0x12f8] sm:$0xff]
    %v4582 = vld [vmem:[#allocation6 + $0x1300] sm:$0xff]
    %v4583 = vld [vmem:[#allocation6 + $0x1308] sm:$0xff]
    %v4584 = vld [vmem:[#allocation6 + $0x1310] sm:$0xff]
    %v4585 = vld [vmem:[#allocation6 + $0x1318] sm:$0xff]
    %v4586 = vld [vmem:[#allocation6 + $0x1320] sm:$0xff]
    %v4587 = vld [vmem:[#allocation6 + $0x1328] sm:$0xff]
    %v4588 = vld [vmem:[#allocation6 + $0x1330] sm:$0xff]
    %v4589 = vld [vmem:[#allocation6 + $0x1338] sm:$0xff]
    %v4590 = vld [vmem:[#allocation6 + $0x1340] sm:$0xff]
    %v4591 = vld [vmem:[#allocation6 + $0x1348] sm:$0xff]
    %v4592 = vld [vmem:[#allocation6 + $0x1350] sm:$0xff]
    %v4593 = vld [vmem:[#allocation6 + $0x1358] sm:$0xff]
    %v4594 = vld [vmem:[#allocation6 + $0x1360] sm:$0xff]
    %v4595 = vld [vmem:[#allocation6 + $0x1368] sm:$0xff]
    %v4596 = vld [vmem:[#allocation6 + $0x1370] sm:$0xff]
    %v4597 = vld [vmem:[#allocation6 + $0x1378] sm:$0xff]
    %v4598 = vld [vmem:[#allocation6 + $0x1380] sm:$0xff]
    %v4599 = vld [vmem:[#allocation6 + $0x1388] sm:$0xff]
    %v4600 = vld [vmem:[#allocation6 + $0x1390] sm:$0xff]
    %v4601 = vld [vmem:[#allocation6 + $0x1398] sm:$0xff]
    %v4602 = vld [vmem:[#allocation6 + $0x13a0] sm:$0xff]
    %v4603 = vld [vmem:[#allocation6 + $0x13a8] sm:$0xff]
    %v4604 = vld [vmem:[#allocation6 + $0x13b0] sm:$0xff]
    %v4605 = vld [vmem:[#allocation6 + $0x13b8] sm:$0xff]
    %v4606 = vld [vmem:[#allocation6 + $0x13c0] sm:$0xff]
    %v4607 = vld [vmem:[#allocation6 + $0x13c8] sm:$0xff]
    %v4608 = vld [vmem:[#allocation6 + $0x13d0] sm:$0xff]
    %v4609 = vld [vmem:[#allocation6 + $0x13d8] sm:$0xff]
    %v4610 = vld [vmem:[#allocation6 + $0x13e0] sm:$0xff]
    %v4611 = vld [vmem:[#allocation6 + $0x13e8] sm:$0xff]
    %v4612 = vld [vmem:[#allocation6 + $0x13f0] sm:$0xff]
    %v4613 = vld [vmem:[#allocation6 + $0x13f8] sm:$0xff]
    %v4614 = vld [vmem:[#allocation6 + $0x1400] sm:$0xff]
    %v4615 = vld [vmem:[#allocation6 + $0x1408] sm:$0xff]
    %v4616 = vld [vmem:[#allocation6 + $0x1410] sm:$0xff]
    %v4617 = vld [vmem:[#allocation6 + $0x1418] sm:$0xff]
    %v4618 = vld [vmem:[#allocation6 + $0x1420] sm:$0xff]
    %v4619 = vld [vmem:[#allocation6 + $0x1428] sm:$0xff]
    %v4620 = vld [vmem:[#allocation6 + $0x1430] sm:$0xff]
    %v4621 = vld [vmem:[#allocation6 + $0x1438] sm:$0xff]
    %v4622 = vld [vmem:[#allocation6 + $0x1440] sm:$0xff]
    %v4623 = vld [vmem:[#allocation6 + $0x1448] sm:$0xff]
    %v4624 = vld [vmem:[#allocation6 + $0x1450] sm:$0xff]
    %v4625 = vld [vmem:[#allocation6 + $0x1458] sm:$0xff]
    %v4626 = vld [vmem:[#allocation6 + $0x1460] sm:$0xff]
    %v4627 = vld [vmem:[#allocation6 + $0x1468] sm:$0xff]
    %v4628 = vld [vmem:[#allocation6 + $0x1470] sm:$0xff]
    %v4629 = vld [vmem:[#allocation6 + $0x1478] sm:$0xff]
    %v4630 = vld [vmem:[#allocation6 + $0x1480] sm:$0xff]
    %v4631 = vld [vmem:[#allocation6 + $0x1488] sm:$0xff]
    %v4632 = vld [vmem:[#allocation6 + $0x1490] sm:$0xff]
    %v4633 = vld [vmem:[#allocation6 + $0x1498] sm:$0xff]
    %v4634 = vld [vmem:[#allocation6 + $0x14a0] sm:$0xff]
    %v4635 = vld [vmem:[#allocation6 + $0x14a8] sm:$0xff]
    %v4636 = vld [vmem:[#allocation6 + $0x14b0] sm:$0xff]
    %v4637 = vld [vmem:[#allocation6 + $0x14b8] sm:$0xff]
    %v4638 = vld [vmem:[#allocation6 + $0x14c0] sm:$0xff]
    %v4639 = vld [vmem:[#allocation6 + $0x14c8] sm:$0xff]
    %v4640 = vld [vmem:[#allocation6 + $0x14d0] sm:$0xff]
    %v4641 = vld [vmem:[#allocation6 + $0x14d8] sm:$0xff]
    %v4642 = vld [vmem:[#allocation6 + $0x14e0] sm:$0xff]
    %v4643 = vld [vmem:[#allocation6 + $0x14e8] sm:$0xff]
    %v4644 = vld [vmem:[#allocation6 + $0x14f0] sm:$0xff]
    %v4645 = vld [vmem:[#allocation6 + $0x14f8] sm:$0xff]
    %v4646 = vld [vmem:[#allocation6 + $0x1500] sm:$0xff]
    %v4647 = vld [vmem:[#allocation6 + $0x1508] sm:$0xff]
    %v4648 = vld [vmem:[#allocation6 + $0x1510] sm:$0xff]
    %v4649 = vld [vmem:[#allocation6 + $0x1518] sm:$0xff]
    %v4650 = vld [vmem:[#allocation6 + $0x1520] sm:$0xff]
    %v4651 = vld [vmem:[#allocation6 + $0x1528] sm:$0xff]
    %v4652 = vld [vmem:[#allocation6 + $0x1530] sm:$0xff]
    %v4653 = vld [vmem:[#allocation6 + $0x1538] sm:$0xff]
    %v4654 = vld [vmem:[#allocation6 + $0x1540] sm:$0xff]
    %v4655 = vld [vmem:[#allocation6 + $0x1548] sm:$0xff]
    %v4656 = vld [vmem:[#allocation6 + $0x1550] sm:$0xff]
    %v4657 = vld [vmem:[#allocation6 + $0x1558] sm:$0xff]
    %v4658 = vld [vmem:[#allocation6 + $0x1560] sm:$0xff]
    %v4659 = vld [vmem:[#allocation6 + $0x1568] sm:$0xff]
    %v4660 = vld [vmem:[#allocation6 + $0x1570] sm:$0xff]
    %v4661 = vld [vmem:[#allocation6 + $0x1578] sm:$0xff]
    %v4662 = vld [vmem:[#allocation6 + $0x1580] sm:$0xff]
    %v4663 = vld [vmem:[#allocation6 + $0x1588] sm:$0xff]
    %v4664 = vld [vmem:[#allocation6 + $0x1590] sm:$0xff]
    %v4665 = vld [vmem:[#allocation6 + $0x1598] sm:$0xff]
    %v4666 = vld [vmem:[#allocation6 + $0x15a0] sm:$0xff]
    %v4667 = vld [vmem:[#allocation6 + $0x15a8] sm:$0xff]
    %v4668 = vld [vmem:[#allocation6 + $0x15b0] sm:$0xff]
    %v4669 = vld [vmem:[#allocation6 + $0x15b8] sm:$0xff]
    %v4670 = vld [vmem:[#allocation6 + $0x15c0] sm:$0xff]
    %v4671 = vld [vmem:[#allocation6 + $0x15c8] sm:$0xff]
    %v4672 = vld [vmem:[#allocation6 + $0x15d0] sm:$0xff]
    %v4673 = vld [vmem:[#allocation6 + $0x15d8] sm:$0xff]
    %v4674 = vld [vmem:[#allocation6 + $0x15e0] sm:$0xff]
    %v4675 = vld [vmem:[#allocation6 + $0x15e8] sm:$0xff]
    %v4676 = vld [vmem:[#allocation6 + $0x15f0] sm:$0xff]
    %v4677 = vld [vmem:[#allocation6 + $0x15f8] sm:$0xff]
    %v4678 = vld [vmem:[#allocation6 + $0x1600] sm:$0xff]
    %v4679 = vld [vmem:[#allocation6 + $0x1608] sm:$0xff]
    %v4680 = vld [vmem:[#allocation6 + $0x1610] sm:$0xff]
    %v4681 = vld [vmem:[#allocation6 + $0x1618] sm:$0xff]
    %v4682 = vld [vmem:[#allocation6 + $0x1620] sm:$0xff]
    %v4683 = vld [vmem:[#allocation6 + $0x1628] sm:$0xff]
    %v4684 = vld [vmem:[#allocation6 + $0x1630] sm:$0xff]
    %v4685 = vld [vmem:[#allocation6 + $0x1638] sm:$0xff]
    %v4686 = vld [vmem:[#allocation6 + $0x1640] sm:$0xff]
    %v4687 = vld [vmem:[#allocation6 + $0x1648] sm:$0xff]
    %v4688 = vld [vmem:[#allocation6 + $0x1650] sm:$0xff]
    %v4689 = vld [vmem:[#allocation6 + $0x1658] sm:$0xff]
    %v4690 = vld [vmem:[#allocation6 + $0x1660] sm:$0xff]
    %v4691 = vld [vmem:[#allocation6 + $0x1668] sm:$0xff]
    %v4692 = vld [vmem:[#allocation6 + $0x1670] sm:$0xff]
    %v4693 = vld [vmem:[#allocation6 + $0x1678] sm:$0xff]
    %v4694 = vld [vmem:[#allocation6 + $0x1680] sm:$0xff]
    %v4695 = vld [vmem:[#allocation6 + $0x1688] sm:$0xff]
    %v4696 = vld [vmem:[#allocation6 + $0x1690] sm:$0xff]
    %v4697 = vld [vmem:[#allocation6 + $0x1698] sm:$0xff]
    %v4698 = vld [vmem:[#allocation6 + $0x16a0] sm:$0xff]
    %v4699 = vld [vmem:[#allocation6 + $0x16a8] sm:$0xff]
    %v4700 = vld [vmem:[#allocation6 + $0x16b0] sm:$0xff]
    %v4701 = vld [vmem:[#allocation6 + $0x16b8] sm:$0xff]
    %v4702 = vld [vmem:[#allocation6 + $0x16c0] sm:$0xff]
    %v4703 = vld [vmem:[#allocation6 + $0x16c8] sm:$0xff]
    %v4704 = vld [vmem:[#allocation6 + $0x16d0] sm:$0xff]
    %v4705 = vld [vmem:[#allocation6 + $0x16d8] sm:$0xff]
    %v4706 = vld [vmem:[#allocation6 + $0x16e0] sm:$0xff]
    %v4707 = vld [vmem:[#allocation6 + $0x16e8] sm:$0xff]
    %v4708 = vld [vmem:[#allocation6 + $0x16f0] sm:$0xff]
    %v4709 = vld [vmem:[#allocation6 + $0x16f8] sm:$0xff]
    %v4710 = vld [vmem:[#allocation6 + $0x1700] sm:$0xff]
    %v4711 = vld [vmem:[#allocation6 + $0x1708] sm:$0xff]
    %v4712 = vld [vmem:[#allocation6 + $0x1710] sm:$0xff]
    %v4713 = vld [vmem:[#allocation6 + $0x1718] sm:$0xff]
    %v4714 = vld [vmem:[#allocation6 + $0x1720] sm:$0xff]
    %v4715 = vld [vmem:[#allocation6 + $0x1728] sm:$0xff]
    %v4716 = vld [vmem:[#allocation6 + $0x1730] sm:$0xff]
    %v4717 = vld [vmem:[#allocation6 + $0x1738] sm:$0xff]
    %v4718 = vld [vmem:[#allocation6 + $0x1740] sm:$0xff]
    %v4719 = vld [vmem:[#allocation6 + $0x1748] sm:$0xff]
    %v4720 = vld [vmem:[#allocation6 + $0x1750] sm:$0xff]
    %v4721 = vld [vmem:[#allocation6 + $0x1758] sm:$0xff]
    %v4722 = vld [vmem:[#allocation6 + $0x1760] sm:$0xff]
    %v4723 = vld [vmem:[#allocation6 + $0x1768] sm:$0xff]
    %v4724 = vld [vmem:[#allocation6 + $0x1770] sm:$0xff]
    %v4725 = vld [vmem:[#allocation6 + $0x1778] sm:$0xff]
    %v4726 = vld [vmem:[#allocation6 + $0x1780] sm:$0xff]
    %v4727 = vld [vmem:[#allocation6 + $0x1788] sm:$0xff]
    %v4728 = vld [vmem:[#allocation6 + $0x1790] sm:$0xff]
    %v4729 = vld [vmem:[#allocation6 + $0x1798] sm:$0xff]
    %v4730 = vld [vmem:[#allocation6 + $0x17a0] sm:$0xff]
    %v4731 = vld [vmem:[#allocation6 + $0x17a8] sm:$0xff]
    %v4732 = vld [vmem:[#allocation6 + $0x17b0] sm:$0xff]
    %v4733 = vld [vmem:[#allocation6 + $0x17b8] sm:$0xff]
    %v4734 = vld [vmem:[#allocation6 + $0x17c0] sm:$0xff]
    %v4735 = vld [vmem:[#allocation6 + $0x17c8] sm:$0xff]
    %v4736 = vld [vmem:[#allocation6 + $0x17d0] sm:$0xff]
    %v4737 = vld [vmem:[#allocation6 + $0x17d8] sm:$0xff]
    %v4738 = vld [vmem:[#allocation6 + $0x17e0] sm:$0xff]
    %v4739 = vld [vmem:[#allocation6 + $0x17e8] sm:$0xff]
    %v4740 = vld [vmem:[#allocation6 + $0x17f0] sm:$0xff]
    %v4741 = vld [vmem:[#allocation6 + $0x17f8] sm:$0xff]
    %v4742 = vld [vmem:[#allocation6 + $0x1800] sm:$0xff]
    %v4743 = vld [vmem:[#allocation6 + $0x1808] sm:$0xff]
    %v4744 = vld [vmem:[#allocation6 + $0x1810] sm:$0xff]
    %v4745 = vld [vmem:[#allocation6 + $0x1818] sm:$0xff]
    %v4746 = vld [vmem:[#allocation6 + $0x1820] sm:$0xff]
    %v4747 = vld [vmem:[#allocation6 + $0x1828] sm:$0xff]
    %v4748 = vld [vmem:[#allocation6 + $0x1830] sm:$0xff]
    %v4749 = vld [vmem:[#allocation6 + $0x1838] sm:$0xff]
    %v4750 = vld [vmem:[#allocation6 + $0x1840] sm:$0xff]
    %v4751 = vld [vmem:[#allocation6 + $0x1848] sm:$0xff]
    %v4752 = vld [vmem:[#allocation6 + $0x1850] sm:$0xff]
    %v4753 = vld [vmem:[#allocation6 + $0x1858] sm:$0xff]
    %v4754 = vld [vmem:[#allocation6 + $0x1860] sm:$0xff]
    %v4755 = vld [vmem:[#allocation6 + $0x1868] sm:$0xff]
    %v4756 = vld [vmem:[#allocation6 + $0x1870] sm:$0xff]
    %v4757 = vld [vmem:[#allocation6 + $0x1878] sm:$0xff]
    %v4758 = vld [vmem:[#allocation6 + $0x1880] sm:$0xff]
    %v4759 = vld [vmem:[#allocation6 + $0x1888] sm:$0xff]
    %v4760 = vld [vmem:[#allocation6 + $0x1890] sm:$0xff]
    %v4761 = vld [vmem:[#allocation6 + $0x1898] sm:$0xff]
    %v4762 = vld [vmem:[#allocation6 + $0x18a0] sm:$0xff]
    %v4763 = vld [vmem:[#allocation6 + $0x18a8] sm:$0xff]
    %v4764 = vld [vmem:[#allocation6 + $0x18b0] sm:$0xff]
    %v4765 = vld [vmem:[#allocation6 + $0x18b8] sm:$0xff]
    %v4766 = vld [vmem:[#allocation6 + $0x18c0] sm:$0xff]
    %v4767 = vld [vmem:[#allocation6 + $0x18c8] sm:$0xff]
    %v4768 = vld [vmem:[#allocation6 + $0x18d0] sm:$0xff]
    %v4769 = vld [vmem:[#allocation6 + $0x18d8] sm:$0xff]
    %v4770 = vld [vmem:[#allocation6 + $0x18e0] sm:$0xff]
    %v4771 = vld [vmem:[#allocation6 + $0x18e8] sm:$0xff]
    %v4772 = vld [vmem:[#allocation6 + $0x18f0] sm:$0xff]
    %v4773 = vld [vmem:[#allocation6 + $0x18f8] sm:$0xff]
    %v4774 = vld [vmem:[#allocation6 + $0x1900] sm:$0xff]
    %v4775 = vld [vmem:[#allocation6 + $0x1908] sm:$0xff]
    %v4776 = vld [vmem:[#allocation6 + $0x1910] sm:$0xff]
    %v4777 = vld [vmem:[#allocation6 + $0x1918] sm:$0xff]
    %v4778 = vld [vmem:[#allocation6 + $0x1920] sm:$0xff]
    %v4779 = vld [vmem:[#allocation6 + $0x1928] sm:$0xff]
    %v4780 = vld [vmem:[#allocation6 + $0x1930] sm:$0xff]
    %v4781 = vld [vmem:[#allocation6 + $0x1938] sm:$0xff]
    %v4782 = vld [vmem:[#allocation6 + $0x1940] sm:$0xff]
    %v4783 = vld [vmem:[#allocation6 + $0x1948] sm:$0xff]
    %v4784 = vld [vmem:[#allocation6 + $0x1950] sm:$0xff]
    %v4785 = vld [vmem:[#allocation6 + $0x1958] sm:$0xff]
    %v4786 = vld [vmem:[#allocation6 + $0x1960] sm:$0xff]
    %v4787 = vld [vmem:[#allocation6 + $0x1968] sm:$0xff]
    %v4788 = vld [vmem:[#allocation6 + $0x1970] sm:$0xff]
    %v4789 = vld [vmem:[#allocation6 + $0x1978] sm:$0xff]
    %v4790 = vld [vmem:[#allocation6 + $0x1980] sm:$0xff]
    %v4791 = vld [vmem:[#allocation6 + $0x1988] sm:$0xff]
    %v4792 = vld [vmem:[#allocation6 + $0x1990] sm:$0xff]
    %v4793 = vld [vmem:[#allocation6 + $0x1998] sm:$0xff]
    %v4794 = vld [vmem:[#allocation6 + $0x19a0] sm:$0xff]
    %v4795 = vld [vmem:[#allocation6 + $0x19a8] sm:$0xff]
    %v4796 = vld [vmem:[#allocation6 + $0x19b0] sm:$0xff]
    %v4797 = vld [vmem:[#allocation6 + $0x19b8] sm:$0xff]
    %v4798 = vld [vmem:[#allocation6 + $0x19c0] sm:$0xff]
    %v4799 = vld [vmem:[#allocation6 + $0x19c8] sm:$0xff]
    %v4800 = vld [vmem:[#allocation6 + $0x19d0] sm:$0xff]
    %v4801 = vld [vmem:[#allocation6 + $0x19d8] sm:$0xff]
    %v4802 = vld [vmem:[#allocation6 + $0x19e0] sm:$0xff]
    %v4803 = vld [vmem:[#allocation6 + $0x19e8] sm:$0xff]
    %v4804 = vld [vmem:[#allocation6 + $0x19f0] sm:$0xff]
    %v4805 = vld [vmem:[#allocation6 + $0x19f8] sm:$0xff]
    %v4806 = vld [vmem:[#allocation6 + $0x1a00] sm:$0xff]
    %v4807 = vld [vmem:[#allocation6 + $0x1a08] sm:$0xff]
    %v4808 = vld [vmem:[#allocation6 + $0x1a10] sm:$0xff]
    %v4809 = vld [vmem:[#allocation6 + $0x1a18] sm:$0xff]
    %v4810 = vld [vmem:[#allocation6 + $0x1a20] sm:$0xff]
    %v4811 = vld [vmem:[#allocation6 + $0x1a28] sm:$0xff]
    %v4812 = vld [vmem:[#allocation6 + $0x1a30] sm:$0xff]
    %v4813 = vld [vmem:[#allocation6 + $0x1a38] sm:$0xff]
    %v4814 = vld [vmem:[#allocation6 + $0x1a40] sm:$0xff]
    %v4815 = vld [vmem:[#allocation6 + $0x1a48] sm:$0xff]
    %v4816 = vld [vmem:[#allocation6 + $0x1a50] sm:$0xff]
    %v4817 = vld [vmem:[#allocation6 + $0x1a58] sm:$0xff]
    %v4818 = vld [vmem:[#allocation6 + $0x1a60] sm:$0xff]
    %v4819 = vld [vmem:[#allocation6 + $0x1a68] sm:$0xff]
    %v4820 = vld [vmem:[#allocation6 + $0x1a70] sm:$0xff]
    %v4821 = vld [vmem:[#allocation6 + $0x1a78] sm:$0xff]
    %v4822 = vld [vmem:[#allocation6 + $0x1a80] sm:$0xff]
    %v4823 = vld [vmem:[#allocation6 + $0x1a88] sm:$0xff]
    %v4824 = vld [vmem:[#allocation6 + $0x1a90] sm:$0xff]
    %v4825 = vld [vmem:[#allocation6 + $0x1a98] sm:$0xff]
    %v4826 = vld [vmem:[#allocation6 + $0x1aa0] sm:$0xff]
    %v4827 = vld [vmem:[#allocation6 + $0x1aa8] sm:$0xff]
    %v4828 = vld [vmem:[#allocation6 + $0x1ab0] sm:$0xff]
    %v4829 = vld [vmem:[#allocation6 + $0x1ab8] sm:$0xff]
    %v4830 = vld [vmem:[#allocation6 + $0x1ac0] sm:$0xff]
    %v4831 = vld [vmem:[#allocation6 + $0x1ac8] sm:$0xff]
    %v4832 = vld [vmem:[#allocation6 + $0x1ad0] sm:$0xff]
    %v4833 = vld [vmem:[#allocation6 + $0x1ad8] sm:$0xff]
    %v4834 = vld [vmem:[#allocation6 + $0x1ae0] sm:$0xff]
    %v4835 = vld [vmem:[#allocation6 + $0x1ae8] sm:$0xff]
    %v4836 = vld [vmem:[#allocation6 + $0x1af0] sm:$0xff]
    %v4837 = vld [vmem:[#allocation6 + $0x1af8] sm:$0xff]
    %v4838 = vld [vmem:[#allocation6 + $0x1b00] sm:$0xff]
    %v4839 = vld [vmem:[#allocation6 + $0x1b08] sm:$0xff]
    %v4840 = vld [vmem:[#allocation6 + $0x1b10] sm:$0xff]
    %v4841 = vld [vmem:[#allocation6 + $0x1b18] sm:$0xff]
    %v4842 = vld [vmem:[#allocation6 + $0x1b20] sm:$0xff]
    %v4843 = vld [vmem:[#allocation6 + $0x1b28] sm:$0xff]
    %v4844 = vld [vmem:[#allocation6 + $0x1b30] sm:$0xff]
    %v4845 = vld [vmem:[#allocation6 + $0x1b38] sm:$0xff]
    %v4846 = vld [vmem:[#allocation6 + $0x1b40] sm:$0xff]
    %v4847 = vld [vmem:[#allocation6 + $0x1b48] sm:$0xff]
    %v4848 = vld [vmem:[#allocation6 + $0x1b50] sm:$0xff]
    %v4849 = vld [vmem:[#allocation6 + $0x1b58] sm:$0xff]
    %v4850 = vld [vmem:[#allocation6 + $0x1b60] sm:$0xff]
    %v4851 = vld [vmem:[#allocation6 + $0x1b68] sm:$0xff]
    %v4852 = vld [vmem:[#allocation6 + $0x1b70] sm:$0xff]
    %v4853 = vld [vmem:[#allocation6 + $0x1b78] sm:$0xff]
    %v4854 = vld [vmem:[#allocation6 + $0x1b80] sm:$0xff]
    %v4855 = vld [vmem:[#allocation6 + $0x1b88] sm:$0xff]
    %v4856 = vld [vmem:[#allocation6 + $0x1b90] sm:$0xff]
    %v4857 = vld [vmem:[#allocation6 + $0x1b98] sm:$0xff]
    %v4858 = vld [vmem:[#allocation6 + $0x1ba0] sm:$0xff]
    %v4859 = vld [vmem:[#allocation6 + $0x1ba8] sm:$0xff]
    %v4860 = vld [vmem:[#allocation6 + $0x1bb0] sm:$0xff]
    %v4861 = vld [vmem:[#allocation6 + $0x1bb8] sm:$0xff]
    %v4862 = vld [vmem:[#allocation6 + $0x1bc0] sm:$0xff]
    %v4863 = vld [vmem:[#allocation6 + $0x1bc8] sm:$0xff]
    %v4864 = vld [vmem:[#allocation6 + $0x1bd0] sm:$0xff]
    %v4865 = vld [vmem:[#allocation6 + $0x1bd8] sm:$0xff]
    %v4866 = vld [vmem:[#allocation6 + $0x1be0] sm:$0xff]
    %v4867 = vld [vmem:[#allocation6 + $0x1be8] sm:$0xff]
    %v4868 = vld [vmem:[#allocation6 + $0x1bf0] sm:$0xff]
    %v4869 = vld [vmem:[#allocation6 + $0x1bf8] sm:$0xff]
    %v4870 = vld [vmem:[#allocation6 + $0x1c00] sm:$0xff]
    %v4871 = vld [vmem:[#allocation6 + $0x1c08] sm:$0xff]
    %v4872 = vld [vmem:[#allocation6 + $0x1c10] sm:$0xff]
    %v4873 = vld [vmem:[#allocation6 + $0x1c18] sm:$0xff]
    %v4874 = vld [vmem:[#allocation6 + $0x1c20] sm:$0xff]
    %v4875 = vld [vmem:[#allocation6 + $0x1c28] sm:$0xff]
    %v4876 = vld [vmem:[#allocation6 + $0x1c30] sm:$0xff]
    %v4877 = vld [vmem:[#allocation6 + $0x1c38] sm:$0xff]
    %v4878 = vld [vmem:[#allocation6 + $0x1c40] sm:$0xff]
    %v4879 = vld [vmem:[#allocation6 + $0x1c48] sm:$0xff]
    %v4880 = vld [vmem:[#allocation6 + $0x1c50] sm:$0xff]
    %v4881 = vld [vmem:[#allocation6 + $0x1c58] sm:$0xff]
    %v4882 = vld [vmem:[#allocation6 + $0x1c60] sm:$0xff]
    %v4883 = vld [vmem:[#allocation6 + $0x1c68] sm:$0xff]
    %v4884 = vld [vmem:[#allocation6 + $0x1c70] sm:$0xff]
    %v4885 = vld [vmem:[#allocation6 + $0x1c78] sm:$0xff]
    %v4886 = vld [vmem:[#allocation6 + $0x1c80] sm:$0xff]
    %v4887 = vld [vmem:[#allocation6 + $0x1c88] sm:$0xff]
    %v4888 = vld [vmem:[#allocation6 + $0x1c90] sm:$0xff]
    %v4889 = vld [vmem:[#allocation6 + $0x1c98] sm:$0xff]
    %v4890 = vld [vmem:[#allocation6 + $0x1ca0] sm:$0xff]
    %v4891 = vld [vmem:[#allocation6 + $0x1ca8] sm:$0xff]
    %v4892 = vld [vmem:[#allocation6 + $0x1cb0] sm:$0xff]
    %v4893 = vld [vmem:[#allocation6 + $0x1cb8] sm:$0xff]
    %v4894 = vld [vmem:[#allocation6 + $0x1cc0] sm:$0xff]
    %v4895 = vld [vmem:[#allocation6 + $0x1cc8] sm:$0xff]
    %v4896 = vld [vmem:[#allocation6 + $0x1cd0] sm:$0xff]
    %v4897 = vld [vmem:[#allocation6 + $0x1cd8] sm:$0xff]
    %v4898 = vld [vmem:[#allocation6 + $0x1ce0] sm:$0xff]
    %v4899 = vld [vmem:[#allocation6 + $0x1ce8] sm:$0xff]
    %v4900 = vld [vmem:[#allocation6 + $0x1cf0] sm:$0xff]
    %v4901 = vld [vmem:[#allocation6 + $0x1cf8] sm:$0xff]
    %v4902 = vld [vmem:[#allocation6 + $0x1d00] sm:$0xff]
    %v4903 = vld [vmem:[#allocation6 + $0x1d08] sm:$0xff]
    %v4904 = vld [vmem:[#allocation6 + $0x1d10] sm:$0xff]
    %v4905 = vld [vmem:[#allocation6 + $0x1d18] sm:$0xff]
    %v4906 = vld [vmem:[#allocation6 + $0x1d20] sm:$0xff]
    %v4907 = vld [vmem:[#allocation6 + $0x1d28] sm:$0xff]
    %v4908 = vld [vmem:[#allocation6 + $0x1d30] sm:$0xff]
    %v4909 = vld [vmem:[#allocation6 + $0x1d38] sm:$0xff]
    %v4910 = vld [vmem:[#allocation6 + $0x1d40] sm:$0xff]
    %v4911 = vld [vmem:[#allocation6 + $0x1d48] sm:$0xff]
    %v4912 = vld [vmem:[#allocation6 + $0x1d50] sm:$0xff]
    %v4913 = vld [vmem:[#allocation6 + $0x1d58] sm:$0xff]
    %v4914 = vld [vmem:[#allocation6 + $0x1d60] sm:$0xff]
    %v4915 = vld [vmem:[#allocation6 + $0x1d68] sm:$0xff]
    %v4916 = vld [vmem:[#allocation6 + $0x1d70] sm:$0xff]
    %v4917 = vld [vmem:[#allocation6 + $0x1d78] sm:$0xff]
    %v4918 = vld [vmem:[#allocation6 + $0x1d80] sm:$0xff]
    %v4919 = vld [vmem:[#allocation6 + $0x1d88] sm:$0xff]
    %v4920 = vld [vmem:[#allocation6 + $0x1d90] sm:$0xff]
    %v4921 = vld [vmem:[#allocation6 + $0x1d98] sm:$0xff]
    %v4922 = vld [vmem:[#allocation6 + $0x1da0] sm:$0xff]
    %v4923 = vld [vmem:[#allocation6 + $0x1da8] sm:$0xff]
    %v4924 = vld [vmem:[#allocation6 + $0x1db0] sm:$0xff]
    %v4925 = vld [vmem:[#allocation6 + $0x1db8] sm:$0xff]
    %v4926 = vld [vmem:[#allocation6 + $0x1dc0] sm:$0xff]
    %v4927 = vld [vmem:[#allocation6 + $0x1dc8] sm:$0xff]
    %v4928 = vld [vmem:[#allocation6 + $0x1dd0] sm:$0xff]
    %v4929 = vld [vmem:[#allocation6 + $0x1dd8] sm:$0xff]
    %v4930 = vld [vmem:[#allocation6 + $0x1de0] sm:$0xff]
    %v4931 = vld [vmem:[#allocation6 + $0x1de8] sm:$0xff]
    %v4932 = vld [vmem:[#allocation6 + $0x1df0] sm:$0xff]
    %v4933 = vld [vmem:[#allocation6 + $0x1df8] sm:$0xff]
    %v4934 = vld [vmem:[#allocation6 + $0x1e00] sm:$0xff]
    %v4935 = vld [vmem:[#allocation6 + $0x1e08] sm:$0xff]
    %v4936 = vld [vmem:[#allocation6 + $0x1e10] sm:$0xff]
    %v4937 = vld [vmem:[#allocation6 + $0x1e18] sm:$0xff]
    %v4938 = vld [vmem:[#allocation6 + $0x1e20] sm:$0xff]
    %v4939 = vld [vmem:[#allocation6 + $0x1e28] sm:$0xff]
    %v4940 = vld [vmem:[#allocation6 + $0x1e30] sm:$0xff]
    %v4941 = vld [vmem:[#allocation6 + $0x1e38] sm:$0xff]
    %v4942 = vld [vmem:[#allocation6 + $0x1e40] sm:$0xff]
    %v4943 = vld [vmem:[#allocation6 + $0x1e48] sm:$0xff]
    %v4944 = vld [vmem:[#allocation6 + $0x1e50] sm:$0xff]
    %v4945 = vld [vmem:[#allocation6 + $0x1e58] sm:$0xff]
    %v4946 = vld [vmem:[#allocation6 + $0x1e60] sm:$0xff]
    %v4947 = vld [vmem:[#allocation6 + $0x1e68] sm:$0xff]
    %v4948 = vld [vmem:[#allocation6 + $0x1e70] sm:$0xff]
    %v4949 = vld [vmem:[#allocation6 + $0x1e78] sm:$0xff]
    %v4950 = vld [vmem:[#allocation6 + $0x1e80] sm:$0xff]
    %v4951 = vld [vmem:[#allocation6 + $0x1e88] sm:$0xff]
    %v4952 = vld [vmem:[#allocation6 + $0x1e90] sm:$0xff]
    %v4953 = vld [vmem:[#allocation6 + $0x1e98] sm:$0xff]
    %v4954 = vld [vmem:[#allocation6 + $0x1ea0] sm:$0xff]
    %v4955 = vld [vmem:[#allocation6 + $0x1ea8] sm:$0xff]
    %v4956 = vld [vmem:[#allocation6 + $0x1eb0] sm:$0xff]
    %v4957 = vld [vmem:[#allocation6 + $0x1eb8] sm:$0xff]
    %v4958 = vld [vmem:[#allocation6 + $0x1ec0] sm:$0xff]
    %v4959 = vld [vmem:[#allocation6 + $0x1ec8] sm:$0xff]
    %v4960 = vld [vmem:[#allocation6 + $0x1ed0] sm:$0xff]
    %v4961 = vld [vmem:[#allocation6 + $0x1ed8] sm:$0xff]
    %v4962 = vld [vmem:[#allocation6 + $0x1ee0] sm:$0xff]
    %v4963 = vld [vmem:[#allocation6 + $0x1ee8] sm:$0xff]
    %v4964 = vld [vmem:[#allocation6 + $0x1ef0] sm:$0xff]
    %v4965 = vld [vmem:[#allocation6 + $0x1ef8] sm:$0xff]
    %v4966 = vld [vmem:[#allocation6 + $0x1f00] sm:$0xff]
    %v4967 = vld [vmem:[#allocation6 + $0x1f08] sm:$0xff]
    %v4968 = vld [vmem:[#allocation6 + $0x1f10] sm:$0xff]
    %v4969 = vld [vmem:[#allocation6 + $0x1f18] sm:$0xff]
    %v4970 = vld [vmem:[#allocation6 + $0x1f20] sm:$0xff]
    %v4971 = vld [vmem:[#allocation6 + $0x1f28] sm:$0xff]
    %v4972 = vld [vmem:[#allocation6 + $0x1f30] sm:$0xff]
    %v4973 = vld [vmem:[#allocation6 + $0x1f38] sm:$0xff]
    %v4974 = vld [vmem:[#allocation6 + $0x1f40] sm:$0xff]
    %v4975 = vld [vmem:[#allocation6 + $0x1f48] sm:$0xff]
    %v4976 = vld [vmem:[#allocation6 + $0x1f50] sm:$0xff]
    %v4977 = vld [vmem:[#allocation6 + $0x1f58] sm:$0xff]
    %v4978 = vld [vmem:[#allocation6 + $0x1f60] sm:$0xff]
    %v4979 = vld [vmem:[#allocation6 + $0x1f68] sm:$0xff]
    %v4980 = vld [vmem:[#allocation6 + $0x1f70] sm:$0xff]
    %v4981 = vld [vmem:[#allocation6 + $0x1f78] sm:$0xff]
    %v4982 = vld [vmem:[#allocation6 + $0x1f80] sm:$0xff]
    %v4983 = vld [vmem:[#allocation6 + $0x1f88] sm:$0xff]
    %v4984 = vld [vmem:[#allocation6 + $0x1f90] sm:$0xff]
    %v4985 = vld [vmem:[#allocation6 + $0x1f98] sm:$0xff]
    %v4986 = vld [vmem:[#allocation6 + $0x1fa0] sm:$0xff]
    %v4987 = vld [vmem:[#allocation6 + $0x1fa8] sm:$0xff]
    %v4988 = vld [vmem:[#allocation6 + $0x1fb0] sm:$0xff]
    %v4989 = vld [vmem:[#allocation6 + $0x1fb8] sm:$0xff]
    %v4990 = vld [vmem:[#allocation6 + $0x1fc0] sm:$0xff]
    %v4991 = vld [vmem:[#allocation6 + $0x1fc8] sm:$0xff]
    %v4992 = vld [vmem:[#allocation6 + $0x1fd0] sm:$0xff]
    %v4993 = vld [vmem:[#allocation6 + $0x1fd8] sm:$0xff]
    %v4994 = vld [vmem:[#allocation6 + $0x1fe0] sm:$0xff]
    %v4995 = vld [vmem:[#allocation6 + $0x1fe8] sm:$0xff]
    %v4996 = vld [vmem:[#allocation6 + $0x1ff0] sm:$0xff]
    %v4997 = vld [vmem:[#allocation6 + $0x1ff8] sm:$0xff]
    %v4998 = vld [vmem:[#allocation6 + $0x2000] sm:$0xff]
    %v4999 = vld [vmem:[#allocation6 + $0x2008] sm:$0xff]
    %v5000 = vld [vmem:[#allocation6 + $0x2010] sm:$0xff]
    %v5001 = vld [vmem:[#allocation6 + $0x2018] sm:$0xff]
    %v5002 = vld [vmem:[#allocation6 + $0x2020] sm:$0xff]
    %v5003 = vld [vmem:[#allocation6 + $0x2028] sm:$0xff]
    %v5004 = vld [vmem:[#allocation6 + $0x2030] sm:$0xff]
    %v5005 = vld [vmem:[#allocation6 + $0x2038] sm:$0xff]
    %v5006 = vld [vmem:[#allocation6 + $0x2040] sm:$0xff]
    %v5007 = vld [vmem:[#allocation6 + $0x2048] sm:$0xff]
    %v5008 = vld [vmem:[#allocation6 + $0x2050] sm:$0xff]
    %v5009 = vld [vmem:[#allocation6 + $0x2058] sm:$0xff]
    %v5010 = vld [vmem:[#allocation6 + $0x2060] sm:$0xff]
    %v5011 = vld [vmem:[#allocation6 + $0x2068] sm:$0xff]
    %v5012 = vld [vmem:[#allocation6 + $0x2070] sm:$0xff]
    %v5013 = vld [vmem:[#allocation6 + $0x2078] sm:$0xff]
    %v5014 = vld [vmem:[#allocation6 + $0x2080] sm:$0xff]
    %v5015 = vld [vmem:[#allocation6 + $0x2088] sm:$0xff]
    %v5016 = vld [vmem:[#allocation6 + $0x2090] sm:$0xff]
    %v5017 = vld [vmem:[#allocation6 + $0x2098] sm:$0xff]
    %v5018 = vld [vmem:[#allocation6 + $0x20a0] sm:$0xff]
    %v5019 = vld [vmem:[#allocation6 + $0x20a8] sm:$0xff]
    %v5020 = vld [vmem:[#allocation6 + $0x20b0] sm:$0xff]
    %v5021 = vld [vmem:[#allocation6 + $0x20b8] sm:$0xff]
    %v5022 = vld [vmem:[#allocation6 + $0x20c0] sm:$0xff]
    %v5023 = vld [vmem:[#allocation6 + $0x20c8] sm:$0xff]
    %v5024 = vld [vmem:[#allocation6 + $0x20d0] sm:$0xff]
    %v5025 = vld [vmem:[#allocation6 + $0x20d8] sm:$0xff]
    %v5026 = vld [vmem:[#allocation6 + $0x20e0] sm:$0xff]
    %v5027 = vld [vmem:[#allocation6 + $0x20e8] sm:$0xff]
    %v5028 = vld [vmem:[#allocation6 + $0x20f0] sm:$0xff]
    %v5029 = vld [vmem:[#allocation6 + $0x20f8] sm:$0xff]
    %v5030 = vld [vmem:[#allocation6 + $0x2100] sm:$0xff]
    %v5031 = vld [vmem:[#allocation6 + $0x2108] sm:$0xff]
    %v5032 = vld [vmem:[#allocation6 + $0x2110] sm:$0xff]
    %v5033 = vld [vmem:[#allocation6 + $0x2118] sm:$0xff]
    %v5034 = vld [vmem:[#allocation6 + $0x2120] sm:$0xff]
    %v5035 = vld [vmem:[#allocation6 + $0x2128] sm:$0xff]
    %v5036 = vld [vmem:[#allocation6 + $0x2130] sm:$0xff]
    %v5037 = vld [vmem:[#allocation6 + $0x2138] sm:$0xff]
    %v5038 = vld [vmem:[#allocation6 + $0x2140] sm:$0xff]
    %v5039 = vld [vmem:[#allocation6 + $0x2148] sm:$0xff]
    %v5040 = vld [vmem:[#allocation6 + $0x2150] sm:$0xff]
    %v5041 = vld [vmem:[#allocation6 + $0x2158] sm:$0xff]
    %v5042 = vld [vmem:[#allocation6 + $0x2160] sm:$0xff]
    %v5043 = vld [vmem:[#allocation6 + $0x2168] sm:$0xff]
    %v5044 = vld [vmem:[#allocation6 + $0x2170] sm:$0xff]
    %v5045 = vld [vmem:[#allocation6 + $0x2178] sm:$0xff]
    %v5046 = vld [vmem:[#allocation6 + $0x2180] sm:$0xff]
    %v5047 = vld [vmem:[#allocation6 + $0x2188] sm:$0xff]
    %v5048 = vld [vmem:[#allocation6 + $0x2190] sm:$0xff]
    %v5049 = vld [vmem:[#allocation6 + $0x2198] sm:$0xff]
    %v5050 = vld [vmem:[#allocation6 + $0x21a0] sm:$0xff]
    %v5051 = vld [vmem:[#allocation6 + $0x21a8] sm:$0xff]
    %v5052 = vld [vmem:[#allocation6 + $0x21b0] sm:$0xff]
    %v5053 = vld [vmem:[#allocation6 + $0x21b8] sm:$0xff]
    %v5054 = vld [vmem:[#allocation6 + $0x21c0] sm:$0xff]
    %v5055 = vld [vmem:[#allocation6 + $0x21c8] sm:$0xff]
    %v5056 = vld [vmem:[#allocation6 + $0x21d0] sm:$0xff]
    %v5057 = vld [vmem:[#allocation6 + $0x21d8] sm:$0xff]
    %v5058 = vld [vmem:[#allocation6 + $0x21e0] sm:$0xff]
    %v5059 = vld [vmem:[#allocation6 + $0x21e8] sm:$0xff]
    %v5060 = vld [vmem:[#allocation6 + $0x21f0] sm:$0xff]
    %v5061 = vld [vmem:[#allocation6 + $0x21f8] sm:$0xff]
    %v5062 = vld [vmem:[#allocation6 + $0x2200] sm:$0xff]
    %v5063 = vld [vmem:[#allocation6 + $0x2208] sm:$0xff]
    %v5064 = vld [vmem:[#allocation6 + $0x2210] sm:$0xff]
    %v5065 = vld [vmem:[#allocation6 + $0x2218] sm:$0xff]
    %v5066 = vld [vmem:[#allocation6 + $0x2220] sm:$0xff]
    %v5067 = vld [vmem:[#allocation6 + $0x2228] sm:$0xff]
    %v5068 = vld [vmem:[#allocation6 + $0x2230] sm:$0xff]
    %v5069 = vld [vmem:[#allocation6 + $0x2238] sm:$0xff]
    %v5070 = vld [vmem:[#allocation6 + $0x2240] sm:$0xff]
    %v5071 = vld [vmem:[#allocation6 + $0x2248] sm:$0xff]
    %v5072 = vld [vmem:[#allocation6 + $0x2250] sm:$0xff]
    %v5073 = vld [vmem:[#allocation6 + $0x2258] sm:$0xff]
    %v5074 = vld [vmem:[#allocation6 + $0x2260] sm:$0xff]
    %v5075 = vld [vmem:[#allocation6 + $0x2268] sm:$0xff]
    %v5076 = vld [vmem:[#allocation6 + $0x2270] sm:$0xff]
    %v5077 = vld [vmem:[#allocation6 + $0x2278] sm:$0xff]
    %v5078 = vld [vmem:[#allocation6 + $0x2280] sm:$0xff]
    %v5079 = vld [vmem:[#allocation6 + $0x2288] sm:$0xff]
    %v5080 = vld [vmem:[#allocation6 + $0x2290] sm:$0xff]
    %v5081 = vld [vmem:[#allocation6 + $0x2298] sm:$0xff]
    %v5082 = vld [vmem:[#allocation6 + $0x22a0] sm:$0xff]
    %v5083 = vld [vmem:[#allocation6 + $0x22a8] sm:$0xff]
    %v5084 = vld [vmem:[#allocation6 + $0x22b0] sm:$0xff]
    %v5085 = vld [vmem:[#allocation6 + $0x22b8] sm:$0xff]
    %v5086 = vld [vmem:[#allocation6 + $0x22c0] sm:$0xff]
    %v5087 = vld [vmem:[#allocation6 + $0x22c8] sm:$0xff]
    %v5088 = vld [vmem:[#allocation6 + $0x22d0] sm:$0xff]
    %v5089 = vld [vmem:[#allocation6 + $0x22d8] sm:$0xff]
    %v5090 = vld [vmem:[#allocation6 + $0x22e0] sm:$0xff]
    %v5091 = vld [vmem:[#allocation6 + $0x22e8] sm:$0xff]
    %v5092 = vld [vmem:[#allocation6 + $0x22f0] sm:$0xff]
    %v5093 = vld [vmem:[#allocation6 + $0x22f8] sm:$0xff]
    %v5094 = vld [vmem:[#allocation6 + $0x2300] sm:$0xff]
    %v5095 = vld [vmem:[#allocation6 + $0x2308] sm:$0xff]
    %v5096 = vld [vmem:[#allocation6 + $0x2310] sm:$0xff]
    %v5097 = vld [vmem:[#allocation6 + $0x2318] sm:$0xff]
    %v5098 = vld [vmem:[#allocation6 + $0x2320] sm:$0xff]
    %v5099 = vld [vmem:[#allocation6 + $0x2328] sm:$0xff]
    %v5100 = vld [vmem:[#allocation6 + $0x2330] sm:$0xff]
    %v5101 = vld [vmem:[#allocation6 + $0x2338] sm:$0xff]
    %v5102 = vld [vmem:[#allocation6 + $0x2340] sm:$0xff]
    %v5103 = vld [vmem:[#allocation6 + $0x2348] sm:$0xff]
    %v5104 = vld [vmem:[#allocation6 + $0x2350] sm:$0xff]
    %v5105 = vld [vmem:[#allocation6 + $0x2358] sm:$0xff]
    %v5106 = vld [vmem:[#allocation6 + $0x2360] sm:$0xff]
    %v5107 = vld [vmem:[#allocation6 + $0x2368] sm:$0xff]
    %v5108 = vld [vmem:[#allocation6 + $0x2370] sm:$0xff]
    %v5109 = vld [vmem:[#allocation6 + $0x2378] sm:$0xff]
    %v5110 = vld [vmem:[#allocation6 + $0x2380] sm:$0xff]
    %v5111 = vld [vmem:[#allocation6 + $0x2388] sm:$0xff]
    %v5112 = vld [vmem:[#allocation6 + $0x2390] sm:$0xff]
    %v5113 = vld [vmem:[#allocation6 + $0x2398] sm:$0xff]
    %v5114 = vld [vmem:[#allocation6 + $0x23a0] sm:$0xff]
    %v5115 = vld [vmem:[#allocation6 + $0x23a8] sm:$0xff]
    %v5116 = vld [vmem:[#allocation6 + $0x23b0] sm:$0xff]
    %v5117 = vld [vmem:[#allocation6 + $0x23b8] sm:$0xff]
    %v5118 = vld [vmem:[#allocation6 + $0x23c0] sm:$0xff]
    %v5119 = vld [vmem:[#allocation6 + $0x23c8] sm:$0xff]
    %v5120 = vld [vmem:[#allocation6 + $0x23d0] sm:$0xff]
    %v5121 = vld [vmem:[#allocation6 + $0x23d8] sm:$0xff]
    %v5122 = vld [vmem:[#allocation6 + $0x23e0] sm:$0xff]
    %v5123 = vld [vmem:[#allocation6 + $0x23e8] sm:$0xff]
    %v5124 = vld [vmem:[#allocation6 + $0x23f0] sm:$0xff]
    %v5125 = vld [vmem:[#allocation6 + $0x23f8] sm:$0xff]
    %v5126 = vld [vmem:[#allocation6 + $0x2400] sm:$0xff]
    %v5127 = vld [vmem:[#allocation6 + $0x2408] sm:$0xff]
    %v5128 = vld [vmem:[#allocation6 + $0x2410] sm:$0xff]
    %v5129 = vld [vmem:[#allocation6 + $0x2418] sm:$0xff]
    %v5130 = vld [vmem:[#allocation6 + $0x2420] sm:$0xff]
    %v5131 = vld [vmem:[#allocation6 + $0x2428] sm:$0xff]
    %v5132 = vld [vmem:[#allocation6 + $0x2430] sm:$0xff]
    %v5133 = vld [vmem:[#allocation6 + $0x2438] sm:$0xff]
    %v5134 = vld [vmem:[#allocation6 + $0x2440] sm:$0xff]
    %v5135 = vld [vmem:[#allocation6 + $0x2448] sm:$0xff]
    %v5136 = vld [vmem:[#allocation6 + $0x2450] sm:$0xff]
    %v5137 = vld [vmem:[#allocation6 + $0x2458] sm:$0xff]
    %v5138 = vld [vmem:[#allocation6 + $0x2460] sm:$0xff]
    %v5139 = vld [vmem:[#allocation6 + $0x2468] sm:$0xff]
    %v5140 = vld [vmem:[#allocation6 + $0x2470] sm:$0xff]
    %v5141 = vld [vmem:[#allocation6 + $0x2478] sm:$0xff]
    %v5142 = vld [vmem:[#allocation6 + $0x2480] sm:$0xff]
    %v5143 = vld [vmem:[#allocation6 + $0x2488] sm:$0xff]
    %v5144 = vld [vmem:[#allocation6 + $0x2490] sm:$0xff]
    %v5145 = vld [vmem:[#allocation6 + $0x2498] sm:$0xff]
    %v5146 = vld [vmem:[#allocation6 + $0x24a0] sm:$0xff]
    %v5147 = vld [vmem:[#allocation6 + $0x24a8] sm:$0xff]
    %v5148 = vld [vmem:[#allocation6 + $0x24b0] sm:$0xff]
    %v5149 = vld [vmem:[#allocation6 + $0x24b8] sm:$0xff]
    %v5150 = vld [vmem:[#allocation6 + $0x24c0] sm:$0xff]
    %v5151 = vld [vmem:[#allocation6 + $0x24c8] sm:$0xff]
    %v5152 = vld [vmem:[#allocation6 + $0x24d0] sm:$0xff]
    %v5153 = vld [vmem:[#allocation6 + $0x24d8] sm:$0xff]
    %v5154 = vld [vmem:[#allocation6 + $0x24e0] sm:$0xff]
    %v5155 = vld [vmem:[#allocation6 + $0x24e8] sm:$0xff]
    %v5156 = vld [vmem:[#allocation6 + $0x24f0] sm:$0xff]
    %v5157 = vld [vmem:[#allocation6 + $0x24f8] sm:$0xff]
    %v5158 = vld [vmem:[#allocation6 + $0x2500] sm:$0xff]
    %v5159 = vld [vmem:[#allocation6 + $0x2508] sm:$0xff]
    %v5160 = vld [vmem:[#allocation6 + $0x2510] sm:$0xff]
    %v5161 = vld [vmem:[#allocation6 + $0x2518] sm:$0xff]
    %v5162 = vld [vmem:[#allocation6 + $0x2520] sm:$0xff]
    %v5163 = vld [vmem:[#allocation6 + $0x2528] sm:$0xff]
    %v5164 = vld [vmem:[#allocation6 + $0x2530] sm:$0xff]
    %v5165 = vld [vmem:[#allocation6 + $0x2538] sm:$0xff]
    %v5166 = vld [vmem:[#allocation6 + $0x2540] sm:$0xff]
    %v5167 = vld [vmem:[#allocation6 + $0x2548] sm:$0xff]
    %v5168 = vld [vmem:[#allocation6 + $0x2550] sm:$0xff]
    %v5169 = vld [vmem:[#allocation6 + $0x2558] sm:$0xff]
    %v5170 = vld [vmem:[#allocation6 + $0x2560] sm:$0xff]
    %v5171 = vld [vmem:[#allocation6 + $0x2568] sm:$0xff]
    %v5172 = vld [vmem:[#allocation6 + $0x2570] sm:$0xff]
    %v5173 = vld [vmem:[#allocation6 + $0x2578] sm:$0xff]
    %v5174 = vld [vmem:[#allocation6 + $0x2580] sm:$0xff]
    %v5175 = vld [vmem:[#allocation6 + $0x2588] sm:$0xff]
    %v5176 = vld [vmem:[#allocation6 + $0x2590] sm:$0xff]
    %v5177 = vld [vmem:[#allocation6 + $0x2598] sm:$0xff]
    %v5178 = vld [vmem:[#allocation6 + $0x25a0] sm:$0xff]
    %v5179 = vld [vmem:[#allocation6 + $0x25a8] sm:$0xff]
    %v5180 = vld [vmem:[#allocation6 + $0x25b0] sm:$0xff]
    %v5181 = vld [vmem:[#allocation6 + $0x25b8] sm:$0xff]
    %v5182 = vld [vmem:[#allocation6 + $0x25c0] sm:$0xff]
    %v5183 = vld [vmem:[#allocation6 + $0x25c8] sm:$0xff]
    %v5184 = vld [vmem:[#allocation6 + $0x25d0] sm:$0xff]
    %v5185 = vld [vmem:[#allocation6 + $0x25d8] sm:$0xff]
    %v5186 = vld [vmem:[#allocation6 + $0x25e0] sm:$0xff]
    %v5187 = vld [vmem:[#allocation6 + $0x25e8] sm:$0xff]
    %v5188 = vld [vmem:[#allocation6 + $0x25f0] sm:$0xff]
    %v5189 = vld [vmem:[#allocation6 + $0x25f8] sm:$0xff]
    %v5190 = vld [vmem:[#allocation6 + $0x2600] sm:$0xff]
    %v5191 = vld [vmem:[#allocation6 + $0x2608] sm:$0xff]
    %v5192 = vld [vmem:[#allocation6 + $0x2610] sm:$0xff]
    %v5193 = vld [vmem:[#allocation6 + $0x2618] sm:$0xff]
    %v5194 = vld [vmem:[#allocation6 + $0x2620] sm:$0xff]
    %v5195 = vld [vmem:[#allocation6 + $0x2628] sm:$0xff]
    %v5196 = vld [vmem:[#allocation6 + $0x2630] sm:$0xff]
    %v5197 = vld [vmem:[#allocation6 + $0x2638] sm:$0xff]
    %v5198 = vld [vmem:[#allocation6 + $0x2640] sm:$0xff]
    %v5199 = vld [vmem:[#allocation6 + $0x2648] sm:$0xff]
    %v5200 = vld [vmem:[#allocation6 + $0x2650] sm:$0xff]
    %v5201 = vld [vmem:[#allocation6 + $0x2658] sm:$0xff]
    %v5202 = vld [vmem:[#allocation6 + $0x2660] sm:$0xff]
    %v5203 = vld [vmem:[#allocation6 + $0x2668] sm:$0xff]
    %v5204 = vld [vmem:[#allocation6 + $0x2670] sm:$0xff]
    %v5205 = vld [vmem:[#allocation6 + $0x2678] sm:$0xff]
    %v5206 = vld [vmem:[#allocation6 + $0x2680] sm:$0xff]
    %v5207 = vld [vmem:[#allocation6 + $0x2688] sm:$0xff]
    %v5208 = vld [vmem:[#allocation6 + $0x2690] sm:$0xff]
    %v5209 = vld [vmem:[#allocation6 + $0x2698] sm:$0xff]
    %v5210 = vld [vmem:[#allocation6 + $0x26a0] sm:$0xff]
    %v5211 = vld [vmem:[#allocation6 + $0x26a8] sm:$0xff]
    %v5212 = vld [vmem:[#allocation6 + $0x26b0] sm:$0xff]
    %v5213 = vld [vmem:[#allocation6 + $0x26b8] sm:$0xff]
    %v5214 = vld [vmem:[#allocation6 + $0x26c0] sm:$0xff]
    %v5215 = vld [vmem:[#allocation6 + $0x26c8] sm:$0xff]
    %v5216 = vld [vmem:[#allocation6 + $0x26d0] sm:$0xff]
    %v5217 = vld [vmem:[#allocation6 + $0x26d8] sm:$0xff]
    %v5218 = vld [vmem:[#allocation6 + $0x26e0] sm:$0xff]
    %v5219 = vld [vmem:[#allocation6 + $0x26e8] sm:$0xff]
    %v5220 = vld [vmem:[#allocation6 + $0x26f0] sm:$0xff]
    %v5221 = vld [vmem:[#allocation6 + $0x26f8] sm:$0xff]
    %v5222 = vld [vmem:[#allocation6 + $0x2700] sm:$0xff]
    %v5223 = vld [vmem:[#allocation6 + $0x2708] sm:$0xff]
    %v5224 = vld [vmem:[#allocation6 + $0x2710] sm:$0xff]
    %v5225 = vld [vmem:[#allocation6 + $0x2718] sm:$0xff]
    %v5226 = vld [vmem:[#allocation6 + $0x2720] sm:$0xff]
    %v5227 = vld [vmem:[#allocation6 + $0x2728] sm:$0xff]
    %v5228 = vld [vmem:[#allocation6 + $0x2730] sm:$0xff]
    %v5229 = vld [vmem:[#allocation6 + $0x2738] sm:$0xff]
    %v5230 = vld [vmem:[#allocation6 + $0x2740] sm:$0xff]
    %v5231 = vld [vmem:[#allocation6 + $0x2748] sm:$0xff]
    %v5232 = vld [vmem:[#allocation6 + $0x2750] sm:$0xff]
    %v5233 = vld [vmem:[#allocation6 + $0x2758] sm:$0xff]
    %v5234 = vld [vmem:[#allocation6 + $0x2760] sm:$0xff]
    %v5235 = vld [vmem:[#allocation6 + $0x2768] sm:$0xff]
    %v5236 = vld [vmem:[#allocation6 + $0x2770] sm:$0xff]
    %v5237 = vld [vmem:[#allocation6 + $0x2778] sm:$0xff]
    %v5238 = vld [vmem:[#allocation6 + $0x2780] sm:$0xff]
    %v5239 = vld [vmem:[#allocation6 + $0x2788] sm:$0xff]
    %v5240 = vld [vmem:[#allocation6 + $0x2790] sm:$0xff]
    %v5241 = vld [vmem:[#allocation6 + $0x2798] sm:$0xff]
    %v5242 = vld [vmem:[#allocation6 + $0x27a0] sm:$0xff]
    %v5243 = vld [vmem:[#allocation6 + $0x27a8] sm:$0xff]
    %v5244 = vld [vmem:[#allocation6 + $0x27b0] sm:$0xff]
    %v5245 = vld [vmem:[#allocation6 + $0x27b8] sm:$0xff]
    %v5246 = vld [vmem:[#allocation6 + $0x27c0] sm:$0xff]
    %v5247 = vld [vmem:[#allocation6 + $0x27c8] sm:$0xff]
    %v5248 = vld [vmem:[#allocation6 + $0x27d0] sm:$0xff]
    %v5249 = vld [vmem:[#allocation6 + $0x27d8] sm:$0xff]
    %v5250 = vld [vmem:[#allocation6 + $0x27e0] sm:$0xff]
    %v5251 = vld [vmem:[#allocation6 + $0x27e8] sm:$0xff]
    %v5252 = vld [vmem:[#allocation6 + $0x27f0] sm:$0xff]
    %v5253 = vld [vmem:[#allocation6 + $0x27f8] sm:$0xff]
    %v5254 = vld [vmem:[#allocation6 + $0x2800] sm:$0xff]
    %v5255 = vld [vmem:[#allocation6 + $0x2808] sm:$0xff]
    %v5256 = vld [vmem:[#allocation6 + $0x2810] sm:$0xff]
    %v5257 = vld [vmem:[#allocation6 + $0x2818] sm:$0xff]
    %v5258 = vld [vmem:[#allocation6 + $0x2820] sm:$0xff]
    %v5259 = vld [vmem:[#allocation6 + $0x2828] sm:$0xff]
    %v5260 = vld [vmem:[#allocation6 + $0x2830] sm:$0xff]
    %v5261 = vld [vmem:[#allocation6 + $0x2838] sm:$0xff]
    %v5262 = vld [vmem:[#allocation6 + $0x2840] sm:$0xff]
    %v5263 = vld [vmem:[#allocation6 + $0x2848] sm:$0xff]
    %v5264 = vld [vmem:[#allocation6 + $0x2850] sm:$0xff]
    %v5265 = vld [vmem:[#allocation6 + $0x2858] sm:$0xff]
    %v5266 = vld [vmem:[#allocation6 + $0x2860] sm:$0xff]
    %v5267 = vld [vmem:[#allocation6 + $0x2868] sm:$0xff]
    %v5268 = vld [vmem:[#allocation6 + $0x2870] sm:$0xff]
    %v5269 = vld [vmem:[#allocation6 + $0x2878] sm:$0xff]
    %v5270 = vld [vmem:[#allocation6 + $0x2880] sm:$0xff]
    %v5271 = vld [vmem:[#allocation6 + $0x2888] sm:$0xff]
    %v5272 = vld [vmem:[#allocation6 + $0x2890] sm:$0xff]
    %v5273 = vld [vmem:[#allocation6 + $0x2898] sm:$0xff]
    %v5274 = vld [vmem:[#allocation6 + $0x28a0] sm:$0xff]
    %v5275 = vld [vmem:[#allocation6 + $0x28a8] sm:$0xff]
    %v5276 = vld [vmem:[#allocation6 + $0x28b0] sm:$0xff]
    %v5277 = vld [vmem:[#allocation6 + $0x28b8] sm:$0xff]
    %v5278 = vld [vmem:[#allocation6 + $0x28c0] sm:$0xff]
    %v5279 = vld [vmem:[#allocation6 + $0x28c8] sm:$0xff]
    %v5280 = vld [vmem:[#allocation6 + $0x28d0] sm:$0xff]
    %v5281 = vld [vmem:[#allocation6 + $0x28d8] sm:$0xff]
    %v5282 = vld [vmem:[#allocation6 + $0x28e0] sm:$0xff]
    %v5283 = vld [vmem:[#allocation6 + $0x28e8] sm:$0xff]
    %v5284 = vld [vmem:[#allocation6 + $0x28f0] sm:$0xff]
    %v5285 = vld [vmem:[#allocation6 + $0x28f8] sm:$0xff]
    %v5286 = vld [vmem:[#allocation6 + $0x2900] sm:$0xff]
    %v5287 = vld [vmem:[#allocation6 + $0x2908] sm:$0xff]
    %v5288 = vld [vmem:[#allocation6 + $0x2910] sm:$0xff]
    %v5289 = vld [vmem:[#allocation6 + $0x2918] sm:$0xff]
    %v5290 = vld [vmem:[#allocation6 + $0x2920] sm:$0xff]
    %v5291 = vld [vmem:[#allocation6 + $0x2928] sm:$0xff]
    %v5292 = vld [vmem:[#allocation6 + $0x2930] sm:$0xff]
    %v5293 = vld [vmem:[#allocation6 + $0x2938] sm:$0xff]
    %v5294 = vld [vmem:[#allocation6 + $0x2940] sm:$0xff]
    %v5295 = vld [vmem:[#allocation6 + $0x2948] sm:$0xff]
    %v5296 = vld [vmem:[#allocation6 + $0x2950] sm:$0xff]
    %v5297 = vld [vmem:[#allocation6 + $0x2958] sm:$0xff]
    %v5298 = vld [vmem:[#allocation6 + $0x2960] sm:$0xff]
    %v5299 = vld [vmem:[#allocation6 + $0x2968] sm:$0xff]
    %v5300 = vld [vmem:[#allocation6 + $0x2970] sm:$0xff]
    %v5301 = vld [vmem:[#allocation6 + $0x2978] sm:$0xff]
    %v5302 = vld [vmem:[#allocation6 + $0x2980] sm:$0xff]
    %v5303 = vld [vmem:[#allocation6 + $0x2988] sm:$0xff]
    %v5304 = vld [vmem:[#allocation6 + $0x2990] sm:$0xff]
    %v5305 = vld [vmem:[#allocation6 + $0x2998] sm:$0xff]
    %v5306 = vld [vmem:[#allocation6 + $0x29a0] sm:$0xff]
    %v5307 = vld [vmem:[#allocation6 + $0x29a8] sm:$0xff]
    %v5308 = vld [vmem:[#allocation6 + $0x29b0] sm:$0xff]
    %v5309 = vld [vmem:[#allocation6 + $0x29b8] sm:$0xff]
    %v5310 = vld [vmem:[#allocation6 + $0x29c0] sm:$0xff]
    %v5311 = vld [vmem:[#allocation6 + $0x29c8] sm:$0xff]
    %v5312 = vld [vmem:[#allocation6 + $0x29d0] sm:$0xff]
    %v5313 = vld [vmem:[#allocation6 + $0x29d8] sm:$0xff]
    %v5314 = vld [vmem:[#allocation6 + $0x29e0] sm:$0xff]
    %v5315 = vld [vmem:[#allocation6 + $0x29e8] sm:$0xff]
    %v5316 = vld [vmem:[#allocation6 + $0x29f0] sm:$0xff]
    %v5317 = vld [vmem:[#allocation6 + $0x29f8] sm:$0xff]
    %v5318 = vld [vmem:[#allocation6 + $0x2a00] sm:$0xff]
    %v5319 = vld [vmem:[#allocation6 + $0x2a08] sm:$0xff]
    %v5320 = vld [vmem:[#allocation6 + $0x2a10] sm:$0xff]
    %v5321 = vld [vmem:[#allocation6 + $0x2a18] sm:$0xff]
    %v5322 = vld [vmem:[#allocation6 + $0x2a20] sm:$0xff]
    %v5323 = vld [vmem:[#allocation6 + $0x2a28] sm:$0xff]
    %v5324 = vld [vmem:[#allocation6 + $0x2a30] sm:$0xff]
    %v5325 = vld [vmem:[#allocation6 + $0x2a38] sm:$0xff]
    %v5326 = vld [vmem:[#allocation6 + $0x2a40] sm:$0xff]
    %v5327 = vld [vmem:[#allocation6 + $0x2a48] sm:$0xff]
    %v5328 = vld [vmem:[#allocation6 + $0x2a50] sm:$0xff]
    %v5329 = vld [vmem:[#allocation6 + $0x2a58] sm:$0xff]
    %v5330 = vld [vmem:[#allocation6 + $0x2a60] sm:$0xff]
    %v5331 = vld [vmem:[#allocation6 + $0x2a68] sm:$0xff]
    %v5332 = vld [vmem:[#allocation6 + $0x2a70] sm:$0xff]
    %v5333 = vld [vmem:[#allocation6 + $0x2a78] sm:$0xff]
    %v5334 = vld [vmem:[#allocation6 + $0x2a80] sm:$0xff]
    %v5335 = vld [vmem:[#allocation6 + $0x2a88] sm:$0xff]
    %v5336 = vld [vmem:[#allocation6 + $0x2a90] sm:$0xff]
    %v5337 = vld [vmem:[#allocation6 + $0x2a98] sm:$0xff]
    %v5338 = vld [vmem:[#allocation6 + $0x2aa0] sm:$0xff]
    %v5339 = vld [vmem:[#allocation6 + $0x2aa8] sm:$0xff]
    %v5340 = vld [vmem:[#allocation6 + $0x2ab0] sm:$0xff]
    %v5341 = vld [vmem:[#allocation6 + $0x2ab8] sm:$0xff]
    %v5342 = vld [vmem:[#allocation6 + $0x2ac0] sm:$0xff]
    %v5343 = vld [vmem:[#allocation6 + $0x2ac8] sm:$0xff]
    %v5344 = vld [vmem:[#allocation6 + $0x2ad0] sm:$0xff]
    %v5345 = vld [vmem:[#allocation6 + $0x2ad8] sm:$0xff]
    %v5346 = vld [vmem:[#allocation6 + $0x2ae0] sm:$0xff]
    %v5347 = vld [vmem:[#allocation6 + $0x2ae8] sm:$0xff]
    %v5348 = vld [vmem:[#allocation6 + $0x2af0] sm:$0xff]
    %v5349 = vld [vmem:[#allocation6 + $0x2af8] sm:$0xff]
    %v5350 = vld [vmem:[#allocation6 + $0x2b00] sm:$0xff]
    %v5351 = vld [vmem:[#allocation6 + $0x2b08] sm:$0xff]
    %v5352 = vld [vmem:[#allocation6 + $0x2b10] sm:$0xff]
    %v5353 = vld [vmem:[#allocation6 + $0x2b18] sm:$0xff]
    %v5354 = vld [vmem:[#allocation6 + $0x2b20] sm:$0xff]
    %v5355 = vld [vmem:[#allocation6 + $0x2b28] sm:$0xff]
    %v5356 = vld [vmem:[#allocation6 + $0x2b30] sm:$0xff]
    %v5357 = vld [vmem:[#allocation6 + $0x2b38] sm:$0xff]
    %v5358 = vld [vmem:[#allocation6 + $0x2b40] sm:$0xff]
    %v5359 = vld [vmem:[#allocation6 + $0x2b48] sm:$0xff]
    %v5360 = vld [vmem:[#allocation6 + $0x2b50] sm:$0xff]
    %v5361 = vld [vmem:[#allocation6 + $0x2b58] sm:$0xff]
    %v5362 = vld [vmem:[#allocation6 + $0x2b60] sm:$0xff]
    %v5363 = vld [vmem:[#allocation6 + $0x2b68] sm:$0xff]
    %v5364 = vld [vmem:[#allocation6 + $0x2b70] sm:$0xff]
    %v5365 = vld [vmem:[#allocation6 + $0x2b78] sm:$0xff]
    %v5366 = vld [vmem:[#allocation6 + $0x2b80] sm:$0xff]
    %v5367 = vld [vmem:[#allocation6 + $0x2b88] sm:$0xff]
    %v5368 = vld [vmem:[#allocation6 + $0x2b90] sm:$0xff]
    %v5369 = vld [vmem:[#allocation6 + $0x2b98] sm:$0xff]
    %v5370 = vld [vmem:[#allocation6 + $0x2ba0] sm:$0xff]
    %v5371 = vld [vmem:[#allocation6 + $0x2ba8] sm:$0xff]
    %v5372 = vld [vmem:[#allocation6 + $0x2bb0] sm:$0xff]
    %v5373 = vld [vmem:[#allocation6 + $0x2bb8] sm:$0xff]
    %v5374 = vld [vmem:[#allocation6 + $0x2bc0] sm:$0xff]
    %v5375 = vld [vmem:[#allocation6 + $0x2bc8] sm:$0xff]
    %v5376 = vld [vmem:[#allocation6 + $0x2bd0] sm:$0xff]
    %v5377 = vld [vmem:[#allocation6 + $0x2bd8] sm:$0xff]
    %v5378 = vld [vmem:[#allocation6 + $0x2be0] sm:$0xff]
    %v5379 = vld [vmem:[#allocation6 + $0x2be8] sm:$0xff]
    %v5380 = vld [vmem:[#allocation6 + $0x2bf0] sm:$0xff]
    %v5381 = vld [vmem:[#allocation6 + $0x2bf8] sm:$0xff]
    %v5382 = vld [vmem:[#allocation6 + $0x2c00] sm:$0xff]
    %v5383 = vld [vmem:[#allocation6 + $0x2c08] sm:$0xff]
    %v5384 = vld [vmem:[#allocation6 + $0x2c10] sm:$0xff]
    %v5385 = vld [vmem:[#allocation6 + $0x2c18] sm:$0xff]
    %v5386 = vld [vmem:[#allocation6 + $0x2c20] sm:$0xff]
    %v5387 = vld [vmem:[#allocation6 + $0x2c28] sm:$0xff]
    %v5388 = vld [vmem:[#allocation6 + $0x2c30] sm:$0xff]
    %v5389 = vld [vmem:[#allocation6 + $0x2c38] sm:$0xff]
    %v5390 = vld [vmem:[#allocation6 + $0x2c40] sm:$0xff]
    %v5391 = vld [vmem:[#allocation6 + $0x2c48] sm:$0xff]
    %v5392 = vld [vmem:[#allocation6 + $0x2c50] sm:$0xff]
    %v5393 = vld [vmem:[#allocation6 + $0x2c58] sm:$0xff]
    %v5394 = vld [vmem:[#allocation6 + $0x2c60] sm:$0xff]
    %v5395 = vld [vmem:[#allocation6 + $0x2c68] sm:$0xff]
    %v5396 = vld [vmem:[#allocation6 + $0x2c70] sm:$0xff]
    %v5397 = vld [vmem:[#allocation6 + $0x2c78] sm:$0xff]
    %v5398 = vld [vmem:[#allocation6 + $0x2c80] sm:$0xff]
    %v5399 = vld [vmem:[#allocation6 + $0x2c88] sm:$0xff]
    %v5400 = vld [vmem:[#allocation6 + $0x2c90] sm:$0xff]
    %v5401 = vld [vmem:[#allocation6 + $0x2c98] sm:$0xff]
    %v5402 = vld [vmem:[#allocation6 + $0x2ca0] sm:$0xff]
    %v5403 = vld [vmem:[#allocation6 + $0x2ca8] sm:$0xff]
    %v5404 = vld [vmem:[#allocation6 + $0x2cb0] sm:$0xff]
    %v5405 = vld [vmem:[#allocation6 + $0x2cb8] sm:$0xff]
    %v5406 = vld [vmem:[#allocation6 + $0x2cc0] sm:$0xff]
    %v5407 = vld [vmem:[#allocation6 + $0x2cc8] sm:$0xff]
    %v5408 = vld [vmem:[#allocation6 + $0x2cd0] sm:$0xff]
    %v5409 = vld [vmem:[#allocation6 + $0x2cd8] sm:$0xff]
    %v5410 = vld [vmem:[#allocation6 + $0x2ce0] sm:$0xff]
    %v5411 = vld [vmem:[#allocation6 + $0x2ce8] sm:$0xff]
    %v5412 = vld [vmem:[#allocation6 + $0x2cf0] sm:$0xff]
    %v5413 = vld [vmem:[#allocation6 + $0x2cf8] sm:$0xff]
    %v5414 = vld [vmem:[#allocation6 + $0x2d00] sm:$0xff]
    %v5415 = vld [vmem:[#allocation6 + $0x2d08] sm:$0xff]
    %v5416 = vld [vmem:[#allocation6 + $0x2d10] sm:$0xff]
    %v5417 = vld [vmem:[#allocation6 + $0x2d18] sm:$0xff]
    %v5418 = vld [vmem:[#allocation6 + $0x2d20] sm:$0xff]
    %v5419 = vld [vmem:[#allocation6 + $0x2d28] sm:$0xff]
    %v5420 = vld [vmem:[#allocation6 + $0x2d30] sm:$0xff]
    %v5421 = vld [vmem:[#allocation6 + $0x2d38] sm:$0xff]
    %v5422 = vld [vmem:[#allocation6 + $0x2d40] sm:$0xff]
    %v5423 = vld [vmem:[#allocation6 + $0x2d48] sm:$0xff]
    %v5424 = vld [vmem:[#allocation6 + $0x2d50] sm:$0xff]
    %v5425 = vld [vmem:[#allocation6 + $0x2d58] sm:$0xff]
    %v5426 = vld [vmem:[#allocation6 + $0x2d60] sm:$0xff]
    %v5427 = vld [vmem:[#allocation6 + $0x2d68] sm:$0xff]
    %v5428 = vld [vmem:[#allocation6 + $0x2d70] sm:$0xff]
    %v5429 = vld [vmem:[#allocation6 + $0x2d78] sm:$0xff]
    %v5430 = vld [vmem:[#allocation6 + $0x2d80] sm:$0xff]
    %v5431 = vld [vmem:[#allocation6 + $0x2d88] sm:$0xff]
    %v5432 = vld [vmem:[#allocation6 + $0x2d90] sm:$0xff]
    %v5433 = vld [vmem:[#allocation6 + $0x2d98] sm:$0xff]
    %v5434 = vld [vmem:[#allocation6 + $0x2da0] sm:$0xff]
    %v5435 = vld [vmem:[#allocation6 + $0x2da8] sm:$0xff]
    %v5436 = vld [vmem:[#allocation6 + $0x2db0] sm:$0xff]
    %v5437 = vld [vmem:[#allocation6 + $0x2db8] sm:$0xff]
    %v5438 = vld [vmem:[#allocation6 + $0x2dc0] sm:$0xff]
    %v5439 = vld [vmem:[#allocation6 + $0x2dc8] sm:$0xff]
    %v5440 = vld [vmem:[#allocation6 + $0x2dd0] sm:$0xff]
    %v5441 = vld [vmem:[#allocation6 + $0x2dd8] sm:$0xff]
    %v5442 = vld [vmem:[#allocation6 + $0x2de0] sm:$0xff]
    %v5443 = vld [vmem:[#allocation6 + $0x2de8] sm:$0xff]
    %v5444 = vld [vmem:[#allocation6 + $0x2df0] sm:$0xff]
    %v5445 = vld [vmem:[#allocation6 + $0x2df8] sm:$0xff]
    %v5446 = vld [vmem:[#allocation6 + $0x2e00] sm:$0xff]
    %v5447 = vld [vmem:[#allocation6 + $0x2e08] sm:$0xff]
    %v5448 = vld [vmem:[#allocation6 + $0x2e10] sm:$0xff]
    %v5449 = vld [vmem:[#allocation6 + $0x2e18] sm:$0xff]
    %v5450 = vld [vmem:[#allocation6 + $0x2e20] sm:$0xff]
    %v5451 = vld [vmem:[#allocation6 + $0x2e28] sm:$0xff]
    %v5452 = vld [vmem:[#allocation6 + $0x2e30] sm:$0xff]
    %v5453 = vld [vmem:[#allocation6 + $0x2e38] sm:$0xff]
    %v5454 = vld [vmem:[#allocation6 + $0x2e40] sm:$0xff]
    %v5455 = vld [vmem:[#allocation6 + $0x2e48] sm:$0xff]
    %v5456 = vld [vmem:[#allocation6 + $0x2e50] sm:$0xff]
    %v5457 = vld [vmem:[#allocation6 + $0x2e58] sm:$0xff]
    %v5458 = vld [vmem:[#allocation6 + $0x2e60] sm:$0xff]
    %v5459 = vld [vmem:[#allocation6 + $0x2e68] sm:$0xff]
    %v5460 = vld [vmem:[#allocation6 + $0x2e70] sm:$0xff]
    %v5461 = vld [vmem:[#allocation6 + $0x2e78] sm:$0xff]
    %v5462 = vld [vmem:[#allocation6 + $0x2e80] sm:$0xff]
    %v5463 = vld [vmem:[#allocation6 + $0x2e88] sm:$0xff]
    %v5464 = vld [vmem:[#allocation6 + $0x2e90] sm:$0xff]
    %v5465 = vld [vmem:[#allocation6 + $0x2e98] sm:$0xff]
    %v5466 = vld [vmem:[#allocation6 + $0x2ea0] sm:$0xff]
    %v5467 = vld [vmem:[#allocation6 + $0x2ea8] sm:$0xff]
    %v5468 = vld [vmem:[#allocation6 + $0x2eb0] sm:$0xff]
    %v5469 = vld [vmem:[#allocation6 + $0x2eb8] sm:$0xff]
    %v5470 = vld [vmem:[#allocation6 + $0x2ec0] sm:$0xff]
    %v5471 = vld [vmem:[#allocation6 + $0x2ec8] sm:$0xff]
    %v5472 = vld [vmem:[#allocation6 + $0x2ed0] sm:$0xff]
    %v5473 = vld [vmem:[#allocation6 + $0x2ed8] sm:$0xff]
    %v5474 = vld [vmem:[#allocation6 + $0x2ee0] sm:$0xff]
    %v5475 = vld [vmem:[#allocation6 + $0x2ee8] sm:$0xff]
    %v5476 = vld [vmem:[#allocation6 + $0x2ef0] sm:$0xff]
    %v5477 = vld [vmem:[#allocation6 + $0x2ef8] sm:$0xff]
    %v5478 = vld [vmem:[#allocation6 + $0x2f00] sm:$0xff]
    %v5479 = vld [vmem:[#allocation6 + $0x2f08] sm:$0xff]
    %v5480 = vld [vmem:[#allocation6 + $0x2f10] sm:$0xff]
    %v5481 = vld [vmem:[#allocation6 + $0x2f18] sm:$0xff]
    %v5482 = vld [vmem:[#allocation6 + $0x2f20] sm:$0xff]
    %v5483 = vld [vmem:[#allocation6 + $0x2f28] sm:$0xff]
    %v5484 = vld [vmem:[#allocation6 + $0x2f30] sm:$0xff]
    %v5485 = vld [vmem:[#allocation6 + $0x2f38] sm:$0xff]
    %v5486 = vld [vmem:[#allocation6 + $0x2f40] sm:$0xff]
    %v5487 = vld [vmem:[#allocation6 + $0x2f48] sm:$0xff]
    %v5488 = vld [vmem:[#allocation6 + $0x2f50] sm:$0xff]
    %v5489 = vld [vmem:[#allocation6 + $0x2f58] sm:$0xff]
    %v5490 = vld [vmem:[#allocation6 + $0x2f60] sm:$0xff]
    %v5491 = vld [vmem:[#allocation6 + $0x2f68] sm:$0xff]
    %v5492 = vld [vmem:[#allocation6 + $0x2f70] sm:$0xff]
    %v5493 = vld [vmem:[#allocation6 + $0x2f78] sm:$0xff]
    %v5494 = vld [vmem:[#allocation6 + $0x2f80] sm:$0xff]
    %v5495 = vld [vmem:[#allocation6 + $0x2f88] sm:$0xff]
    %v5496 = vld [vmem:[#allocation6 + $0x2f90] sm:$0xff]
    %v5497 = vld [vmem:[#allocation6 + $0x2f98] sm:$0xff]
    %v5498 = vld [vmem:[#allocation6 + $0x2fa0] sm:$0xff]
    %v5499 = vld [vmem:[#allocation6 + $0x2fa8] sm:$0xff]
    %v5500 = vld [vmem:[#allocation6 + $0x2fb0] sm:$0xff]
    %v5501 = vld [vmem:[#allocation6 + $0x2fb8] sm:$0xff]
    %v5502 = vld [vmem:[#allocation6 + $0x2fc0] sm:$0xff]
    %v5503 = vld [vmem:[#allocation6 + $0x2fc8] sm:$0xff]
    %v5504 = vld [vmem:[#allocation6 + $0x2fd0] sm:$0xff]
    %v5505 = vld [vmem:[#allocation6 + $0x2fd8] sm:$0xff]
    %v5506 = vld [vmem:[#allocation6 + $0x2fe0] sm:$0xff]
    %v5507 = vld [vmem:[#allocation6 + $0x2fe8] sm:$0xff]
    %v5508 = vld [vmem:[#allocation6 + $0x2ff0] sm:$0xff]
    %v5509 = vld [vmem:[#allocation6 + $0x2ff8] sm:$0xff]
    %v5510 = vld [vmem:[#allocation6 + $0x3000] sm:$0xff]
    %v5511 = vld [vmem:[#allocation6 + $0x3008] sm:$0xff]
    %v5512 = vld [vmem:[#allocation6 + $0x3010] sm:$0xff]
    %v5513 = vld [vmem:[#allocation6 + $0x3018] sm:$0xff]
    %v5514 = vld [vmem:[#allocation6 + $0x3020] sm:$0xff]
    %v5515 = vld [vmem:[#allocation6 + $0x3028] sm:$0xff]
    %v5516 = vld [vmem:[#allocation6 + $0x3030] sm:$0xff]
    %v5517 = vld [vmem:[#allocation6 + $0x3038] sm:$0xff]
    %v5518 = vld [vmem:[#allocation6 + $0x3040] sm:$0xff]
    %v5519 = vld [vmem:[#allocation6 + $0x3048] sm:$0xff]
    %v5520 = vld [vmem:[#allocation6 + $0x3050] sm:$0xff]
    %v5521 = vld [vmem:[#allocation6 + $0x3058] sm:$0xff]
    %v5522 = vld [vmem:[#allocation6 + $0x3060] sm:$0xff]
    %v5523 = vld [vmem:[#allocation6 + $0x3068] sm:$0xff]
    %v5524 = vld [vmem:[#allocation6 + $0x3070] sm:$0xff]
    %v5525 = vld [vmem:[#allocation6 + $0x3078] sm:$0xff]
    %v5526 = vld [vmem:[#allocation6 + $0x3080] sm:$0xff]
    %v5527 = vld [vmem:[#allocation6 + $0x3088] sm:$0xff]
    %v5528 = vld [vmem:[#allocation6 + $0x3090] sm:$0xff]
    %v5529 = vld [vmem:[#allocation6 + $0x3098] sm:$0xff]
    %v5530 = vld [vmem:[#allocation6 + $0x30a0] sm:$0xff]
    %v5531 = vld [vmem:[#allocation6 + $0x30a8] sm:$0xff]
    %v5532 = vld [vmem:[#allocation6 + $0x30b0] sm:$0xff]
    %v5533 = vld [vmem:[#allocation6 + $0x30b8] sm:$0xff]
    %v5534 = vld [vmem:[#allocation6 + $0x30c0] sm:$0xff]
    %v5535 = vld [vmem:[#allocation6 + $0x30c8] sm:$0xff]
    %v5536 = vld [vmem:[#allocation6 + $0x30d0] sm:$0xff]
    %v5537 = vld [vmem:[#allocation6 + $0x30d8] sm:$0xff]
    %v5538 = vld [vmem:[#allocation6 + $0x30e0] sm:$0xff]
    %v5539 = vld [vmem:[#allocation6 + $0x30e8] sm:$0xff]
    %v5540 = vld [vmem:[#allocation6 + $0x30f0] sm:$0xff]
    %v5541 = vld [vmem:[#allocation6 + $0x30f8] sm:$0xff]
    %v5542 = vld [vmem:[#allocation6 + $0x3100] sm:$0xff]
    %v5543 = vld [vmem:[#allocation6 + $0x3108] sm:$0xff]
    %v5544 = vld [vmem:[#allocation6 + $0x3110] sm:$0xff]
    %v5545 = vld [vmem:[#allocation6 + $0x3118] sm:$0xff]
    %v5546 = vld [vmem:[#allocation6 + $0x3120] sm:$0xff]
    %v5547 = vld [vmem:[#allocation6 + $0x3128] sm:$0xff]
    %v5548 = vld [vmem:[#allocation6 + $0x3130] sm:$0xff]
    %v5549 = vld [vmem:[#allocation6 + $0x3138] sm:$0xff]
    %v5550 = vld [vmem:[#allocation6 + $0x3140] sm:$0xff]
    %v5551 = vld [vmem:[#allocation6 + $0x3148] sm:$0xff]
    %v5552 = vld [vmem:[#allocation6 + $0x3150] sm:$0xff]
    %v5553 = vld [vmem:[#allocation6 + $0x3158] sm:$0xff]
    %v5554 = vld [vmem:[#allocation6 + $0x3160] sm:$0xff]
    %v5555 = vld [vmem:[#allocation6 + $0x3168] sm:$0xff]
    %v5556 = vld [vmem:[#allocation6 + $0x3170] sm:$0xff]
    %v5557 = vld [vmem:[#allocation6 + $0x3178] sm:$0xff]
    %v5558 = vld [vmem:[#allocation6 + $0x3180] sm:$0xff]
    %v5559 = vld [vmem:[#allocation6 + $0x3188] sm:$0xff]
    %v5560 = vld [vmem:[#allocation6 + $0x3190] sm:$0xff]
    %v5561 = vld [vmem:[#allocation6 + $0x3198] sm:$0xff]
    %v5562 = vld [vmem:[#allocation6 + $0x31a0] sm:$0xff]
    %v5563 = vld [vmem:[#allocation6 + $0x31a8] sm:$0xff]
    %v5564 = vld [vmem:[#allocation6 + $0x31b0] sm:$0xff]
    %v5565 = vld [vmem:[#allocation6 + $0x31b8] sm:$0xff]
    %v5566 = vld [vmem:[#allocation6 + $0x31c0] sm:$0xff]
    %v5567 = vld [vmem:[#allocation6 + $0x31c8] sm:$0xff]
    %v5568 = vld [vmem:[#allocation6 + $0x31d0] sm:$0xff]
    %v5569 = vld [vmem:[#allocation6 + $0x31d8] sm:$0xff]
    %v5570 = vld [vmem:[#allocation6 + $0x31e0] sm:$0xff]
    %v5571 = vld [vmem:[#allocation6 + $0x31e8] sm:$0xff]
    %v5572 = vld [vmem:[#allocation6 + $0x31f0] sm:$0xff]
    %v5573 = vld [vmem:[#allocation6 + $0x31f8] sm:$0xff]
    %v5574 = vld [vmem:[#allocation6 + $0x3200] sm:$0xff]
    %v5575 = vld [vmem:[#allocation6 + $0x3208] sm:$0xff]
    %v5576 = vld [vmem:[#allocation6 + $0x3210] sm:$0xff]
    %v5577 = vld [vmem:[#allocation6 + $0x3218] sm:$0xff]
    %v5578 = vld [vmem:[#allocation6 + $0x3220] sm:$0xff]
    %v5579 = vld [vmem:[#allocation6 + $0x3228] sm:$0xff]
    %v5580 = vld [vmem:[#allocation6 + $0x3230] sm:$0xff]
    %v5581 = vld [vmem:[#allocation6 + $0x3238] sm:$0xff]
    %v5582 = vld [vmem:[#allocation6 + $0x3240] sm:$0xff]
    %v5583 = vld [vmem:[#allocation6 + $0x3248] sm:$0xff]
    %v5584 = vld [vmem:[#allocation6 + $0x3250] sm:$0xff]
    %v5585 = vld [vmem:[#allocation6 + $0x3258] sm:$0xff]
    %v5586 = vld [vmem:[#allocation6 + $0x3260] sm:$0xff]
    %v5587 = vld [vmem:[#allocation6 + $0x3268] sm:$0xff]
    %v5588 = vld [vmem:[#allocation6 + $0x3270] sm:$0xff]
    %v5589 = vld [vmem:[#allocation6 + $0x3278] sm:$0xff]
    %v5590 = vld [vmem:[#allocation6 + $0x3280] sm:$0xff]
    %v5591 = vld [vmem:[#allocation6 + $0x3288] sm:$0xff]
    %v5592 = vld [vmem:[#allocation6 + $0x3290] sm:$0xff]
    %v5593 = vld [vmem:[#allocation6 + $0x3298] sm:$0xff]
    %v5594 = vld [vmem:[#allocation6 + $0x32a0] sm:$0xff]
    %v5595 = vld [vmem:[#allocation6 + $0x32a8] sm:$0xff]
    %v5596 = vld [vmem:[#allocation6 + $0x32b0] sm:$0xff]
    %v5597 = vld [vmem:[#allocation6 + $0x32b8] sm:$0xff]
    %v5598 = vld [vmem:[#allocation6 + $0x32c0] sm:$0xff]
    %v5599 = vld [vmem:[#allocation6 + $0x32c8] sm:$0xff]
    %v5600 = vld [vmem:[#allocation6 + $0x32d0] sm:$0xff]
    %v5601 = vld [vmem:[#allocation6 + $0x32d8] sm:$0xff]
    %v5602 = vld [vmem:[#allocation6 + $0x32e0] sm:$0xff]
    %v5603 = vld [vmem:[#allocation6 + $0x32e8] sm:$0xff]
    %v5604 = vld [vmem:[#allocation6 + $0x32f0] sm:$0xff]
    %v5605 = vld [vmem:[#allocation6 + $0x32f8] sm:$0xff]
    %v5606 = vld [vmem:[#allocation6 + $0x3300] sm:$0xff]
    %v5607 = vld [vmem:[#allocation6 + $0x3308] sm:$0xff]
    %v5608 = vld [vmem:[#allocation6 + $0x3310] sm:$0xff]
    %v5609 = vld [vmem:[#allocation6 + $0x3318] sm:$0xff]
    %v5610 = vld [vmem:[#allocation6 + $0x3320] sm:$0xff]
    %v5611 = vld [vmem:[#allocation6 + $0x3328] sm:$0xff]
    %v5612 = vld [vmem:[#allocation6 + $0x3330] sm:$0xff]
    %v5613 = vld [vmem:[#allocation6 + $0x3338] sm:$0xff]
    %v5614 = vld [vmem:[#allocation6 + $0x3340] sm:$0xff]
    %v5615 = vld [vmem:[#allocation6 + $0x3348] sm:$0xff]
    %v5616 = vld [vmem:[#allocation6 + $0x3350] sm:$0xff]
    %v5617 = vld [vmem:[#allocation6 + $0x3358] sm:$0xff]
    %v5618 = vld [vmem:[#allocation6 + $0x3360] sm:$0xff]
    %v5619 = vld [vmem:[#allocation6 + $0x3368] sm:$0xff]
    %v5620 = vld [vmem:[#allocation6 + $0x3370] sm:$0xff]
    %v5621 = vld [vmem:[#allocation6 + $0x3378] sm:$0xff]
    %v5622 = vld [vmem:[#allocation6 + $0x3380] sm:$0xff]
    %v5623 = vld [vmem:[#allocation6 + $0x3388] sm:$0xff]
    %v5624 = vld [vmem:[#allocation6 + $0x3390] sm:$0xff]
    %v5625 = vld [vmem:[#allocation6 + $0x3398] sm:$0xff]
    %v5626 = vld [vmem:[#allocation6 + $0x33a0] sm:$0xff]
    %v5627 = vld [vmem:[#allocation6 + $0x33a8] sm:$0xff]
    %v5628 = vld [vmem:[#allocation6 + $0x33b0] sm:$0xff]
    %v5629 = vld [vmem:[#allocation6 + $0x33b8] sm:$0xff]
    %v5630 = vld [vmem:[#allocation6 + $0x33c0] sm:$0xff]
    %v5631 = vld [vmem:[#allocation6 + $0x33c8] sm:$0xff]
    %v5632 = vld [vmem:[#allocation6 + $0x33d0] sm:$0xff]
    %v5633 = vld [vmem:[#allocation6 + $0x33d8] sm:$0xff]
    %v5634 = vld [vmem:[#allocation6 + $0x33e0] sm:$0xff]
    %v5635 = vld [vmem:[#allocation6 + $0x33e8] sm:$0xff]
    %v5636 = vld [vmem:[#allocation6 + $0x33f0] sm:$0xff]
    %v5637 = vld [vmem:[#allocation6 + $0x33f8] sm:$0xff]
    %v5638 = vld [vmem:[#allocation6 + $0x3400] sm:$0xff]
    %v5639 = vld [vmem:[#allocation6 + $0x3408] sm:$0xff]
    %v5640 = vld [vmem:[#allocation6 + $0x3410] sm:$0xff]
    %v5641 = vld [vmem:[#allocation6 + $0x3418] sm:$0xff]
    %v5642 = vld [vmem:[#allocation6 + $0x3420] sm:$0xff]
    %v5643 = vld [vmem:[#allocation6 + $0x3428] sm:$0xff]
    %v5644 = vld [vmem:[#allocation6 + $0x3430] sm:$0xff]
    %v5645 = vld [vmem:[#allocation6 + $0x3438] sm:$0xff]
    %v5646 = vld [vmem:[#allocation6 + $0x3440] sm:$0xff]
    %v5647 = vld [vmem:[#allocation6 + $0x3448] sm:$0xff]
    %v5648 = vld [vmem:[#allocation6 + $0x3450] sm:$0xff]
    %v5649 = vld [vmem:[#allocation6 + $0x3458] sm:$0xff]
    %v5650 = vld [vmem:[#allocation6 + $0x3460] sm:$0xff]
    %v5651 = vld [vmem:[#allocation6 + $0x3468] sm:$0xff]
    %v5652 = vld [vmem:[#allocation6 + $0x3470] sm:$0xff]
    %v5653 = vld [vmem:[#allocation6 + $0x3478] sm:$0xff]
    %v5654 = vld [vmem:[#allocation6 + $0x3480] sm:$0xff]
    %v5655 = vld [vmem:[#allocation6 + $0x3488] sm:$0xff]
    %v5656 = vld [vmem:[#allocation6 + $0x3490] sm:$0xff]
    %v5657 = vld [vmem:[#allocation6 + $0x3498] sm:$0xff]
    %v5658 = vld [vmem:[#allocation6 + $0x34a0] sm:$0xff]
    %v5659 = vld [vmem:[#allocation6 + $0x34a8] sm:$0xff]
    %v5660 = vld [vmem:[#allocation6 + $0x34b0] sm:$0xff]
    %v5661 = vld [vmem:[#allocation6 + $0x34b8] sm:$0xff]
    %v5662 = vld [vmem:[#allocation6 + $0x34c0] sm:$0xff]
    %v5663 = vld [vmem:[#allocation6 + $0x34c8] sm:$0xff]
    %v5664 = vld [vmem:[#allocation6 + $0x34d0] sm:$0xff]
    %v5665 = vld [vmem:[#allocation6 + $0x34d8] sm:$0xff]
    %v5666 = vld [vmem:[#allocation6 + $0x34e0] sm:$0xff]
    %v5667 = vld [vmem:[#allocation6 + $0x34e8] sm:$0xff]
    %v5668 = vld [vmem:[#allocation6 + $0x34f0] sm:$0xff]
    %v5669 = vld [vmem:[#allocation6 + $0x34f8] sm:$0xff]
    %v5670 = vld [vmem:[#allocation6 + $0x3500] sm:$0xff]
    %v5671 = vld [vmem:[#allocation6 + $0x3508] sm:$0xff]
    %v5672 = vld [vmem:[#allocation6 + $0x3510] sm:$0xff]
    %v5673 = vld [vmem:[#allocation6 + $0x3518] sm:$0xff]
    %v5674 = vld [vmem:[#allocation6 + $0x3520] sm:$0xff]
    %v5675 = vld [vmem:[#allocation6 + $0x3528] sm:$0xff]
    %v5676 = vld [vmem:[#allocation6 + $0x3530] sm:$0xff]
    %v5677 = vld [vmem:[#allocation6 + $0x3538] sm:$0xff]
    %v5678 = vld [vmem:[#allocation6 + $0x3540] sm:$0xff]
    %v5679 = vld [vmem:[#allocation6 + $0x3548] sm:$0xff]
    %v5680 = vld [vmem:[#allocation6 + $0x3550] sm:$0xff]
    %v5681 = vld [vmem:[#allocation6 + $0x3558] sm:$0xff]
    %v5682 = vld [vmem:[#allocation6 + $0x3560] sm:$0xff]
    %v5683 = vld [vmem:[#allocation6 + $0x3568] sm:$0xff]
    %v5684 = vld [vmem:[#allocation6 + $0x3570] sm:$0xff]
    %v5685 = vld [vmem:[#allocation6 + $0x3578] sm:$0xff]
    %v5686 = vld [vmem:[#allocation6 + $0x3580] sm:$0xff]
    %v5687 = vld [vmem:[#allocation6 + $0x3588] sm:$0xff]
    %v5688 = vld [vmem:[#allocation6 + $0x3590] sm:$0xff]
    %v5689 = vld [vmem:[#allocation6 + $0x3598] sm:$0xff]
    %v5690 = vld [vmem:[#allocation6 + $0x35a0] sm:$0xff]
    %v5691 = vld [vmem:[#allocation6 + $0x35a8] sm:$0xff]
    %v5692 = vld [vmem:[#allocation6 + $0x35b0] sm:$0xff]
    %v5693 = vld [vmem:[#allocation6 + $0x35b8] sm:$0xff]
    %v5694 = vld [vmem:[#allocation6 + $0x35c0] sm:$0xff]
    %v5695 = vld [vmem:[#allocation6 + $0x35c8] sm:$0xff]
    %v5696 = vld [vmem:[#allocation6 + $0x35d0] sm:$0xff]
    %v5697 = vld [vmem:[#allocation6 + $0x35d8] sm:$0xff]
    %v5698 = vld [vmem:[#allocation6 + $0x35e0] sm:$0xff]
    %v5699 = vld [vmem:[#allocation6 + $0x35e8] sm:$0xff]
    %v5700 = vld [vmem:[#allocation6 + $0x35f0] sm:$0xff]
    %v5701 = vld [vmem:[#allocation6 + $0x35f8] sm:$0xff]
    %v5702 = vld [vmem:[#allocation6 + $0x3600] sm:$0xff]
    %v5703 = vld [vmem:[#allocation6 + $0x3608] sm:$0xff]
    %v5704 = vld [vmem:[#allocation6 + $0x3610] sm:$0xff]
    %v5705 = vld [vmem:[#allocation6 + $0x3618] sm:$0xff]
    %v5706 = vld [vmem:[#allocation6 + $0x3620] sm:$0xff]
    %v5707 = vld [vmem:[#allocation6 + $0x3628] sm:$0xff]
    %v5708 = vld [vmem:[#allocation6 + $0x3630] sm:$0xff]
    %v5709 = vld [vmem:[#allocation6 + $0x3638] sm:$0xff]
    %v5710 = vld [vmem:[#allocation6 + $0x3640] sm:$0xff]
    %v5711 = vld [vmem:[#allocation6 + $0x3648] sm:$0xff]
    %v5712 = vld [vmem:[#allocation6 + $0x3650] sm:$0xff]
    %v5713 = vld [vmem:[#allocation6 + $0x3658] sm:$0xff]
    %v5714 = vld [vmem:[#allocation6 + $0x3660] sm:$0xff]
    %v5715 = vld [vmem:[#allocation6 + $0x3668] sm:$0xff]
    %v5716 = vld [vmem:[#allocation6 + $0x3670] sm:$0xff]
    %v5717 = vld [vmem:[#allocation6 + $0x3678] sm:$0xff]
    %v5718 = vld [vmem:[#allocation6 + $0x3680] sm:$0xff]
    %v5719 = vld [vmem:[#allocation6 + $0x3688] sm:$0xff]
    %v5720 = vld [vmem:[#allocation6 + $0x3690] sm:$0xff]
    %v5721 = vld [vmem:[#allocation6 + $0x3698] sm:$0xff]
    %v5722 = vld [vmem:[#allocation6 + $0x36a0] sm:$0xff]
    %v5723 = vld [vmem:[#allocation6 + $0x36a8] sm:$0xff]
    %v5724 = vld [vmem:[#allocation6 + $0x36b0] sm:$0xff]
    %v5725 = vld [vmem:[#allocation6 + $0x36b8] sm:$0xff]
    %v5726 = vld [vmem:[#allocation6 + $0x36c0] sm:$0xff]
    %v5727 = vld [vmem:[#allocation6 + $0x36c8] sm:$0xff]
    %v5728 = vld [vmem:[#allocation6 + $0x36d0] sm:$0xff]
    %v5729 = vld [vmem:[#allocation6 + $0x36d8] sm:$0xff]
    %v5730 = vld [vmem:[#allocation6 + $0x36e0] sm:$0xff]
    %v5731 = vld [vmem:[#allocation6 + $0x36e8] sm:$0xff]
    %v5732 = vld [vmem:[#allocation6 + $0x36f0] sm:$0xff]
    %v5733 = vld [vmem:[#allocation6 + $0x36f8] sm:$0xff]
    %v5734 = vld [vmem:[#allocation6 + $0x3700] sm:$0xff]
    %v5735 = vld [vmem:[#allocation6 + $0x3708] sm:$0xff]
    %v5736 = vld [vmem:[#allocation6 + $0x3710] sm:$0xff]
    %v5737 = vld [vmem:[#allocation6 + $0x3718] sm:$0xff]
    %v5738 = vld [vmem:[#allocation6 + $0x3720] sm:$0xff]
    %v5739 = vld [vmem:[#allocation6 + $0x3728] sm:$0xff]
    %v5740 = vld [vmem:[#allocation6 + $0x3730] sm:$0xff]
    %v5741 = vld [vmem:[#allocation6 + $0x3738] sm:$0xff]
    %v5742 = vld [vmem:[#allocation6 + $0x3740] sm:$0xff]
    %v5743 = vld [vmem:[#allocation6 + $0x3748] sm:$0xff]
    %v5744 = vld [vmem:[#allocation6 + $0x3750] sm:$0xff]
    %v5745 = vld [vmem:[#allocation6 + $0x3758] sm:$0xff]
    %v5746 = vld [vmem:[#allocation6 + $0x3760] sm:$0xff]
    %v5747 = vld [vmem:[#allocation6 + $0x3768] sm:$0xff]
    %v5748 = vld [vmem:[#allocation6 + $0x3770] sm:$0xff]
    %v5749 = vld [vmem:[#allocation6 + $0x3778] sm:$0xff]
    %v5750 = vld [vmem:[#allocation6 + $0x3780] sm:$0xff]
    %v5751 = vld [vmem:[#allocation6 + $0x3788] sm:$0xff]
    %v5752 = vld [vmem:[#allocation6 + $0x3790] sm:$0xff]
    %v5753 = vld [vmem:[#allocation6 + $0x3798] sm:$0xff]
    %v5754 = vld [vmem:[#allocation6 + $0x37a0] sm:$0xff]
    %v5755 = vld [vmem:[#allocation6 + $0x37a8] sm:$0xff]
    %v5756 = vld [vmem:[#allocation6 + $0x37b0] sm:$0xff]
    %v5757 = vld [vmem:[#allocation6 + $0x37b8] sm:$0xff]
    %v5758 = vld [vmem:[#allocation6 + $0x37c0] sm:$0xff]
    %v5759 = vld [vmem:[#allocation6 + $0x37c8] sm:$0xff]
    %v5760 = vld [vmem:[#allocation6 + $0x37d0] sm:$0xff]
    %v5761 = vld [vmem:[#allocation6 + $0x37d8] sm:$0xff]
    %v5762 = vld [vmem:[#allocation6 + $0x37e0] sm:$0xff]
    %v5763 = vld [vmem:[#allocation6 + $0x37e8] sm:$0xff]
    %v5764 = vld [vmem:[#allocation6 + $0x37f0] sm:$0xff]
    %v5765 = vld [vmem:[#allocation6 + $0x37f8] sm:$0xff]
    %v5766 = vld [vmem:[#allocation6 + $0x3800] sm:$0xff]
    %v5767 = vld [vmem:[#allocation6 + $0x3808] sm:$0xff]
    %v5768 = vld [vmem:[#allocation6 + $0x3810] sm:$0xff]
    %v5769 = vld [vmem:[#allocation6 + $0x3818] sm:$0xff]
    %v5770 = vld [vmem:[#allocation6 + $0x3820] sm:$0xff]
    %v5771 = vld [vmem:[#allocation6 + $0x3828] sm:$0xff]
    %v5772 = vld [vmem:[#allocation6 + $0x3830] sm:$0xff]
    %v5773 = vld [vmem:[#allocation6 + $0x3838] sm:$0xff]
    %v5774 = vld [vmem:[#allocation6 + $0x3840] sm:$0xff]
    %v5775 = vld [vmem:[#allocation6 + $0x3848] sm:$0xff]
    %v5776 = vld [vmem:[#allocation6 + $0x3850] sm:$0xff]
    %v5777 = vld [vmem:[#allocation6 + $0x3858] sm:$0xff]
    %v5778 = vld [vmem:[#allocation6 + $0x3860] sm:$0xff]
    %v5779 = vld [vmem:[#allocation6 + $0x3868] sm:$0xff]
    %v5780 = vld [vmem:[#allocation6 + $0x3870] sm:$0xff]
    %v5781 = vld [vmem:[#allocation6 + $0x3878] sm:$0xff]
    %v5782 = vld [vmem:[#allocation6 + $0x3880] sm:$0xff]
    %v5783 = vld [vmem:[#allocation6 + $0x3888] sm:$0xff]
    %v5784 = vld [vmem:[#allocation6 + $0x3890] sm:$0xff]
    %v5785 = vld [vmem:[#allocation6 + $0x3898] sm:$0xff]
    %v5786 = vld [vmem:[#allocation6 + $0x38a0] sm:$0xff]
    %v5787 = vld [vmem:[#allocation6 + $0x38a8] sm:$0xff]
    %v5788 = vld [vmem:[#allocation6 + $0x38b0] sm:$0xff]
    %v5789 = vld [vmem:[#allocation6 + $0x38b8] sm:$0xff]
    %v5790 = vld [vmem:[#allocation6 + $0x38c0] sm:$0xff]
    %v5791 = vld [vmem:[#allocation6 + $0x38c8] sm:$0xff]
    %v5792 = vld [vmem:[#allocation6 + $0x38d0] sm:$0xff]
    %v5793 = vld [vmem:[#allocation6 + $0x38d8] sm:$0xff]
    %v5794 = vld [vmem:[#allocation6 + $0x38e0] sm:$0xff]
    %v5795 = vld [vmem:[#allocation6 + $0x38e8] sm:$0xff]
    %v5796 = vld [vmem:[#allocation6 + $0x38f0] sm:$0xff]
    %v5797 = vld [vmem:[#allocation6 + $0x38f8] sm:$0xff]
    %v5798 = vld [vmem:[#allocation6 + $0x3900] sm:$0xff]
    %v5799 = vld [vmem:[#allocation6 + $0x3908] sm:$0xff]
    %v5800 = vld [vmem:[#allocation6 + $0x3910] sm:$0xff]
    %v5801 = vld [vmem:[#allocation6 + $0x3918] sm:$0xff]
    %v5802 = vld [vmem:[#allocation6 + $0x3920] sm:$0xff]
    %v5803 = vld [vmem:[#allocation6 + $0x3928] sm:$0xff]
    %v5804 = vld [vmem:[#allocation6 + $0x3930] sm:$0xff]
    %v5805 = vld [vmem:[#allocation6 + $0x3938] sm:$0xff]
    %v5806 = vld [vmem:[#allocation6 + $0x3940] sm:$0xff]
    %v5807 = vld [vmem:[#allocation6 + $0x3948] sm:$0xff]
    %v5808 = vld [vmem:[#allocation6 + $0x3950] sm:$0xff]
    %v5809 = vld [vmem:[#allocation6 + $0x3958] sm:$0xff]
    %v5810 = vld [vmem:[#allocation6 + $0x3960] sm:$0xff]
    %v5811 = vld [vmem:[#allocation6 + $0x3968] sm:$0xff]
    %v5812 = vld [vmem:[#allocation6 + $0x3970] sm:$0xff]
    %v5813 = vld [vmem:[#allocation6 + $0x3978] sm:$0xff]
    %v5814 = vld [vmem:[#allocation6 + $0x3980] sm:$0xff]
    %v5815 = vld [vmem:[#allocation6 + $0x3988] sm:$0xff]
    %v5816 = vld [vmem:[#allocation6 + $0x3990] sm:$0xff]
    %v5817 = vld [vmem:[#allocation6 + $0x3998] sm:$0xff]
    %v5818 = vld [vmem:[#allocation6 + $0x39a0] sm:$0xff]
    %v5819 = vld [vmem:[#allocation6 + $0x39a8] sm:$0xff]
    %v5820 = vld [vmem:[#allocation6 + $0x39b0] sm:$0xff]
    %v5821 = vld [vmem:[#allocation6 + $0x39b8] sm:$0xff]
    %v5822 = vld [vmem:[#allocation6 + $0x39c0] sm:$0xff]
    %v5823 = vld [vmem:[#allocation6 + $0x39c8] sm:$0xff]
    %v5824 = vld [vmem:[#allocation6 + $0x39d0] sm:$0xff]
    %v5825 = vld [vmem:[#allocation6 + $0x39d8] sm:$0xff]
    %v5826 = vld [vmem:[#allocation6 + $0x39e0] sm:$0xff]
    %v5827 = vld [vmem:[#allocation6 + $0x39e8] sm:$0xff]
    %v5828 = vld [vmem:[#allocation6 + $0x39f0] sm:$0xff]
    %v5829 = vld [vmem:[#allocation6 + $0x39f8] sm:$0xff]
    %v5830 = vld [vmem:[#allocation6 + $0x3a00] sm:$0xff]
    %v5831 = vld [vmem:[#allocation6 + $0x3a08] sm:$0xff]
    %v5832 = vld [vmem:[#allocation6 + $0x3a10] sm:$0xff]
    %v5833 = vld [vmem:[#allocation6 + $0x3a18] sm:$0xff]
    %v5834 = vld [vmem:[#allocation6 + $0x3a20] sm:$0xff]
    %v5835 = vld [vmem:[#allocation6 + $0x3a28] sm:$0xff]
    %v5836 = vld [vmem:[#allocation6 + $0x3a30] sm:$0xff]
    %v5837 = vld [vmem:[#allocation6 + $0x3a38] sm:$0xff]
    %v5838 = vld [vmem:[#allocation6 + $0x3a40] sm:$0xff]
    %v5839 = vld [vmem:[#allocation6 + $0x3a48] sm:$0xff]
    %v5840 = vld [vmem:[#allocation6 + $0x3a50] sm:$0xff]
    %v5841 = vld [vmem:[#allocation6 + $0x3a58] sm:$0xff]
    %v5842 = vld [vmem:[#allocation6 + $0x3a60] sm:$0xff]
    %v5843 = vld [vmem:[#allocation6 + $0x3a68] sm:$0xff]
    %v5844 = vld [vmem:[#allocation6 + $0x3a70] sm:$0xff]
    %v5845 = vld [vmem:[#allocation6 + $0x3a78] sm:$0xff]
    %v5846 = vld [vmem:[#allocation6 + $0x3a80] sm:$0xff]
    %v5847 = vld [vmem:[#allocation6 + $0x3a88] sm:$0xff]
    %v5848 = vld [vmem:[#allocation6 + $0x3a90] sm:$0xff]
    %v5849 = vld [vmem:[#allocation6 + $0x3a98] sm:$0xff]
    %v5850 = vld [vmem:[#allocation6 + $0x3aa0] sm:$0xff]
    %v5851 = vld [vmem:[#allocation6 + $0x3aa8] sm:$0xff]
    %v5852 = vld [vmem:[#allocation6 + $0x3ab0] sm:$0xff]
    %v5853 = vld [vmem:[#allocation6 + $0x3ab8] sm:$0xff]
    %v5854 = vld [vmem:[#allocation6 + $0x3ac0] sm:$0xff]
    %v5855 = vld [vmem:[#allocation6 + $0x3ac8] sm:$0xff]
    %v5856 = vld [vmem:[#allocation6 + $0x3ad0] sm:$0xff]
    %v5857 = vld [vmem:[#allocation6 + $0x3ad8] sm:$0xff]
    %v5858 = vld [vmem:[#allocation6 + $0x3ae0] sm:$0xff]
    %v5859 = vld [vmem:[#allocation6 + $0x3ae8] sm:$0xff]
    %v5860 = vld [vmem:[#allocation6 + $0x3af0] sm:$0xff]
    %v5861 = vld [vmem:[#allocation6 + $0x3af8] sm:$0xff]
    %v5862 = vld [vmem:[#allocation6 + $0x3b00] sm:$0xff]
    %v5863 = vld [vmem:[#allocation6 + $0x3b08] sm:$0xff]
    %v5864 = vld [vmem:[#allocation6 + $0x3b10] sm:$0xff]
    %v5865 = vld [vmem:[#allocation6 + $0x3b18] sm:$0xff]
    %v5866 = vld [vmem:[#allocation6 + $0x3b20] sm:$0xff]
    %v5867 = vld [vmem:[#allocation6 + $0x3b28] sm:$0xff]
    %v5868 = vld [vmem:[#allocation6 + $0x3b30] sm:$0xff]
    %v5869 = vld [vmem:[#allocation6 + $0x3b38] sm:$0xff]
    %v5870 = vld [vmem:[#allocation6 + $0x3b40] sm:$0xff]
    %v5871 = vld [vmem:[#allocation6 + $0x3b48] sm:$0xff]
    %v5872 = vld [vmem:[#allocation6 + $0x3b50] sm:$0xff]
    %v5873 = vld [vmem:[#allocation6 + $0x3b58] sm:$0xff]
    %v5874 = vld [vmem:[#allocation6 + $0x3b60] sm:$0xff]
    %v5875 = vld [vmem:[#allocation6 + $0x3b68] sm:$0xff]
    %v5876 = vld [vmem:[#allocation6 + $0x3b70] sm:$0xff]
    %v5877 = vld [vmem:[#allocation6 + $0x3b78] sm:$0xff]
    %v5878 = vld [vmem:[#allocation6 + $0x3b80] sm:$0xff]
    %v5879 = vld [vmem:[#allocation6 + $0x3b88] sm:$0xff]
    %v5880 = vld [vmem:[#allocation6 + $0x3b90] sm:$0xff]
    %v5881 = vld [vmem:[#allocation6 + $0x3b98] sm:$0xff]
    %v5882 = vld [vmem:[#allocation6 + $0x3ba0] sm:$0xff]
    %v5883 = vld [vmem:[#allocation6 + $0x3ba8] sm:$0xff]
    %v5884 = vld [vmem:[#allocation6 + $0x3bb0] sm:$0xff]
    %v5885 = vld [vmem:[#allocation6 + $0x3bb8] sm:$0xff]
    %v5886 = vld [vmem:[#allocation6 + $0x3bc0] sm:$0xff]
    %v5887 = vld [vmem:[#allocation6 + $0x3bc8] sm:$0xff]
    %v5888 = vld [vmem:[#allocation6 + $0x3bd0] sm:$0xff]
    %v5889 = vld [vmem:[#allocation6 + $0x3bd8] sm:$0xff]
    %v5890 = vld [vmem:[#allocation6 + $0x3be0] sm:$0xff]
    %v5891 = vld [vmem:[#allocation6 + $0x3be8] sm:$0xff]
    %v5892 = vld [vmem:[#allocation6 + $0x3bf0] sm:$0xff]
    %v5893 = vld [vmem:[#allocation6 + $0x3bf8] sm:$0xff]
    %v5894 = vld [vmem:[#allocation6 + $0x3c00] sm:$0xff]
    %v5895 = vld [vmem:[#allocation6 + $0x3c08] sm:$0xff]
    %v5896 = vld [vmem:[#allocation6 + $0x3c10] sm:$0xff]
    %v5897 = vld [vmem:[#allocation6 + $0x3c18] sm:$0xff]
    %v5898 = vld [vmem:[#allocation6 + $0x3c20] sm:$0xff]
    %v5899 = vld [vmem:[#allocation6 + $0x3c28] sm:$0xff]
    %v5900 = vld [vmem:[#allocation6 + $0x3c30] sm:$0xff]
    %v5901 = vld [vmem:[#allocation6 + $0x3c38] sm:$0xff]
    %v5902 = vld [vmem:[#allocation6 + $0x3c40] sm:$0xff]
    %v5903 = vld [vmem:[#allocation6 + $0x3c48] sm:$0xff]
    %v5904 = vld [vmem:[#allocation6 + $0x3c50] sm:$0xff]
    %v5905 = vld [vmem:[#allocation6 + $0x3c58] sm:$0xff]
    %v5906 = vld [vmem:[#allocation6 + $0x3c60] sm:$0xff]
    %v5907 = vld [vmem:[#allocation6 + $0x3c68] sm:$0xff]
    %v5908 = vld [vmem:[#allocation6 + $0x3c70] sm:$0xff]
    %v5909 = vld [vmem:[#allocation6 + $0x3c78] sm:$0xff]
    %v5910 = vld [vmem:[#allocation6 + $0x3c80] sm:$0xff]
    %v5911 = vld [vmem:[#allocation6 + $0x3c88] sm:$0xff]
    %v5912 = vld [vmem:[#allocation6 + $0x3c90] sm:$0xff]
    %v5913 = vld [vmem:[#allocation6 + $0x3c98] sm:$0xff]
    %v5914 = vld [vmem:[#allocation6 + $0x3ca0] sm:$0xff]
    %v5915 = vld [vmem:[#allocation6 + $0x3ca8] sm:$0xff]
    %v5916 = vld [vmem:[#allocation6 + $0x3cb0] sm:$0xff]
    %v5917 = vld [vmem:[#allocation6 + $0x3cb8] sm:$0xff]
    %v5918 = vld [vmem:[#allocation6 + $0x3cc0] sm:$0xff]
    %v5919 = vld [vmem:[#allocation6 + $0x3cc8] sm:$0xff]
    %v5920 = vld [vmem:[#allocation6 + $0x3cd0] sm:$0xff]
    %v5921 = vld [vmem:[#allocation6 + $0x3cd8] sm:$0xff]
    %v5922 = vld [vmem:[#allocation6 + $0x3ce0] sm:$0xff]
    %v5923 = vld [vmem:[#allocation6 + $0x3ce8] sm:$0xff]
    %v5924 = vld [vmem:[#allocation6 + $0x3cf0] sm:$0xff]
    %v5925 = vld [vmem:[#allocation6 + $0x3cf8] sm:$0xff]
    %v5926 = vld [vmem:[#allocation6 + $0x3d00] sm:$0xff]
    %v5927 = vld [vmem:[#allocation6 + $0x3d08] sm:$0xff]
    %v5928 = vld [vmem:[#allocation6 + $0x3d10] sm:$0xff]
    %v5929 = vld [vmem:[#allocation6 + $0x3d18] sm:$0xff]
    %v5930 = vld [vmem:[#allocation6 + $0x3d20] sm:$0xff]
    %v5931 = vld [vmem:[#allocation6 + $0x3d28] sm:$0xff]
    %v5932 = vld [vmem:[#allocation6 + $0x3d30] sm:$0xff]
    %v5933 = vld [vmem:[#allocation6 + $0x3d38] sm:$0xff]
    %v5934 = vld [vmem:[#allocation6 + $0x3d40] sm:$0xff]
    %v5935 = vld [vmem:[#allocation6 + $0x3d48] sm:$0xff]
    %v5936 = vld [vmem:[#allocation6 + $0x3d50] sm:$0xff]
    %v5937 = vld [vmem:[#allocation6 + $0x3d58] sm:$0xff]
    %v5938 = vld [vmem:[#allocation6 + $0x3d60] sm:$0xff]
    %v5939 = vld [vmem:[#allocation6 + $0x3d68] sm:$0xff]
    %v5940 = vld [vmem:[#allocation6 + $0x3d70] sm:$0xff]
    %v5941 = vld [vmem:[#allocation6 + $0x3d78] sm:$0xff]
    %v5942 = vld [vmem:[#allocation6 + $0x3d80] sm:$0xff]
    %v5943 = vld [vmem:[#allocation6 + $0x3d88] sm:$0xff]
    %v5944 = vld [vmem:[#allocation6 + $0x3d90] sm:$0xff]
    %v5945 = vld [vmem:[#allocation6 + $0x3d98] sm:$0xff]
    %v5946 = vld [vmem:[#allocation6 + $0x3da0] sm:$0xff]
    %v5947 = vld [vmem:[#allocation6 + $0x3da8] sm:$0xff]
    %v5948 = vld [vmem:[#allocation6 + $0x3db0] sm:$0xff]
    %v5949 = vld [vmem:[#allocation6 + $0x3db8] sm:$0xff]
    %v5950 = vld [vmem:[#allocation6 + $0x3dc0] sm:$0xff]
    %v5951 = vld [vmem:[#allocation6 + $0x3dc8] sm:$0xff]
    %v5952 = vld [vmem:[#allocation6 + $0x3dd0] sm:$0xff]
    %v5953 = vld [vmem:[#allocation6 + $0x3dd8] sm:$0xff]
    %v5954 = vld [vmem:[#allocation6 + $0x3de0] sm:$0xff]
    %v5955 = vld [vmem:[#allocation6 + $0x3de8] sm:$0xff]
    %v5956 = vld [vmem:[#allocation6 + $0x3df0] sm:$0xff]
    %v5957 = vld [vmem:[#allocation6 + $0x3df8] sm:$0xff]
    %v5958 = vld [vmem:[#allocation6 + $0x3e00] sm:$0xff]
    %v5959 = vld [vmem:[#allocation6 + $0x3e08] sm:$0xff]
    %v5960 = vld [vmem:[#allocation6 + $0x3e10] sm:$0xff]
    %v5961 = vld [vmem:[#allocation6 + $0x3e18] sm:$0xff]
    %v5962 = vld [vmem:[#allocation6 + $0x3e20] sm:$0xff]
    %v5963 = vld [vmem:[#allocation6 + $0x3e28] sm:$0xff]
    %v5964 = vld [vmem:[#allocation6 + $0x3e30] sm:$0xff]
    %v5965 = vld [vmem:[#allocation6 + $0x3e38] sm:$0xff]
    %v5966 = vld [vmem:[#allocation6 + $0x3e40] sm:$0xff]
    %v5967 = vld [vmem:[#allocation6 + $0x3e48] sm:$0xff]
    %v5968 = vld [vmem:[#allocation6 + $0x3e50] sm:$0xff]
    %v5969 = vld [vmem:[#allocation6 + $0x3e58] sm:$0xff]
    %v5970 = vld [vmem:[#allocation6 + $0x3e60] sm:$0xff]
    %v5971 = vld [vmem:[#allocation6 + $0x3e68] sm:$0xff]
    %v5972 = vld [vmem:[#allocation6 + $0x3e70] sm:$0xff]
    %v5973 = vld [vmem:[#allocation6 + $0x3e78] sm:$0xff]
    %v5974 = vld [vmem:[#allocation6 + $0x3e80] sm:$0xff]
    %v5975 = vld [vmem:[#allocation6 + $0x3e88] sm:$0xff]
    %v5976 = vld [vmem:[#allocation6 + $0x3e90] sm:$0xff]
    %v5977 = vld [vmem:[#allocation6 + $0x3e98] sm:$0xff]
    %v5978 = vld [vmem:[#allocation6 + $0x3ea0] sm:$0xff]
    %v5979 = vld [vmem:[#allocation6 + $0x3ea8] sm:$0xff]
    %v5980 = vld [vmem:[#allocation6 + $0x3eb0] sm:$0xff]
    %v5981 = vld [vmem:[#allocation6 + $0x3eb8] sm:$0xff]
    %v5982 = vld [vmem:[#allocation6 + $0x3ec0] sm:$0xff]
    %v5983 = vld [vmem:[#allocation6 + $0x3ec8] sm:$0xff]
    %v5984 = vld [vmem:[#allocation6 + $0x3ed0] sm:$0xff]
    %v5985 = vld [vmem:[#allocation6 + $0x3ed8] sm:$0xff]
    %v5986 = vld [vmem:[#allocation6 + $0x3ee0] sm:$0xff]
    %v5987 = vld [vmem:[#allocation6 + $0x3ee8] sm:$0xff]
    %v5988 = vld [vmem:[#allocation6 + $0x3ef0] sm:$0xff]
    %v5989 = vld [vmem:[#allocation6 + $0x3ef8] sm:$0xff]
    %v5990 = vld [vmem:[#allocation6 + $0x3f00] sm:$0xff]
    %v5991 = vld [vmem:[#allocation6 + $0x3f08] sm:$0xff]
    %v5992 = vld [vmem:[#allocation6 + $0x3f10] sm:$0xff]
    %v5993 = vld [vmem:[#allocation6 + $0x3f18] sm:$0xff]
    %v5994 = vld [vmem:[#allocation6 + $0x3f20] sm:$0xff]
    %v5995 = vld [vmem:[#allocation6 + $0x3f28] sm:$0xff]
    %v5996 = vld [vmem:[#allocation6 + $0x3f30] sm:$0xff]
    %v5997 = vld [vmem:[#allocation6 + $0x3f38] sm:$0xff]
    %v5998 = vld [vmem:[#allocation6 + $0x3f40] sm:$0xff]
    %v5999 = vld [vmem:[#allocation6 + $0x3f48] sm:$0xff]
    %v6000 = vld [vmem:[#allocation6 + $0x3f50] sm:$0xff]
    %v6001 = vld [vmem:[#allocation6 + $0x3f58] sm:$0xff]
    %v6002 = vld [vmem:[#allocation6 + $0x3f60] sm:$0xff]
    %v6003 = vld [vmem:[#allocation6 + $0x3f68] sm:$0xff]
    %v6004 = vld [vmem:[#allocation6 + $0x3f70] sm:$0xff]
    %v6005 = vld [vmem:[#allocation6 + $0x3f78] sm:$0xff]
    %v6006 = vld [vmem:[#allocation6 + $0x3f80] sm:$0xff]
    %v6007 = vld [vmem:[#allocation6 + $0x3f88] sm:$0xff]
    %v6008 = vld [vmem:[#allocation6 + $0x3f90] sm:$0xff]
    %v6009 = vld [vmem:[#allocation6 + $0x3f98] sm:$0xff]
    %v6010 = vld [vmem:[#allocation6 + $0x3fa0] sm:$0xff]
    %v6011 = vld [vmem:[#allocation6 + $0x3fa8] sm:$0xff]
    %v6012 = vld [vmem:[#allocation6 + $0x3fb0] sm:$0xff]
    %v6013 = vld [vmem:[#allocation6 + $0x3fb8] sm:$0xff]
    %v6014 = vld [vmem:[#allocation6 + $0x3fc0] sm:$0xff]
    %v6015 = vld [vmem:[#allocation6 + $0x3fc8] sm:$0xff]
    %v6016 = vld [vmem:[#allocation6 + $0x3fd0] sm:$0xff]
    %v6017 = vld [vmem:[#allocation6 + $0x3fd8] sm:$0xff]
    %v6018 = vld [vmem:[#allocation6 + $0x3fe0] sm:$0xff]
    %v6019 = vld [vmem:[#allocation6 + $0x3fe8] sm:$0xff]
    %v6020 = vld [vmem:[#allocation6 + $0x3ff0] sm:$0xff]
    %v6021 = vld [vmem:[#allocation6 + $0x3ff8] sm:$0xff]
    %v6022 = vld [vmem:[#allocation6 + $0x4000] sm:$0xff]
    %v6023 = vld [vmem:[#allocation6 + $0x4008] sm:$0xff]
    %v6024 = vld [vmem:[#allocation6 + $0x4010] sm:$0xff]
    %v6025 = vld [vmem:[#allocation6 + $0x4018] sm:$0xff]
    %v6026 = vld [vmem:[#allocation6 + $0x4020] sm:$0xff]
    %v6027 = vld [vmem:[#allocation6 + $0x4028] sm:$0xff]
    %v6028 = vld [vmem:[#allocation6 + $0x4030] sm:$0xff]
    %v6029 = vld [vmem:[#allocation6 + $0x4038] sm:$0xff]
    %v6030 = vld [vmem:[#allocation6 + $0x4040] sm:$0xff]
    %v6031 = vld [vmem:[#allocation6 + $0x4048] sm:$0xff]
    %v6032 = vld [vmem:[#allocation6 + $0x4050] sm:$0xff]
    %v6033 = vld [vmem:[#allocation6 + $0x4058] sm:$0xff]
    %v6034 = vld [vmem:[#allocation6 + $0x4060] sm:$0xff]
    %v6035 = vld [vmem:[#allocation6 + $0x4068] sm:$0xff]
    %v6036 = vld [vmem:[#allocation6 + $0x4070] sm:$0xff]
    %v6037 = vld [vmem:[#allocation6 + $0x4078] sm:$0xff]
    %v6038 = vld [vmem:[#allocation6 + $0x4080] sm:$0xff]
    %v6039 = vld [vmem:[#allocation6 + $0x4088] sm:$0xff]
    %v6040 = vld [vmem:[#allocation6 + $0x4090] sm:$0xff]
    %v6041 = vld [vmem:[#allocation6 + $0x4098] sm:$0xff]
    %v6042 = vld [vmem:[#allocation6 + $0x40a0] sm:$0xff]
    %v6043 = vld [vmem:[#allocation6 + $0x40a8] sm:$0xff]
    %v6044 = vld [vmem:[#allocation6 + $0x40b0] sm:$0xff]
    %v6045 = vld [vmem:[#allocation6 + $0x40b8] sm:$0xff]
    %v6046 = vld [vmem:[#allocation6 + $0x40c0] sm:$0xff]
    %v6047 = vld [vmem:[#allocation6 + $0x40c8] sm:$0xff]
    %v6048 = vld [vmem:[#allocation6 + $0x40d0] sm:$0xff]
    %v6049 = vld [vmem:[#allocation6 + $0x40d8] sm:$0xff]
    %v6050 = vld [vmem:[#allocation6 + $0x40e0] sm:$0xff]
    %v6051 = vld [vmem:[#allocation6 + $0x40e8] sm:$0xff]
    %v6052 = vld [vmem:[#allocation6 + $0x40f0] sm:$0xff]
    %v6053 = vld [vmem:[#allocation6 + $0x40f8] sm:$0xff]
    %v6054 = vld [vmem:[#allocation6 + $0x4100] sm:$0xff]
    %v6055 = vld [vmem:[#allocation6 + $0x4108] sm:$0xff]
    %v6056 = vld [vmem:[#allocation6 + $0x4110] sm:$0xff]
    %v6057 = vld [vmem:[#allocation6 + $0x4118] sm:$0xff]
    %v6058 = vld [vmem:[#allocation6 + $0x4120] sm:$0xff]
    %v6059 = vld [vmem:[#allocation6 + $0x4128] sm:$0xff]
    %v6060 = vld [vmem:[#allocation6 + $0x4130] sm:$0xff]
    %v6061 = vld [vmem:[#allocation6 + $0x4138] sm:$0xff]
    %v6062 = vld [vmem:[#allocation6 + $0x4140] sm:$0xff]
    %v6063 = vld [vmem:[#allocation6 + $0x4148] sm:$0xff]
    %v6064 = vld [vmem:[#allocation6 + $0x4150] sm:$0xff]
    %v6065 = vld [vmem:[#allocation6 + $0x4158] sm:$0xff]
    %v6066 = vld [vmem:[#allocation6 + $0x4160] sm:$0xff]
    %v6067 = vld [vmem:[#allocation6 + $0x4168] sm:$0xff]
    %v6068 = vld [vmem:[#allocation6 + $0x4170] sm:$0xff]
    %v6069 = vld [vmem:[#allocation6 + $0x4178] sm:$0xff]
    %v6070 = vld [vmem:[#allocation6 + $0x4180] sm:$0xff]
    %v6071 = vld [vmem:[#allocation6 + $0x4188] sm:$0xff]
    %v6072 = vld [vmem:[#allocation6 + $0x4190] sm:$0xff]
    %v6073 = vld [vmem:[#allocation6 + $0x4198] sm:$0xff]
    %v6074 = vld [vmem:[#allocation6 + $0x41a0] sm:$0xff]
    %v6075 = vld [vmem:[#allocation6 + $0x41a8] sm:$0xff]
    %v6076 = vld [vmem:[#allocation6 + $0x41b0] sm:$0xff]
    %v6077 = vld [vmem:[#allocation6 + $0x41b8] sm:$0xff]
    %v6078 = vld [vmem:[#allocation6 + $0x41c0] sm:$0xff]
    %v6079 = vld [vmem:[#allocation6 + $0x41c8] sm:$0xff]
    %v6080 = vld [vmem:[#allocation6 + $0x41d0] sm:$0xff]
    %v6081 = vld [vmem:[#allocation6 + $0x41d8] sm:$0xff]
    %v6082 = vld [vmem:[#allocation6 + $0x41e0] sm:$0xff]
    %v6083 = vld [vmem:[#allocation6 + $0x41e8] sm:$0xff]
    %v6084 = vld [vmem:[#allocation6 + $0x41f0] sm:$0xff]
    %v6085 = vld [vmem:[#allocation6 + $0x41f8] sm:$0xff]
    %v6086 = vld [vmem:[#allocation6 + $0x4200] sm:$0xff]
    %v6087 = vld [vmem:[#allocation6 + $0x4208] sm:$0xff]
    %v6088 = vld [vmem:[#allocation6 + $0x4210] sm:$0xff]
    %v6089 = vld [vmem:[#allocation6 + $0x4218] sm:$0xff]
    %v6090 = vld [vmem:[#allocation6 + $0x4220] sm:$0xff]
    %v6091 = vld [vmem:[#allocation6 + $0x4228] sm:$0xff]
    %v6092 = vld [vmem:[#allocation6 + $0x4230] sm:$0xff]
    %v6093 = vld [vmem:[#allocation6 + $0x4238] sm:$0xff]
    %v6094 = vld [vmem:[#allocation6 + $0x4240] sm:$0xff]
    %v6095 = vld [vmem:[#allocation6 + $0x4248] sm:$0xff]
    %v6096 = vld [vmem:[#allocation6 + $0x4250] sm:$0xff]
    %v6097 = vld [vmem:[#allocation6 + $0x4258] sm:$0xff]
    %v6098 = vld [vmem:[#allocation6 + $0x4260] sm:$0xff]
    %v6099 = vld [vmem:[#allocation6 + $0x4268] sm:$0xff]
    %v6100 = vld [vmem:[#allocation6 + $0x4270] sm:$0xff]
    %v6101 = vld [vmem:[#allocation6 + $0x4278] sm:$0xff]
    %v6102 = vld [vmem:[#allocation6 + $0x4280] sm:$0xff]
    %v6103 = vld [vmem:[#allocation6 + $0x4288] sm:$0xff]
    %v6104 = vld [vmem:[#allocation6 + $0x4290] sm:$0xff]
    %v6105 = vld [vmem:[#allocation6 + $0x4298] sm:$0xff]
    %v6106 = vld [vmem:[#allocation6 + $0x42a0] sm:$0xff]
    %v6107 = vld [vmem:[#allocation6 + $0x42a8] sm:$0xff]
    %v6108 = vld [vmem:[#allocation6 + $0x42b0] sm:$0xff]
    %v6109 = vld [vmem:[#allocation6 + $0x42b8] sm:$0xff]
    %v6110 = vld [vmem:[#allocation6 + $0x42c0] sm:$0xff]
    %v6111 = vld [vmem:[#allocation6 + $0x42c8] sm:$0xff]
    %v6112 = vld [vmem:[#allocation6 + $0x42d0] sm:$0xff]
    %v6113 = vld [vmem:[#allocation6 + $0x42d8] sm:$0xff]
    %v6114 = vld [vmem:[#allocation6 + $0x42e0] sm:$0xff]
    %v6115 = vld [vmem:[#allocation6 + $0x42e8] sm:$0xff]
    %v6116 = vld [vmem:[#allocation6 + $0x42f0] sm:$0xff]
    %v6117 = vld [vmem:[#allocation6 + $0x42f8] sm:$0xff]
    %v6118 = vld [vmem:[#allocation6 + $0x4300] sm:$0xff]
    %v6119 = vld [vmem:[#allocation6 + $0x4308] sm:$0xff]
    %v6120 = vld [vmem:[#allocation6 + $0x4310] sm:$0xff]
    %v6121 = vld [vmem:[#allocation6 + $0x4318] sm:$0xff]
    %v6122 = vld [vmem:[#allocation6 + $0x4320] sm:$0xff]
    %v6123 = vld [vmem:[#allocation6 + $0x4328] sm:$0xff]
    %v6124 = vld [vmem:[#allocation6 + $0x4330] sm:$0xff]
    %v6125 = vld [vmem:[#allocation6 + $0x4338] sm:$0xff]
    %v6126 = vld [vmem:[#allocation6 + $0x4340] sm:$0xff]
    %v6127 = vld [vmem:[#allocation6 + $0x4348] sm:$0xff]
    %v6128 = vld [vmem:[#allocation6 + $0x4350] sm:$0xff]
    %v6129 = vld [vmem:[#allocation6 + $0x4358] sm:$0xff]
    %v6130 = vld [vmem:[#allocation6 + $0x4360] sm:$0xff]
    %v6131 = vld [vmem:[#allocation6 + $0x4368] sm:$0xff]
    %v6132 = vld [vmem:[#allocation6 + $0x4370] sm:$0xff]
    %v6133 = vld [vmem:[#allocation6 + $0x4378] sm:$0xff]
    %v6134 = vld [vmem:[#allocation6 + $0x4380] sm:$0xff]
    %v6135 = vld [vmem:[#allocation6 + $0x4388] sm:$0xff]
    %v6136 = vld [vmem:[#allocation6 + $0x4390] sm:$0xff]
    %v6137 = vld [vmem:[#allocation6 + $0x4398] sm:$0xff]
    %v6138 = vld [vmem:[#allocation6 + $0x43a0] sm:$0xff]
    %v6139 = vld [vmem:[#allocation6 + $0x43a8] sm:$0xff]
    %v6140 = vld [vmem:[#allocation6 + $0x43b0] sm:$0xff]
    %v6141 = vld [vmem:[#allocation6 + $0x43b8] sm:$0xff]
    %v6142 = vld [vmem:[#allocation6 + $0x43c0] sm:$0xff]
    %v6143 = vld [vmem:[#allocation6 + $0x43c8] sm:$0xff]
    %v6144 = vld [vmem:[#allocation6 + $0x43d0] sm:$0xff]
    %v6145 = vld [vmem:[#allocation6 + $0x43d8] sm:$0xff]
    %v6146 = vld [vmem:[#allocation6 + $0x43e0] sm:$0xff]
    %v6147 = vld [vmem:[#allocation6 + $0x43e8] sm:$0xff]
    %v6148 = vld [vmem:[#allocation6 + $0x43f0] sm:$0xff]
    %v6149 = vld [vmem:[#allocation6 + $0x43f8] sm:$0xff]
    %v6150 = vld [vmem:[#allocation6 + $0x4400] sm:$0xff]
    %v6151 = vld [vmem:[#allocation6 + $0x4408] sm:$0xff]
    %v6152 = vld [vmem:[#allocation6 + $0x4410] sm:$0xff]
    %v6153 = vld [vmem:[#allocation6 + $0x4418] sm:$0xff]
    %v6154 = vld [vmem:[#allocation6 + $0x4420] sm:$0xff]
    %v6155 = vld [vmem:[#allocation6 + $0x4428] sm:$0xff]
    %v6156 = vld [vmem:[#allocation6 + $0x4430] sm:$0xff]
    %v6157 = vld [vmem:[#allocation6 + $0x4438] sm:$0xff]
    %v6158 = vld [vmem:[#allocation6 + $0x4440] sm:$0xff]
    %v6159 = vld [vmem:[#allocation6 + $0x4448] sm:$0xff]
    %v6160 = vld [vmem:[#allocation6 + $0x4450] sm:$0xff]
    %v6161 = vld [vmem:[#allocation6 + $0x4458] sm:$0xff]
    %v6162 = vld [vmem:[#allocation6 + $0x4460] sm:$0xff]
    %v6163 = vld [vmem:[#allocation6 + $0x4468] sm:$0xff]
    %v6164 = vld [vmem:[#allocation6 + $0x4470] sm:$0xff]
    %v6165 = vld [vmem:[#allocation6 + $0x4478] sm:$0xff]
    %v6166 = vld [vmem:[#allocation6 + $0x4480] sm:$0xff]
    %v6167 = vld [vmem:[#allocation6 + $0x4488] sm:$0xff]
    %v6168 = vld [vmem:[#allocation6 + $0x4490] sm:$0xff]
    %v6169 = vld [vmem:[#allocation6 + $0x4498] sm:$0xff]
    %v6170 = vld [vmem:[#allocation6 + $0x44a0] sm:$0xff]
    %v6171 = vld [vmem:[#allocation6 + $0x44a8] sm:$0xff]
    %v6172 = vld [vmem:[#allocation6 + $0x44b0] sm:$0xff]
    %v6173 = vld [vmem:[#allocation6 + $0x44b8] sm:$0xff]
    %v6174 = vld [vmem:[#allocation6 + $0x44c0] sm:$0xff]
    %v6175 = vld [vmem:[#allocation6 + $0x44c8] sm:$0xff]
    %v6176 = vld [vmem:[#allocation6 + $0x44d0] sm:$0xff]
    %v6177 = vld [vmem:[#allocation6 + $0x44d8] sm:$0xff]
    %v6178 = vld [vmem:[#allocation6 + $0x44e0] sm:$0xff]
    %v6179 = vld [vmem:[#allocation6 + $0x44e8] sm:$0xff]
    %v6180 = vld [vmem:[#allocation6 + $0x44f0] sm:$0xff]
    %v6181 = vld [vmem:[#allocation6 + $0x44f8] sm:$0xff]
    %v6182 = vld [vmem:[#allocation6 + $0x4500] sm:$0xff]
    %v6183 = vld [vmem:[#allocation6 + $0x4508] sm:$0xff]
    %v6184 = vld [vmem:[#allocation6 + $0x4510] sm:$0xff]
    %v6185 = vld [vmem:[#allocation6 + $0x4518] sm:$0xff]
    %v6186 = vld [vmem:[#allocation6 + $0x4520] sm:$0xff]
    %v6187 = vld [vmem:[#allocation6 + $0x4528] sm:$0xff]
    %v6188 = vld [vmem:[#allocation6 + $0x4530] sm:$0xff]
    %v6189 = vld [vmem:[#allocation6 + $0x4538] sm:$0xff]
    %v6190 = vld [vmem:[#allocation6 + $0x4540] sm:$0xff]
    %v6191 = vld [vmem:[#allocation6 + $0x4548] sm:$0xff]
    %v6192 = vld [vmem:[#allocation6 + $0x4550] sm:$0xff]
    %v6193 = vld [vmem:[#allocation6 + $0x4558] sm:$0xff]
    %v6194 = vld [vmem:[#allocation6 + $0x4560] sm:$0xff]
    %v6195 = vld [vmem:[#allocation6 + $0x4568] sm:$0xff]
    %v6196 = vld [vmem:[#allocation6 + $0x4570] sm:$0xff]
    %v6197 = vld [vmem:[#allocation6 + $0x4578] sm:$0xff]
    %v6198 = vld [vmem:[#allocation6 + $0x4580] sm:$0xff]
    %v6199 = vld [vmem:[#allocation6 + $0x4588] sm:$0xff]
    %v6200 = vld [vmem:[#allocation6 + $0x4590] sm:$0xff]
    %v6201 = vld [vmem:[#allocation6 + $0x4598] sm:$0xff]
    %v6202 = vld [vmem:[#allocation6 + $0x45a0] sm:$0xff]
    %v6203 = vld [vmem:[#allocation6 + $0x45a8] sm:$0xff]
    %v6204 = vld [vmem:[#allocation6 + $0x45b0] sm:$0xff]
    %v6205 = vld [vmem:[#allocation6 + $0x45b8] sm:$0xff]
    %v6206 = vld [vmem:[#allocation6 + $0x45c0] sm:$0xff]
    %v6207 = vld [vmem:[#allocation6 + $0x45c8] sm:$0xff]
    %v6208 = vld [vmem:[#allocation6 + $0x45d0] sm:$0xff]
    %v6209 = vld [vmem:[#allocation6 + $0x45d8] sm:$0xff]
    %v6210 = vld [vmem:[#allocation6 + $0x45e0] sm:$0xff]
    %v6211 = vld [vmem:[#allocation6 + $0x45e8] sm:$0xff]
    %v6212 = vld [vmem:[#allocation6 + $0x45f0] sm:$0xff]
    %v6213 = vld [vmem:[#allocation6 + $0x45f8] sm:$0xff]
    %v6214 = vld [vmem:[#allocation6 + $0x4600] sm:$0xff]
    %v6215 = vld [vmem:[#allocation6 + $0x4608] sm:$0xff]
    %v6216 = vld [vmem:[#allocation6 + $0x4610] sm:$0xff]
    %v6217 = vld [vmem:[#allocation6 + $0x4618] sm:$0xff]
    %v6218 = vld [vmem:[#allocation6 + $0x4620] sm:$0xff]
    %v6219 = vld [vmem:[#allocation6 + $0x4628] sm:$0xff]
    %v6220 = vld [vmem:[#allocation6 + $0x4630] sm:$0xff]
    %v6221 = vld [vmem:[#allocation6 + $0x4638] sm:$0xff]
    %v6222 = vld [vmem:[#allocation6 + $0x4640] sm:$0xff]
    %v6223 = vld [vmem:[#allocation6 + $0x4648] sm:$0xff]
    %v6224 = vld [vmem:[#allocation6 + $0x4650] sm:$0xff]
    %v6225 = vld [vmem:[#allocation6 + $0x4658] sm:$0xff]
    %v6226 = vld [vmem:[#allocation6 + $0x4660] sm:$0xff]
    %v6227 = vld [vmem:[#allocation6 + $0x4668] sm:$0xff]
    %v6228 = vld [vmem:[#allocation6 + $0x4670] sm:$0xff]
    %v6229 = vld [vmem:[#allocation6 + $0x4678] sm:$0xff]
    %v6230 = vld [vmem:[#allocation6 + $0x4680] sm:$0xff]
    %v6231 = vld [vmem:[#allocation6 + $0x4688] sm:$0xff]
    %v6232 = vld [vmem:[#allocation6 + $0x4690] sm:$0xff]
    %v6233 = vld [vmem:[#allocation6 + $0x4698] sm:$0xff]
    %v6234 = vld [vmem:[#allocation6 + $0x46a0] sm:$0xff]
    %v6235 = vld [vmem:[#allocation6 + $0x46a8] sm:$0xff]
    %v6236 = vld [vmem:[#allocation6 + $0x46b0] sm:$0xff]
    %v6237 = vld [vmem:[#allocation6 + $0x46b8] sm:$0xff]
    %v6238 = vld [vmem:[#allocation6 + $0x46c0] sm:$0xff]
    %v6239 = vld [vmem:[#allocation6 + $0x46c8] sm:$0xff]
    %v6240 = vld [vmem:[#allocation6 + $0x46d0] sm:$0xff]
    %v6241 = vld [vmem:[#allocation6 + $0x46d8] sm:$0xff]
    %v6242 = vld [vmem:[#allocation6 + $0x46e0] sm:$0xff]
    %v6243 = vld [vmem:[#allocation6 + $0x46e8] sm:$0xff]
    %v6244 = vld [vmem:[#allocation6 + $0x46f0] sm:$0xff]
    %v6245 = vld [vmem:[#allocation6 + $0x46f8] sm:$0xff]
    %v6246 = vld [vmem:[#allocation6 + $0x4700] sm:$0xff]
    %v6247 = vld [vmem:[#allocation6 + $0x4708] sm:$0xff]
    %v6248 = vld [vmem:[#allocation6 + $0x4710] sm:$0xff]
    %v6249 = vld [vmem:[#allocation6 + $0x4718] sm:$0xff]
    %v6250 = vld [vmem:[#allocation6 + $0x4720] sm:$0xff]
    %v6251 = vld [vmem:[#allocation6 + $0x4728] sm:$0xff]
    %v6252 = vld [vmem:[#allocation6 + $0x4730] sm:$0xff]
    %v6253 = vld [vmem:[#allocation6 + $0x4738] sm:$0xff]
    %v6254 = vld [vmem:[#allocation6 + $0x4740] sm:$0xff]
    %v6255 = vld [vmem:[#allocation6 + $0x4748] sm:$0xff]
    %v6256 = vld [vmem:[#allocation6 + $0x4750] sm:$0xff]
    %v6257 = vld [vmem:[#allocation6 + $0x4758] sm:$0xff]
    %v6258 = vld [vmem:[#allocation6 + $0x4760] sm:$0xff]
    %v6259 = vld [vmem:[#allocation6 + $0x4768] sm:$0xff]
    %v6260 = vld [vmem:[#allocation6 + $0x4770] sm:$0xff]
    %v6261 = vld [vmem:[#allocation6 + $0x4778] sm:$0xff]
    %v6262 = vld [vmem:[#allocation6 + $0x4780] sm:$0xff]
    %v6263 = vld [vmem:[#allocation6 + $0x4788] sm:$0xff]
    %v6264 = vld [vmem:[#allocation6 + $0x4790] sm:$0xff]
    %v6265 = vld [vmem:[#allocation6 + $0x4798] sm:$0xff]
    %v6266 = vld [vmem:[#allocation6 + $0x47a0] sm:$0xff]
    %v6267 = vld [vmem:[#allocation6 + $0x47a8] sm:$0xff]
    %v6268 = vld [vmem:[#allocation6 + $0x47b0] sm:$0xff]
    %v6269 = vld [vmem:[#allocation6 + $0x47b8] sm:$0xff]
    %v6270 = vld [vmem:[#allocation6 + $0x47c0] sm:$0xff]
    %v6271 = vld [vmem:[#allocation6 + $0x47c8] sm:$0xff]
    %v6272 = vld [vmem:[#allocation6 + $0x47d0] sm:$0xff]
    %v6273 = vld [vmem:[#allocation6 + $0x47d8] sm:$0xff]
    %v6274 = vld [vmem:[#allocation6 + $0x47e0] sm:$0xff]
    %v6275 = vld [vmem:[#allocation6 + $0x47e8] sm:$0xff]
    %v6276 = vld [vmem:[#allocation6 + $0x47f0] sm:$0xff]
    %v6277 = vld [vmem:[#allocation6 + $0x47f8] sm:$0xff]
    %v6278 = vld [vmem:[#allocation7] sm:$0xff]
    %v6279 = vld [vmem:[#allocation7 + $0x8] sm:$0xf]
    %v6282 = vlaneseq
    %v6283 = vshrl.u32 %v6282, 7
    %v6284 = vsub.s32 0, %v6283
    %v6285 = vrot.slane %v6278, %v6284
    %v6286 = vlaneseq
    %v6287 = vshrl.u32 %v6286, 7
    %v6288 = vsub.s32 1, %v6287
    %v6289 = vrot.slane %v6278, %v6288
    %v6290 = vlaneseq
    %v6291 = vshrl.u32 %v6290, 7
    %v6292 = vsub.s32 2, %v6291
    %v6293 = vrot.slane %v6278, %v6292
    %v6294 = vlaneseq
    %v6295 = vshrl.u32 %v6294, 7
    %v6296 = vsub.s32 3, %v6295
    %v6297 = vrot.slane %v6278, %v6296
    %v6298 = vlaneseq
    %v6299 = vshrl.u32 %v6298, 7
    %v6300 = vsub.s32 4, %v6299
    %v6301 = vrot.slane %v6278, %v6300
    %v6302 = vlaneseq
    %v6303 = vshrl.u32 %v6302, 7
    %v6304 = vsub.s32 5, %v6303
    %v6305 = vrot.slane %v6278, %v6304
    %v6306 = vlaneseq
    %v6307 = vshrl.u32 %v6306, 7
    %v6308 = vsub.s32 6, %v6307
    %v6309 = vrot.slane %v6278, %v6308
    %v6310 = vlaneseq
    %v6311 = vshrl.u32 %v6310, 7
    %v6312 = vsub.s32 7, %v6311
    %v6313 = vrot.slane %v6278, %v6312
    %v6314 = vlaneseq
    %v6315 = vshrl.u32 %v6314, 7
    %v6316 = vsub.s32 0, %v6315
    %v6317 = vrot.slane %v6279, %v6316
    %v6318 = vlaneseq
    %v6319 = vshrl.u32 %v6318, 7
    %v6320 = vsub.s32 1, %v6319
    %v6321 = vrot.slane %v6279, %v6320
    %v6322 = vlaneseq
    %v6323 = vshrl.u32 %v6322, 7
    %v6324 = vsub.s32 2, %v6323
    %v6325 = vrot.slane %v6279, %v6324
    %v6326 = vlaneseq
    %v6327 = vshrl.u32 %v6326, 7
    %v6328 = vsub.s32 3, %v6327
    %v6329 = vrot.slane %v6279, %v6328
    %6342 = vmatprep.subr.bf16.mxu0 %v3975
    %6343 = vmatpush1.bf16.msra.mxu0 %v3974
    %6344 = vmatprep.subr.bf16.mxu0 %v3987
    %6345 = vmatpush1.bf16.msra.mxu0 %v3986
    %6346 = vmatprep.subr.bf16.mxu0 %v3999
    %6347 = vmatpush1.bf16.msra.mxu0 %v3998
    %6348 = vmatprep.subr.bf16.mxu0 %v4011
    %6349 = vmatpush1.bf16.msra.mxu0 %v4010
    %6350 = vmatprep.subr.bf16.mxu0 %v4023
    %6351 = vmatpush1.bf16.msra.mxu0 %v4022
    %6352 = vmatprep.subr.bf16.mxu0 %v4035
    %6353 = vmatpush1.bf16.msra.mxu0 %v4034
    %6354 = vmatprep.subr.bf16.mxu0 %v4047
    %6355 = vmatpush1.bf16.msra.mxu0 %v4046
    %6356 = vmatprep.subr.bf16.mxu0 %v4059
    %6357 = vmatpush1.bf16.msra.mxu0 %v4058
    %6358 = vmatprep.subr.bf16.mxu0 %v4071
    %6359 = vmatpush1.bf16.msra.mxu0 %v4070
    %6360 = vmatprep.subr.bf16.mxu0 %v4083
    %6361 = vmatpush1.bf16.msra.mxu0 %v4082
    %6362 = vmatprep.subr.bf16.mxu0 %v4095
    %6363 = vmatpush1.bf16.msra.mxu0 %v4094
    %6364 = vmatprep.subr.bf16.mxu0 %v4107
    %6365 = vmatpush1.bf16.msra.mxu0 %v4106
    %6366 = vmatprep.subr.bf16.mxu0 %v4119
    %6367 = vmatpush1.bf16.msra.mxu0 %v4118
    %6368 = vmatprep.subr.bf16.mxu0 %v4131
    %6369 = vmatpush1.bf16.msra.mxu0 %v4130
    %6370 = vmatprep.subr.bf16.mxu0 %v4143
    %6371 = vmatpush1.bf16.msra.mxu0 %v4142
    %6372 = vmatprep.subr.bf16.mxu0 %v4155
    %6373 = vmatpush1.bf16.msra.mxu0 %v4154
    %6374 = vmatprep.mubr.bf16.mxu0 %v3944
    %6375 = vmatmul.mubr.bf16.gmra.mrb[0].mxu0 %v3943
    %v6376 = vpop.f32.mrb[0].mxu0
    %v6377 = vadd.f32 %v6285, %v6376
    %v6378 = vpop.f32.mrb[0].mxu0
    %v6379 = vadd.f32 %v6289, %v6378
    %v6380 = vpop.f32.mrb[0].mxu0
    %v6381 = vpop.f32.mrb[0].mxu0
    %6382 = vdwg.mxu0
    %6383 = vmatprep.subr.bf16.mxu0 %v4167
    %6384 = vmatpush1.bf16.msra.mxu0 %v4166
    %6385 = vmatprep.subr.bf16.mxu0 %v4179
    %6386 = vmatpush1.bf16.msra.mxu0 %v4178
    %6387 = vmatprep.subr.bf16.mxu0 %v4191
    %6388 = vmatpush1.bf16.msra.mxu0 %v4190
    %6389 = vmatprep.subr.bf16.mxu0 %v4203
    %6390 = vmatpush1.bf16.msra.mxu0 %v4202
    %6391 = vmatprep.subr.bf16.mxu0 %v4215
    %6392 = vmatpush1.bf16.msra.mxu0 %v4214
    %6393 = vmatprep.subr.bf16.mxu0 %v4227
    %6394 = vmatpush1.bf16.msra.mxu0 %v4226
    %6395 = vmatprep.subr.bf16.mxu0 %v4239
    %6396 = vmatpush1.bf16.msra.mxu0 %v4238
    %6397 = vmatprep.subr.bf16.mxu0 %v4251
    %6398 = vmatpush1.bf16.msra.mxu0 %v4250
    %6399 = vmatprep.subr.bf16.mxu0 %v4263
    %6400 = vmatpush1.bf16.msra.mxu0 %v4262
    %6401 = vmatprep.subr.bf16.mxu0 %v4275
    %6402 = vmatpush1.bf16.msra.mxu0 %v4274
    %6403 = vmatprep.subr.bf16.mxu0 %v4287
    %6404 = vmatpush1.bf16.msra.mxu0 %v4286
    %6405 = vmatprep.subr.bf16.mxu0 %v4299
    %6406 = vmatpush1.bf16.msra.mxu0 %v4298
    %6407 = vmatprep.subr.bf16.mxu0 %v4311
    %6408 = vmatpush1.bf16.msra.mxu0 %v4310
    %6409 = vmatprep.subr.bf16.mxu0 %v4323
    %6410 = vmatpush1.bf16.msra.mxu0 %v4322
    %6411 = vmatprep.subr.bf16.mxu0 %v4335
    %6412 = vmatpush1.bf16.msra.mxu0 %v4334
    %6413 = vmatprep.subr.bf16.mxu0 %v4347
    %6414 = vmatpush1.bf16.msra.mxu0 %v4346
    %6415 = vmatprep.mubr.bf16.mxu0 %v3946
    %6416 = vmatmul.mubr.bf16.gmra.mrb[0].mxu0 %v3945
    %v6417 = vpop.f32.mrb[0].mxu0
    %v6418 = vadd.f32 %v6377, %v6417
    %v6419 = vpop.f32.mrb[0].mxu0
    %v6420 = vadd.f32 %v6379, %v6419
    %v6421 = vpop.f32.mrb[0].mxu0
    %v6422 = vpop.f32.mrb[0].mxu0
    %6423 = vdwg.mxu0
    %6424 = vmatprep.subr.bf16.mxu0 %v4359
    %6425 = vmatpush1.bf16.msra.mxu0 %v4358
    %6426 = vmatprep.subr.bf16.mxu0 %v4371
    %6427 = vmatpush1.bf16.msra.mxu0 %v4370
    %6428 = vmatprep.subr.bf16.mxu0 %v4383
    %6429 = vmatpush1.bf16.msra.mxu0 %v4382
    %6430 = vmatprep.subr.bf16.mxu0 %v4395
    %6431 = vmatpush1.bf16.msra.mxu0 %v4394
    %6432 = vmatprep.subr.bf16.mxu0 %v4407
    %6433 = vmatpush1.bf16.msra.mxu0 %v4406
    %6434 = vmatprep.subr.bf16.mxu0 %v4419
    %6435 = vmatpush1.bf16.msra.mxu0 %v4418
    %6436 = vmatprep.subr.bf16.mxu0 %v4431
    %6437 = vmatpush1.bf16.msra.mxu0 %v4430
    %6438 = vmatprep.subr.bf16.mxu0 %v4443
    %6439 = vmatpush1.bf16.msra.mxu0 %v4442
    %6440 = vmatprep.subr.bf16.mxu0 %v4455
    %6441 = vmatpush1.bf16.msra.mxu0 %v4454
    %6442 = vmatprep.subr.bf16.mxu0 %v4467
    %6443 = vmatpush1.bf16.msra.mxu0 %v4466
    %6444 = vmatprep.subr.bf16.mxu0 %v4479
    %6445 = vmatpush1.bf16.msra.mxu0 %v4478
    %6446 = vmatprep.subr.bf16.mxu0 %v4491
    %6447 = vmatpush1.bf16.msra.mxu0 %v4490
    %6448 = vmatprep.subr.bf16.mxu0 %v4503
    %6449 = vmatpush1.bf16.msra.mxu0 %v4502
    %6450 = vmatprep.subr.bf16.mxu0 %v4515
    %6451 = vmatpush1.bf16.msra.mxu0 %v4514
    %6452 = vmatprep.subr.bf16.mxu0 %v4527
    %6453 = vmatpush1.bf16.msra.mxu0 %v4526
    %6454 = vmatprep.subr.bf16.mxu0 %v4539
    %6455 = vmatpush1.bf16.msra.mxu0 %v4538
    %6456 = vmatprep.mubr.bf16.mxu0 %v3948
    %6457 = vmatmul.mubr.bf16.gmra.mrb[0].mxu0 %v3947
    %v6458 = vpop.f32.mrb[0].mxu0
    %v6459 = vadd.f32 %v6418, %v6458
    %v6460 = vpop.f32.mrb[0].mxu0
    %v6461 = vadd.f32 %v6420, %v6460
    %v6462 = vpop.f32.mrb[0].mxu0
    %v6463 = vpop.f32.mrb[0].mxu0
    %6464 = vdwg.mxu0
    %6465 = vmatprep.subr.bf16.mxu0 %v4551
    %6466 = vmatpush1.bf16.msra.mxu0 %v4550
    %6467 = vmatprep.subr.bf16.mxu0 %v4563
    %6468 = vmatpush1.bf16.msra.mxu0 %v4562
    %6469 = vmatprep.subr.bf16.mxu0 %v4575
    %6470 = vmatpush1.bf16.msra.mxu0 %v4574
    %6471 = vmatprep.subr.bf16.mxu0 %v4587
    %6472 = vmatpush1.bf16.msra.mxu0 %v4586
    %6473 = vmatprep.subr.bf16.mxu0 %v4599
    %6474 = vmatpush1.bf16.msra.mxu0 %v4598
    %6475 = vmatprep.subr.bf16.mxu0 %v4611
    %6476 = vmatpush1.bf16.msra.mxu0 %v4610
    %6477 = vmatprep.subr.bf16.mxu0 %v4623
    %6478 = vmatpush1.bf16.msra.mxu0 %v4622
    %6479 = vmatprep.subr.bf16.mxu0 %v4635
    %6480 = vmatpush1.bf16.msra.mxu0 %v4634
    %6481 = vmatprep.subr.bf16.mxu0 %v4647
    %6482 = vmatpush1.bf16.msra.mxu0 %v4646
    %6483 = vmatprep.subr.bf16.mxu0 %v4659
    %6484 = vmatpush1.bf16.msra.mxu0 %v4658
    %6485 = vmatprep.subr.bf16.mxu0 %v4671
    %6486 = vmatpush1.bf16.msra.mxu0 %v4670
    %6487 = vmatprep.subr.bf16.mxu0 %v4683
    %6488 = vmatpush1.bf16.msra.mxu0 %v4682
    %6489 = vmatprep.subr.bf16.mxu0 %v4695
    %6490 = vmatpush1.bf16.msra.mxu0 %v4694
    %6491 = vmatprep.subr.bf16.mxu0 %v4707
    %6492 = vmatpush1.bf16.msra.mxu0 %v4706
    %6493 = vmatprep.subr.bf16.mxu0 %v4719
    %6494 = vmatpush1.bf16.msra.mxu0 %v4718
    %6495 = vmatprep.subr.bf16.mxu0 %v4731
    %6496 = vmatpush1.bf16.msra.mxu0 %v4730
    %6497 = vmatprep.mubr.bf16.mxu0 %v3950
    %6498 = vmatmul.mubr.bf16.gmra.mrb[0].mxu0 %v3949
    %v6499 = vpop.f32.mrb[0].mxu0
    %v6500 = vadd.f32 %v6459, %v6499
    %v6501 = vpop.f32.mrb[0].mxu0
    %v6502 = vadd.f32 %v6461, %v6501
    %v6503 = vpop.f32.mrb[0].mxu0
    %v6504 = vpop.f32.mrb[0].mxu0
    %6505 = vdwg.mxu0
    %6506 = vmatprep.subr.bf16.mxu0 %v4743
    %6507 = vmatpush1.bf16.msra.mxu0 %v4742
    %6508 = vmatprep.subr.bf16.mxu0 %v4755
    %6509 = vmatpush1.bf16.msra.mxu0 %v4754
    %6510 = vmatprep.subr.bf16.mxu0 %v4767
    %6511 = vmatpush1.bf16.msra.mxu0 %v4766
    %6512 = vmatprep.subr.bf16.mxu0 %v4779
    %6513 = vmatpush1.bf16.msra.mxu0 %v4778
    %6514 = vmatprep.subr.bf16.mxu0 %v4791
    %6515 = vmatpush1.bf16.msra.mxu0 %v4790
    %6516 = vmatprep.subr.bf16.mxu0 %v4803
    %6517 = vmatpush1.bf16.msra.mxu0 %v4802
    %6518 = vmatprep.subr.bf16.mxu0 %v4815
    %6519 = vmatpush1.bf16.msra.mxu0 %v4814
    %6520 = vmatprep.subr.bf16.mxu0 %v4827
    %6521 = vmatpush1.bf16.msra.mxu0 %v4826
    %6522 = vmatprep.subr.bf16.mxu0 %v4839
    %6523 = vmatpush1.bf16.msra.mxu0 %v4838
    %6524 = vmatprep.subr.bf16.mxu0 %v4851
    %6525 = vmatpush1.bf16.msra.mxu0 %v4850
    %6526 = vmatprep.subr.bf16.mxu0 %v4863
    %6527 = vmatpush1.bf16.msra.mxu0 %v4862
    %6528 = vmatprep.subr.bf16.mxu0 %v4875
    %6529 = vmatpush1.bf16.msra.mxu0 %v4874
    %6530 = vmatprep.subr.bf16.mxu0 %v4887
    %6531 = vmatpush1.bf16.msra.mxu0 %v4886
    %6532 = vmatprep.subr.bf16.mxu0 %v4899
    %6533 = vmatpush1.bf16.msra.mxu0 %v4898
    %6534 = vmatprep.subr.bf16.mxu0 %v4911
    %6535 = vmatpush1.bf16.msra.mxu0 %v4910
    %6536 = vmatprep.subr.bf16.mxu0 %v4923
    %6537 = vmatpush1.bf16.msra.mxu0 %v4922
    %6538 = vmatprep.mubr.bf16.mxu0 %v3952
    %6539 = vmatmul.mubr.bf16.gmra.mrb[0].mxu0 %v3951
    %v6540 = vpop.f32.mrb[0].mxu0
    %v6541 = vadd.f32 %v6500, %v6540
    %v6542 = vpop.f32.mrb[0].mxu0
    %v6543 = vadd.f32 %v6502, %v6542
    %v6544 = vpop.f32.mrb[0].mxu0
    %v6545 = vpop.f32.mrb[0].mxu0
    %6546 = vdwg.mxu0
    %6547 = vmatprep.subr.bf16.mxu0 %v4935
    %6548 = vmatpush1.bf16.msra.mxu0 %v4934
    %6549 = vmatprep.subr.bf16.mxu0 %v4947
    %6550 = vmatpush1.bf16.msra.mxu0 %v4946
    %6551 = vmatprep.subr.bf16.mxu0 %v4959
    %6552 = vmatpush1.bf16.msra.mxu0 %v4958
    %6553 = vmatprep.subr.bf16.mxu0 %v4971
    %6554 = vmatpush1.bf16.msra.mxu0 %v4970
    %6555 = vmatprep.subr.bf16.mxu0 %v4983
    %6556 = vmatpush1.bf16.msra.mxu0 %v4982
    %6557 = vmatprep.subr.bf16.mxu0 %v4995
    %6558 = vmatpush1.bf16.msra.mxu0 %v4994
    %6559 = vmatprep.subr.bf16.mxu0 %v5007
    %6560 = vmatpush1.bf16.msra.mxu0 %v5006
    %6561 = vmatprep.subr.bf16.mxu0 %v5019
    %6562 = vmatpush1.bf16.msra.mxu0 %v5018
    %6563 = vmatprep.subr.bf16.mxu0 %v5031
    %6564 = vmatpush1.bf16.msra.mxu0 %v5030
    %6565 = vmatprep.subr.bf16.mxu0 %v5043
    %6566 = vmatpush1.bf16.msra.mxu0 %v5042
    %6567 = vmatprep.subr.bf16.mxu0 %v5055
    %6568 = vmatpush1.bf16.msra.mxu0 %v5054
    %6569 = vmatprep.subr.bf16.mxu0 %v5067
    %6570 = vmatpush1.bf16.msra.mxu0 %v5066
    %6571 = vmatprep.subr.bf16.mxu0 %v5079
    %6572 = vmatpush1.bf16.msra.mxu0 %v5078
    %6573 = vmatprep.subr.bf16.mxu0 %v5091
    %6574 = vmatpush1.bf16.msra.mxu0 %v5090
    %6575 = vmatprep.subr.bf16.mxu0 %v5103
    %6576 = vmatpush1.bf16.msra.mxu0 %v5102
    %6577 = vmatprep.subr.bf16.mxu0 %v5115
    %6578 = vmatpush1.bf16.msra.mxu0 %v5114
    %6579 = vmatprep.mubr.bf16.mxu0 %v3954
    %6580 = vmatmul.mubr.bf16.gmra.mrb[0].mxu0 %v3953
    %v6581 = vpop.f32.mrb[0].mxu0
    %v6582 = vadd.f32 %v6541, %v6581
    %v6583 = vpop.f32.mrb[0].mxu0
    %v6584 = vadd.f32 %v6543, %v6583
    %v6585 = vpop.f32.mrb[0].mxu0
    %v6586 = vpop.f32.mrb[0].mxu0
    %6587 = vdwg.mxu0
    %6588 = vmatprep.subr.bf16.mxu0 %v5127
    %6589 = vmatpush1.bf16.msra.mxu0 %v5126
    %6590 = vmatprep.subr.bf16.mxu0 %v5139
    %6591 = vmatpush1.bf16.msra.mxu0 %v5138
    %6592 = vmatprep.subr.bf16.mxu0 %v5151
    %6593 = vmatpush1.bf16.msra.mxu0 %v5150
    %6594 = vmatprep.subr.bf16.mxu0 %v5163
    %6595 = vmatpush1.bf16.msra.mxu0 %v5162
    %6596 = vmatprep.subr.bf16.mxu0 %v5175
    %6597 = vmatpush1.bf16.msra.mxu0 %v5174
    %6598 = vmatprep.subr.bf16.mxu0 %v5187
    %6599 = vmatpush1.bf16.msra.mxu0 %v5186
    %6600 = vmatprep.subr.bf16.mxu0 %v5199
    %6601 = vmatpush1.bf16.msra.mxu0 %v5198
    %6602 = vmatprep.subr.bf16.mxu0 %v5211
    %6603 = vmatpush1.bf16.msra.mxu0 %v5210
    %6604 = vmatprep.subr.bf16.mxu0 %v5223
    %6605 = vmatpush1.bf16.msra.mxu0 %v5222
    %6606 = vmatprep.subr.bf16.mxu0 %v5235
    %6607 = vmatpush1.bf16.msra.mxu0 %v5234
    %6608 = vmatprep.subr.bf16.mxu0 %v5247
    %6609 = vmatpush1.bf16.msra.mxu0 %v5246
    %6610 = vmatprep.subr.bf16.mxu0 %v5259
    %6611 = vmatpush1.bf16.msra.mxu0 %v5258
    %6612 = vmatprep.subr.bf16.mxu0 %v5271
    %6613 = vmatpush1.bf16.msra.mxu0 %v5270
    %6614 = vmatprep.subr.bf16.mxu0 %v5283
    %6615 = vmatpush1.bf16.msra.mxu0 %v5282
    %6616 = vmatprep.subr.bf16.mxu0 %v5295
    %6617 = vmatpush1.bf16.msra.mxu0 %v5294
    %6618 = vmatprep.subr.bf16.mxu0 %v5307
    %6619 = vmatpush1.bf16.msra.mxu0 %v5306
    %6620 = vmatprep.mubr.bf16.mxu0 %v3956
    %6621 = vmatmul.mubr.bf16.gmra.mrb[0].mxu0 %v3955
    %v6622 = vpop.f32.mrb[0].mxu0
    %v6623 = vadd.f32 %v6582, %v6622
    %v6624 = vpop.f32.mrb[0].mxu0
    %v6625 = vadd.f32 %v6584, %v6624
    %v6626 = vpop.f32.mrb[0].mxu0
    %v6627 = vpop.f32.mrb[0].mxu0
    %6628 = vdwg.mxu0
    %6629 = vmatprep.subr.bf16.mxu0 %v5319
    %6630 = vmatpush1.bf16.msra.mxu0 %v5318
    %6631 = vmatprep.subr.bf16.mxu0 %v5331
    %6632 = vmatpush1.bf16.msra.mxu0 %v5330
    %6633 = vmatprep.subr.bf16.mxu0 %v5343
    %6634 = vmatpush1.bf16.msra.mxu0 %v5342
    %6635 = vmatprep.subr.bf16.mxu0 %v5355
    %6636 = vmatpush1.bf16.msra.mxu0 %v5354
    %6637 = vmatprep.subr.bf16.mxu0 %v5367
    %6638 = vmatpush1.bf16.msra.mxu0 %v5366
    %6639 = vmatprep.subr.bf16.mxu0 %v5379
    %6640 = vmatpush1.bf16.msra.mxu0 %v5378
    %6641 = vmatprep.subr.bf16.mxu0 %v5391
    %6642 = vmatpush1.bf16.msra.mxu0 %v5390
    %6643 = vmatprep.subr.bf16.mxu0 %v5403
    %6644 = vmatpush1.bf16.msra.mxu0 %v5402
    %6645 = vmatprep.subr.bf16.mxu0 %v5415
    %6646 = vmatpush1.bf16.msra.mxu0 %v5414
    %6647 = vmatprep.subr.bf16.mxu0 %v5427
    %6648 = vmatpush1.bf16.msra.mxu0 %v5426
    %6649 = vmatprep.subr.bf16.mxu0 %v5439
    %6650 = vmatpush1.bf16.msra.mxu0 %v5438
    %6651 = vmatprep.subr.bf16.mxu0 %v5451
    %6652 = vmatpush1.bf16.msra.mxu0 %v5450
    %6653 = vmatprep.subr.bf16.mxu0 %v5463
    %6654 = vmatpush1.bf16.msra.mxu0 %v5462
    %6655 = vmatprep.subr.bf16.mxu0 %v5475
    %6656 = vmatpush1.bf16.msra.mxu0 %v5474
    %6657 = vmatprep.subr.bf16.mxu0 %v5487
    %6658 = vmatpush1.bf16.msra.mxu0 %v5486
    %6659 = vmatprep.subr.bf16.mxu0 %v5499
    %6660 = vmatpush1.bf16.msra.mxu0 %v5498
    %6661 = vmatprep.mubr.bf16.mxu0 %v3958
    %6662 = vmatmul.mubr.bf16.gmra.mrb[0].mxu0 %v3957
    %v6663 = vpop.f32.mrb[0].mxu0
    %v6664 = vadd.f32 %v6623, %v6663
    %v6665 = vpop.f32.mrb[0].mxu0
    %v6666 = vadd.f32 %v6625, %v6665
    %v6667 = vpop.f32.mrb[0].mxu0
    %v6668 = vpop.f32.mrb[0].mxu0
    %6669 = vdwg.mxu0
    %6670 = vmatprep.subr.bf16.mxu0 %v5511
    %6671 = vmatpush1.bf16.msra.mxu0 %v5510
    %6672 = vmatprep.subr.bf16.mxu0 %v5523
    %6673 = vmatpush1.bf16.msra.mxu0 %v5522
    %6674 = vmatprep.subr.bf16.mxu0 %v5535
    %6675 = vmatpush1.bf16.msra.mxu0 %v5534
    %6676 = vmatprep.subr.bf16.mxu0 %v5547
    %6677 = vmatpush1.bf16.msra.mxu0 %v5546
    %6678 = vmatprep.subr.bf16.mxu0 %v5559
    %6679 = vmatpush1.bf16.msra.mxu0 %v5558
    %6680 = vmatprep.subr.bf16.mxu0 %v5571
    %6681 = vmatpush1.bf16.msra.mxu0 %v5570
    %6682 = vmatprep.subr.bf16.mxu0 %v5583
    %6683 = vmatpush1.bf16.msra.mxu0 %v5582
    %6684 = vmatprep.subr.bf16.mxu0 %v5595
    %6685 = vmatpush1.bf16.msra.mxu0 %v5594
    %6686 = vmatprep.subr.bf16.mxu0 %v5607
    %6687 = vmatpush1.bf16.msra.mxu0 %v5606
    %6688 = vmatprep.subr.bf16.mxu0 %v5619
    %6689 = vmatpush1.bf16.msra.mxu0 %v5618
    %6690 = vmatprep.subr.bf16.mxu0 %v5631
    %6691 = vmatpush1.bf16.msra.mxu0 %v5630
    %6692 = vmatprep.subr.bf16.mxu0 %v5643
    %6693 = vmatpush1.bf16.msra.mxu0 %v5642
    %6694 = vmatprep.subr.bf16.mxu0 %v5655
    %6695 = vmatpush1.bf16.msra.mxu0 %v5654
    %6696 = vmatprep.subr.bf16.mxu0 %v5667
    %6697 = vmatpush1.bf16.msra.mxu0 %v5666
    %6698 = vmatprep.subr.bf16.mxu0 %v5679
    %6699 = vmatpush1.bf16.msra.mxu0 %v5678
    %6700 = vmatprep.subr.bf16.mxu0 %v5691
    %6701 = vmatpush1.bf16.msra.mxu0 %v5690
    %6702 = vmatprep.mubr.bf16.mxu0 %v3960
    %6703 = vmatmul.mubr.bf16.gmra.mrb[0].mxu0 %v3959
    %v6704 = vpop.f32.mrb[0].mxu0
    %v6705 = vadd.f32 %v6664, %v6704
    %v6706 = vpop.f32.mrb[0].mxu0
    %v6707 = vadd.f32 %v6666, %v6706
    %v6708 = vpop.f32.mrb[0].mxu0
    %v6709 = vpop.f32.mrb[0].mxu0
    %6710 = vdwg.mxu0
    %6711 = vmatprep.subr.bf16.mxu0 %v5703
    %6712 = vmatpush1.bf16.msra.mxu0 %v5702
    %6713 = vmatprep.subr.bf16.mxu0 %v5715
    %6714 = vmatpush1.bf16.msra.mxu0 %v5714
    %6715 = vmatprep.subr.bf16.mxu0 %v5727
    %6716 = vmatpush1.bf16.msra.mxu0 %v5726
    %6717 = vmatprep.subr.bf16.mxu0 %v5739
    %6718 = vmatpush1.bf16.msra.mxu0 %v5738
    %6719 = vmatprep.subr.bf16.mxu0 %v5751
    %6720 = vmatpush1.bf16.msra.mxu0 %v5750
    %6721 = vmatprep.subr.bf16.mxu0 %v5763
    %6722 = vmatpush1.bf16.msra.mxu0 %v5762
    %6723 = vmatprep.subr.bf16.mxu0 %v5775
    %6724 = vmatpush1.bf16.msra.mxu0 %v5774
    %6725 = vmatprep.subr.bf16.mxu0 %v5787
    %6726 = vmatpush1.bf16.msra.mxu0 %v5786
    %6727 = vmatprep.subr.bf16.mxu0 %v5799
    %6728 = vmatpush1.bf16.msra.mxu0 %v5798
    %6729 = vmatprep.subr.bf16.mxu0 %v5811
    %6730 = vmatpush1.bf16.msra.mxu0 %v5810
    %6731 = vmatprep.subr.bf16.mxu0 %v5823
    %6732 = vmatpush1.bf16.msra.mxu0 %v5822
    %6733 = vmatprep.subr.bf16.mxu0 %v5835
    %6734 = vmatpush1.bf16.msra.mxu0 %v5834
    %6735 = vmatprep.subr.bf16.mxu0 %v5847
    %6736 = vmatpush1.bf16.msra.mxu0 %v5846
    %6737 = vmatprep.subr.bf16.mxu0 %v5859
    %6738 = vmatpush1.bf16.msra.mxu0 %v5858
    %6739 = vmatprep.subr.bf16.mxu0 %v5871
    %6740 = vmatpush1.bf16.msra.mxu0 %v5870
    %6741 = vmatprep.subr.bf16.mxu0 %v5883
    %6742 = vmatpush1.bf16.msra.mxu0 %v5882
    %6743 = vmatprep.mubr.bf16.mxu0 %v3962
    %6744 = vmatmul.mubr.bf16.gmra.mrb[0].mxu0 %v3961
    %v6745 = vpop.f32.mrb[0].mxu0
    %v6746 = vadd.f32 %v6705, %v6745
    %v6747 = vpop.f32.mrb[0].mxu0
    %v6748 = vadd.f32 %v6707, %v6747
    %v6749 = vpop.f32.mrb[0].mxu0
    %v6750 = vpop.f32.mrb[0].mxu0
    %6751 = vdwg.mxu0
    %6752 = vmatprep.subr.bf16.mxu0 %v5895
    %6753 = vmatpush1.bf16.msra.mxu0 %v5894
    %6754 = vmatprep.subr.bf16.mxu0 %v5907
    %6755 = vmatpush1.bf16.msra.mxu0 %v5906
    %6756 = vmatprep.subr.bf16.mxu0 %v5919
    %6757 = vmatpush1.bf16.msra.mxu0 %v5918
    %6758 = vmatprep.subr.bf16.mxu0 %v5931
    %6759 = vmatpush1.bf16.msra.mxu0 %v5930
    %6760 = vmatprep.subr.bf16.mxu0 %v5943
    %6761 = vmatpush1.bf16.msra.mxu0 %v5942
    %6762 = vmatprep.subr.bf16.mxu0 %v5955
    %6763 = vmatpush1.bf16.msra.mxu0 %v5954
    %6764 = vmatprep.subr.bf16.mxu0 %v5967
    %6765 = vmatpush1.bf16.msra.mxu0 %v5966
    %6766 = vmatprep.subr.bf16.mxu0 %v5979
    %6767 = vmatpush1.bf16.msra.mxu0 %v5978
    %6768 = vmatprep.subr.bf16.mxu0 %v5991
    %6769 = vmatpush1.bf16.msra.mxu0 %v5990
    %6770 = vmatprep.subr.bf16.mxu0 %v6003
    %6771 = vmatpush1.bf16.msra.mxu0 %v6002
    %6772 = vmatprep.subr.bf16.mxu0 %v6015
    %6773 = vmatpush1.bf16.msra.mxu0 %v6014
    %6774 = vmatprep.subr.bf16.mxu0 %v6027
    %6775 = vmatpush1.bf16.msra.mxu0 %v6026
    %6776 = vmatprep.subr.bf16.mxu0 %v6039
    %6777 = vmatpush1.bf16.msra.mxu0 %v6038
    %6778 = vmatprep.subr.bf16.mxu0 %v6051
    %6779 = vmatpush1.bf16.msra.mxu0 %v6050
    %6780 = vmatprep.subr.bf16.mxu0 %v6063
    %6781 = vmatpush1.bf16.msra.mxu0 %v6062
    %6782 = vmatprep.subr.bf16.mxu0 %v6075
    %6783 = vmatpush1.bf16.msra.mxu0 %v6074
    %6784 = vmatprep.mubr.bf16.mxu0 %v3964
    %6785 = vmatmul.mubr.bf16.gmra.mrb[0].mxu0 %v3963
    %v6786 = vpop.f32.mrb[0].mxu0
    %v6787 = vadd.f32 %v6746, %v6786
    %v6788 = vpop.f32.mrb[0].mxu0
    %v6789 = vadd.f32 %v6748, %v6788
    %v6790 = vpop.f32.mrb[0].mxu0
    %v6791 = vpop.f32.mrb[0].mxu0
    %6792 = vdwg.mxu0
    %6793 = vmatprep.subr.bf16.mxu0 %v6087
    %6794 = vmatpush1.bf16.msra.mxu0 %v6086
    %6795 = vmatprep.subr.bf16.mxu0 %v6099
    %6796 = vmatpush1.bf16.msra.mxu0 %v6098
    %6797 = vmatprep.subr.bf16.mxu0 %v6111
    %6798 = vmatpush1.bf16.msra.mxu0 %v6110
    %6799 = vmatprep.subr.bf16.mxu0 %v6123
    %6800 = vmatpush1.bf16.msra.mxu0 %v6122
    %6801 = vmatprep.subr.bf16.mxu0 %v6135
    %6802 = vmatpush1.bf16.msra.mxu0 %v6134
    %6803 = vmatprep.subr.bf16.mxu0 %v6147
    %6804 = vmatpush1.bf16.msra.mxu0 %v6146
    %6805 = vmatprep.subr.bf16.mxu0 %v6159
    %6806 = vmatpush1.bf16.msra.mxu0 %v6158
    %6807 = vmatprep.subr.bf16.mxu0 %v6171
    %6808 = vmatpush1.bf16.msra.mxu0 %v6170
    %6809 = vmatprep.subr.bf16.mxu0 %v6183
    %6810 = vmatpush1.bf16.msra.mxu0 %v6182
    %6811 = vmatprep.subr.bf16.mxu0 %v6195
    %6812 = vmatpush1.bf16.msra.mxu0 %v6194
    %6813 = vmatprep.subr.bf16.mxu0 %v6207
    %6814 = vmatpush1.bf16.msra.mxu0 %v6206
    %6815 = vmatprep.subr.bf16.mxu0 %v6219
    %6816 = vmatpush1.bf16.msra.mxu0 %v6218
    %6817 = vmatprep.subr.bf16.mxu0 %v6231
    %6818 = vmatpush1.bf16.msra.mxu0 %v6230
    %6819 = vmatprep.subr.bf16.mxu0 %v6243
    %6820 = vmatpush1.bf16.msra.mxu0 %v6242
    %6821 = vmatprep.subr.bf16.mxu0 %v6255
    %6822 = vmatpush1.bf16.msra.mxu0 %v6254
    %6823 = vmatprep.subr.bf16.mxu0 %v6267
    %6824 = vmatpush1.bf16.msra.mxu0 %v6266
    %6825 = vmatprep.mubr.bf16.mxu0 %v3966
    %6826 = vmatmul.mubr.bf16.gmra.mrb[0].mxu0 %v3965
    %v6827 = vpop.f32.mrb[0].mxu0
    %v6828 = vadd.f32 %v6787, %v6827
    %v6829 = vpop.f32.mrb[0].mxu0
    %v6830 = vadd.f32 %v6789, %v6829
    %v6831 = vpop.f32.mrb[0].mxu0
    %v6832 = vpop.f32.mrb[0].mxu0
    %6833 = vdwg.mxu0
    %6834 = vmatprep.subr.bf16.mxu0 %v3977
    %6835 = vmatpush1.bf16.msra.mxu0 %v3976
    %6836 = vmatprep.subr.bf16.mxu0 %v3989
    %6837 = vmatpush1.bf16.msra.mxu0 %v3988
    %6838 = vmatprep.subr.bf16.mxu0 %v4001
    %6839 = vmatpush1.bf16.msra.mxu0 %v4000
    %6840 = vmatprep.subr.bf16.mxu0 %v4013
    %6841 = vmatpush1.bf16.msra.mxu0 %v4012
    %6842 = vmatprep.subr.bf16.mxu0 %v4025
    %6843 = vmatpush1.bf16.msra.mxu0 %v4024
    %6844 = vmatprep.subr.bf16.mxu0 %v4037
    %6845 = vmatpush1.bf16.msra.mxu0 %v4036
    %6846 = vmatprep.subr.bf16.mxu0 %v4049
    %6847 = vmatpush1.bf16.msra.mxu0 %v4048
    %6848 = vmatprep.subr.bf16.mxu0 %v4061
    %6849 = vmatpush1.bf16.msra.mxu0 %v4060
    %6850 = vmatprep.subr.bf16.mxu0 %v4073
    %6851 = vmatpush1.bf16.msra.mxu0 %v4072
    %6852 = vmatprep.subr.bf16.mxu0 %v4085
    %6853 = vmatpush1.bf16.msra.mxu0 %v4084
    %6854 = vmatprep.subr.bf16.mxu0 %v4097
    %6855 = vmatpush1.bf16.msra.mxu0 %v4096
    %6856 = vmatprep.subr.bf16.mxu0 %v4109
    %6857 = vmatpush1.bf16.msra.mxu0 %v4108
    %6858 = vmatprep.subr.bf16.mxu0 %v4121
    %6859 = vmatpush1.bf16.msra.mxu0 %v4120
    %6860 = vmatprep.subr.bf16.mxu0 %v4133
    %6861 = vmatpush1.bf16.msra.mxu0 %v4132
    %6862 = vmatprep.subr.bf16.mxu0 %v4145
    %6863 = vmatpush1.bf16.msra.mxu0 %v4144
    %6864 = vmatprep.subr.bf16.mxu0 %v4157
    %6865 = vmatpush1.bf16.msra.mxu0 %v4156
    %6866 = vmatprep.mubr.bf16.mxu0 %v3944
    %6867 = vmatmul.mubr.bf16.gmra.mrb[0].mxu0 %v3943
    %v6868 = vpop.f32.mrb[0].mxu0
    %v6869 = vadd.f32 %v6293, %v6868
    %v6870 = vpop.f32.mrb[0].mxu0
    %v6871 = vadd.f32 %v6297, %v6870
    %v6872 = vpop.f32.mrb[0].mxu0
    %v6873 = vpop.f32.mrb[0].mxu0
    %6874 = vdwg.mxu0
    %6875 = vmatprep.subr.bf16.mxu0 %v4169
    %6876 = vmatpush1.bf16.msra.mxu0 %v4168
    %6877 = vmatprep.subr.bf16.mxu0 %v4181
    %6878 = vmatpush1.bf16.msra.mxu0 %v4180
    %6879 = vmatprep.subr.bf16.mxu0 %v4193
    %6880 = vmatpush1.bf16.msra.mxu0 %v4192
    %6881 = vmatprep.subr.bf16.mxu0 %v4205
    %6882 = vmatpush1.bf16.msra.mxu0 %v4204
    %6883 = vmatprep.subr.bf16.mxu0 %v4217
    %6884 = vmatpush1.bf16.msra.mxu0 %v4216
    %6885 = vmatprep.subr.bf16.mxu0 %v4229
    %6886 = vmatpush1.bf16.msra.mxu0 %v4228
    %6887 = vmatprep.subr.bf16.mxu0 %v4241
    %6888 = vmatpush1.bf16.msra.mxu0 %v4240
    %6889 = vmatprep.subr.bf16.mxu0 %v4253
    %6890 = vmatpush1.bf16.msra.mxu0 %v4252
    %6891 = vmatprep.subr.bf16.mxu0 %v4265
    %6892 = vmatpush1.bf16.msra.mxu0 %v4264
    %6893 = vmatprep.subr.bf16.mxu0 %v4277
    %6894 = vmatpush1.bf16.msra.mxu0 %v4276
    %6895 = vmatprep.subr.bf16.mxu0 %v4289
    %6896 = vmatpush1.bf16.msra.mxu0 %v4288
    %6897 = vmatprep.subr.bf16.mxu0 %v4301
    %6898 = vmatpush1.bf16.msra.mxu0 %v4300
    %6899 = vmatprep.subr.bf16.mxu0 %v4313
    %6900 = vmatpush1.bf16.msra.mxu0 %v4312
    %6901 = vmatprep.subr.bf16.mxu0 %v4325
    %6902 = vmatpush1.bf16.msra.mxu0 %v4324
    %6903 = vmatprep.subr.bf16.mxu0 %v4337
    %6904 = vmatpush1.bf16.msra.mxu0 %v4336
    %6905 = vmatprep.subr.bf16.mxu0 %v4349
    %6906 = vmatpush1.bf16.msra.mxu0 %v4348
    %6907 = vmatprep.mubr.bf16.mxu0 %v3946
    %6908 = vmatmul.mubr.bf16.gmra.mrb[0].mxu0 %v3945
    %v6909 = vpop.f32.mrb[0].mxu0
    %v6910 = vadd.f32 %v6869, %v6909
    %v6911 = vpop.f32.mrb[0].mxu0
    %v6912 = vadd.f32 %v6871, %v6911
    %v6913 = vpop.f32.mrb[0].mxu0
    %v6914 = vpop.f32.mrb[0].mxu0
    %6915 = vdwg.mxu0
    %6916 = vmatprep.subr.bf16.mxu0 %v4361
    %6917 = vmatpush1.bf16.msra.mxu0 %v4360
    %6918 = vmatprep.subr.bf16.mxu0 %v4373
    %6919 = vmatpush1.bf16.msra.mxu0 %v4372
    %6920 = vmatprep.subr.bf16.mxu0 %v4385
    %6921 = vmatpush1.bf16.msra.mxu0 %v4384
    %6922 = vmatprep.subr.bf16.mxu0 %v4397
    %6923 = vmatpush1.bf16.msra.mxu0 %v4396
    %6924 = vmatprep.subr.bf16.mxu0 %v4409
    %6925 = vmatpush1.bf16.msra.mxu0 %v4408
    %6926 = vmatprep.subr.bf16.mxu0 %v4421
    %6927 = vmatpush1.bf16.msra.mxu0 %v4420
    %6928 = vmatprep.subr.bf16.mxu0 %v4433
    %6929 = vmatpush1.bf16.msra.mxu0 %v4432
    %6930 = vmatprep.subr.bf16.mxu0 %v4445
    %6931 = vmatpush1.bf16.msra.mxu0 %v4444
    %6932 = vmatprep.subr.bf16.mxu0 %v4457
    %6933 = vmatpush1.bf16.msra.mxu0 %v4456
    %6934 = vmatprep.subr.bf16.mxu0 %v4469
    %6935 = vmatpush1.bf16.msra.mxu0 %v4468
    %6936 = vmatprep.subr.bf16.mxu0 %v4481
    %6937 = vmatpush1.bf16.msra.mxu0 %v4480
    %6938 = vmatprep.subr.bf16.mxu0 %v4493
    %6939 = vmatpush1.bf16.msra.mxu0 %v4492
    %6940 = vmatprep.subr.bf16.mxu0 %v4505
    %6941 = vmatpush1.bf16.msra.mxu0 %v4504
    %6942 = vmatprep.subr.bf16.mxu0 %v4517
    %6943 = vmatpush1.bf16.msra.mxu0 %v4516
    %6944 = vmatprep.subr.bf16.mxu0 %v4529
    %6945 = vmatpush1.bf16.msra.mxu0 %v4528
    %6946 = vmatprep.subr.bf16.mxu0 %v4541
    %6947 = vmatpush1.bf16.msra.mxu0 %v4540
    %6948 = vmatprep.mubr.bf16.mxu0 %v3948
    %6949 = vmatmul.mubr.bf16.gmra.mrb[0].mxu0 %v3947
    %v6950 = vpop.f32.mrb[0].mxu0
    %v6951 = vadd.f32 %v6910, %v6950
    %v6952 = vpop.f32.mrb[0].mxu0
    %v6953 = vadd.f32 %v6912, %v6952
    %v6954 = vpop.f32.mrb[0].mxu0
    %v6955 = vpop.f32.mrb[0].mxu0
    %6956 = vdwg.mxu0
    %6957 = vmatprep.subr.bf16.mxu0 %v4553
    %6958 = vmatpush1.bf16.msra.mxu0 %v4552
    %6959 = vmatprep.subr.bf16.mxu0 %v4565
    %6960 = vmatpush1.bf16.msra.mxu0 %v4564
    %6961 = vmatprep.subr.bf16.mxu0 %v4577
    %6962 = vmatpush1.bf16.msra.mxu0 %v4576
    %6963 = vmatprep.subr.bf16.mxu0 %v4589
    %6964 = vmatpush1.bf16.msra.mxu0 %v4588
    %6965 = vmatprep.subr.bf16.mxu0 %v4601
    %6966 = vmatpush1.bf16.msra.mxu0 %v4600
    %6967 = vmatprep.subr.bf16.mxu0 %v4613
    %6968 = vmatpush1.bf16.msra.mxu0 %v4612
    %6969 = vmatprep.subr.bf16.mxu0 %v4625
    %6970 = vmatpush1.bf16.msra.mxu0 %v4624
    %6971 = vmatprep.subr.bf16.mxu0 %v4637
    %6972 = vmatpush1.bf16.msra.mxu0 %v4636
    %6973 = vmatprep.subr.bf16.mxu0 %v4649
    %6974 = vmatpush1.bf16.msra.mxu0 %v4648
    %6975 = vmatprep.subr.bf16.mxu0 %v4661
    %6976 = vmatpush1.bf16.msra.mxu0 %v4660
    %6977 = vmatprep.subr.bf16.mxu0 %v4673
    %6978 = vmatpush1.bf16.msra.mxu0 %v4672
    %6979 = vmatprep.subr.bf16.mxu0 %v4685
    %6980 = vmatpush1.bf16.msra.mxu0 %v4684
    %6981 = vmatprep.subr.bf16.mxu0 %v4697
    %6982 = vmatpush1.bf16.msra.mxu0 %v4696
    %6983 = vmatprep.subr.bf16.mxu0 %v4709
    %6984 = vmatpush1.bf16.msra.mxu0 %v4708
    %6985 = vmatprep.subr.bf16.mxu0 %v4721
    %6986 = vmatpush1.bf16.msra.mxu0 %v4720
    %6987 = vmatprep.subr.bf16.mxu0 %v4733
    %6988 = vmatpush1.bf16.msra.mxu0 %v4732
    %6989 = vmatprep.mubr.bf16.mxu0 %v3950
    %6990 = vmatmul.mubr.bf16.gmra.mrb[0].mxu0 %v3949
    %v6991 = vpop.f32.mrb[0].mxu0
    %v6992 = vadd.f32 %v6951, %v6991
    %v6993 = vpop.f32.mrb[0].mxu0
    %v6994 = vadd.f32 %v6953, %v6993
    %v6995 = vpop.f32.mrb[0].mxu0
    %v6996 = vpop.f32.mrb[0].mxu0
    %6997 = vdwg.mxu0
    %6998 = vmatprep.subr.bf16.mxu0 %v4745
    %6999 = vmatpush1.bf16.msra.mxu0 %v4744
    %7000 = vmatprep.subr.bf16.mxu0 %v4757
    %7001 = vmatpush1.bf16.msra.mxu0 %v4756
    %7002 = vmatprep.subr.bf16.mxu0 %v4769
    %7003 = vmatpush1.bf16.msra.mxu0 %v4768
    %7004 = vmatprep.subr.bf16.mxu0 %v4781
    %7005 = vmatpush1.bf16.msra.mxu0 %v4780
    %7006 = vmatprep.subr.bf16.mxu0 %v4793
    %7007 = vmatpush1.bf16.msra.mxu0 %v4792
    %7008 = vmatprep.subr.bf16.mxu0 %v4805
    %7009 = vmatpush1.bf16.msra.mxu0 %v4804
    %7010 = vmatprep.subr.bf16.mxu0 %v4817
    %7011 = vmatpush1.bf16.msra.mxu0 %v4816
    %7012 = vmatprep.subr.bf16.mxu0 %v4829
    %7013 = vmatpush1.bf16.msra.mxu0 %v4828
    %7014 = vmatprep.subr.bf16.mxu0 %v4841
    %7015 = vmatpush1.bf16.msra.mxu0 %v4840
    %7016 = vmatprep.subr.bf16.mxu0 %v4853
    %7017 = vmatpush1.bf16.msra.mxu0 %v4852
    %7018 = vmatprep.subr.bf16.mxu0 %v4865
    %7019 = vmatpush1.bf16.msra.mxu0 %v4864
    %7020 = vmatprep.subr.bf16.mxu0 %v4877
    %7021 = vmatpush1.bf16.msra.mxu0 %v4876
    %7022 = vmatprep.subr.bf16.mxu0 %v4889
    %7023 = vmatpush1.bf16.msra.mxu0 %v4888
    %7024 = vmatprep.subr.bf16.mxu0 %v4901
    %7025 = vmatpush1.bf16.msra.mxu0 %v4900
    %7026 = vmatprep.subr.bf16.mxu0 %v4913
    %7027 = vmatpush1.bf16.msra.mxu0 %v4912
    %7028 = vmatprep.subr.bf16.mxu0 %v4925
    %7029 = vmatpush1.bf16.msra.mxu0 %v4924
    %7030 = vmatprep.mubr.bf16.mxu0 %v3952
    %7031 = vmatmul.mubr.bf16.gmra.mrb[0].mxu0 %v3951
    %v7032 = vpop.f32.mrb[0].mxu0
    %v7033 = vadd.f32 %v6992, %v7032
    %v7034 = vpop.f32.mrb[0].mxu0
    %v7035 = vadd.f32 %v6994, %v7034
    %v7036 = vpop.f32.mrb[0].mxu0
    %v7037 = vpop.f32.mrb[0].mxu0
    %7038 = vdwg.mxu0
    %7039 = vmatprep.subr.bf16.mxu0 %v4937
    %7040 = vmatpush1.bf16.msra.mxu0 %v4936
    %7041 = vmatprep.subr.bf16.mxu0 %v4949
    %7042 = vmatpush1.bf16.msra.mxu0 %v4948
    %7043 = vmatprep.subr.bf16.mxu0 %v4961
    %7044 = vmatpush1.bf16.msra.mxu0 %v4960
    %7045 = vmatprep.subr.bf16.mxu0 %v4973
    %7046 = vmatpush1.bf16.msra.mxu0 %v4972
    %7047 = vmatprep.subr.bf16.mxu0 %v4985
    %7048 = vmatpush1.bf16.msra.mxu0 %v4984
    %7049 = vmatprep.subr.bf16.mxu0 %v4997
    %7050 = vmatpush1.bf16.msra.mxu0 %v4996
    %7051 = vmatprep.subr.bf16.mxu0 %v5009
    %7052 = vmatpush1.bf16.msra.mxu0 %v5008
    %7053 = vmatprep.subr.bf16.mxu0 %v5021
    %7054 = vmatpush1.bf16.msra.mxu0 %v5020
    %7055 = vmatprep.subr.bf16.mxu0 %v5033
    %7056 = vmatpush1.bf16.msra.mxu0 %v5032
    %7057 = vmatprep.subr.bf16.mxu0 %v5045
    %7058 = vmatpush1.bf16.msra.mxu0 %v5044
    %7059 = vmatprep.subr.bf16.mxu0 %v5057
    %7060 = vmatpush1.bf16.msra.mxu0 %v5056
    %7061 = vmatprep.subr.bf16.mxu0 %v5069
    %7062 = vmatpush1.bf16.msra.mxu0 %v5068
    %7063 = vmatprep.subr.bf16.mxu0 %v5081
    %7064 = vmatpush1.bf16.msra.mxu0 %v5080
    %7065 = vmatprep.subr.bf16.mxu0 %v5093
    %7066 = vmatpush1.bf16.msra.mxu0 %v5092
    %7067 = vmatprep.subr.bf16.mxu0 %v5105
    %7068 = vmatpush1.bf16.msra.mxu0 %v5104
    %7069 = vmatprep.subr.bf16.mxu0 %v5117
    %7070 = vmatpush1.bf16.msra.mxu0 %v5116
    %7071 = vmatprep.mubr.bf16.mxu0 %v3954
    %7072 = vmatmul.mubr.bf16.gmra.mrb[0].mxu0 %v3953
    %v7073 = vpop.f32.mrb[0].mxu0
    %v7074 = vadd.f32 %v7033, %v7073
    %v7075 = vpop.f32.mrb[0].mxu0
    %v7076 = vadd.f32 %v7035, %v7075
    %v7077 = vpop.f32.mrb[0].mxu0
    %v7078 = vpop.f32.mrb[0].mxu0
    %7079 = vdwg.mxu0
    %7080 = vmatprep.subr.bf16.mxu0 %v5129
    %7081 = vmatpush1.bf16.msra.mxu0 %v5128
    %7082 = vmatprep.subr.bf16.mxu0 %v5141
    %7083 = vmatpush1.bf16.msra.mxu0 %v5140
    %7084 = vmatprep.subr.bf16.mxu0 %v5153
    %7085 = vmatpush1.bf16.msra.mxu0 %v5152
    %7086 = vmatprep.subr.bf16.mxu0 %v5165
    %7087 = vmatpush1.bf16.msra.mxu0 %v5164
    %7088 = vmatprep.subr.bf16.mxu0 %v5177
    %7089 = vmatpush1.bf16.msra.mxu0 %v5176
    %7090 = vmatprep.subr.bf16.mxu0 %v5189
    %7091 = vmatpush1.bf16.msra.mxu0 %v5188
    %7092 = vmatprep.subr.bf16.mxu0 %v5201
    %7093 = vmatpush1.bf16.msra.mxu0 %v5200
    %7094 = vmatprep.subr.bf16.mxu0 %v5213
    %7095 = vmatpush1.bf16.msra.mxu0 %v5212
    %7096 = vmatprep.subr.bf16.mxu0 %v5225
    %7097 = vmatpush1.bf16.msra.mxu0 %v5224
    %7098 = vmatprep.subr.bf16.mxu0 %v5237
    %7099 = vmatpush1.bf16.msra.mxu0 %v5236
    %7100 = vmatprep.subr.bf16.mxu0 %v5249
    %7101 = vmatpush1.bf16.msra.mxu0 %v5248
    %7102 = vmatprep.subr.bf16.mxu0 %v5261
    %7103 = vmatpush1.bf16.msra.mxu0 %v5260
    %7104 = vmatprep.subr.bf16.mxu0 %v5273
    %7105 = vmatpush1.bf16.msra.mxu0 %v5272
    %7106 = vmatprep.subr.bf16.mxu0 %v5285
    %7107 = vmatpush1.bf16.msra.mxu0 %v5284
    %7108 = vmatprep.subr.bf16.mxu0 %v5297
    %7109 = vmatpush1.bf16.msra.mxu0 %v5296
    %7110 = vmatprep.subr.bf16.mxu0 %v5309
    %7111 = vmatpush1.bf16.msra.mxu0 %v5308
    %7112 = vmatprep.mubr.bf16.mxu0 %v3956
    %7113 = vmatmul.mubr.bf16.gmra.mrb[0].mxu0 %v3955
    %v7114 = vpop.f32.mrb[0].mxu0
    %v7115 = vadd.f32 %v7074, %v7114
    %v7116 = vpop.f32.mrb[0].mxu0
    %v7117 = vadd.f32 %v7076, %v7116
    %v7118 = vpop.f32.mrb[0].mxu0
    %v7119 = vpop.f32.mrb[0].mxu0
    %7120 = vdwg.mxu0
    %7121 = vmatprep.subr.bf16.mxu0 %v5321
    %7122 = vmatpush1.bf16.msra.mxu0 %v5320
    %7123 = vmatprep.subr.bf16.mxu0 %v5333
    %7124 = vmatpush1.bf16.msra.mxu0 %v5332
    %7125 = vmatprep.subr.bf16.mxu0 %v5345
    %7126 = vmatpush1.bf16.msra.mxu0 %v5344
    %7127 = vmatprep.subr.bf16.mxu0 %v5357
    %7128 = vmatpush1.bf16.msra.mxu0 %v5356
    %7129 = vmatprep.subr.bf16.mxu0 %v5369
    %7130 = vmatpush1.bf16.msra.mxu0 %v5368
    %7131 = vmatprep.subr.bf16.mxu0 %v5381
    %7132 = vmatpush1.bf16.msra.mxu0 %v5380
    %7133 = vmatprep.subr.bf16.mxu0 %v5393
    %7134 = vmatpush1.bf16.msra.mxu0 %v5392
    %7135 = vmatprep.subr.bf16.mxu0 %v5405
    %7136 = vmatpush1.bf16.msra.mxu0 %v5404
    %7137 = vmatprep.subr.bf16.mxu0 %v5417
    %7138 = vmatpush1.bf16.msra.mxu0 %v5416
    %7139 = vmatprep.subr.bf16.mxu0 %v5429
    %7140 = vmatpush1.bf16.msra.mxu0 %v5428
    %7141 = vmatprep.subr.bf16.mxu0 %v5441
    %7142 = vmatpush1.bf16.msra.mxu0 %v5440
    %7143 = vmatprep.subr.bf16.mxu0 %v5453
    %7144 = vmatpush1.bf16.msra.mxu0 %v5452
    %7145 = vmatprep.subr.bf16.mxu0 %v5465
    %7146 = vmatpush1.bf16.msra.mxu0 %v5464
    %7147 = vmatprep.subr.bf16.mxu0 %v5477
    %7148 = vmatpush1.bf16.msra.mxu0 %v5476
    %7149 = vmatprep.subr.bf16.mxu0 %v5489
    %7150 = vmatpush1.bf16.msra.mxu0 %v5488
    %7151 = vmatprep.subr.bf16.mxu0 %v5501
    %7152 = vmatpush1.bf16.msra.mxu0 %v5500
    %7153 = vmatprep.mubr.bf16.mxu0 %v3958
    %7154 = vmatmul.mubr.bf16.gmra.mrb[0].mxu0 %v3957
    %v7155 = vpop.f32.mrb[0].mxu0
    %v7156 = vadd.f32 %v7115, %v7155
    %v7157 = vpop.f32.mrb[0].mxu0
    %v7158 = vadd.f32 %v7117, %v7157
    %v7159 = vpop.f32.mrb[0].mxu0
    %v7160 = vpop.f32.mrb[0].mxu0
    %7161 = vdwg.mxu0
    %7162 = vmatprep.subr.bf16.mxu0 %v5513
    %7163 = vmatpush1.bf16.msra.mxu0 %v5512
    %7164 = vmatprep.subr.bf16.mxu0 %v5525
    %7165 = vmatpush1.bf16.msra.mxu0 %v5524
    %7166 = vmatprep.subr.bf16.mxu0 %v5537
    %7167 = vmatpush1.bf16.msra.mxu0 %v5536
    %7168 = vmatprep.subr.bf16.mxu0 %v5549
    %7169 = vmatpush1.bf16.msra.mxu0 %v5548
    %7170 = vmatprep.subr.bf16.mxu0 %v5561
    %7171 = vmatpush1.bf16.msra.mxu0 %v5560
    %7172 = vmatprep.subr.bf16.mxu0 %v5573
    %7173 = vmatpush1.bf16.msra.mxu0 %v5572
    %7174 = vmatprep.subr.bf16.mxu0 %v5585
    %7175 = vmatpush1.bf16.msra.mxu0 %v5584
    %7176 = vmatprep.subr.bf16.mxu0 %v5597
    %7177 = vmatpush1.bf16.msra.mxu0 %v5596
    %7178 = vmatprep.subr.bf16.mxu0 %v5609
    %7179 = vmatpush1.bf16.msra.mxu0 %v5608
    %7180 = vmatprep.subr.bf16.mxu0 %v5621
    %7181 = vmatpush1.bf16.msra.mxu0 %v5620
    %7182 = vmatprep.subr.bf16.mxu0 %v5633
    %7183 = vmatpush1.bf16.msra.mxu0 %v5632
    %7184 = vmatprep.subr.bf16.mxu0 %v5645
    %7185 = vmatpush1.bf16.msra.mxu0 %v5644
    %7186 = vmatprep.subr.bf16.mxu0 %v5657
    %7187 = vmatpush1.bf16.msra.mxu0 %v5656
    %7188 = vmatprep.subr.bf16.mxu0 %v5669
    %7189 = vmatpush1.bf16.msra.mxu0 %v5668
    %7190 = vmatprep.subr.bf16.mxu0 %v5681
    %7191 = vmatpush1.bf16.msra.mxu0 %v5680
    %7192 = vmatprep.subr.bf16.mxu0 %v5693
    %7193 = vmatpush1.bf16.msra.mxu0 %v5692
    %7194 = vmatprep.mubr.bf16.mxu0 %v3960
    %7195 = vmatmul.mubr.bf16.gmra.mrb[0].mxu0 %v3959
    %v7196 = vpop.f32.mrb[0].mxu0
    %v7197 = vadd.f32 %v7156, %v7196
    %v7198 = vpop.f32.mrb[0].mxu0
    %v7199 = vadd.f32 %v7158, %v7198
    %v7200 = vpop.f32.mrb[0].mxu0
    %v7201 = vpop.f32.mrb[0].mxu0
    %7202 = vdwg.mxu0
    %7203 = vmatprep.subr.bf16.mxu0 %v5705
    %7204 = vmatpush1.bf16.msra.mxu0 %v5704
    %7205 = vmatprep.subr.bf16.mxu0 %v5717
    %7206 = vmatpush1.bf16.msra.mxu0 %v5716
    %7207 = vmatprep.subr.bf16.mxu0 %v5729
    %7208 = vmatpush1.bf16.msra.mxu0 %v5728
    %7209 = vmatprep.subr.bf16.mxu0 %v5741
    %7210 = vmatpush1.bf16.msra.mxu0 %v5740
    %7211 = vmatprep.subr.bf16.mxu0 %v5753
    %7212 = vmatpush1.bf16.msra.mxu0 %v5752
    %7213 = vmatprep.subr.bf16.mxu0 %v5765
    %7214 = vmatpush1.bf16.msra.mxu0 %v5764
    %7215 = vmatprep.subr.bf16.mxu0 %v5777
    %7216 = vmatpush1.bf16.msra.mxu0 %v5776
    %7217 = vmatprep.subr.bf16.mxu0 %v5789
    %7218 = vmatpush1.bf16.msra.mxu0 %v5788
    %7219 = vmatprep.subr.bf16.mxu0 %v5801
    %7220 = vmatpush1.bf16.msra.mxu0 %v5800
    %7221 = vmatprep.subr.bf16.mxu0 %v5813
    %7222 = vmatpush1.bf16.msra.mxu0 %v5812
    %7223 = vmatprep.subr.bf16.mxu0 %v5825
    %7224 = vmatpush1.bf16.msra.mxu0 %v5824
    %7225 = vmatprep.subr.bf16.mxu0 %v5837
    %7226 = vmatpush1.bf16.msra.mxu0 %v5836
    %7227 = vmatprep.subr.bf16.mxu0 %v5849
    %7228 = vmatpush1.bf16.msra.mxu0 %v5848
    %7229 = vmatprep.subr.bf16.mxu0 %v5861
    %7230 = vmatpush1.bf16.msra.mxu0 %v5860
    %7231 = vmatprep.subr.bf16.mxu0 %v5873
    %7232 = vmatpush1.bf16.msra.mxu0 %v5872
    %7233 = vmatprep.subr.bf16.mxu0 %v5885
    %7234 = vmatpush1.bf16.msra.mxu0 %v5884
    %7235 = vmatprep.mubr.bf16.mxu0 %v3962
    %7236 = vmatmul.mubr.bf16.gmra.mrb[0].mxu0 %v3961
    %v7237 = vpop.f32.mrb[0].mxu0
    %v7238 = vadd.f32 %v7197, %v7237
    %v7239 = vpop.f32.mrb[0].mxu0
    %v7240 = vadd.f32 %v7199, %v7239
    %v7241 = vpop.f32.mrb[0].mxu0
    %v7242 = vpop.f32.mrb[0].mxu0
    %7243 = vdwg.mxu0
    %7244 = vmatprep.subr.bf16.mxu0 %v5897
    %7245 = vmatpush1.bf16.msra.mxu0 %v5896
    %7246 = vmatprep.subr.bf16.mxu0 %v5909
    %7247 = vmatpush1.bf16.msra.mxu0 %v5908
    %7248 = vmatprep.subr.bf16.mxu0 %v5921
    %7249 = vmatpush1.bf16.msra.mxu0 %v5920
    %7250 = vmatprep.subr.bf16.mxu0 %v5933
    %7251 = vmatpush1.bf16.msra.mxu0 %v5932
    %7252 = vmatprep.subr.bf16.mxu0 %v5945
    %7253 = vmatpush1.bf16.msra.mxu0 %v5944
    %7254 = vmatprep.subr.bf16.mxu0 %v5957
    %7255 = vmatpush1.bf16.msra.mxu0 %v5956
    %7256 = vmatprep.subr.bf16.mxu0 %v5969
    %7257 = vmatpush1.bf16.msra.mxu0 %v5968
    %7258 = vmatprep.subr.bf16.mxu0 %v5981
    %7259 = vmatpush1.bf16.msra.mxu0 %v5980
    %7260 = vmatprep.subr.bf16.mxu0 %v5993
    %7261 = vmatpush1.bf16.msra.mxu0 %v5992
    %7262 = vmatprep.subr.bf16.mxu0 %v6005
    %7263 = vmatpush1.bf16.msra.mxu0 %v6004
    %7264 = vmatprep.subr.bf16.mxu0 %v6017
    %7265 = vmatpush1.bf16.msra.mxu0 %v6016
    %7266 = vmatprep.subr.bf16.mxu0 %v6029
    %7267 = vmatpush1.bf16.msra.mxu0 %v6028
    %7268 = vmatprep.subr.bf16.mxu0 %v6041
    %7269 = vmatpush1.bf16.msra.mxu0 %v6040
    %7270 = vmatprep.subr.bf16.mxu0 %v6053
    %7271 = vmatpush1.bf16.msra.mxu0 %v6052
    %7272 = vmatprep.subr.bf16.mxu0 %v6065
    %7273 = vmatpush1.bf16.msra.mxu0 %v6064
    %7274 = vmatprep.subr.bf16.mxu0 %v6077
    %7275 = vmatpush1.bf16.msra.mxu0 %v6076
    %7276 = vmatprep.mubr.bf16.mxu0 %v3964
    %7277 = vmatmul.mubr.bf16.gmra.mrb[0].mxu0 %v3963
    %v7278 = vpop.f32.mrb[0].mxu0
    %v7279 = vadd.f32 %v7238, %v7278
    %v7280 = vpop.f32.mrb[0].mxu0
    %v7281 = vadd.f32 %v7240, %v7280
    %v7282 = vpop.f32.mrb[0].mxu0
    %v7283 = vpop.f32.mrb[0].mxu0
    %7284 = vdwg.mxu0
    %7285 = vmatprep.subr.bf16.mxu0 %v6089
    %7286 = vmatpush1.bf16.msra.mxu0 %v6088
    %7287 = vmatprep.subr.bf16.mxu0 %v6101
    %7288 = vmatpush1.bf16.msra.mxu0 %v6100
    %7289 = vmatprep.subr.bf16.mxu0 %v6113
    %7290 = vmatpush1.bf16.msra.mxu0 %v6112
    %7291 = vmatprep.subr.bf16.mxu0 %v6125
    %7292 = vmatpush1.bf16.msra.mxu0 %v6124
    %7293 = vmatprep.subr.bf16.mxu0 %v6137
    %7294 = vmatpush1.bf16.msra.mxu0 %v6136
    %7295 = vmatprep.subr.bf16.mxu0 %v6149
    %7296 = vmatpush1.bf16.msra.mxu0 %v6148
    %7297 = vmatprep.subr.bf16.mxu0 %v6161
    %7298 = vmatpush1.bf16.msra.mxu0 %v6160
    %7299 = vmatprep.subr.bf16.mxu0 %v6173
    %7300 = vmatpush1.bf16.msra.mxu0 %v6172
    %7301 = vmatprep.subr.bf16.mxu0 %v6185
    %7302 = vmatpush1.bf16.msra.mxu0 %v6184
    %7303 = vmatprep.subr.bf16.mxu0 %v6197
    %7304 = vmatpush1.bf16.msra.mxu0 %v6196
    %7305 = vmatprep.subr.bf16.mxu0 %v6209
    %7306 = vmatpush1.bf16.msra.mxu0 %v6208
    %7307 = vmatprep.subr.bf16.mxu0 %v6221
    %7308 = vmatpush1.bf16.msra.mxu0 %v6220
    %7309 = vmatprep.subr.bf16.mxu0 %v6233
    %7310 = vmatpush1.bf16.msra.mxu0 %v6232
    %7311 = vmatprep.subr.bf16.mxu0 %v6245
    %7312 = vmatpush1.bf16.msra.mxu0 %v6244
    %7313 = vmatprep.subr.bf16.mxu0 %v6257
    %7314 = vmatpush1.bf16.msra.mxu0 %v6256
    %7315 = vmatprep.subr.bf16.mxu0 %v6269
    %7316 = vmatpush1.bf16.msra.mxu0 %v6268
    %7317 = vmatprep.mubr.bf16.mxu0 %v3966
    %7318 = vmatmul.mubr.bf16.gmra.mrb[0].mxu0 %v3965
    %v7319 = vpop.f32.mrb[0].mxu0
    %v7320 = vadd.f32 %v7279, %v7319
    %v7321 = vpop.f32.mrb[0].mxu0
    %v7322 = vadd.f32 %v7281, %v7321
    %v7323 = vpop.f32.mrb[0].mxu0
    %v7324 = vpop.f32.mrb[0].mxu0
    %7325 = vdwg.mxu0
    %7326 = vmatprep.subr.bf16.mxu0 %v3979
    %7327 = vmatpush1.bf16.msra.mxu0 %v3978
    %7328 = vmatprep.subr.bf16.mxu0 %v3991
    %7329 = vmatpush1.bf16.msra.mxu0 %v3990
    %7330 = vmatprep.subr.bf16.mxu0 %v4003
    %7331 = vmatpush1.bf16.msra.mxu0 %v4002
    %7332 = vmatprep.subr.bf16.mxu0 %v4015
    %7333 = vmatpush1.bf16.msra.mxu0 %v4014
    %7334 = vmatprep.subr.bf16.mxu0 %v4027
    %7335 = vmatpush1.bf16.msra.mxu0 %v4026
    %7336 = vmatprep.subr.bf16.mxu0 %v4039
    %7337 = vmatpush1.bf16.msra.mxu0 %v4038
    %7338 = vmatprep.subr.bf16.mxu0 %v4051
    %7339 = vmatpush1.bf16.msra.mxu0 %v4050
    %7340 = vmatprep.subr.bf16.mxu0 %v4063
    %7341 = vmatpush1.bf16.msra.mxu0 %v4062
    %7342 = vmatprep.subr.bf16.mxu0 %v4075
    %7343 = vmatpush1.bf16.msra.mxu0 %v4074
    %7344 = vmatprep.subr.bf16.mxu0 %v4087
    %7345 = vmatpush1.bf16.msra.mxu0 %v4086
    %7346 = vmatprep.subr.bf16.mxu0 %v4099
    %7347 = vmatpush1.bf16.msra.mxu0 %v4098
    %7348 = vmatprep.subr.bf16.mxu0 %v4111
    %7349 = vmatpush1.bf16.msra.mxu0 %v4110
    %7350 = vmatprep.subr.bf16.mxu0 %v4123
    %7351 = vmatpush1.bf16.msra.mxu0 %v4122
    %7352 = vmatprep.subr.bf16.mxu0 %v4135
    %7353 = vmatpush1.bf16.msra.mxu0 %v4134
    %7354 = vmatprep.subr.bf16.mxu0 %v4147
    %7355 = vmatpush1.bf16.msra.mxu0 %v4146
    %7356 = vmatprep.subr.bf16.mxu0 %v4159
    %7357 = vmatpush1.bf16.msra.mxu0 %v4158
    %7358 = vmatprep.mubr.bf16.mxu0 %v3944
    %7359 = vmatmul.mubr.bf16.gmra.mrb[0].mxu0 %v3943
    %v7360 = vpop.f32.mrb[0].mxu0
    %v7361 = vadd.f32 %v6301, %v7360
    %v7362 = vpop.f32.mrb[0].mxu0
    %v7363 = vadd.f32 %v6305, %v7362
    %v7364 = vpop.f32.mrb[0].mxu0
    %v7365 = vpop.f32.mrb[0].mxu0
    %7366 = vdwg.mxu0
    %7367 = vmatprep.subr.bf16.mxu0 %v4171
    %7368 = vmatpush1.bf16.msra.mxu0 %v4170
    %7369 = vmatprep.subr.bf16.mxu0 %v4183
    %7370 = vmatpush1.bf16.msra.mxu0 %v4182
    %7371 = vmatprep.subr.bf16.mxu0 %v4195
    %7372 = vmatpush1.bf16.msra.mxu0 %v4194
    %7373 = vmatprep.subr.bf16.mxu0 %v4207
    %7374 = vmatpush1.bf16.msra.mxu0 %v4206
    %7375 = vmatprep.subr.bf16.mxu0 %v4219
    %7376 = vmatpush1.bf16.msra.mxu0 %v4218
    %7377 = vmatprep.subr.bf16.mxu0 %v4231
    %7378 = vmatpush1.bf16.msra.mxu0 %v4230
    %7379 = vmatprep.subr.bf16.mxu0 %v4243
    %7380 = vmatpush1.bf16.msra.mxu0 %v4242
    %7381 = vmatprep.subr.bf16.mxu0 %v4255
    %7382 = vmatpush1.bf16.msra.mxu0 %v4254
    %7383 = vmatprep.subr.bf16.mxu0 %v4267
    %7384 = vmatpush1.bf16.msra.mxu0 %v4266
    %7385 = vmatprep.subr.bf16.mxu0 %v4279
    %7386 = vmatpush1.bf16.msra.mxu0 %v4278
    %7387 = vmatprep.subr.bf16.mxu0 %v4291
    %7388 = vmatpush1.bf16.msra.mxu0 %v4290
    %7389 = vmatprep.subr.bf16.mxu0 %v4303
    %7390 = vmatpush1.bf16.msra.mxu0 %v4302
    %7391 = vmatprep.subr.bf16.mxu0 %v4315
    %7392 = vmatpush1.bf16.msra.mxu0 %v4314
    %7393 = vmatprep.subr.bf16.mxu0 %v4327
    %7394 = vmatpush1.bf16.msra.mxu0 %v4326
    %7395 = vmatprep.subr.bf16.mxu0 %v4339
    %7396 = vmatpush1.bf16.msra.mxu0 %v4338
    %7397 = vmatprep.subr.bf16.mxu0 %v4351
    %7398 = vmatpush1.bf16.msra.mxu0 %v4350
    %7399 = vmatprep.mubr.bf16.mxu0 %v3946
    %7400 = vmatmul.mubr.bf16.gmra.mrb[0].mxu0 %v3945
    %v7401 = vpop.f32.mrb[0].mxu0
    %v7402 = vadd.f32 %v7361, %v7401
    %v7403 = vpop.f32.mrb[0].mxu0
    %v7404 = vadd.f32 %v7363, %v7403
    %v7405 = vpop.f32.mrb[0].mxu0
    %v7406 = vpop.f32.mrb[0].mxu0
    %7407 = vdwg.mxu0
    %7408 = vmatprep.subr.bf16.mxu0 %v4363
    %7409 = vmatpush1.bf16.msra.mxu0 %v4362
    %7410 = vmatprep.subr.bf16.mxu0 %v4375
    %7411 = vmatpush1.bf16.msra.mxu0 %v4374
    %7412 = vmatprep.subr.bf16.mxu0 %v4387
    %7413 = vmatpush1.bf16.msra.mxu0 %v4386
    %7414 = vmatprep.subr.bf16.mxu0 %v4399
    %7415 = vmatpush1.bf16.msra.mxu0 %v4398
    %7416 = vmatprep.subr.bf16.mxu0 %v4411
    %7417 = vmatpush1.bf16.msra.mxu0 %v4410
    %7418 = vmatprep.subr.bf16.mxu0 %v4423
    %7419 = vmatpush1.bf16.msra.mxu0 %v4422
    %7420 = vmatprep.subr.bf16.mxu0 %v4435
    %7421 = vmatpush1.bf16.msra.mxu0 %v4434
    %7422 = vmatprep.subr.bf16.mxu0 %v4447
    %7423 = vmatpush1.bf16.msra.mxu0 %v4446
    %7424 = vmatprep.subr.bf16.mxu0 %v4459
    %7425 = vmatpush1.bf16.msra.mxu0 %v4458
    %7426 = vmatprep.subr.bf16.mxu0 %v4471
    %7427 = vmatpush1.bf16.msra.mxu0 %v4470
    %7428 = vmatprep.subr.bf16.mxu0 %v4483
    %7429 = vmatpush1.bf16.msra.mxu0 %v4482
    %7430 = vmatprep.subr.bf16.mxu0 %v4495
    %7431 = vmatpush1.bf16.msra.mxu0 %v4494
    %7432 = vmatprep.subr.bf16.mxu0 %v4507
    %7433 = vmatpush1.bf16.msra.mxu0 %v4506
    %7434 = vmatprep.subr.bf16.mxu0 %v4519
    %7435 = vmatpush1.bf16.msra.mxu0 %v4518
    %7436 = vmatprep.subr.bf16.mxu0 %v4531
    %7437 = vmatpush1.bf16.msra.mxu0 %v4530
    %7438 = vmatprep.subr.bf16.mxu0 %v4543
    %7439 = vmatpush1.bf16.msra.mxu0 %v4542
    %7440 = vmatprep.mubr.bf16.mxu0 %v3948
    %7441 = vmatmul.mubr.bf16.gmra.mrb[0].mxu0 %v3947
    %v7442 = vpop.f32.mrb[0].mxu0
    %v7443 = vadd.f32 %v7402, %v7442
    %v7444 = vpop.f32.mrb[0].mxu0
    %v7445 = vadd.f32 %v7404, %v7444
    %v7446 = vpop.f32.mrb[0].mxu0
    %v7447 = vpop.f32.mrb[0].mxu0
    %7448 = vdwg.mxu0
    %7449 = vmatprep.subr.bf16.mxu0 %v4555
    %7450 = vmatpush1.bf16.msra.mxu0 %v4554
    %7451 = vmatprep.subr.bf16.mxu0 %v4567
    %7452 = vmatpush1.bf16.msra.mxu0 %v4566
    %7453 = vmatprep.subr.bf16.mxu0 %v4579
    %7454 = vmatpush1.bf16.msra.mxu0 %v4578
    %7455 = vmatprep.subr.bf16.mxu0 %v4591
    %7456 = vmatpush1.bf16.msra.mxu0 %v4590
    %7457 = vmatprep.subr.bf16.mxu0 %v4603
    %7458 = vmatpush1.bf16.msra.mxu0 %v4602
    %7459 = vmatprep.subr.bf16.mxu0 %v4615
    %7460 = vmatpush1.bf16.msra.mxu0 %v4614
    %7461 = vmatprep.subr.bf16.mxu0 %v4627
    %7462 = vmatpush1.bf16.msra.mxu0 %v4626
    %7463 = vmatprep.subr.bf16.mxu0 %v4639
    %7464 = vmatpush1.bf16.msra.mxu0 %v4638
    %7465 = vmatprep.subr.bf16.mxu0 %v4651
    %7466 = vmatpush1.bf16.msra.mxu0 %v4650
    %7467 = vmatprep.subr.bf16.mxu0 %v4663
    %7468 = vmatpush1.bf16.msra.mxu0 %v4662
    %7469 = vmatprep.subr.bf16.mxu0 %v4675
    %7470 = vmatpush1.bf16.msra.mxu0 %v4674
    %7471 = vmatprep.subr.bf16.mxu0 %v4687
    %7472 = vmatpush1.bf16.msra.mxu0 %v4686
    %7473 = vmatprep.subr.bf16.mxu0 %v4699
    %7474 = vmatpush1.bf16.msra.mxu0 %v4698
    %7475 = vmatprep.subr.bf16.mxu0 %v4711
    %7476 = vmatpush1.bf16.msra.mxu0 %v4710
    %7477 = vmatprep.subr.bf16.mxu0 %v4723
    %7478 = vmatpush1.bf16.msra.mxu0 %v4722
    %7479 = vmatprep.subr.bf16.mxu0 %v4735
    %7480 = vmatpush1.bf16.msra.mxu0 %v4734
    %7481 = vmatprep.mubr.bf16.mxu0 %v3950
    %7482 = vmatmul.mubr.bf16.gmra.mrb[0].mxu0 %v3949
    %v7483 = vpop.f32.mrb[0].mxu0
    %v7484 = vadd.f32 %v7443, %v7483
    %v7485 = vpop.f32.mrb[0].mxu0
    %v7486 = vadd.f32 %v7445, %v7485
    %v7487 = vpop.f32.mrb[0].mxu0
    %v7488 = vpop.f32.mrb[0].mxu0
    %7489 = vdwg.mxu0
    %7490 = vmatprep.subr.bf16.mxu0 %v4747
    %7491 = vmatpush1.bf16.msra.mxu0 %v4746
    %7492 = vmatprep.subr.bf16.mxu0 %v4759
    %7493 = vmatpush1.bf16.msra.mxu0 %v4758
    %7494 = vmatprep.subr.bf16.mxu0 %v4771
    %7495 = vmatpush1.bf16.msra.mxu0 %v4770
    %7496 = vmatprep.subr.bf16.mxu0 %v4783
    %7497 = vmatpush1.bf16.msra.mxu0 %v4782
    %7498 = vmatprep.subr.bf16.mxu0 %v4795
    %7499 = vmatpush1.bf16.msra.mxu0 %v4794
    %7500 = vmatprep.subr.bf16.mxu0 %v4807
    %7501 = vmatpush1.bf16.msra.mxu0 %v4806
    %7502 = vmatprep.subr.bf16.mxu0 %v4819
    %7503 = vmatpush1.bf16.msra.mxu0 %v4818
    %7504 = vmatprep.subr.bf16.mxu0 %v4831
    %7505 = vmatpush1.bf16.msra.mxu0 %v4830
    %7506 = vmatprep.subr.bf16.mxu0 %v4843
    %7507 = vmatpush1.bf16.msra.mxu0 %v4842
    %7508 = vmatprep.subr.bf16.mxu0 %v4855
    %7509 = vmatpush1.bf16.msra.mxu0 %v4854
    %7510 = vmatprep.subr.bf16.mxu0 %v4867
    %7511 = vmatpush1.bf16.msra.mxu0 %v4866
    %7512 = vmatprep.subr.bf16.mxu0 %v4879
    %7513 = vmatpush1.bf16.msra.mxu0 %v4878
    %7514 = vmatprep.subr.bf16.mxu0 %v4891
    %7515 = vmatpush1.bf16.msra.mxu0 %v4890
    %7516 = vmatprep.subr.bf16.mxu0 %v4903
    %7517 = vmatpush1.bf16.msra.mxu0 %v4902
    %7518 = vmatprep.subr.bf16.mxu0 %v4915
    %7519 = vmatpush1.bf16.msra.mxu0 %v4914
    %7520 = vmatprep.subr.bf16.mxu0 %v4927
    %7521 = vmatpush1.bf16.msra.mxu0 %v4926
    %7522 = vmatprep.mubr.bf16.mxu0 %v3952
    %7523 = vmatmul.mubr.bf16.gmra.mrb[0].mxu0 %v3951
    %v7524 = vpop.f32.mrb[0].mxu0
    %v7525 = vadd.f32 %v7484, %v7524
    %v7526 = vpop.f32.mrb[0].mxu0
    %v7527 = vadd.f32 %v7486, %v7526
    %v7528 = vpop.f32.mrb[0].mxu0
    %v7529 = vpop.f32.mrb[0].mxu0
    %7530 = vdwg.mxu0
    %7531 = vmatprep.subr.bf16.mxu0 %v4939
    %7532 = vmatpush1.bf16.msra.mxu0 %v4938
    %7533 = vmatprep.subr.bf16.mxu0 %v4951
    %7534 = vmatpush1.bf16.msra.mxu0 %v4950
    %7535 = vmatprep.subr.bf16.mxu0 %v4963
    %7536 = vmatpush1.bf16.msra.mxu0 %v4962
    %7537 = vmatprep.subr.bf16.mxu0 %v4975
    %7538 = vmatpush1.bf16.msra.mxu0 %v4974
    %7539 = vmatprep.subr.bf16.mxu0 %v4987
    %7540 = vmatpush1.bf16.msra.mxu0 %v4986
    %7541 = vmatprep.subr.bf16.mxu0 %v4999
    %7542 = vmatpush1.bf16.msra.mxu0 %v4998
    %7543 = vmatprep.subr.bf16.mxu0 %v5011
    %7544 = vmatpush1.bf16.msra.mxu0 %v5010
    %7545 = vmatprep.subr.bf16.mxu0 %v5023
    %7546 = vmatpush1.bf16.msra.mxu0 %v5022
    %7547 = vmatprep.subr.bf16.mxu0 %v5035
    %7548 = vmatpush1.bf16.msra.mxu0 %v5034
    %7549 = vmatprep.subr.bf16.mxu0 %v5047
    %7550 = vmatpush1.bf16.msra.mxu0 %v5046
    %7551 = vmatprep.subr.bf16.mxu0 %v5059
    %7552 = vmatpush1.bf16.msra.mxu0 %v5058
    %7553 = vmatprep.subr.bf16.mxu0 %v5071
    %7554 = vmatpush1.bf16.msra.mxu0 %v5070
    %7555 = vmatprep.subr.bf16.mxu0 %v5083
    %7556 = vmatpush1.bf16.msra.mxu0 %v5082
    %7557 = vmatprep.subr.bf16.mxu0 %v5095
    %7558 = vmatpush1.bf16.msra.mxu0 %v5094
    %7559 = vmatprep.subr.bf16.mxu0 %v5107
    %7560 = vmatpush1.bf16.msra.mxu0 %v5106
    %7561 = vmatprep.subr.bf16.mxu0 %v5119
    %7562 = vmatpush1.bf16.msra.mxu0 %v5118
    %7563 = vmatprep.mubr.bf16.mxu0 %v3954
    %7564 = vmatmul.mubr.bf16.gmra.mrb[0].mxu0 %v3953
    %v7565 = vpop.f32.mrb[0].mxu0
    %v7566 = vadd.f32 %v7525, %v7565
    %v7567 = vpop.f32.mrb[0].mxu0
    %v7568 = vadd.f32 %v7527, %v7567
    %v7569 = vpop.f32.mrb[0].mxu0
    %v7570 = vpop.f32.mrb[0].mxu0
    %7571 = vdwg.mxu0
    %7572 = vmatprep.subr.bf16.mxu0 %v5131
    %7573 = vmatpush1.bf16.msra.mxu0 %v5130
    %7574 = vmatprep.subr.bf16.mxu0 %v5143
    %7575 = vmatpush1.bf16.msra.mxu0 %v5142
    %7576 = vmatprep.subr.bf16.mxu0 %v5155
    %7577 = vmatpush1.bf16.msra.mxu0 %v5154
    %7578 = vmatprep.subr.bf16.mxu0 %v5167
    %7579 = vmatpush1.bf16.msra.mxu0 %v5166
    %7580 = vmatprep.subr.bf16.mxu0 %v5179
    %7581 = vmatpush1.bf16.msra.mxu0 %v5178
    %7582 = vmatprep.subr.bf16.mxu0 %v5191
    %7583 = vmatpush1.bf16.msra.mxu0 %v5190
    %7584 = vmatprep.subr.bf16.mxu0 %v5203
    %7585 = vmatpush1.bf16.msra.mxu0 %v5202
    %7586 = vmatprep.subr.bf16.mxu0 %v5215
    %7587 = vmatpush1.bf16.msra.mxu0 %v5214
    %7588 = vmatprep.subr.bf16.mxu0 %v5227
    %7589 = vmatpush1.bf16.msra.mxu0 %v5226
    %7590 = vmatprep.subr.bf16.mxu0 %v5239
    %7591 = vmatpush1.bf16.msra.mxu0 %v5238
    %7592 = vmatprep.subr.bf16.mxu0 %v5251
    %7593 = vmatpush1.bf16.msra.mxu0 %v5250
    %7594 = vmatprep.subr.bf16.mxu0 %v5263
    %7595 = vmatpush1.bf16.msra.mxu0 %v5262
    %7596 = vmatprep.subr.bf16.mxu0 %v5275
    %7597 = vmatpush1.bf16.msra.mxu0 %v5274
    %7598 = vmatprep.subr.bf16.mxu0 %v5287
    %7599 = vmatpush1.bf16.msra.mxu0 %v5286
    %7600 = vmatprep.subr.bf16.mxu0 %v5299
    %7601 = vmatpush1.bf16.msra.mxu0 %v5298
    %7602 = vmatprep.subr.bf16.mxu0 %v5311
    %7603 = vmatpush1.bf16.msra.mxu0 %v5310
    %7604 = vmatprep.mubr.bf16.mxu0 %v3956
    %7605 = vmatmul.mubr.bf16.gmra.mrb[0].mxu0 %v3955
    %v7606 = vpop.f32.mrb[0].mxu0
    %v7607 = vadd.f32 %v7566, %v7606
    %v7608 = vpop.f32.mrb[0].mxu0
    %v7609 = vadd.f32 %v7568, %v7608
    %v7610 = vpop.f32.mrb[0].mxu0
    %v7611 = vpop.f32.mrb[0].mxu0
    %7612 = vdwg.mxu0
    %7613 = vmatprep.subr.bf16.mxu0 %v5323
    %7614 = vmatpush1.bf16.msra.mxu0 %v5322
    %7615 = vmatprep.subr.bf16.mxu0 %v5335
    %7616 = vmatpush1.bf16.msra.mxu0 %v5334
    %7617 = vmatprep.subr.bf16.mxu0 %v5347
    %7618 = vmatpush1.bf16.msra.mxu0 %v5346
    %7619 = vmatprep.subr.bf16.mxu0 %v5359
    %7620 = vmatpush1.bf16.msra.mxu0 %v5358
    %7621 = vmatprep.subr.bf16.mxu0 %v5371
    %7622 = vmatpush1.bf16.msra.mxu0 %v5370
    %7623 = vmatprep.subr.bf16.mxu0 %v5383
    %7624 = vmatpush1.bf16.msra.mxu0 %v5382
    %7625 = vmatprep.subr.bf16.mxu0 %v5395
    %7626 = vmatpush1.bf16.msra.mxu0 %v5394
    %7627 = vmatprep.subr.bf16.mxu0 %v5407
    %7628 = vmatpush1.bf16.msra.mxu0 %v5406
    %7629 = vmatprep.subr.bf16.mxu0 %v5419
    %7630 = vmatpush1.bf16.msra.mxu0 %v5418
    %7631 = vmatprep.subr.bf16.mxu0 %v5431
    %7632 = vmatpush1.bf16.msra.mxu0 %v5430
    %7633 = vmatprep.subr.bf16.mxu0 %v5443
    %7634 = vmatpush1.bf16.msra.mxu0 %v5442
    %7635 = vmatprep.subr.bf16.mxu0 %v5455
    %7636 = vmatpush1.bf16.msra.mxu0 %v5454
    %7637 = vmatprep.subr.bf16.mxu0 %v5467
    %7638 = vmatpush1.bf16.msra.mxu0 %v5466
    %7639 = vmatprep.subr.bf16.mxu0 %v5479
    %7640 = vmatpush1.bf16.msra.mxu0 %v5478
    %7641 = vmatprep.subr.bf16.mxu0 %v5491
    %7642 = vmatpush1.bf16.msra.mxu0 %v5490
    %7643 = vmatprep.subr.bf16.mxu0 %v5503
    %7644 = vmatpush1.bf16.msra.mxu0 %v5502
    %7645 = vmatprep.mubr.bf16.mxu0 %v3958
    %7646 = vmatmul.mubr.bf16.gmra.mrb[0].mxu0 %v3957
    %v7647 = vpop.f32.mrb[0].mxu0
    %v7648 = vadd.f32 %v7607, %v7647
    %v7649 = vpop.f32.mrb[0].mxu0
    %v7650 = vadd.f32 %v7609, %v7649
    %v7651 = vpop.f32.mrb[0].mxu0
    %v7652 = vpop.f32.mrb[0].mxu0
    %7653 = vdwg.mxu0
    %7654 = vmatprep.subr.bf16.mxu0 %v5515
    %7655 = vmatpush1.bf16.msra.mxu0 %v5514
    %7656 = vmatprep.subr.bf16.mxu0 %v5527
    %7657 = vmatpush1.bf16.msra.mxu0 %v5526
    %7658 = vmatprep.subr.bf16.mxu0 %v5539
    %7659 = vmatpush1.bf16.msra.mxu0 %v5538
    %7660 = vmatprep.subr.bf16.mxu0 %v5551
    %7661 = vmatpush1.bf16.msra.mxu0 %v5550
    %7662 = vmatprep.subr.bf16.mxu0 %v5563
    %7663 = vmatpush1.bf16.msra.mxu0 %v5562
    %7664 = vmatprep.subr.bf16.mxu0 %v5575
    %7665 = vmatpush1.bf16.msra.mxu0 %v5574
    %7666 = vmatprep.subr.bf16.mxu0 %v5587
    %7667 = vmatpush1.bf16.msra.mxu0 %v5586
    %7668 = vmatprep.subr.bf16.mxu0 %v5599
    %7669 = vmatpush1.bf16.msra.mxu0 %v5598
    %7670 = vmatprep.subr.bf16.mxu0 %v5611
    %7671 = vmatpush1.bf16.msra.mxu0 %v5610
    %7672 = vmatprep.subr.bf16.mxu0 %v5623
    %7673 = vmatpush1.bf16.msra.mxu0 %v5622
    %7674 = vmatprep.subr.bf16.mxu0 %v5635
    %7675 = vmatpush1.bf16.msra.mxu0 %v5634
    %7676 = vmatprep.subr.bf16.mxu0 %v5647
    %7677 = vmatpush1.bf16.msra.mxu0 %v5646
    %7678 = vmatprep.subr.bf16.mxu0 %v5659
    %7679 = vmatpush1.bf16.msra.mxu0 %v5658
    %7680 = vmatprep.subr.bf16.mxu0 %v5671
    %7681 = vmatpush1.bf16.msra.mxu0 %v5670
    %7682 = vmatprep.subr.bf16.mxu0 %v5683
    %7683 = vmatpush1.bf16.msra.mxu0 %v5682
    %7684 = vmatprep.subr.bf16.mxu0 %v5695
    %7685 = vmatpush1.bf16.msra.mxu0 %v5694
    %7686 = vmatprep.mubr.bf16.mxu0 %v3960
    %7687 = vmatmul.mubr.bf16.gmra.mrb[0].mxu0 %v3959
    %v7688 = vpop.f32.mrb[0].mxu0
    %v7689 = vadd.f32 %v7648, %v7688
    %v7690 = vpop.f32.mrb[0].mxu0
    %v7691 = vadd.f32 %v7650, %v7690
    %v7692 = vpop.f32.mrb[0].mxu0
    %v7693 = vpop.f32.mrb[0].mxu0
    %7694 = vdwg.mxu0
    %7695 = vmatprep.subr.bf16.mxu0 %v5707
    %7696 = vmatpush1.bf16.msra.mxu0 %v5706
    %7697 = vmatprep.subr.bf16.mxu0 %v5719
    %7698 = vmatpush1.bf16.msra.mxu0 %v5718
    %7699 = vmatprep.subr.bf16.mxu0 %v5731
    %7700 = vmatpush1.bf16.msra.mxu0 %v5730
    %7701 = vmatprep.subr.bf16.mxu0 %v5743
    %7702 = vmatpush1.bf16.msra.mxu0 %v5742
    %7703 = vmatprep.subr.bf16.mxu0 %v5755
    %7704 = vmatpush1.bf16.msra.mxu0 %v5754
    %7705 = vmatprep.subr.bf16.mxu0 %v5767
    %7706 = vmatpush1.bf16.msra.mxu0 %v5766
    %7707 = vmatprep.subr.bf16.mxu0 %v5779
    %7708 = vmatpush1.bf16.msra.mxu0 %v5778
    %7709 = vmatprep.subr.bf16.mxu0 %v5791
    %7710 = vmatpush1.bf16.msra.mxu0 %v5790
    %7711 = vmatprep.subr.bf16.mxu0 %v5803
    %7712 = vmatpush1.bf16.msra.mxu0 %v5802
    %7713 = vmatprep.subr.bf16.mxu0 %v5815
    %7714 = vmatpush1.bf16.msra.mxu0 %v5814
    %7715 = vmatprep.subr.bf16.mxu0 %v5827
    %7716 = vmatpush1.bf16.msra.mxu0 %v5826
    %7717 = vmatprep.subr.bf16.mxu0 %v5839
    %7718 = vmatpush1.bf16.msra.mxu0 %v5838
    %7719 = vmatprep.subr.bf16.mxu0 %v5851
    %7720 = vmatpush1.bf16.msra.mxu0 %v5850
    %7721 = vmatprep.subr.bf16.mxu0 %v5863
    %7722 = vmatpush1.bf16.msra.mxu0 %v5862
    %7723 = vmatprep.subr.bf16.mxu0 %v5875
    %7724 = vmatpush1.bf16.msra.mxu0 %v5874
    %7725 = vmatprep.subr.bf16.mxu0 %v5887
    %7726 = vmatpush1.bf16.msra.mxu0 %v5886
    %7727 = vmatprep.mubr.bf16.mxu0 %v3962
    %7728 = vmatmul.mubr.bf16.gmra.mrb[0].mxu0 %v3961
    %v7729 = vpop.f32.mrb[0].mxu0
    %v7730 = vadd.f32 %v7689, %v7729
    %v7731 = vpop.f32.mrb[0].mxu0
    %v7732 = vadd.f32 %v7691, %v7731
    %v7733 = vpop.f32.mrb[0].mxu0
    %v7734 = vpop.f32.mrb[0].mxu0
    %7735 = vdwg.mxu0
    %7736 = vmatprep.subr.bf16.mxu0 %v5899
    %7737 = vmatpush1.bf16.msra.mxu0 %v5898
    %7738 = vmatprep.subr.bf16.mxu0 %v5911
    %7739 = vmatpush1.bf16.msra.mxu0 %v5910
    %7740 = vmatprep.subr.bf16.mxu0 %v5923
    %7741 = vmatpush1.bf16.msra.mxu0 %v5922
    %7742 = vmatprep.subr.bf16.mxu0 %v5935
    %7743 = vmatpush1.bf16.msra.mxu0 %v5934
    %7744 = vmatprep.subr.bf16.mxu0 %v5947
    %7745 = vmatpush1.bf16.msra.mxu0 %v5946
    %7746 = vmatprep.subr.bf16.mxu0 %v5959
    %7747 = vmatpush1.bf16.msra.mxu0 %v5958
    %7748 = vmatprep.subr.bf16.mxu0 %v5971
    %7749 = vmatpush1.bf16.msra.mxu0 %v5970
    %7750 = vmatprep.subr.bf16.mxu0 %v5983
    %7751 = vmatpush1.bf16.msra.mxu0 %v5982
    %7752 = vmatprep.subr.bf16.mxu0 %v5995
    %7753 = vmatpush1.bf16.msra.mxu0 %v5994
    %7754 = vmatprep.subr.bf16.mxu0 %v6007
    %7755 = vmatpush1.bf16.msra.mxu0 %v6006
    %7756 = vmatprep.subr.bf16.mxu0 %v6019
    %7757 = vmatpush1.bf16.msra.mxu0 %v6018
    %7758 = vmatprep.subr.bf16.mxu0 %v6031
    %7759 = vmatpush1.bf16.msra.mxu0 %v6030
    %7760 = vmatprep.subr.bf16.mxu0 %v6043
    %7761 = vmatpush1.bf16.msra.mxu0 %v6042
    %7762 = vmatprep.subr.bf16.mxu0 %v6055
    %7763 = vmatpush1.bf16.msra.mxu0 %v6054
    %7764 = vmatprep.subr.bf16.mxu0 %v6067
    %7765 = vmatpush1.bf16.msra.mxu0 %v6066
    %7766 = vmatprep.subr.bf16.mxu0 %v6079
    %7767 = vmatpush1.bf16.msra.mxu0 %v6078
    %7768 = vmatprep.mubr.bf16.mxu0 %v3964
    %7769 = vmatmul.mubr.bf16.gmra.mrb[0].mxu0 %v3963
    %v7770 = vpop.f32.mrb[0].mxu0
    %v7771 = vadd.f32 %v7730, %v7770
    %v7772 = vpop.f32.mrb[0].mxu0
    %v7773 = vadd.f32 %v7732, %v7772
    %v7774 = vpop.f32.mrb[0].mxu0
    %v7775 = vpop.f32.mrb[0].mxu0
    %7776 = vdwg.mxu0
    %7777 = vmatprep.subr.bf16.mxu0 %v6091
    %7778 = vmatpush1.bf16.msra.mxu0 %v6090
    %7779 = vmatprep.subr.bf16.mxu0 %v6103
    %7780 = vmatpush1.bf16.msra.mxu0 %v6102
    %7781 = vmatprep.subr.bf16.mxu0 %v6115
    %7782 = vmatpush1.bf16.msra.mxu0 %v6114
    %7783 = vmatprep.subr.bf16.mxu0 %v6127
    %7784 = vmatpush1.bf16.msra.mxu0 %v6126
    %7785 = vmatprep.subr.bf16.mxu0 %v6139
    %7786 = vmatpush1.bf16.msra.mxu0 %v6138
    %7787 = vmatprep.subr.bf16.mxu0 %v6151
    %7788 = vmatpush1.bf16.msra.mxu0 %v6150
    %7789 = vmatprep.subr.bf16.mxu0 %v6163
    %7790 = vmatpush1.bf16.msra.mxu0 %v6162
    %7791 = vmatprep.subr.bf16.mxu0 %v6175
    %7792 = vmatpush1.bf16.msra.mxu0 %v6174
    %7793 = vmatprep.subr.bf16.mxu0 %v6187
    %7794 = vmatpush1.bf16.msra.mxu0 %v6186
    %7795 = vmatprep.subr.bf16.mxu0 %v6199
    %7796 = vmatpush1.bf16.msra.mxu0 %v6198
    %7797 = vmatprep.subr.bf16.mxu0 %v6211
    %7798 = vmatpush1.bf16.msra.mxu0 %v6210
    %7799 = vmatprep.subr.bf16.mxu0 %v6223
    %7800 = vmatpush1.bf16.msra.mxu0 %v6222
    %7801 = vmatprep.subr.bf16.mxu0 %v6235
    %7802 = vmatpush1.bf16.msra.mxu0 %v6234
    %7803 = vmatprep.subr.bf16.mxu0 %v6247
    %7804 = vmatpush1.bf16.msra.mxu0 %v6246
    %7805 = vmatprep.subr.bf16.mxu0 %v6259
    %7806 = vmatpush1.bf16.msra.mxu0 %v6258
    %7807 = vmatprep.subr.bf16.mxu0 %v6271
    %7808 = vmatpush1.bf16.msra.mxu0 %v6270
    %7809 = vmatprep.mubr.bf16.mxu0 %v3966
    %7810 = vmatmul.mubr.bf16.gmra.mrb[0].mxu0 %v3965
    %v7811 = vpop.f32.mrb[0].mxu0
    %v7812 = vadd.f32 %v7771, %v7811
    %v7813 = vpop.f32.mrb[0].mxu0
    %v7814 = vadd.f32 %v7773, %v7813
    %v7815 = vpop.f32.mrb[0].mxu0
    %v7816 = vpop.f32.mrb[0].mxu0
    %7817 = vdwg.mxu0
    %7818 = vmatprep.subr.bf16.mxu0 %v3981
    %7819 = vmatpush1.bf16.msra.mxu0 %v3980
    %7820 = vmatprep.subr.bf16.mxu0 %v3993
    %7821 = vmatpush1.bf16.msra.mxu0 %v3992
    %7822 = vmatprep.subr.bf16.mxu0 %v4005
    %7823 = vmatpush1.bf16.msra.mxu0 %v4004
    %7824 = vmatprep.subr.bf16.mxu0 %v4017
    %7825 = vmatpush1.bf16.msra.mxu0 %v4016
    %7826 = vmatprep.subr.bf16.mxu0 %v4029
    %7827 = vmatpush1.bf16.msra.mxu0 %v4028
    %7828 = vmatprep.subr.bf16.mxu0 %v4041
    %7829 = vmatpush1.bf16.msra.mxu0 %v4040
    %7830 = vmatprep.subr.bf16.mxu0 %v4053
    %7831 = vmatpush1.bf16.msra.mxu0 %v4052
    %7832 = vmatprep.subr.bf16.mxu0 %v4065
    %7833 = vmatpush1.bf16.msra.mxu0 %v4064
    %7834 = vmatprep.subr.bf16.mxu0 %v4077
    %7835 = vmatpush1.bf16.msra.mxu0 %v4076
    %7836 = vmatprep.subr.bf16.mxu0 %v4089
    %7837 = vmatpush1.bf16.msra.mxu0 %v4088
    %7838 = vmatprep.subr.bf16.mxu0 %v4101
    %7839 = vmatpush1.bf16.msra.mxu0 %v4100
    %7840 = vmatprep.subr.bf16.mxu0 %v4113
    %7841 = vmatpush1.bf16.msra.mxu0 %v4112
    %7842 = vmatprep.subr.bf16.mxu0 %v4125
    %7843 = vmatpush1.bf16.msra.mxu0 %v4124
    %7844 = vmatprep.subr.bf16.mxu0 %v4137
    %7845 = vmatpush1.bf16.msra.mxu0 %v4136
    %7846 = vmatprep.subr.bf16.mxu0 %v4149
    %7847 = vmatpush1.bf16.msra.mxu0 %v4148
    %7848 = vmatprep.subr.bf16.mxu0 %v4161
    %7849 = vmatpush1.bf16.msra.mxu0 %v4160
    %7850 = vmatprep.mubr.bf16.mxu0 %v3944
    %7851 = vmatmul.mubr.bf16.gmra.mrb[0].mxu0 %v3943
    %v7852 = vpop.f32.mrb[0].mxu0
    %v7853 = vadd.f32 %v6309, %v7852
    %v7854 = vpop.f32.mrb[0].mxu0
    %v7855 = vadd.f32 %v6313, %v7854
    %v7856 = vpop.f32.mrb[0].mxu0
    %v7857 = vpop.f32.mrb[0].mxu0
    %7858 = vdwg.mxu0
    %7859 = vmatprep.subr.bf16.mxu0 %v4173
    %7860 = vmatpush1.bf16.msra.mxu0 %v4172
    %7861 = vmatprep.subr.bf16.mxu0 %v4185
    %7862 = vmatpush1.bf16.msra.mxu0 %v4184
    %7863 = vmatprep.subr.bf16.mxu0 %v4197
    %7864 = vmatpush1.bf16.msra.mxu0 %v4196
    %7865 = vmatprep.subr.bf16.mxu0 %v4209
    %7866 = vmatpush1.bf16.msra.mxu0 %v4208
    %7867 = vmatprep.subr.bf16.mxu0 %v4221
    %7868 = vmatpush1.bf16.msra.mxu0 %v4220
    %7869 = vmatprep.subr.bf16.mxu0 %v4233
    %7870 = vmatpush1.bf16.msra.mxu0 %v4232
    %7871 = vmatprep.subr.bf16.mxu0 %v4245
    %7872 = vmatpush1.bf16.msra.mxu0 %v4244
    %7873 = vmatprep.subr.bf16.mxu0 %v4257
    %7874 = vmatpush1.bf16.msra.mxu0 %v4256
    %7875 = vmatprep.subr.bf16.mxu0 %v4269
    %7876 = vmatpush1.bf16.msra.mxu0 %v4268
    %7877 = vmatprep.subr.bf16.mxu0 %v4281
    %7878 = vmatpush1.bf16.msra.mxu0 %v4280
    %7879 = vmatprep.subr.bf16.mxu0 %v4293
    %7880 = vmatpush1.bf16.msra.mxu0 %v4292
    %7881 = vmatprep.subr.bf16.mxu0 %v4305
    %7882 = vmatpush1.bf16.msra.mxu0 %v4304
    %7883 = vmatprep.subr.bf16.mxu0 %v4317
    %7884 = vmatpush1.bf16.msra.mxu0 %v4316
    %7885 = vmatprep.subr.bf16.mxu0 %v4329
    %7886 = vmatpush1.bf16.msra.mxu0 %v4328
    %7887 = vmatprep.subr.bf16.mxu0 %v4341
    %7888 = vmatpush1.bf16.msra.mxu0 %v4340
    %7889 = vmatprep.subr.bf16.mxu0 %v4353
    %7890 = vmatpush1.bf16.msra.mxu0 %v4352
    %7891 = vmatprep.mubr.bf16.mxu0 %v3946
    %7892 = vmatmul.mubr.bf16.gmra.mrb[0].mxu0 %v3945
    %v7893 = vpop.f32.mrb[0].mxu0
    %v7894 = vadd.f32 %v7853, %v7893
    %v7895 = vpop.f32.mrb[0].mxu0
    %v7896 = vadd.f32 %v7855, %v7895
    %v7897 = vpop.f32.mrb[0].mxu0
    %v7898 = vpop.f32.mrb[0].mxu0
    %7899 = vdwg.mxu0
    %7900 = vmatprep.subr.bf16.mxu0 %v4365
    %7901 = vmatpush1.bf16.msra.mxu0 %v4364
    %7902 = vmatprep.subr.bf16.mxu0 %v4377
    %7903 = vmatpush1.bf16.msra.mxu0 %v4376
    %7904 = vmatprep.subr.bf16.mxu0 %v4389
    %7905 = vmatpush1.bf16.msra.mxu0 %v4388
    %7906 = vmatprep.subr.bf16.mxu0 %v4401
    %7907 = vmatpush1.bf16.msra.mxu0 %v4400
    %7908 = vmatprep.subr.bf16.mxu0 %v4413
    %7909 = vmatpush1.bf16.msra.mxu0 %v4412
    %7910 = vmatprep.subr.bf16.mxu0 %v4425
    %7911 = vmatpush1.bf16.msra.mxu0 %v4424
    %7912 = vmatprep.subr.bf16.mxu0 %v4437
    %7913 = vmatpush1.bf16.msra.mxu0 %v4436
    %7914 = vmatprep.subr.bf16.mxu0 %v4449
    %7915 = vmatpush1.bf16.msra.mxu0 %v4448
    %7916 = vmatprep.subr.bf16.mxu0 %v4461
    %7917 = vmatpush1.bf16.msra.mxu0 %v4460
    %7918 = vmatprep.subr.bf16.mxu0 %v4473
    %7919 = vmatpush1.bf16.msra.mxu0 %v4472
    %7920 = vmatprep.subr.bf16.mxu0 %v4485
    %7921 = vmatpush1.bf16.msra.mxu0 %v4484
    %7922 = vmatprep.subr.bf16.mxu0 %v4497
    %7923 = vmatpush1.bf16.msra.mxu0 %v4496
    %7924 = vmatprep.subr.bf16.mxu0 %v4509
    %7925 = vmatpush1.bf16.msra.mxu0 %v4508
    %7926 = vmatprep.subr.bf16.mxu0 %v4521
    %7927 = vmatpush1.bf16.msra.mxu0 %v4520
    %7928 = vmatprep.subr.bf16.mxu0 %v4533
    %7929 = vmatpush1.bf16.msra.mxu0 %v4532
    %7930 = vmatprep.subr.bf16.mxu0 %v4545
    %7931 = vmatpush1.bf16.msra.mxu0 %v4544
    %7932 = vmatprep.mubr.bf16.mxu0 %v3948
    %7933 = vmatmul.mubr.bf16.gmra.mrb[0].mxu0 %v3947
    %v7934 = vpop.f32.mrb[0].mxu0
    %v7935 = vadd.f32 %v7894, %v7934
    %v7936 = vpop.f32.mrb[0].mxu0
    %v7937 = vadd.f32 %v7896, %v7936
    %v7938 = vpop.f32.mrb[0].mxu0
    %v7939 = vpop.f32.mrb[0].mxu0
    %7940 = vdwg.mxu0
    %7941 = vmatprep.subr.bf16.mxu0 %v4557
    %7942 = vmatpush1.bf16.msra.mxu0 %v4556
    %7943 = vmatprep.subr.bf16.mxu0 %v4569
    %7944 = vmatpush1.bf16.msra.mxu0 %v4568
    %7945 = vmatprep.subr.bf16.mxu0 %v4581
    %7946 = vmatpush1.bf16.msra.mxu0 %v4580
    %7947 = vmatprep.subr.bf16.mxu0 %v4593
    %7948 = vmatpush1.bf16.msra.mxu0 %v4592
    %7949 = vmatprep.subr.bf16.mxu0 %v4605
    %7950 = vmatpush1.bf16.msra.mxu0 %v4604
    %7951 = vmatprep.subr.bf16.mxu0 %v4617
    %7952 = vmatpush1.bf16.msra.mxu0 %v4616
    %7953 = vmatprep.subr.bf16.mxu0 %v4629
    %7954 = vmatpush1.bf16.msra.mxu0 %v4628
    %7955 = vmatprep.subr.bf16.mxu0 %v4641
    %7956 = vmatpush1.bf16.msra.mxu0 %v4640
    %7957 = vmatprep.subr.bf16.mxu0 %v4653
    %7958 = vmatpush1.bf16.msra.mxu0 %v4652
    %7959 = vmatprep.subr.bf16.mxu0 %v4665
    %7960 = vmatpush1.bf16.msra.mxu0 %v4664
    %7961 = vmatprep.subr.bf16.mxu0 %v4677
    %7962 = vmatpush1.bf16.msra.mxu0 %v4676
    %7963 = vmatprep.subr.bf16.mxu0 %v4689
    %7964 = vmatpush1.bf16.msra.mxu0 %v4688
    %7965 = vmatprep.subr.bf16.mxu0 %v4701
    %7966 = vmatpush1.bf16.msra.mxu0 %v4700
    %7967 = vmatprep.subr.bf16.mxu0 %v4713
    %7968 = vmatpush1.bf16.msra.mxu0 %v4712
    %7969 = vmatprep.subr.bf16.mxu0 %v4725
    %7970 = vmatpush1.bf16.msra.mxu0 %v4724
    %7971 = vmatprep.subr.bf16.mxu0 %v4737
    %7972 = vmatpush1.bf16.msra.mxu0 %v4736
    %7973 = vmatprep.mubr.bf16.mxu0 %v3950
    %7974 = vmatmul.mubr.bf16.gmra.mrb[0].mxu0 %v3949
    %v7975 = vpop.f32.mrb[0].mxu0
    %v7976 = vadd.f32 %v7935, %v7975
    %v7977 = vpop.f32.mrb[0].mxu0
    %v7978 = vadd.f32 %v7937, %v7977
    %v7979 = vpop.f32.mrb[0].mxu0
    %v7980 = vpop.f32.mrb[0].mxu0
    %7981 = vdwg.mxu0
    %7982 = vmatprep.subr.bf16.mxu0 %v4749
    %7983 = vmatpush1.bf16.msra.mxu0 %v4748
    %7984 = vmatprep.subr.bf16.mxu0 %v4761
    %7985 = vmatpush1.bf16.msra.mxu0 %v4760
    %7986 = vmatprep.subr.bf16.mxu0 %v4773
    %7987 = vmatpush1.bf16.msra.mxu0 %v4772
    %7988 = vmatprep.subr.bf16.mxu0 %v4785
    %7989 = vmatpush1.bf16.msra.mxu0 %v4784
    %7990 = vmatprep.subr.bf16.mxu0 %v4797
    %7991 = vmatpush1.bf16.msra.mxu0 %v4796
    %7992 = vmatprep.subr.bf16.mxu0 %v4809
    %7993 = vmatpush1.bf16.msra.mxu0 %v4808
    %7994 = vmatprep.subr.bf16.mxu0 %v4821
    %7995 = vmatpush1.bf16.msra.mxu0 %v4820
    %7996 = vmatprep.subr.bf16.mxu0 %v4833
    %7997 = vmatpush1.bf16.msra.mxu0 %v4832
    %7998 = vmatprep.subr.bf16.mxu0 %v4845
    %7999 = vmatpush1.bf16.msra.mxu0 %v4844
    %8000 = vmatprep.subr.bf16.mxu0 %v4857
    %8001 = vmatpush1.bf16.msra.mxu0 %v4856
    %8002 = vmatprep.subr.bf16.mxu0 %v4869
    %8003 = vmatpush1.bf16.msra.mxu0 %v4868
    %8004 = vmatprep.subr.bf16.mxu0 %v4881
    %8005 = vmatpush1.bf16.msra.mxu0 %v4880
    %8006 = vmatprep.subr.bf16.mxu0 %v4893
    %8007 = vmatpush1.bf16.msra.mxu0 %v4892
    %8008 = vmatprep.subr.bf16.mxu0 %v4905
    %8009 = vmatpush1.bf16.msra.mxu0 %v4904
    %8010 = vmatprep.subr.bf16.mxu0 %v4917
    %8011 = vmatpush1.bf16.msra.mxu0 %v4916
    %8012 = vmatprep.subr.bf16.mxu0 %v4929
    %8013 = vmatpush1.bf16.msra.mxu0 %v4928
    %8014 = vmatprep.mubr.bf16.mxu0 %v3952
    %8015 = vmatmul.mubr.bf16.gmra.mrb[0].mxu0 %v3951
    %v8016 = vpop.f32.mrb[0].mxu0
    %v8017 = vadd.f32 %v7976, %v8016
    %v8018 = vpop.f32.mrb[0].mxu0
    %v8019 = vadd.f32 %v7978, %v8018
    %v8020 = vpop.f32.mrb[0].mxu0
    %v8021 = vpop.f32.mrb[0].mxu0
    %8022 = vdwg.mxu0
    %8023 = vmatprep.subr.bf16.mxu0 %v4941
    %8024 = vmatpush1.bf16.msra.mxu0 %v4940
    %8025 = vmatprep.subr.bf16.mxu0 %v4953
    %8026 = vmatpush1.bf16.msra.mxu0 %v4952
    %8027 = vmatprep.subr.bf16.mxu0 %v4965
    %8028 = vmatpush1.bf16.msra.mxu0 %v4964
    %8029 = vmatprep.subr.bf16.mxu0 %v4977
    %8030 = vmatpush1.bf16.msra.mxu0 %v4976
    %8031 = vmatprep.subr.bf16.mxu0 %v4989
    %8032 = vmatpush1.bf16.msra.mxu0 %v4988
    %8033 = vmatprep.subr.bf16.mxu0 %v5001
    %8034 = vmatpush1.bf16.msra.mxu0 %v5000
    %8035 = vmatprep.subr.bf16.mxu0 %v5013
    %8036 = vmatpush1.bf16.msra.mxu0 %v5012
    %8037 = vmatprep.subr.bf16.mxu0 %v5025
    %8038 = vmatpush1.bf16.msra.mxu0 %v5024
    %8039 = vmatprep.subr.bf16.mxu0 %v5037
    %8040 = vmatpush1.bf16.msra.mxu0 %v5036
    %8041 = vmatprep.subr.bf16.mxu0 %v5049
    %8042 = vmatpush1.bf16.msra.mxu0 %v5048
    %8043 = vmatprep.subr.bf16.mxu0 %v5061
    %8044 = vmatpush1.bf16.msra.mxu0 %v5060
    %8045 = vmatprep.subr.bf16.mxu0 %v5073
    %8046 = vmatpush1.bf16.msra.mxu0 %v5072
    %8047 = vmatprep.subr.bf16.mxu0 %v5085
    %8048 = vmatpush1.bf16.msra.mxu0 %v5084
    %8049 = vmatprep.subr.bf16.mxu0 %v5097
    %8050 = vmatpush1.bf16.msra.mxu0 %v5096
    %8051 = vmatprep.subr.bf16.mxu0 %v5109
    %8052 = vmatpush1.bf16.msra.mxu0 %v5108
    %8053 = vmatprep.subr.bf16.mxu0 %v5121
    %8054 = vmatpush1.bf16.msra.mxu0 %v5120
    %8055 = vmatprep.mubr.bf16.mxu0 %v3954
    %8056 = vmatmul.mubr.bf16.gmra.mrb[0].mxu0 %v3953
    %v8057 = vpop.f32.mrb[0].mxu0
    %v8058 = vadd.f32 %v8017, %v8057
    %v8059 = vpop.f32.mrb[0].mxu0
    %v8060 = vadd.f32 %v8019, %v8059
    %v8061 = vpop.f32.mrb[0].mxu0
    %v8062 = vpop.f32.mrb[0].mxu0
    %8063 = vdwg.mxu0
    %8064 = vmatprep.subr.bf16.mxu0 %v5133
    %8065 = vmatpush1.bf16.msra.mxu0 %v5132
    %8066 = vmatprep.subr.bf16.mxu0 %v5145
    %8067 = vmatpush1.bf16.msra.mxu0 %v5144
    %8068 = vmatprep.subr.bf16.mxu0 %v5157
    %8069 = vmatpush1.bf16.msra.mxu0 %v5156
    %8070 = vmatprep.subr.bf16.mxu0 %v5169
    %8071 = vmatpush1.bf16.msra.mxu0 %v5168
    %8072 = vmatprep.subr.bf16.mxu0 %v5181
    %8073 = vmatpush1.bf16.msra.mxu0 %v5180
    %8074 = vmatprep.subr.bf16.mxu0 %v5193
    %8075 = vmatpush1.bf16.msra.mxu0 %v5192
    %8076 = vmatprep.subr.bf16.mxu0 %v5205
    %8077 = vmatpush1.bf16.msra.mxu0 %v5204
    %8078 = vmatprep.subr.bf16.mxu0 %v5217
    %8079 = vmatpush1.bf16.msra.mxu0 %v5216
    %8080 = vmatprep.subr.bf16.mxu0 %v5229
    %8081 = vmatpush1.bf16.msra.mxu0 %v5228
    %8082 = vmatprep.subr.bf16.mxu0 %v5241
    %8083 = vmatpush1.bf16.msra.mxu0 %v5240
    %8084 = vmatprep.subr.bf16.mxu0 %v5253
    %8085 = vmatpush1.bf16.msra.mxu0 %v5252
    %8086 = vmatprep.subr.bf16.mxu0 %v5265
    %8087 = vmatpush1.bf16.msra.mxu0 %v5264
    %8088 = vmatprep.subr.bf16.mxu0 %v5277
    %8089 = vmatpush1.bf16.msra.mxu0 %v5276
    %8090 = vmatprep.subr.bf16.mxu0 %v5289
    %8091 = vmatpush1.bf16.msra.mxu0 %v5288
    %8092 = vmatprep.subr.bf16.mxu0 %v5301
    %8093 = vmatpush1.bf16.msra.mxu0 %v5300
    %8094 = vmatprep.subr.bf16.mxu0 %v5313
    %8095 = vmatpush1.bf16.msra.mxu0 %v5312
    %8096 = vmatprep.mubr.bf16.mxu0 %v3956
    %8097 = vmatmul.mubr.bf16.gmra.mrb[0].mxu0 %v3955
    %v8098 = vpop.f32.mrb[0].mxu0
    %v8099 = vadd.f32 %v8058, %v8098
    %v8100 = vpop.f32.mrb[0].mxu0
    %v8101 = vadd.f32 %v8060, %v8100
    %v8102 = vpop.f32.mrb[0].mxu0
    %v8103 = vpop.f32.mrb[0].mxu0
    %8104 = vdwg.mxu0
    %8105 = vmatprep.subr.bf16.mxu0 %v5325
    %8106 = vmatpush1.bf16.msra.mxu0 %v5324
    %8107 = vmatprep.subr.bf16.mxu0 %v5337
    %8108 = vmatpush1.bf16.msra.mxu0 %v5336
    %8109 = vmatprep.subr.bf16.mxu0 %v5349
    %8110 = vmatpush1.bf16.msra.mxu0 %v5348
    %8111 = vmatprep.subr.bf16.mxu0 %v5361
    %8112 = vmatpush1.bf16.msra.mxu0 %v5360
    %8113 = vmatprep.subr.bf16.mxu0 %v5373
    %8114 = vmatpush1.bf16.msra.mxu0 %v5372
    %8115 = vmatprep.subr.bf16.mxu0 %v5385
    %8116 = vmatpush1.bf16.msra.mxu0 %v5384
    %8117 = vmatprep.subr.bf16.mxu0 %v5397
    %8118 = vmatpush1.bf16.msra.mxu0 %v5396
    %8119 = vmatprep.subr.bf16.mxu0 %v5409
    %8120 = vmatpush1.bf16.msra.mxu0 %v5408
    %8121 = vmatprep.subr.bf16.mxu0 %v5421
    %8122 = vmatpush1.bf16.msra.mxu0 %v5420
    %8123 = vmatprep.subr.bf16.mxu0 %v5433
    %8124 = vmatpush1.bf16.msra.mxu0 %v5432
    %8125 = vmatprep.subr.bf16.mxu0 %v5445
    %8126 = vmatpush1.bf16.msra.mxu0 %v5444
    %8127 = vmatprep.subr.bf16.mxu0 %v5457
    %8128 = vmatpush1.bf16.msra.mxu0 %v5456
    %8129 = vmatprep.subr.bf16.mxu0 %v5469
    %8130 = vmatpush1.bf16.msra.mxu0 %v5468
    %8131 = vmatprep.subr.bf16.mxu0 %v5481
    %8132 = vmatpush1.bf16.msra.mxu0 %v5480
    %8133 = vmatprep.subr.bf16.mxu0 %v5493
    %8134 = vmatpush1.bf16.msra.mxu0 %v5492
    %8135 = vmatprep.subr.bf16.mxu0 %v5505
    %8136 = vmatpush1.bf16.msra.mxu0 %v5504
    %8137 = vmatprep.mubr.bf16.mxu0 %v3958
    %8138 = vmatmul.mubr.bf16.gmra.mrb[0].mxu0 %v3957
    %v8139 = vpop.f32.mrb[0].mxu0
    %v8140 = vadd.f32 %v8099, %v8139
    %v8141 = vpop.f32.mrb[0].mxu0
    %v8142 = vadd.f32 %v8101, %v8141
    %v8143 = vpop.f32.mrb[0].mxu0
    %v8144 = vpop.f32.mrb[0].mxu0
    %8145 = vdwg.mxu0
    %8146 = vmatprep.subr.bf16.mxu0 %v5517
    %8147 = vmatpush1.bf16.msra.mxu0 %v5516
    %8148 = vmatprep.subr.bf16.mxu0 %v5529
    %8149 = vmatpush1.bf16.msra.mxu0 %v5528
    %8150 = vmatprep.subr.bf16.mxu0 %v5541
    %8151 = vmatpush1.bf16.msra.mxu0 %v5540
    %8152 = vmatprep.subr.bf16.mxu0 %v5553
    %8153 = vmatpush1.bf16.msra.mxu0 %v5552
    %8154 = vmatprep.subr.bf16.mxu0 %v5565
    %8155 = vmatpush1.bf16.msra.mxu0 %v5564
    %8156 = vmatprep.subr.bf16.mxu0 %v5577
    %8157 = vmatpush1.bf16.msra.mxu0 %v5576
    %8158 = vmatprep.subr.bf16.mxu0 %v5589
    %8159 = vmatpush1.bf16.msra.mxu0 %v5588
    %8160 = vmatprep.subr.bf16.mxu0 %v5601
    %8161 = vmatpush1.bf16.msra.mxu0 %v5600
    %8162 = vmatprep.subr.bf16.mxu0 %v5613
    %8163 = vmatpush1.bf16.msra.mxu0 %v5612
    %8164 = vmatprep.subr.bf16.mxu0 %v5625
    %8165 = vmatpush1.bf16.msra.mxu0 %v5624
    %8166 = vmatprep.subr.bf16.mxu0 %v5637
    %8167 = vmatpush1.bf16.msra.mxu0 %v5636
    %8168 = vmatprep.subr.bf16.mxu0 %v5649
    %8169 = vmatpush1.bf16.msra.mxu0 %v5648
    %8170 = vmatprep.subr.bf16.mxu0 %v5661
    %8171 = vmatpush1.bf16.msra.mxu0 %v5660
    %8172 = vmatprep.subr.bf16.mxu0 %v5673
    %8173 = vmatpush1.bf16.msra.mxu0 %v5672
    %8174 = vmatprep.subr.bf16.mxu0 %v5685
    %8175 = vmatpush1.bf16.msra.mxu0 %v5684
    %8176 = vmatprep.subr.bf16.mxu0 %v5697
    %8177 = vmatpush1.bf16.msra.mxu0 %v5696
    %8178 = vmatprep.mubr.bf16.mxu0 %v3960
    %8179 = vmatmul.mubr.bf16.gmra.mrb[0].mxu0 %v3959
    %v8180 = vpop.f32.mrb[0].mxu0
    %v8181 = vadd.f32 %v8140, %v8180
    %v8182 = vpop.f32.mrb[0].mxu0
    %v8183 = vadd.f32 %v8142, %v8182
    %v8184 = vpop.f32.mrb[0].mxu0
    %v8185 = vpop.f32.mrb[0].mxu0
    %8186 = vdwg.mxu0
    %8187 = vmatprep.subr.bf16.mxu0 %v5709
    %8188 = vmatpush1.bf16.msra.mxu0 %v5708
    %8189 = vmatprep.subr.bf16.mxu0 %v5721
    %8190 = vmatpush1.bf16.msra.mxu0 %v5720
    %8191 = vmatprep.subr.bf16.mxu0 %v5733
    %8192 = vmatpush1.bf16.msra.mxu0 %v5732
    %8193 = vmatprep.subr.bf16.mxu0 %v5745
    %8194 = vmatpush1.bf16.msra.mxu0 %v5744
    %8195 = vmatprep.subr.bf16.mxu0 %v5757
    %8196 = vmatpush1.bf16.msra.mxu0 %v5756
    %8197 = vmatprep.subr.bf16.mxu0 %v5769
    %8198 = vmatpush1.bf16.msra.mxu0 %v5768
    %8199 = vmatprep.subr.bf16.mxu0 %v5781
    %8200 = vmatpush1.bf16.msra.mxu0 %v5780
    %8201 = vmatprep.subr.bf16.mxu0 %v5793
    %8202 = vmatpush1.bf16.msra.mxu0 %v5792
    %8203 = vmatprep.subr.bf16.mxu0 %v5805
    %8204 = vmatpush1.bf16.msra.mxu0 %v5804
    %8205 = vmatprep.subr.bf16.mxu0 %v5817
    %8206 = vmatpush1.bf16.msra.mxu0 %v5816
    %8207 = vmatprep.subr.bf16.mxu0 %v5829
    %8208 = vmatpush1.bf16.msra.mxu0 %v5828
    %8209 = vmatprep.subr.bf16.mxu0 %v5841
    %8210 = vmatpush1.bf16.msra.mxu0 %v5840
    %8211 = vmatprep.subr.bf16.mxu0 %v5853
    %8212 = vmatpush1.bf16.msra.mxu0 %v5852
    %8213 = vmatprep.subr.bf16.mxu0 %v5865
    %8214 = vmatpush1.bf16.msra.mxu0 %v5864
    %8215 = vmatprep.subr.bf16.mxu0 %v5877
    %8216 = vmatpush1.bf16.msra.mxu0 %v5876
    %8217 = vmatprep.subr.bf16.mxu0 %v5889
    %8218 = vmatpush1.bf16.msra.mxu0 %v5888
    %8219 = vmatprep.mubr.bf16.mxu0 %v3962
    %8220 = vmatmul.mubr.bf16.gmra.mrb[0].mxu0 %v3961
    %v8221 = vpop.f32.mrb[0].mxu0
    %v8222 = vadd.f32 %v8181, %v8221
    %v8223 = vpop.f32.mrb[0].mxu0
    %v8224 = vadd.f32 %v8183, %v8223
    %v8225 = vpop.f32.mrb[0].mxu0
    %v8226 = vpop.f32.mrb[0].mxu0
    %8227 = vdwg.mxu0
    %8228 = vmatprep.subr.bf16.mxu0 %v5901
    %8229 = vmatpush1.bf16.msra.mxu0 %v5900
    %8230 = vmatprep.subr.bf16.mxu0 %v5913
    %8231 = vmatpush1.bf16.msra.mxu0 %v5912
    %8232 = vmatprep.subr.bf16.mxu0 %v5925
    %8233 = vmatpush1.bf16.msra.mxu0 %v5924
    %8234 = vmatprep.subr.bf16.mxu0 %v5937
    %8235 = vmatpush1.bf16.msra.mxu0 %v5936
    %8236 = vmatprep.subr.bf16.mxu0 %v5949
    %8237 = vmatpush1.bf16.msra.mxu0 %v5948
    %8238 = vmatprep.subr.bf16.mxu0 %v5961
    %8239 = vmatpush1.bf16.msra.mxu0 %v5960
    %8240 = vmatprep.subr.bf16.mxu0 %v5973
    %8241 = vmatpush1.bf16.msra.mxu0 %v5972
    %8242 = vmatprep.subr.bf16.mxu0 %v5985
    %8243 = vmatpush1.bf16.msra.mxu0 %v5984
    %8244 = vmatprep.subr.bf16.mxu0 %v5997
    %8245 = vmatpush1.bf16.msra.mxu0 %v5996
    %8246 = vmatprep.subr.bf16.mxu0 %v6009
    %8247 = vmatpush1.bf16.msra.mxu0 %v6008
    %8248 = vmatprep.subr.bf16.mxu0 %v6021
    %8249 = vmatpush1.bf16.msra.mxu0 %v6020
    %8250 = vmatprep.subr.bf16.mxu0 %v6033
    %8251 = vmatpush1.bf16.msra.mxu0 %v6032
    %8252 = vmatprep.subr.bf16.mxu0 %v6045
    %8253 = vmatpush1.bf16.msra.mxu0 %v6044
    %8254 = vmatprep.subr.bf16.mxu0 %v6057
    %8255 = vmatpush1.bf16.msra.mxu0 %v6056
    %8256 = vmatprep.subr.bf16.mxu0 %v6069
    %8257 = vmatpush1.bf16.msra.mxu0 %v6068
    %8258 = vmatprep.subr.bf16.mxu0 %v6081
    %8259 = vmatpush1.bf16.msra.mxu0 %v6080
    %8260 = vmatprep.mubr.bf16.mxu0 %v3964
    %8261 = vmatmul.mubr.bf16.gmra.mrb[0].mxu0 %v3963
    %v8262 = vpop.f32.mrb[0].mxu0
    %v8263 = vadd.f32 %v8222, %v8262
    %v8264 = vpop.f32.mrb[0].mxu0
    %v8265 = vadd.f32 %v8224, %v8264
    %v8266 = vpop.f32.mrb[0].mxu0
    %v8267 = vpop.f32.mrb[0].mxu0
    %8268 = vdwg.mxu0
    %8269 = vmatprep.subr.bf16.mxu0 %v6093
    %8270 = vmatpush1.bf16.msra.mxu0 %v6092
    %8271 = vmatprep.subr.bf16.mxu0 %v6105
    %8272 = vmatpush1.bf16.msra.mxu0 %v6104
    %8273 = vmatprep.subr.bf16.mxu0 %v6117
    %8274 = vmatpush1.bf16.msra.mxu0 %v6116
    %8275 = vmatprep.subr.bf16.mxu0 %v6129
    %8276 = vmatpush1.bf16.msra.mxu0 %v6128
    %8277 = vmatprep.subr.bf16.mxu0 %v6141
    %8278 = vmatpush1.bf16.msra.mxu0 %v6140
    %8279 = vmatprep.subr.bf16.mxu0 %v6153
    %8280 = vmatpush1.bf16.msra.mxu0 %v6152
    %8281 = vmatprep.subr.bf16.mxu0 %v6165
    %8282 = vmatpush1.bf16.msra.mxu0 %v6164
    %8283 = vmatprep.subr.bf16.mxu0 %v6177
    %8284 = vmatpush1.bf16.msra.mxu0 %v6176
    %8285 = vmatprep.subr.bf16.mxu0 %v6189
    %8286 = vmatpush1.bf16.msra.mxu0 %v6188
    %8287 = vmatprep.subr.bf16.mxu0 %v6201
    %8288 = vmatpush1.bf16.msra.mxu0 %v6200
    %8289 = vmatprep.subr.bf16.mxu0 %v6213
    %8290 = vmatpush1.bf16.msra.mxu0 %v6212
    %8291 = vmatprep.subr.bf16.mxu0 %v6225
    %8292 = vmatpush1.bf16.msra.mxu0 %v6224
    %8293 = vmatprep.subr.bf16.mxu0 %v6237
    %8294 = vmatpush1.bf16.msra.mxu0 %v6236
    %8295 = vmatprep.subr.bf16.mxu0 %v6249
    %8296 = vmatpush1.bf16.msra.mxu0 %v6248
    %8297 = vmatprep.subr.bf16.mxu0 %v6261
    %8298 = vmatpush1.bf16.msra.mxu0 %v6260
    %8299 = vmatprep.subr.bf16.mxu0 %v6273
    %8300 = vmatpush1.bf16.msra.mxu0 %v6272
    %8301 = vmatprep.mubr.bf16.mxu0 %v3966
    %8302 = vmatmul.mubr.bf16.gmra.mrb[0].mxu0 %v3965
    %v8303 = vpop.f32.mrb[0].mxu0
    %v8304 = vadd.f32 %v8263, %v8303
    %v8305 = vpop.f32.mrb[0].mxu0
    %v8306 = vadd.f32 %v8265, %v8305
    %v8307 = vpop.f32.mrb[0].mxu0
    %v8308 = vpop.f32.mrb[0].mxu0
    %8309 = vdwg.mxu0
    %8310 = vmatprep.subr.bf16.mxu0 %v3983
    %8311 = vmatpush1.bf16.msra.mxu0 %v3982
    %8312 = vmatprep.subr.bf16.mxu0 %v3995
    %8313 = vmatpush1.bf16.msra.mxu0 %v3994
    %8314 = vmatprep.subr.bf16.mxu0 %v4007
    %8315 = vmatpush1.bf16.msra.mxu0 %v4006
    %8316 = vmatprep.subr.bf16.mxu0 %v4019
    %8317 = vmatpush1.bf16.msra.mxu0 %v4018
    %8318 = vmatprep.subr.bf16.mxu0 %v4031
    %8319 = vmatpush1.bf16.msra.mxu0 %v4030
    %8320 = vmatprep.subr.bf16.mxu0 %v4043
    %8321 = vmatpush1.bf16.msra.mxu0 %v4042
    %8322 = vmatprep.subr.bf16.mxu0 %v4055
    %8323 = vmatpush1.bf16.msra.mxu0 %v4054
    %8324 = vmatprep.subr.bf16.mxu0 %v4067
    %8325 = vmatpush1.bf16.msra.mxu0 %v4066
    %8326 = vmatprep.subr.bf16.mxu0 %v4079
    %8327 = vmatpush1.bf16.msra.mxu0 %v4078
    %8328 = vmatprep.subr.bf16.mxu0 %v4091
    %8329 = vmatpush1.bf16.msra.mxu0 %v4090
    %8330 = vmatprep.subr.bf16.mxu0 %v4103
    %8331 = vmatpush1.bf16.msra.mxu0 %v4102
    %8332 = vmatprep.subr.bf16.mxu0 %v4115
    %8333 = vmatpush1.bf16.msra.mxu0 %v4114
    %8334 = vmatprep.subr.bf16.mxu0 %v4127
    %8335 = vmatpush1.bf16.msra.mxu0 %v4126
    %8336 = vmatprep.subr.bf16.mxu0 %v4139
    %8337 = vmatpush1.bf16.msra.mxu0 %v4138
    %8338 = vmatprep.subr.bf16.mxu0 %v4151
    %8339 = vmatpush1.bf16.msra.mxu0 %v4150
    %8340 = vmatprep.subr.bf16.mxu0 %v4163
    %8341 = vmatpush1.bf16.msra.mxu0 %v4162
    %8342 = vmatprep.mubr.bf16.mxu0 %v3944
    %8343 = vmatmul.mubr.bf16.gmra.mrb[0].mxu0 %v3943
    %v8344 = vpop.f32.mrb[0].mxu0
    %v8345 = vadd.f32 %v6317, %v8344
    %v8346 = vpop.f32.mrb[0].mxu0
    %v8347 = vadd.f32 %v6321, %v8346
    %v8348 = vpop.f32.mrb[0].mxu0
    %v8349 = vpop.f32.mrb[0].mxu0
    %8350 = vdwg.mxu0
    %8351 = vmatprep.subr.bf16.mxu0 %v4175
    %8352 = vmatpush1.bf16.msra.mxu0 %v4174
    %8353 = vmatprep.subr.bf16.mxu0 %v4187
    %8354 = vmatpush1.bf16.msra.mxu0 %v4186
    %8355 = vmatprep.subr.bf16.mxu0 %v4199
    %8356 = vmatpush1.bf16.msra.mxu0 %v4198
    %8357 = vmatprep.subr.bf16.mxu0 %v4211
    %8358 = vmatpush1.bf16.msra.mxu0 %v4210
    %8359 = vmatprep.subr.bf16.mxu0 %v4223
    %8360 = vmatpush1.bf16.msra.mxu0 %v4222
    %8361 = vmatprep.subr.bf16.mxu0 %v4235
    %8362 = vmatpush1.bf16.msra.mxu0 %v4234
    %8363 = vmatprep.subr.bf16.mxu0 %v4247
    %8364 = vmatpush1.bf16.msra.mxu0 %v4246
    %8365 = vmatprep.subr.bf16.mxu0 %v4259
    %8366 = vmatpush1.bf16.msra.mxu0 %v4258
    %8367 = vmatprep.subr.bf16.mxu0 %v4271
    %8368 = vmatpush1.bf16.msra.mxu0 %v4270
    %8369 = vmatprep.subr.bf16.mxu0 %v4283
    %8370 = vmatpush1.bf16.msra.mxu0 %v4282
    %8371 = vmatprep.subr.bf16.mxu0 %v4295
    %8372 = vmatpush1.bf16.msra.mxu0 %v4294
    %8373 = vmatprep.subr.bf16.mxu0 %v4307
    %8374 = vmatpush1.bf16.msra.mxu0 %v4306
    %8375 = vmatprep.subr.bf16.mxu0 %v4319
    %8376 = vmatpush1.bf16.msra.mxu0 %v4318
    %8377 = vmatprep.subr.bf16.mxu0 %v4331
    %8378 = vmatpush1.bf16.msra.mxu0 %v4330
    %8379 = vmatprep.subr.bf16.mxu0 %v4343
    %8380 = vmatpush1.bf16.msra.mxu0 %v4342
    %8381 = vmatprep.subr.bf16.mxu0 %v4355
    %8382 = vmatpush1.bf16.msra.mxu0 %v4354
    %8383 = vmatprep.mubr.bf16.mxu0 %v3946
    %8384 = vmatmul.mubr.bf16.gmra.mrb[0].mxu0 %v3945
    %v8385 = vpop.f32.mrb[0].mxu0
    %v8386 = vadd.f32 %v8345, %v8385
    %v8387 = vpop.f32.mrb[0].mxu0
    %v8388 = vadd.f32 %v8347, %v8387
    %v8389 = vpop.f32.mrb[0].mxu0
    %v8390 = vpop.f32.mrb[0].mxu0
    %8391 = vdwg.mxu0
    %8392 = vmatprep.subr.bf16.mxu0 %v4367
    %8393 = vmatpush1.bf16.msra.mxu0 %v4366
    %8394 = vmatprep.subr.bf16.mxu0 %v4379
    %8395 = vmatpush1.bf16.msra.mxu0 %v4378
    %8396 = vmatprep.subr.bf16.mxu0 %v4391
    %8397 = vmatpush1.bf16.msra.mxu0 %v4390
    %8398 = vmatprep.subr.bf16.mxu0 %v4403
    %8399 = vmatpush1.bf16.msra.mxu0 %v4402
    %8400 = vmatprep.subr.bf16.mxu0 %v4415
    %8401 = vmatpush1.bf16.msra.mxu0 %v4414
    %8402 = vmatprep.subr.bf16.mxu0 %v4427
    %8403 = vmatpush1.bf16.msra.mxu0 %v4426
    %8404 = vmatprep.subr.bf16.mxu0 %v4439
    %8405 = vmatpush1.bf16.msra.mxu0 %v4438
    %8406 = vmatprep.subr.bf16.mxu0 %v4451
    %8407 = vmatpush1.bf16.msra.mxu0 %v4450
    %8408 = vmatprep.subr.bf16.mxu0 %v4463
    %8409 = vmatpush1.bf16.msra.mxu0 %v4462
    %8410 = vmatprep.subr.bf16.mxu0 %v4475
    %8411 = vmatpush1.bf16.msra.mxu0 %v4474
    %8412 = vmatprep.subr.bf16.mxu0 %v4487
    %8413 = vmatpush1.bf16.msra.mxu0 %v4486
    %8414 = vmatprep.subr.bf16.mxu0 %v4499
    %8415 = vmatpush1.bf16.msra.mxu0 %v4498
    %8416 = vmatprep.subr.bf16.mxu0 %v4511
    %8417 = vmatpush1.bf16.msra.mxu0 %v4510
    %8418 = vmatprep.subr.bf16.mxu0 %v4523
    %8419 = vmatpush1.bf16.msra.mxu0 %v4522
    %8420 = vmatprep.subr.bf16.mxu0 %v4535
    %8421 = vmatpush1.bf16.msra.mxu0 %v4534
    %8422 = vmatprep.subr.bf16.mxu0 %v4547
    %8423 = vmatpush1.bf16.msra.mxu0 %v4546
    %8424 = vmatprep.mubr.bf16.mxu0 %v3948
    %8425 = vmatmul.mubr.bf16.gmra.mrb[0].mxu0 %v3947
    %v8426 = vpop.f32.mrb[0].mxu0
    %v8427 = vadd.f32 %v8386, %v8426
    %v8428 = vpop.f32.mrb[0].mxu0
    %v8429 = vadd.f32 %v8388, %v8428
    %v8430 = vpop.f32.mrb[0].mxu0
    %v8431 = vpop.f32.mrb[0].mxu0
    %8432 = vdwg.mxu0
    %8433 = vmatprep.subr.bf16.mxu0 %v4559
    %8434 = vmatpush1.bf16.msra.mxu0 %v4558
    %8435 = vmatprep.subr.bf16.mxu0 %v4571
    %8436 = vmatpush1.bf16.msra.mxu0 %v4570
    %8437 = vmatprep.subr.bf16.mxu0 %v4583
    %8438 = vmatpush1.bf16.msra.mxu0 %v4582
    %8439 = vmatprep.subr.bf16.mxu0 %v4595
    %8440 = vmatpush1.bf16.msra.mxu0 %v4594
    %8441 = vmatprep.subr.bf16.mxu0 %v4607
    %8442 = vmatpush1.bf16.msra.mxu0 %v4606
    %8443 = vmatprep.subr.bf16.mxu0 %v4619
    %8444 = vmatpush1.bf16.msra.mxu0 %v4618
    %8445 = vmatprep.subr.bf16.mxu0 %v4631
    %8446 = vmatpush1.bf16.msra.mxu0 %v4630
    %8447 = vmatprep.subr.bf16.mxu0 %v4643
    %8448 = vmatpush1.bf16.msra.mxu0 %v4642
    %8449 = vmatprep.subr.bf16.mxu0 %v4655
    %8450 = vmatpush1.bf16.msra.mxu0 %v4654
    %8451 = vmatprep.subr.bf16.mxu0 %v4667
    %8452 = vmatpush1.bf16.msra.mxu0 %v4666
    %8453 = vmatprep.subr.bf16.mxu0 %v4679
    %8454 = vmatpush1.bf16.msra.mxu0 %v4678
    %8455 = vmatprep.subr.bf16.mxu0 %v4691
    %8456 = vmatpush1.bf16.msra.mxu0 %v4690
    %8457 = vmatprep.subr.bf16.mxu0 %v4703
    %8458 = vmatpush1.bf16.msra.mxu0 %v4702
    %8459 = vmatprep.subr.bf16.mxu0 %v4715
    %8460 = vmatpush1.bf16.msra.mxu0 %v4714
    %8461 = vmatprep.subr.bf16.mxu0 %v4727
    %8462 = vmatpush1.bf16.msra.mxu0 %v4726
    %8463 = vmatprep.subr.bf16.mxu0 %v4739
    %8464 = vmatpush1.bf16.msra.mxu0 %v4738
    %8465 = vmatprep.mubr.bf16.mxu0 %v3950
    %8466 = vmatmul.mubr.bf16.gmra.mrb[0].mxu0 %v3949
    %v8467 = vpop.f32.mrb[0].mxu0
    %v8468 = vadd.f32 %v8427, %v8467
    %v8469 = vpop.f32.mrb[0].mxu0
    %v8470 = vadd.f32 %v8429, %v8469
    %v8471 = vpop.f32.mrb[0].mxu0
    %v8472 = vpop.f32.mrb[0].mxu0
    %8473 = vdwg.mxu0
    %8474 = vmatprep.subr.bf16.mxu0 %v4751
    %8475 = vmatpush1.bf16.msra.mxu0 %v4750
    %8476 = vmatprep.subr.bf16.mxu0 %v4763
    %8477 = vmatpush1.bf16.msra.mxu0 %v4762
    %8478 = vmatprep.subr.bf16.mxu0 %v4775
    %8479 = vmatpush1.bf16.msra.mxu0 %v4774
    %8480 = vmatprep.subr.bf16.mxu0 %v4787
    %8481 = vmatpush1.bf16.msra.mxu0 %v4786
    %8482 = vmatprep.subr.bf16.mxu0 %v4799
    %8483 = vmatpush1.bf16.msra.mxu0 %v4798
    %8484 = vmatprep.subr.bf16.mxu0 %v4811
    %8485 = vmatpush1.bf16.msra.mxu0 %v4810
    %8486 = vmatprep.subr.bf16.mxu0 %v4823
    %8487 = vmatpush1.bf16.msra.mxu0 %v4822
    %8488 = vmatprep.subr.bf16.mxu0 %v4835
    %8489 = vmatpush1.bf16.msra.mxu0 %v4834
    %8490 = vmatprep.subr.bf16.mxu0 %v4847
    %8491 = vmatpush1.bf16.msra.mxu0 %v4846
    %8492 = vmatprep.subr.bf16.mxu0 %v4859
    %8493 = vmatpush1.bf16.msra.mxu0 %v4858
    %8494 = vmatprep.subr.bf16.mxu0 %v4871
    %8495 = vmatpush1.bf16.msra.mxu0 %v4870
    %8496 = vmatprep.subr.bf16.mxu0 %v4883
    %8497 = vmatpush1.bf16.msra.mxu0 %v4882
    %8498 = vmatprep.subr.bf16.mxu0 %v4895
    %8499 = vmatpush1.bf16.msra.mxu0 %v4894
    %8500 = vmatprep.subr.bf16.mxu0 %v4907
    %8501 = vmatpush1.bf16.msra.mxu0 %v4906
    %8502 = vmatprep.subr.bf16.mxu0 %v4919
    %8503 = vmatpush1.bf16.msra.mxu0 %v4918
    %8504 = vmatprep.subr.bf16.mxu0 %v4931
    %8505 = vmatpush1.bf16.msra.mxu0 %v4930
    %8506 = vmatprep.mubr.bf16.mxu0 %v3952
    %8507 = vmatmul.mubr.bf16.gmra.mrb[0].mxu0 %v3951
    %v8508 = vpop.f32.mrb[0].mxu0
    %v8509 = vadd.f32 %v8468, %v8508
    %v8510 = vpop.f32.mrb[0].mxu0
    %v8511 = vadd.f32 %v8470, %v8510
    %v8512 = vpop.f32.mrb[0].mxu0
    %v8513 = vpop.f32.mrb[0].mxu0
    %8514 = vdwg.mxu0
    %8515 = vmatprep.subr.bf16.mxu0 %v4943
    %8516 = vmatpush1.bf16.msra.mxu0 %v4942
    %8517 = vmatprep.subr.bf16.mxu0 %v4955
    %8518 = vmatpush1.bf16.msra.mxu0 %v4954
    %8519 = vmatprep.subr.bf16.mxu0 %v4967
    %8520 = vmatpush1.bf16.msra.mxu0 %v4966
    %8521 = vmatprep.subr.bf16.mxu0 %v4979
    %8522 = vmatpush1.bf16.msra.mxu0 %v4978
    %8523 = vmatprep.subr.bf16.mxu0 %v4991
    %8524 = vmatpush1.bf16.msra.mxu0 %v4990
    %8525 = vmatprep.subr.bf16.mxu0 %v5003
    %8526 = vmatpush1.bf16.msra.mxu0 %v5002
    %8527 = vmatprep.subr.bf16.mxu0 %v5015
    %8528 = vmatpush1.bf16.msra.mxu0 %v5014
    %8529 = vmatprep.subr.bf16.mxu0 %v5027
    %8530 = vmatpush1.bf16.msra.mxu0 %v5026
    %8531 = vmatprep.subr.bf16.mxu0 %v5039
    %8532 = vmatpush1.bf16.msra.mxu0 %v5038
    %8533 = vmatprep.subr.bf16.mxu0 %v5051
    %8534 = vmatpush1.bf16.msra.mxu0 %v5050
    %8535 = vmatprep.subr.bf16.mxu0 %v5063
    %8536 = vmatpush1.bf16.msra.mxu0 %v5062
    %8537 = vmatprep.subr.bf16.mxu0 %v5075
    %8538 = vmatpush1.bf16.msra.mxu0 %v5074
    %8539 = vmatprep.subr.bf16.mxu0 %v5087
    %8540 = vmatpush1.bf16.msra.mxu0 %v5086
    %8541 = vmatprep.subr.bf16.mxu0 %v5099
    %8542 = vmatpush1.bf16.msra.mxu0 %v5098
    %8543 = vmatprep.subr.bf16.mxu0 %v5111
    %8544 = vmatpush1.bf16.msra.mxu0 %v5110
    %8545 = vmatprep.subr.bf16.mxu0 %v5123
    %8546 = vmatpush1.bf16.msra.mxu0 %v5122
    %8547 = vmatprep.mubr.bf16.mxu0 %v3954
    %8548 = vmatmul.mubr.bf16.gmra.mrb[0].mxu0 %v3953
    %v8549 = vpop.f32.mrb[0].mxu0
    %v8550 = vadd.f32 %v8509, %v8549
    %v8551 = vpop.f32.mrb[0].mxu0
    %v8552 = vadd.f32 %v8511, %v8551
    %v8553 = vpop.f32.mrb[0].mxu0
    %v8554 = vpop.f32.mrb[0].mxu0
    %8555 = vdwg.mxu0
    %8556 = vmatprep.subr.bf16.mxu0 %v5135
    %8557 = vmatpush1.bf16.msra.mxu0 %v5134
    %8558 = vmatprep.subr.bf16.mxu0 %v5147
    %8559 = vmatpush1.bf16.msra.mxu0 %v5146
    %8560 = vmatprep.subr.bf16.mxu0 %v5159
    %8561 = vmatpush1.bf16.msra.mxu0 %v5158
    %8562 = vmatprep.subr.bf16.mxu0 %v5171
    %8563 = vmatpush1.bf16.msra.mxu0 %v5170
    %8564 = vmatprep.subr.bf16.mxu0 %v5183
    %8565 = vmatpush1.bf16.msra.mxu0 %v5182
    %8566 = vmatprep.subr.bf16.mxu0 %v5195
    %8567 = vmatpush1.bf16.msra.mxu0 %v5194
    %8568 = vmatprep.subr.bf16.mxu0 %v5207
    %8569 = vmatpush1.bf16.msra.mxu0 %v5206
    %8570 = vmatprep.subr.bf16.mxu0 %v5219
    %8571 = vmatpush1.bf16.msra.mxu0 %v5218
    %8572 = vmatprep.subr.bf16.mxu0 %v5231
    %8573 = vmatpush1.bf16.msra.mxu0 %v5230
    %8574 = vmatprep.subr.bf16.mxu0 %v5243
    %8575 = vmatpush1.bf16.msra.mxu0 %v5242
    %8576 = vmatprep.subr.bf16.mxu0 %v5255
    %8577 = vmatpush1.bf16.msra.mxu0 %v5254
    %8578 = vmatprep.subr.bf16.mxu0 %v5267
    %8579 = vmatpush1.bf16.msra.mxu0 %v5266
    %8580 = vmatprep.subr.bf16.mxu0 %v5279
    %8581 = vmatpush1.bf16.msra.mxu0 %v5278
    %8582 = vmatprep.subr.bf16.mxu0 %v5291
    %8583 = vmatpush1.bf16.msra.mxu0 %v5290
    %8584 = vmatprep.subr.bf16.mxu0 %v5303
    %8585 = vmatpush1.bf16.msra.mxu0 %v5302
    %8586 = vmatprep.subr.bf16.mxu0 %v5315
    %8587 = vmatpush1.bf16.msra.mxu0 %v5314
    %8588 = vmatprep.mubr.bf16.mxu0 %v3956
    %8589 = vmatmul.mubr.bf16.gmra.mrb[0].mxu0 %v3955
    %v8590 = vpop.f32.mrb[0].mxu0
    %v8591 = vadd.f32 %v8550, %v8590
    %v8592 = vpop.f32.mrb[0].mxu0
    %v8593 = vadd.f32 %v8552, %v8592
    %v8594 = vpop.f32.mrb[0].mxu0
    %v8595 = vpop.f32.mrb[0].mxu0
    %8596 = vdwg.mxu0
    %8597 = vmatprep.subr.bf16.mxu0 %v5327
    %8598 = vmatpush1.bf16.msra.mxu0 %v5326
    %8599 = vmatprep.subr.bf16.mxu0 %v5339
    %8600 = vmatpush1.bf16.msra.mxu0 %v5338
    %8601 = vmatprep.subr.bf16.mxu0 %v5351
    %8602 = vmatpush1.bf16.msra.mxu0 %v5350
    %8603 = vmatprep.subr.bf16.mxu0 %v5363
    %8604 = vmatpush1.bf16.msra.mxu0 %v5362
    %8605 = vmatprep.subr.bf16.mxu0 %v5375
    %8606 = vmatpush1.bf16.msra.mxu0 %v5374
    %8607 = vmatprep.subr.bf16.mxu0 %v5387
    %8608 = vmatpush1.bf16.msra.mxu0 %v5386
    %8609 = vmatprep.subr.bf16.mxu0 %v5399
    %8610 = vmatpush1.bf16.msra.mxu0 %v5398
    %8611 = vmatprep.subr.bf16.mxu0 %v5411
    %8612 = vmatpush1.bf16.msra.mxu0 %v5410
    %8613 = vmatprep.subr.bf16.mxu0 %v5423
    %8614 = vmatpush1.bf16.msra.mxu0 %v5422
    %8615 = vmatprep.subr.bf16.mxu0 %v5435
    %8616 = vmatpush1.bf16.msra.mxu0 %v5434
    %8617 = vmatprep.subr.bf16.mxu0 %v5447
    %8618 = vmatpush1.bf16.msra.mxu0 %v5446
    %8619 = vmatprep.subr.bf16.mxu0 %v5459
    %8620 = vmatpush1.bf16.msra.mxu0 %v5458
    %8621 = vmatprep.subr.bf16.mxu0 %v5471
    %8622 = vmatpush1.bf16.msra.mxu0 %v5470
    %8623 = vmatprep.subr.bf16.mxu0 %v5483
    %8624 = vmatpush1.bf16.msra.mxu0 %v5482
    %8625 = vmatprep.subr.bf16.mxu0 %v5495
    %8626 = vmatpush1.bf16.msra.mxu0 %v5494
    %8627 = vmatprep.subr.bf16.mxu0 %v5507
    %8628 = vmatpush1.bf16.msra.mxu0 %v5506
    %8629 = vmatprep.mubr.bf16.mxu0 %v3958
    %8630 = vmatmul.mubr.bf16.gmra.mrb[0].mxu0 %v3957
    %v8631 = vpop.f32.mrb[0].mxu0
    %v8632 = vadd.f32 %v8591, %v8631
    %v8633 = vpop.f32.mrb[0].mxu0
    %v8634 = vadd.f32 %v8593, %v8633
    %v8635 = vpop.f32.mrb[0].mxu0
    %v8636 = vpop.f32.mrb[0].mxu0
    %8637 = vdwg.mxu0
    %8638 = vmatprep.subr.bf16.mxu0 %v5519
    %8639 = vmatpush1.bf16.msra.mxu0 %v5518
    %8640 = vmatprep.subr.bf16.mxu0 %v5531
    %8641 = vmatpush1.bf16.msra.mxu0 %v5530
    %8642 = vmatprep.subr.bf16.mxu0 %v5543
    %8643 = vmatpush1.bf16.msra.mxu0 %v5542
    %8644 = vmatprep.subr.bf16.mxu0 %v5555
    %8645 = vmatpush1.bf16.msra.mxu0 %v5554
    %8646 = vmatprep.subr.bf16.mxu0 %v5567
    %8647 = vmatpush1.bf16.msra.mxu0 %v5566
    %8648 = vmatprep.subr.bf16.mxu0 %v5579
    %8649 = vmatpush1.bf16.msra.mxu0 %v5578
    %8650 = vmatprep.subr.bf16.mxu0 %v5591
    %8651 = vmatpush1.bf16.msra.mxu0 %v5590
    %8652 = vmatprep.subr.bf16.mxu0 %v5603
    %8653 = vmatpush1.bf16.msra.mxu0 %v5602
    %8654 = vmatprep.subr.bf16.mxu0 %v5615
    %8655 = vmatpush1.bf16.msra.mxu0 %v5614
    %8656 = vmatprep.subr.bf16.mxu0 %v5627
    %8657 = vmatpush1.bf16.msra.mxu0 %v5626
    %8658 = vmatprep.subr.bf16.mxu0 %v5639
    %8659 = vmatpush1.bf16.msra.mxu0 %v5638
    %8660 = vmatprep.subr.bf16.mxu0 %v5651
    %8661 = vmatpush1.bf16.msra.mxu0 %v5650
    %8662 = vmatprep.subr.bf16.mxu0 %v5663
    %8663 = vmatpush1.bf16.msra.mxu0 %v5662
    %8664 = vmatprep.subr.bf16.mxu0 %v5675
    %8665 = vmatpush1.bf16.msra.mxu0 %v5674
    %8666 = vmatprep.subr.bf16.mxu0 %v5687
    %8667 = vmatpush1.bf16.msra.mxu0 %v5686
    %8668 = vmatprep.subr.bf16.mxu0 %v5699
    %8669 = vmatpush1.bf16.msra.mxu0 %v5698
    %8670 = vmatprep.mubr.bf16.mxu0 %v3960
    %8671 = vmatmul.mubr.bf16.gmra.mrb[0].mxu0 %v3959
    %v8672 = vpop.f32.mrb[0].mxu0
    %v8673 = vadd.f32 %v8632, %v8672
    %v8674 = vpop.f32.mrb[0].mxu0
    %v8675 = vadd.f32 %v8634, %v8674
    %v8676 = vpop.f32.mrb[0].mxu0
    %v8677 = vpop.f32.mrb[0].mxu0
    %8678 = vdwg.mxu0
    %8679 = vmatprep.subr.bf16.mxu0 %v5711
    %8680 = vmatpush1.bf16.msra.mxu0 %v5710
    %8681 = vmatprep.subr.bf16.mxu0 %v5723
    %8682 = vmatpush1.bf16.msra.mxu0 %v5722
    %8683 = vmatprep.subr.bf16.mxu0 %v5735
    %8684 = vmatpush1.bf16.msra.mxu0 %v5734
    %8685 = vmatprep.subr.bf16.mxu0 %v5747
    %8686 = vmatpush1.bf16.msra.mxu0 %v5746
    %8687 = vmatprep.subr.bf16.mxu0 %v5759
    %8688 = vmatpush1.bf16.msra.mxu0 %v5758
    %8689 = vmatprep.subr.bf16.mxu0 %v5771
    %8690 = vmatpush1.bf16.msra.mxu0 %v5770
    %8691 = vmatprep.subr.bf16.mxu0 %v5783
    %8692 = vmatpush1.bf16.msra.mxu0 %v5782
    %8693 = vmatprep.subr.bf16.mxu0 %v5795
    %8694 = vmatpush1.bf16.msra.mxu0 %v5794
    %8695 = vmatprep.subr.bf16.mxu0 %v5807
    %8696 = vmatpush1.bf16.msra.mxu0 %v5806
    %8697 = vmatprep.subr.bf16.mxu0 %v5819
    %8698 = vmatpush1.bf16.msra.mxu0 %v5818
    %8699 = vmatprep.subr.bf16.mxu0 %v5831
    %8700 = vmatpush1.bf16.msra.mxu0 %v5830
    %8701 = vmatprep.subr.bf16.mxu0 %v5843
    %8702 = vmatpush1.bf16.msra.mxu0 %v5842
    %8703 = vmatprep.subr.bf16.mxu0 %v5855
    %8704 = vmatpush1.bf16.msra.mxu0 %v5854
    %8705 = vmatprep.subr.bf16.mxu0 %v5867
    %8706 = vmatpush1.bf16.msra.mxu0 %v5866
    %8707 = vmatprep.subr.bf16.mxu0 %v5879
    %8708 = vmatpush1.bf16.msra.mxu0 %v5878
    %8709 = vmatprep.subr.bf16.mxu0 %v5891
    %8710 = vmatpush1.bf16.msra.mxu0 %v5890
    %8711 = vmatprep.mubr.bf16.mxu0 %v3962
    %8712 = vmatmul.mubr.bf16.gmra.mrb[0].mxu0 %v3961
    %v8713 = vpop.f32.mrb[0].mxu0
    %v8714 = vadd.f32 %v8673, %v8713
    %v8715 = vpop.f32.mrb[0].mxu0
    %v8716 = vadd.f32 %v8675, %v8715
    %v8717 = vpop.f32.mrb[0].mxu0
    %v8718 = vpop.f32.mrb[0].mxu0
    %8719 = vdwg.mxu0
    %8720 = vmatprep.subr.bf16.mxu0 %v5903
    %8721 = vmatpush1.bf16.msra.mxu0 %v5902
    %8722 = vmatprep.subr.bf16.mxu0 %v5915
    %8723 = vmatpush1.bf16.msra.mxu0 %v5914
    %8724 = vmatprep.subr.bf16.mxu0 %v5927
    %8725 = vmatpush1.bf16.msra.mxu0 %v5926
    %8726 = vmatprep.subr.bf16.mxu0 %v5939
    %8727 = vmatpush1.bf16.msra.mxu0 %v5938
    %8728 = vmatprep.subr.bf16.mxu0 %v5951
    %8729 = vmatpush1.bf16.msra.mxu0 %v5950
    %8730 = vmatprep.subr.bf16.mxu0 %v5963
    %8731 = vmatpush1.bf16.msra.mxu0 %v5962
    %8732 = vmatprep.subr.bf16.mxu0 %v5975
    %8733 = vmatpush1.bf16.msra.mxu0 %v5974
    %8734 = vmatprep.subr.bf16.mxu0 %v5987
    %8735 = vmatpush1.bf16.msra.mxu0 %v5986
    %8736 = vmatprep.subr.bf16.mxu0 %v5999
    %8737 = vmatpush1.bf16.msra.mxu0 %v5998
    %8738 = vmatprep.subr.bf16.mxu0 %v6011
    %8739 = vmatpush1.bf16.msra.mxu0 %v6010
    %8740 = vmatprep.subr.bf16.mxu0 %v6023
    %8741 = vmatpush1.bf16.msra.mxu0 %v6022
    %8742 = vmatprep.subr.bf16.mxu0 %v6035
    %8743 = vmatpush1.bf16.msra.mxu0 %v6034
    %8744 = vmatprep.subr.bf16.mxu0 %v6047
    %8745 = vmatpush1.bf16.msra.mxu0 %v6046
    %8746 = vmatprep.subr.bf16.mxu0 %v6059
    %8747 = vmatpush1.bf16.msra.mxu0 %v6058
    %8748 = vmatprep.subr.bf16.mxu0 %v6071
    %8749 = vmatpush1.bf16.msra.mxu0 %v6070
    %8750 = vmatprep.subr.bf16.mxu0 %v6083
    %8751 = vmatpush1.bf16.msra.mxu0 %v6082
    %8752 = vmatprep.mubr.bf16.mxu0 %v3964
    %8753 = vmatmul.mubr.bf16.gmra.mrb[0].mxu0 %v3963
    %v8754 = vpop.f32.mrb[0].mxu0
    %v8755 = vadd.f32 %v8714, %v8754
    %v8756 = vpop.f32.mrb[0].mxu0
    %v8757 = vadd.f32 %v8716, %v8756
    %v8758 = vpop.f32.mrb[0].mxu0
    %v8759 = vpop.f32.mrb[0].mxu0
    %8760 = vdwg.mxu0
    %8761 = vmatprep.subr.bf16.mxu0 %v6095
    %8762 = vmatpush1.bf16.msra.mxu0 %v6094
    %8763 = vmatprep.subr.bf16.mxu0 %v6107
    %8764 = vmatpush1.bf16.msra.mxu0 %v6106
    %8765 = vmatprep.subr.bf16.mxu0 %v6119
    %8766 = vmatpush1.bf16.msra.mxu0 %v6118
    %8767 = vmatprep.subr.bf16.mxu0 %v6131
    %8768 = vmatpush1.bf16.msra.mxu0 %v6130
    %8769 = vmatprep.subr.bf16.mxu0 %v6143
    %8770 = vmatpush1.bf16.msra.mxu0 %v6142
    %8771 = vmatprep.subr.bf16.mxu0 %v6155
    %8772 = vmatpush1.bf16.msra.mxu0 %v6154
    %8773 = vmatprep.subr.bf16.mxu0 %v6167
    %8774 = vmatpush1.bf16.msra.mxu0 %v6166
    %8775 = vmatprep.subr.bf16.mxu0 %v6179
    %8776 = vmatpush1.bf16.msra.mxu0 %v6178
    %8777 = vmatprep.subr.bf16.mxu0 %v6191
    %8778 = vmatpush1.bf16.msra.mxu0 %v6190
    %8779 = vmatprep.subr.bf16.mxu0 %v6203
    %8780 = vmatpush1.bf16.msra.mxu0 %v6202
    %8781 = vmatprep.subr.bf16.mxu0 %v6215
    %8782 = vmatpush1.bf16.msra.mxu0 %v6214
    %8783 = vmatprep.subr.bf16.mxu0 %v6227
    %8784 = vmatpush1.bf16.msra.mxu0 %v6226
    %8785 = vmatprep.subr.bf16.mxu0 %v6239
    %8786 = vmatpush1.bf16.msra.mxu0 %v6238
    %8787 = vmatprep.subr.bf16.mxu0 %v6251
    %8788 = vmatpush1.bf16.msra.mxu0 %v6250
    %8789 = vmatprep.subr.bf16.mxu0 %v6263
    %8790 = vmatpush1.bf16.msra.mxu0 %v6262
    %8791 = vmatprep.subr.bf16.mxu0 %v6275
    %8792 = vmatpush1.bf16.msra.mxu0 %v6274
    %8793 = vmatprep.mubr.bf16.mxu0 %v3966
    %8794 = vmatmul.mubr.bf16.gmra.mrb[0].mxu0 %v3965
    %v8795 = vpop.f32.mrb[0].mxu0
    %v8796 = vadd.f32 %v8755, %v8795
    %v8797 = vpop.f32.mrb[0].mxu0
    %v8798 = vadd.f32 %v8757, %v8797
    %v8799 = vpop.f32.mrb[0].mxu0
    %v8800 = vpop.f32.mrb[0].mxu0
    %8801 = vdwg.mxu0
    %8802 = vmatprep.subr.bf16.mxu0 %v3985
    %8803 = vmatpush1.bf16.msra.mxu0 %v3984
    %8804 = vmatprep.subr.bf16.mxu0 %v3997
    %8805 = vmatpush1.bf16.msra.mxu0 %v3996
    %8806 = vmatprep.subr.bf16.mxu0 %v4009
    %8807 = vmatpush1.bf16.msra.mxu0 %v4008
    %8808 = vmatprep.subr.bf16.mxu0 %v4021
    %8809 = vmatpush1.bf16.msra.mxu0 %v4020
    %8810 = vmatprep.subr.bf16.mxu0 %v4033
    %8811 = vmatpush1.bf16.msra.mxu0 %v4032
    %8812 = vmatprep.subr.bf16.mxu0 %v4045
    %8813 = vmatpush1.bf16.msra.mxu0 %v4044
    %8814 = vmatprep.subr.bf16.mxu0 %v4057
    %8815 = vmatpush1.bf16.msra.mxu0 %v4056
    %8816 = vmatprep.subr.bf16.mxu0 %v4069
    %8817 = vmatpush1.bf16.msra.mxu0 %v4068
    %8818 = vmatprep.subr.bf16.mxu0 %v4081
    %8819 = vmatpush1.bf16.msra.mxu0 %v4080
    %8820 = vmatprep.subr.bf16.mxu0 %v4093
    %8821 = vmatpush1.bf16.msra.mxu0 %v4092
    %8822 = vmatprep.subr.bf16.mxu0 %v4105
    %8823 = vmatpush1.bf16.msra.mxu0 %v4104
    %8824 = vmatprep.subr.bf16.mxu0 %v4117
    %8825 = vmatpush1.bf16.msra.mxu0 %v4116
    %8826 = vmatprep.subr.bf16.mxu0 %v4129
    %8827 = vmatpush1.bf16.msra.mxu0 %v4128
    %8828 = vmatprep.subr.bf16.mxu0 %v4141
    %8829 = vmatpush1.bf16.msra.mxu0 %v4140
    %8830 = vmatprep.subr.bf16.mxu0 %v4153
    %8831 = vmatpush1.bf16.msra.mxu0 %v4152
    %8832 = vmatprep.subr.bf16.mxu0 %v4165
    %8833 = vmatpush1.bf16.msra.mxu0 %v4164
    %8834 = vmatprep.mubr.bf16.mxu0 %v3944
    %8835 = vmatmul.mubr.bf16.gmra.mrb[0].mxu0 %v3943
    %v8836 = vpop.f32.mrb[0].mxu0
    %v8837 = vadd.f32 %v6325, %v8836
    %v8838 = vpop.f32.mrb[0].mxu0
    %v8839 = vadd.f32 %v6329, %v8838
    %v8840 = vpop.f32.mrb[0].mxu0
    %v8841 = vpop.f32.mrb[0].mxu0
    %8842 = vdwg.mxu0
    %8843 = vmatprep.subr.bf16.mxu0 %v4177
    %8844 = vmatpush1.bf16.msra.mxu0 %v4176
    %8845 = vmatprep.subr.bf16.mxu0 %v4189
    %8846 = vmatpush1.bf16.msra.mxu0 %v4188
    %8847 = vmatprep.subr.bf16.mxu0 %v4201
    %8848 = vmatpush1.bf16.msra.mxu0 %v4200
    %8849 = vmatprep.subr.bf16.mxu0 %v4213
    %8850 = vmatpush1.bf16.msra.mxu0 %v4212
    %8851 = vmatprep.subr.bf16.mxu0 %v4225
    %8852 = vmatpush1.bf16.msra.mxu0 %v4224
    %8853 = vmatprep.subr.bf16.mxu0 %v4237
    %8854 = vmatpush1.bf16.msra.mxu0 %v4236
    %8855 = vmatprep.subr.bf16.mxu0 %v4249
    %8856 = vmatpush1.bf16.msra.mxu0 %v4248
    %8857 = vmatprep.subr.bf16.mxu0 %v4261
    %8858 = vmatpush1.bf16.msra.mxu0 %v4260
    %8859 = vmatprep.subr.bf16.mxu0 %v4273
    %8860 = vmatpush1.bf16.msra.mxu0 %v4272
    %8861 = vmatprep.subr.bf16.mxu0 %v4285
    %8862 = vmatpush1.bf16.msra.mxu0 %v4284
    %8863 = vmatprep.subr.bf16.mxu0 %v4297
    %8864 = vmatpush1.bf16.msra.mxu0 %v4296
    %8865 = vmatprep.subr.bf16.mxu0 %v4309
    %8866 = vmatpush1.bf16.msra.mxu0 %v4308
    %8867 = vmatprep.subr.bf16.mxu0 %v4321
    %8868 = vmatpush1.bf16.msra.mxu0 %v4320
    %8869 = vmatprep.subr.bf16.mxu0 %v4333
    %8870 = vmatpush1.bf16.msra.mxu0 %v4332
    %8871 = vmatprep.subr.bf16.mxu0 %v4345
    %8872 = vmatpush1.bf16.msra.mxu0 %v4344
    %8873 = vmatprep.subr.bf16.mxu0 %v4357
    %8874 = vmatpush1.bf16.msra.mxu0 %v4356
    %8875 = vmatprep.mubr.bf16.mxu0 %v3946
    %8876 = vmatmul.mubr.bf16.gmra.mrb[0].mxu0 %v3945
    %v8877 = vpop.f32.mrb[0].mxu0
    %v8878 = vadd.f32 %v8837, %v8877
    %v8879 = vpop.f32.mrb[0].mxu0
    %v8880 = vadd.f32 %v8839, %v8879
    %v8881 = vpop.f32.mrb[0].mxu0
    %v8882 = vpop.f32.mrb[0].mxu0
    %8883 = vdwg.mxu0
    %8884 = vmatprep.subr.bf16.mxu0 %v4369
    %8885 = vmatpush1.bf16.msra.mxu0 %v4368
    %8886 = vmatprep.subr.bf16.mxu0 %v4381
    %8887 = vmatpush1.bf16.msra.mxu0 %v4380
    %8888 = vmatprep.subr.bf16.mxu0 %v4393
    %8889 = vmatpush1.bf16.msra.mxu0 %v4392
    %8890 = vmatprep.subr.bf16.mxu0 %v4405
    %8891 = vmatpush1.bf16.msra.mxu0 %v4404
    %8892 = vmatprep.subr.bf16.mxu0 %v4417
    %8893 = vmatpush1.bf16.msra.mxu0 %v4416
    %8894 = vmatprep.subr.bf16.mxu0 %v4429
    %8895 = vmatpush1.bf16.msra.mxu0 %v4428
    %8896 = vmatprep.subr.bf16.mxu0 %v4441
    %8897 = vmatpush1.bf16.msra.mxu0 %v4440
    %8898 = vmatprep.subr.bf16.mxu0 %v4453
    %8899 = vmatpush1.bf16.msra.mxu0 %v4452
    %8900 = vmatprep.subr.bf16.mxu0 %v4465
    %8901 = vmatpush1.bf16.msra.mxu0 %v4464
    %8902 = vmatprep.subr.bf16.mxu0 %v4477
    %8903 = vmatpush1.bf16.msra.mxu0 %v4476
    %8904 = vmatprep.subr.bf16.mxu0 %v4489
    %8905 = vmatpush1.bf16.msra.mxu0 %v4488
    %8906 = vmatprep.subr.bf16.mxu0 %v4501
    %8907 = vmatpush1.bf16.msra.mxu0 %v4500
    %8908 = vmatprep.subr.bf16.mxu0 %v4513
    %8909 = vmatpush1.bf16.msra.mxu0 %v4512
    %8910 = vmatprep.subr.bf16.mxu0 %v4525
    %8911 = vmatpush1.bf16.msra.mxu0 %v4524
    %8912 = vmatprep.subr.bf16.mxu0 %v4537
    %8913 = vmatpush1.bf16.msra.mxu0 %v4536
    %8914 = vmatprep.subr.bf16.mxu0 %v4549
    %8915 = vmatpush1.bf16.msra.mxu0 %v4548
    %8916 = vmatprep.mubr.bf16.mxu0 %v3948
    %8917 = vmatmul.mubr.bf16.gmra.mrb[0].mxu0 %v3947
    %v8918 = vpop.f32.mrb[0].mxu0
    %v8919 = vadd.f32 %v8878, %v8918
    %v8920 = vpop.f32.mrb[0].mxu0
    %v8921 = vadd.f32 %v8880, %v8920
    %v8922 = vpop.f32.mrb[0].mxu0
    %v8923 = vpop.f32.mrb[0].mxu0
    %8924 = vdwg.mxu0
    %8925 = vmatprep.subr.bf16.mxu0 %v4561
    %8926 = vmatpush1.bf16.msra.mxu0 %v4560
    %8927 = vmatprep.subr.bf16.mxu0 %v4573
    %8928 = vmatpush1.bf16.msra.mxu0 %v4572
    %8929 = vmatprep.subr.bf16.mxu0 %v4585
    %8930 = vmatpush1.bf16.msra.mxu0 %v4584
    %8931 = vmatprep.subr.bf16.mxu0 %v4597
    %8932 = vmatpush1.bf16.msra.mxu0 %v4596
    %8933 = vmatprep.subr.bf16.mxu0 %v4609
    %8934 = vmatpush1.bf16.msra.mxu0 %v4608
    %8935 = vmatprep.subr.bf16.mxu0 %v4621
    %8936 = vmatpush1.bf16.msra.mxu0 %v4620
    %8937 = vmatprep.subr.bf16.mxu0 %v4633
    %8938 = vmatpush1.bf16.msra.mxu0 %v4632
    %8939 = vmatprep.subr.bf16.mxu0 %v4645
    %8940 = vmatpush1.bf16.msra.mxu0 %v4644
    %8941 = vmatprep.subr.bf16.mxu0 %v4657
    %8942 = vmatpush1.bf16.msra.mxu0 %v4656
    %8943 = vmatprep.subr.bf16.mxu0 %v4669
    %8944 = vmatpush1.bf16.msra.mxu0 %v4668
    %8945 = vmatprep.subr.bf16.mxu0 %v4681
    %8946 = vmatpush1.bf16.msra.mxu0 %v4680
    %8947 = vmatprep.subr.bf16.mxu0 %v4693
    %8948 = vmatpush1.bf16.msra.mxu0 %v4692
    %8949 = vmatprep.subr.bf16.mxu0 %v4705
    %8950 = vmatpush1.bf16.msra.mxu0 %v4704
    %8951 = vmatprep.subr.bf16.mxu0 %v4717
    %8952 = vmatpush1.bf16.msra.mxu0 %v4716
    %8953 = vmatprep.subr.bf16.mxu0 %v4729
    %8954 = vmatpush1.bf16.msra.mxu0 %v4728
    %8955 = vmatprep.subr.bf16.mxu0 %v4741
    %8956 = vmatpush1.bf16.msra.mxu0 %v4740
    %8957 = vmatprep.mubr.bf16.mxu0 %v3950
    %8958 = vmatmul.mubr.bf16.gmra.mrb[0].mxu0 %v3949
    %v8959 = vpop.f32.mrb[0].mxu0
    %v8960 = vadd.f32 %v8919, %v8959
    %v8961 = vpop.f32.mrb[0].mxu0
    %v8962 = vadd.f32 %v8921, %v8961
    %v8963 = vpop.f32.mrb[0].mxu0
    %v8964 = vpop.f32.mrb[0].mxu0
    %8965 = vdwg.mxu0
    %8966 = vmatprep.subr.bf16.mxu0 %v4753
    %8967 = vmatpush1.bf16.msra.mxu0 %v4752
    %8968 = vmatprep.subr.bf16.mxu0 %v4765
    %8969 = vmatpush1.bf16.msra.mxu0 %v4764
    %8970 = vmatprep.subr.bf16.mxu0 %v4777
    %8971 = vmatpush1.bf16.msra.mxu0 %v4776
    %8972 = vmatprep.subr.bf16.mxu0 %v4789
    %8973 = vmatpush1.bf16.msra.mxu0 %v4788
    %8974 = vmatprep.subr.bf16.mxu0 %v4801
    %8975 = vmatpush1.bf16.msra.mxu0 %v4800
    %8976 = vmatprep.subr.bf16.mxu0 %v4813
    %8977 = vmatpush1.bf16.msra.mxu0 %v4812
    %8978 = vmatprep.subr.bf16.mxu0 %v4825
    %8979 = vmatpush1.bf16.msra.mxu0 %v4824
    %8980 = vmatprep.subr.bf16.mxu0 %v4837
    %8981 = vmatpush1.bf16.msra.mxu0 %v4836
    %8982 = vmatprep.subr.bf16.mxu0 %v4849
    %8983 = vmatpush1.bf16.msra.mxu0 %v4848
    %8984 = vmatprep.subr.bf16.mxu0 %v4861
    %8985 = vmatpush1.bf16.msra.mxu0 %v4860
    %8986 = vmatprep.subr.bf16.mxu0 %v4873
    %8987 = vmatpush1.bf16.msra.mxu0 %v4872
    %8988 = vmatprep.subr.bf16.mxu0 %v4885
    %8989 = vmatpush1.bf16.msra.mxu0 %v4884
    %8990 = vmatprep.subr.bf16.mxu0 %v4897
    %8991 = vmatpush1.bf16.msra.mxu0 %v4896
    %8992 = vmatprep.subr.bf16.mxu0 %v4909
    %8993 = vmatpush1.bf16.msra.mxu0 %v4908
    %8994 = vmatprep.subr.bf16.mxu0 %v4921
    %8995 = vmatpush1.bf16.msra.mxu0 %v4920
    %8996 = vmatprep.subr.bf16.mxu0 %v4933
    %8997 = vmatpush1.bf16.msra.mxu0 %v4932
    %8998 = vmatprep.mubr.bf16.mxu0 %v3952
    %8999 = vmatmul.mubr.bf16.gmra.mrb[0].mxu0 %v3951
    %v9000 = vpop.f32.mrb[0].mxu0
    %v9001 = vadd.f32 %v8960, %v9000
    %v9002 = vpop.f32.mrb[0].mxu0
    %v9003 = vadd.f32 %v8962, %v9002
    %v9004 = vpop.f32.mrb[0].mxu0
    %v9005 = vpop.f32.mrb[0].mxu0
    %9006 = vdwg.mxu0
    %9007 = vmatprep.subr.bf16.mxu0 %v4945
    %9008 = vmatpush1.bf16.msra.mxu0 %v4944
    %9009 = vmatprep.subr.bf16.mxu0 %v4957
    %9010 = vmatpush1.bf16.msra.mxu0 %v4956
    %9011 = vmatprep.subr.bf16.mxu0 %v4969
    %9012 = vmatpush1.bf16.msra.mxu0 %v4968
    %9013 = vmatprep.subr.bf16.mxu0 %v4981
    %9014 = vmatpush1.bf16.msra.mxu0 %v4980
    %9015 = vmatprep.subr.bf16.mxu0 %v4993
    %9016 = vmatpush1.bf16.msra.mxu0 %v4992
    %9017 = vmatprep.subr.bf16.mxu0 %v5005
    %9018 = vmatpush1.bf16.msra.mxu0 %v5004
    %9019 = vmatprep.subr.bf16.mxu0 %v5017
    %9020 = vmatpush1.bf16.msra.mxu0 %v5016
    %9021 = vmatprep.subr.bf16.mxu0 %v5029
    %9022 = vmatpush1.bf16.msra.mxu0 %v5028
    %9023 = vmatprep.subr.bf16.mxu0 %v5041
    %9024 = vmatpush1.bf16.msra.mxu0 %v5040
    %9025 = vmatprep.subr.bf16.mxu0 %v5053
    %9026 = vmatpush1.bf16.msra.mxu0 %v5052
    %9027 = vmatprep.subr.bf16.mxu0 %v5065
    %9028 = vmatpush1.bf16.msra.mxu0 %v5064
    %9029 = vmatprep.subr.bf16.mxu0 %v5077
    %9030 = vmatpush1.bf16.msra.mxu0 %v5076
    %9031 = vmatprep.subr.bf16.mxu0 %v5089
    %9032 = vmatpush1.bf16.msra.mxu0 %v5088
    %9033 = vmatprep.subr.bf16.mxu0 %v5101
    %9034 = vmatpush1.bf16.msra.mxu0 %v5100
    %9035 = vmatprep.subr.bf16.mxu0 %v5113
    %9036 = vmatpush1.bf16.msra.mxu0 %v5112
    %9037 = vmatprep.subr.bf16.mxu0 %v5125
    %9038 = vmatpush1.bf16.msra.mxu0 %v5124
    %9039 = vmatprep.mubr.bf16.mxu0 %v3954
    %9040 = vmatmul.mubr.bf16.gmra.mrb[0].mxu0 %v3953
    %v9041 = vpop.f32.mrb[0].mxu0
    %v9042 = vadd.f32 %v9001, %v9041
    %v9043 = vpop.f32.mrb[0].mxu0
    %v9044 = vadd.f32 %v9003, %v9043
    %v9045 = vpop.f32.mrb[0].mxu0
    %v9046 = vpop.f32.mrb[0].mxu0
    %9047 = vdwg.mxu0
    %9048 = vmatprep.subr.bf16.mxu0 %v5137
    %9049 = vmatpush1.bf16.msra.mxu0 %v5136
    %9050 = vmatprep.subr.bf16.mxu0 %v5149
    %9051 = vmatpush1.bf16.msra.mxu0 %v5148
    %9052 = vmatprep.subr.bf16.mxu0 %v5161
    %9053 = vmatpush1.bf16.msra.mxu0 %v5160
    %9054 = vmatprep.subr.bf16.mxu0 %v5173
    %9055 = vmatpush1.bf16.msra.mxu0 %v5172
    %9056 = vmatprep.subr.bf16.mxu0 %v5185
    %9057 = vmatpush1.bf16.msra.mxu0 %v5184
    %9058 = vmatprep.subr.bf16.mxu0 %v5197
    %9059 = vmatpush1.bf16.msra.mxu0 %v5196
    %9060 = vmatprep.subr.bf16.mxu0 %v5209
    %9061 = vmatpush1.bf16.msra.mxu0 %v5208
    %9062 = vmatprep.subr.bf16.mxu0 %v5221
    %9063 = vmatpush1.bf16.msra.mxu0 %v5220
    %9064 = vmatprep.subr.bf16.mxu0 %v5233
    %9065 = vmatpush1.bf16.msra.mxu0 %v5232
    %9066 = vmatprep.subr.bf16.mxu0 %v5245
    %9067 = vmatpush1.bf16.msra.mxu0 %v5244
    %9068 = vmatprep.subr.bf16.mxu0 %v5257
    %9069 = vmatpush1.bf16.msra.mxu0 %v5256
    %9070 = vmatprep.subr.bf16.mxu0 %v5269
    %9071 = vmatpush1.bf16.msra.mxu0 %v5268
    %9072 = vmatprep.subr.bf16.mxu0 %v5281
    %9073 = vmatpush1.bf16.msra.mxu0 %v5280
    %9074 = vmatprep.subr.bf16.mxu0 %v5293
    %9075 = vmatpush1.bf16.msra.mxu0 %v5292
    %9076 = vmatprep.subr.bf16.mxu0 %v5305
    %9077 = vmatpush1.bf16.msra.mxu0 %v5304
    %9078 = vmatprep.subr.bf16.mxu0 %v5317
    %9079 = vmatpush1.bf16.msra.mxu0 %v5316
    %9080 = vmatprep.mubr.bf16.mxu0 %v3956
    %9081 = vmatmul.mubr.bf16.gmra.mrb[0].mxu0 %v3955
    %v9082 = vpop.f32.mrb[0].mxu0
    %v9083 = vadd.f32 %v9042, %v9082
    %v9084 = vpop.f32.mrb[0].mxu0
    %v9085 = vadd.f32 %v9044, %v9084
    %v9086 = vpop.f32.mrb[0].mxu0
    %v9087 = vpop.f32.mrb[0].mxu0
    %9088 = vdwg.mxu0
    %9089 = vmatprep.subr.bf16.mxu0 %v5329
    %9090 = vmatpush1.bf16.msra.mxu0 %v5328
    %9091 = vmatprep.subr.bf16.mxu0 %v5341
    %9092 = vmatpush1.bf16.msra.mxu0 %v5340
    %9093 = vmatprep.subr.bf16.mxu0 %v5353
    %9094 = vmatpush1.bf16.msra.mxu0 %v5352
    %9095 = vmatprep.subr.bf16.mxu0 %v5365
    %9096 = vmatpush1.bf16.msra.mxu0 %v5364
    %9097 = vmatprep.subr.bf16.mxu0 %v5377
    %9098 = vmatpush1.bf16.msra.mxu0 %v5376
    %9099 = vmatprep.subr.bf16.mxu0 %v5389
    %9100 = vmatpush1.bf16.msra.mxu0 %v5388
    %9101 = vmatprep.subr.bf16.mxu0 %v5401
    %9102 = vmatpush1.bf16.msra.mxu0 %v5400
    %9103 = vmatprep.subr.bf16.mxu0 %v5413
    %9104 = vmatpush1.bf16.msra.mxu0 %v5412
    %9105 = vmatprep.subr.bf16.mxu0 %v5425
    %9106 = vmatpush1.bf16.msra.mxu0 %v5424
    %9107 = vmatprep.subr.bf16.mxu0 %v5437
    %9108 = vmatpush1.bf16.msra.mxu0 %v5436
    %9109 = vmatprep.subr.bf16.mxu0 %v5449
    %9110 = vmatpush1.bf16.msra.mxu0 %v5448
    %9111 = vmatprep.subr.bf16.mxu0 %v5461
    %9112 = vmatpush1.bf16.msra.mxu0 %v5460
    %9113 = vmatprep.subr.bf16.mxu0 %v5473
    %9114 = vmatpush1.bf16.msra.mxu0 %v5472
    %9115 = vmatprep.subr.bf16.mxu0 %v5485
    %9116 = vmatpush1.bf16.msra.mxu0 %v5484
    %9117 = vmatprep.subr.bf16.mxu0 %v5497
    %9118 = vmatpush1.bf16.msra.mxu0 %v5496
    %9119 = vmatprep.subr.bf16.mxu0 %v5509
    %9120 = vmatpush1.bf16.msra.mxu0 %v5508
    %9121 = vmatprep.mubr.bf16.mxu0 %v3958
    %9122 = vmatmul.mubr.bf16.gmra.mrb[0].mxu0 %v3957
    %v9123 = vpop.f32.mrb[0].mxu0
    %v9124 = vadd.f32 %v9083, %v9123
    %v9125 = vpop.f32.mrb[0].mxu0
    %v9126 = vadd.f32 %v9085, %v9125
    %v9127 = vpop.f32.mrb[0].mxu0
    %v9128 = vpop.f32.mrb[0].mxu0
    %9129 = vdwg.mxu0
    %9130 = vmatprep.subr.bf16.mxu0 %v5521
    %9131 = vmatpush1.bf16.msra.mxu0 %v5520
    %9132 = vmatprep.subr.bf16.mxu0 %v5533
    %9133 = vmatpush1.bf16.msra.mxu0 %v5532
    %9134 = vmatprep.subr.bf16.mxu0 %v5545
    %9135 = vmatpush1.bf16.msra.mxu0 %v5544
    %9136 = vmatprep.subr.bf16.mxu0 %v5557
    %9137 = vmatpush1.bf16.msra.mxu0 %v5556
    %9138 = vmatprep.subr.bf16.mxu0 %v5569
    %9139 = vmatpush1.bf16.msra.mxu0 %v5568
    %9140 = vmatprep.subr.bf16.mxu0 %v5581
    %9141 = vmatpush1.bf16.msra.mxu0 %v5580
    %9142 = vmatprep.subr.bf16.mxu0 %v5593
    %9143 = vmatpush1.bf16.msra.mxu0 %v5592
    %9144 = vmatprep.subr.bf16.mxu0 %v5605
    %9145 = vmatpush1.bf16.msra.mxu0 %v5604
    %9146 = vmatprep.subr.bf16.mxu0 %v5617
    %9147 = vmatpush1.bf16.msra.mxu0 %v5616
    %9148 = vmatprep.subr.bf16.mxu0 %v5629
    %9149 = vmatpush1.bf16.msra.mxu0 %v5628
    %9150 = vmatprep.subr.bf16.mxu0 %v5641
    %9151 = vmatpush1.bf16.msra.mxu0 %v5640
    %9152 = vmatprep.subr.bf16.mxu0 %v5653
    %9153 = vmatpush1.bf16.msra.mxu0 %v5652
    %9154 = vmatprep.subr.bf16.mxu0 %v5665
    %9155 = vmatpush1.bf16.msra.mxu0 %v5664
    %9156 = vmatprep.subr.bf16.mxu0 %v5677
    %9157 = vmatpush1.bf16.msra.mxu0 %v5676
    %9158 = vmatprep.subr.bf16.mxu0 %v5689
    %9159 = vmatpush1.bf16.msra.mxu0 %v5688
    %9160 = vmatprep.subr.bf16.mxu0 %v5701
    %9161 = vmatpush1.bf16.msra.mxu0 %v5700
    %9162 = vmatprep.mubr.bf16.mxu0 %v3960
    %9163 = vmatmul.mubr.bf16.gmra.mrb[0].mxu0 %v3959
    %v9164 = vpop.f32.mrb[0].mxu0
    %v9165 = vadd.f32 %v9124, %v9164
    %v9166 = vpop.f32.mrb[0].mxu0
    %v9167 = vadd.f32 %v9126, %v9166
    %v9168 = vpop.f32.mrb[0].mxu0
    %v9169 = vpop.f32.mrb[0].mxu0
    %9170 = vdwg.mxu0
    %9171 = vmatprep.subr.bf16.mxu0 %v5713
    %9172 = vmatpush1.bf16.msra.mxu0 %v5712
    %9173 = vmatprep.subr.bf16.mxu0 %v5725
    %9174 = vmatpush1.bf16.msra.mxu0 %v5724
    %9175 = vmatprep.subr.bf16.mxu0 %v5737
    %9176 = vmatpush1.bf16.msra.mxu0 %v5736
    %9177 = vmatprep.subr.bf16.mxu0 %v5749
    %9178 = vmatpush1.bf16.msra.mxu0 %v5748
    %9179 = vmatprep.subr.bf16.mxu0 %v5761
    %9180 = vmatpush1.bf16.msra.mxu0 %v5760
    %9181 = vmatprep.subr.bf16.mxu0 %v5773
    %9182 = vmatpush1.bf16.msra.mxu0 %v5772
    %9183 = vmatprep.subr.bf16.mxu0 %v5785
    %9184 = vmatpush1.bf16.msra.mxu0 %v5784
    %9185 = vmatprep.subr.bf16.mxu0 %v5797
    %9186 = vmatpush1.bf16.msra.mxu0 %v5796
    %9187 = vmatprep.subr.bf16.mxu0 %v5809
    %9188 = vmatpush1.bf16.msra.mxu0 %v5808
    %9189 = vmatprep.subr.bf16.mxu0 %v5821
    %9190 = vmatpush1.bf16.msra.mxu0 %v5820
    %9191 = vmatprep.subr.bf16.mxu0 %v5833
    %9192 = vmatpush1.bf16.msra.mxu0 %v5832
    %9193 = vmatprep.subr.bf16.mxu0 %v5845
    %9194 = vmatpush1.bf16.msra.mxu0 %v5844
    %9195 = vmatprep.subr.bf16.mxu0 %v5857
    %9196 = vmatpush1.bf16.msra.mxu0 %v5856
    %9197 = vmatprep.subr.bf16.mxu0 %v5869
    %9198 = vmatpush1.bf16.msra.mxu0 %v5868
    %9199 = vmatprep.subr.bf16.mxu0 %v5881
    %9200 = vmatpush1.bf16.msra.mxu0 %v5880
    %9201 = vmatprep.subr.bf16.mxu0 %v5893
    %9202 = vmatpush1.bf16.msra.mxu0 %v5892
    %9203 = vmatprep.mubr.bf16.mxu0 %v3962
    %9204 = vmatmul.mubr.bf16.gmra.mrb[0].mxu0 %v3961
    %v9205 = vpop.f32.mrb[0].mxu0
    %v9206 = vadd.f32 %v9165, %v9205
    %v9207 = vpop.f32.mrb[0].mxu0
    %v9208 = vadd.f32 %v9167, %v9207
    %v9209 = vpop.f32.mrb[0].mxu0
    %v9210 = vpop.f32.mrb[0].mxu0
    %9211 = vdwg.mxu0
    %9212 = vmatprep.subr.bf16.mxu0 %v5905
    %9213 = vmatpush1.bf16.msra.mxu0 %v5904
    %9214 = vmatprep.subr.bf16.mxu0 %v5917
    %9215 = vmatpush1.bf16.msra.mxu0 %v5916
    %9216 = vmatprep.subr.bf16.mxu0 %v5929
    %9217 = vmatpush1.bf16.msra.mxu0 %v5928
    %9218 = vmatprep.subr.bf16.mxu0 %v5941
    %9219 = vmatpush1.bf16.msra.mxu0 %v5940
    %9220 = vmatprep.subr.bf16.mxu0 %v5953
    %9221 = vmatpush1.bf16.msra.mxu0 %v5952
    %9222 = vmatprep.subr.bf16.mxu0 %v5965
    %9223 = vmatpush1.bf16.msra.mxu0 %v5964
    %9224 = vmatprep.subr.bf16.mxu0 %v5977
    %9225 = vmatpush1.bf16.msra.mxu0 %v5976
    %9226 = vmatprep.subr.bf16.mxu0 %v5989
    %9227 = vmatpush1.bf16.msra.mxu0 %v5988
    %9228 = vmatprep.subr.bf16.mxu0 %v6001
    %9229 = vmatpush1.bf16.msra.mxu0 %v6000
    %9230 = vmatprep.subr.bf16.mxu0 %v6013
    %9231 = vmatpush1.bf16.msra.mxu0 %v6012
    %9232 = vmatprep.subr.bf16.mxu0 %v6025
    %9233 = vmatpush1.bf16.msra.mxu0 %v6024
    %9234 = vmatprep.subr.bf16.mxu0 %v6037
    %9235 = vmatpush1.bf16.msra.mxu0 %v6036
    %9236 = vmatprep.subr.bf16.mxu0 %v6049
    %9237 = vmatpush1.bf16.msra.mxu0 %v6048
    %9238 = vmatprep.subr.bf16.mxu0 %v6061
    %9239 = vmatpush1.bf16.msra.mxu0 %v6060
    %9240 = vmatprep.subr.bf16.mxu0 %v6073
    %9241 = vmatpush1.bf16.msra.mxu0 %v6072
    %9242 = vmatprep.subr.bf16.mxu0 %v6085
    %9243 = vmatpush1.bf16.msra.mxu0 %v6084
    %9244 = vmatprep.mubr.bf16.mxu0 %v3964
    %9245 = vmatmul.mubr.bf16.gmra.mrb[0].mxu0 %v3963
    %v9246 = vpop.f32.mrb[0].mxu0
    %v9247 = vadd.f32 %v9206, %v9246
    %v9248 = vpop.f32.mrb[0].mxu0
    %v9249 = vadd.f32 %v9208, %v9248
    %v9250 = vpop.f32.mrb[0].mxu0
    %v9251 = vpop.f32.mrb[0].mxu0
    %9252 = vdwg.mxu0
    %9253 = vmatprep.subr.bf16.mxu0 %v6097
    %9254 = vmatpush1.bf16.msra.mxu0 %v6096
    %9255 = vmatprep.subr.bf16.mxu0 %v6109
    %9256 = vmatpush1.bf16.msra.mxu0 %v6108
    %9257 = vmatprep.subr.bf16.mxu0 %v6121
    %9258 = vmatpush1.bf16.msra.mxu0 %v6120
    %9259 = vmatprep.subr.bf16.mxu0 %v6133
    %9260 = vmatpush1.bf16.msra.mxu0 %v6132
    %9261 = vmatprep.subr.bf16.mxu0 %v6145
    %9262 = vmatpush1.bf16.msra.mxu0 %v6144
    %9263 = vmatprep.subr.bf16.mxu0 %v6157
    %9264 = vmatpush1.bf16.msra.mxu0 %v6156
    %9265 = vmatprep.subr.bf16.mxu0 %v6169
    %9266 = vmatpush1.bf16.msra.mxu0 %v6168
    %9267 = vmatprep.subr.bf16.mxu0 %v6181
    %9268 = vmatpush1.bf16.msra.mxu0 %v6180
    %9269 = vmatprep.subr.bf16.mxu0 %v6193
    %9270 = vmatpush1.bf16.msra.mxu0 %v6192
    %9271 = vmatprep.subr.bf16.mxu0 %v6205
    %9272 = vmatpush1.bf16.msra.mxu0 %v6204
    %9273 = vmatprep.subr.bf16.mxu0 %v6217
    %9274 = vmatpush1.bf16.msra.mxu0 %v6216
    %9275 = vmatprep.subr.bf16.mxu0 %v6229
    %9276 = vmatpush1.bf16.msra.mxu0 %v6228
    %9277 = vmatprep.subr.bf16.mxu0 %v6241
    %9278 = vmatpush1.bf16.msra.mxu0 %v6240
    %9279 = vmatprep.subr.bf16.mxu0 %v6253
    %9280 = vmatpush1.bf16.msra.mxu0 %v6252
    %9281 = vmatprep.subr.bf16.mxu0 %v6265
    %9282 = vmatpush1.bf16.msra.mxu0 %v6264
    %9283 = vmatprep.subr.bf16.mxu0 %v6277
    %9284 = vmatpush1.bf16.msra.mxu0 %v6276
    %9285 = vmatprep.mubr.bf16.mxu0 %v3966
    %9286 = vmatmul.mubr.bf16.gmra.mrb[0].mxu0 %v3965
    %v9287 = vpop.f32.mrb[0].mxu0
    %v9288 = vadd.f32 %v9247, %v9287
    %v9289 = vpop.f32.mrb[0].mxu0
    %v9290 = vadd.f32 %v9249, %v9289
    %v9291 = vpop.f32.mrb[0].mxu0
    %v9292 = vpop.f32.mrb[0].mxu0
    %9293 = vdwg.mxu0
    %v9294 = vmax.f32 %v6828, 0.0
    %v9295 = vmax.f32 %v6830, 0.0
    %v9296 = vmax.f32 %v7320, 0.0
    %v9297 = vmax.f32 %v7322, 0.0
    %v9298 = vmax.f32 %v7812, 0.0
    %v9299 = vmax.f32 %v7814, 0.0
    %v9300 = vmax.f32 %v8304, 0.0
    %v9301 = vmax.f32 %v8306, 0.0
    %v9302 = vmax.f32 %v8796, 0.0
    %v9303 = vmax.f32 %v8798, 0.0
    %v9304 = vmax.f32 %v9288, 0.0
    %v9305 = vmax.f32 %v9290, 0.0
    %v9306 = vpack.c.bf16 %v9294, %v9294
    %v9307 = vpack.c.bf16 %v9295, %v9295
    %v9308 = vpack.c.bf16 %v9296, %v9296
    %v9309 = vpack.c.bf16 %v9297, %v9297
    %v9310 = vpack.c.bf16 %v9298, %v9298
    %v9311 = vpack.c.bf16 %v9299, %v9299
    %v9312 = vpack.c.bf16 %v9300, %v9300
    %v9313 = vpack.c.bf16 %v9301, %v9301
    %v9314 = vpack.c.bf16 %v9302, %v9302
    %v9315 = vpack.c.bf16 %v9303, %v9303
    %v9316 = vpack.c.bf16 %v9304, %v9304
    %v9317 = vpack.c.bf16 %v9305, %v9305
    %s9318 = smul.u32 4, 192
    %s9319 = smul.u32 %s9318, 1
    %s9320 = sshll.u32 %s9319, 4
    %9321 = dma.done %s171, %s9320
    %s9322 = smul.u32 1, 1
    %s9323 = sshll.u32 %s9322, 4
    %9324 = dma.done %s183, %s9323
    %v9325 = vld [vmem:[#allocation8] sm:$0xff]
    %v9326 = vld [vmem:[#allocation8 + $0x8] sm:$0xff]
    %v9327 = vld [vmem:[#allocation8 + $0x10] sm:$0xff]
    %v9328 = vld [vmem:[#allocation8 + $0x18] sm:$0xff]
    %v9329 = vld [vmem:[#allocation8 + $0x20] sm:$0xff]
    %v9330 = vld [vmem:[#allocation8 + $0x28] sm:$0xff]
    %v9331 = vld [vmem:[#allocation8 + $0x30] sm:$0xff]
    %v9332 = vld [vmem:[#allocation8 + $0x38] sm:$0xff]
    %v9333 = vld [vmem:[#allocation8 + $0x40] sm:$0xff]
    %v9334 = vld [vmem:[#allocation8 + $0x48] sm:$0xff]
    %v9335 = vld [vmem:[#allocation8 + $0x50] sm:$0xff]
    %v9336 = vld [vmem:[#allocation8 + $0x58] sm:$0xff]
    %v9337 = vld [vmem:[#allocation8 + $0x60] sm:$0xff]
    %v9338 = vld [vmem:[#allocation8 + $0x68] sm:$0xff]
    %v9339 = vld [vmem:[#allocation8 + $0x70] sm:$0xff]
    %v9340 = vld [vmem:[#allocation8 + $0x78] sm:$0xff]
    %v9341 = vld [vmem:[#allocation8 + $0x80] sm:$0xff]
    %v9342 = vld [vmem:[#allocation8 + $0x88] sm:$0xff]
    %v9343 = vld [vmem:[#allocation8 + $0x90] sm:$0xff]
    %v9344 = vld [vmem:[#allocation8 + $0x98] sm:$0xff]
    %v9345 = vld [vmem:[#allocation8 + $0xa0] sm:$0xff]
    %v9346 = vld [vmem:[#allocation8 + $0xa8] sm:$0xff]
    %v9347 = vld [vmem:[#allocation8 + $0xb0] sm:$0xff]
    %v9348 = vld [vmem:[#allocation8 + $0xb8] sm:$0xff]
    %v9349 = vld [vmem:[#allocation8 + $0xc0] sm:$0xff]
    %v9350 = vld [vmem:[#allocation8 + $0xc8] sm:$0xff]
    %v9351 = vld [vmem:[#allocation8 + $0xd0] sm:$0xff]
    %v9352 = vld [vmem:[#allocation8 + $0xd8] sm:$0xff]
    %v9353 = vld [vmem:[#allocation8 + $0xe0] sm:$0xff]
    %v9354 = vld [vmem:[#allocation8 + $0xe8] sm:$0xff]
    %v9355 = vld [vmem:[#allocation8 + $0xf0] sm:$0xff]
    %v9356 = vld [vmem:[#allocation8 + $0xf8] sm:$0xff]
    %v9357 = vld [vmem:[#allocation8 + $0x100] sm:$0xff]
    %v9358 = vld [vmem:[#allocation8 + $0x108] sm:$0xff]
    %v9359 = vld [vmem:[#allocation8 + $0x110] sm:$0xff]
    %v9360 = vld [vmem:[#allocation8 + $0x118] sm:$0xff]
    %v9361 = vld [vmem:[#allocation8 + $0x120] sm:$0xff]
    %v9362 = vld [vmem:[#allocation8 + $0x128] sm:$0xff]
    %v9363 = vld [vmem:[#allocation8 + $0x130] sm:$0xff]
    %v9364 = vld [vmem:[#allocation8 + $0x138] sm:$0xff]
    %v9365 = vld [vmem:[#allocation8 + $0x140] sm:$0xff]
    %v9366 = vld [vmem:[#allocation8 + $0x148] sm:$0xff]
    %v9367 = vld [vmem:[#allocation8 + $0x150] sm:$0xff]
    %v9368 = vld [vmem:[#allocation8 + $0x158] sm:$0xff]
    %v9369 = vld [vmem:[#allocation8 + $0x160] sm:$0xff]
    %v9370 = vld [vmem:[#allocation8 + $0x168] sm:$0xff]
    %v9371 = vld [vmem:[#allocation8 + $0x170] sm:$0xff]
    %v9372 = vld [vmem:[#allocation8 + $0x178] sm:$0xff]
    %v9373 = vld [vmem:[#allocation8 + $0x180] sm:$0xff]
    %v9374 = vld [vmem:[#allocation8 + $0x188] sm:$0xff]
    %v9375 = vld [vmem:[#allocation8 + $0x190] sm:$0xff]
    %v9376 = vld [vmem:[#allocation8 + $0x198] sm:$0xff]
    %v9377 = vld [vmem:[#allocation8 + $0x1a0] sm:$0xff]
    %v9378 = vld [vmem:[#allocation8 + $0x1a8] sm:$0xff]
    %v9379 = vld [vmem:[#allocation8 + $0x1b0] sm:$0xff]
    %v9380 = vld [vmem:[#allocation8 + $0x1b8] sm:$0xff]
    %v9381 = vld [vmem:[#allocation8 + $0x1c0] sm:$0xff]
    %v9382 = vld [vmem:[#allocation8 + $0x1c8] sm:$0xff]
    %v9383 = vld [vmem:[#allocation8 + $0x1d0] sm:$0xff]
    %v9384 = vld [vmem:[#allocation8 + $0x1d8] sm:$0xff]
    %v9385 = vld [vmem:[#allocation8 + $0x1e0] sm:$0xff]
    %v9386 = vld [vmem:[#allocation8 + $0x1e8] sm:$0xff]
    %v9387 = vld [vmem:[#allocation8 + $0x1f0] sm:$0xff]
    %v9388 = vld [vmem:[#allocation8 + $0x1f8] sm:$0xff]
    %v9389 = vld [vmem:[#allocation8 + $0x200] sm:$0xff]
    %v9390 = vld [vmem:[#allocation8 + $0x208] sm:$0xff]
    %v9391 = vld [vmem:[#allocation8 + $0x210] sm:$0xff]
    %v9392 = vld [vmem:[#allocation8 + $0x218] sm:$0xff]
    %v9393 = vld [vmem:[#allocation8 + $0x220] sm:$0xff]
    %v9394 = vld [vmem:[#allocation8 + $0x228] sm:$0xff]
    %v9395 = vld [vmem:[#allocation8 + $0x230] sm:$0xff]
    %v9396 = vld [vmem:[#allocation8 + $0x238] sm:$0xff]
    %v9397 = vld [vmem:[#allocation8 + $0x240] sm:$0xff]
    %v9398 = vld [vmem:[#allocation8 + $0x248] sm:$0xff]
    %v9399 = vld [vmem:[#allocation8 + $0x250] sm:$0xff]
    %v9400 = vld [vmem:[#allocation8 + $0x258] sm:$0xff]
    %v9401 = vld [vmem:[#allocation8 + $0x260] sm:$0xff]
    %v9402 = vld [vmem:[#allocation8 + $0x268] sm:$0xff]
    %v9403 = vld [vmem:[#allocation8 + $0x270] sm:$0xff]
    %v9404 = vld [vmem:[#allocation8 + $0x278] sm:$0xff]
    %v9405 = vld [vmem:[#allocation8 + $0x280] sm:$0xff]
    %v9406 = vld [vmem:[#allocation8 + $0x288] sm:$0xff]
    %v9407 = vld [vmem:[#allocation8 + $0x290] sm:$0xff]
    %v9408 = vld [vmem:[#allocation8 + $0x298] sm:$0xff]
    %v9409 = vld [vmem:[#allocation8 + $0x2a0] sm:$0xff]
    %v9410 = vld [vmem:[#allocation8 + $0x2a8] sm:$0xff]
    %v9411 = vld [vmem:[#allocation8 + $0x2b0] sm:$0xff]
    %v9412 = vld [vmem:[#allocation8 + $0x2b8] sm:$0xff]
    %v9413 = vld [vmem:[#allocation8 + $0x2c0] sm:$0xff]
    %v9414 = vld [vmem:[#allocation8 + $0x2c8] sm:$0xff]
    %v9415 = vld [vmem:[#allocation8 + $0x2d0] sm:$0xff]
    %v9416 = vld [vmem:[#allocation8 + $0x2d8] sm:$0xff]
    %v9417 = vld [vmem:[#allocation8 + $0x2e0] sm:$0xff]
    %v9418 = vld [vmem:[#allocation8 + $0x2e8] sm:$0xff]
    %v9419 = vld [vmem:[#allocation8 + $0x2f0] sm:$0xff]
    %v9420 = vld [vmem:[#allocation8 + $0x2f8] sm:$0xff]
    %v9421 = vld [vmem:[#allocation9] sm:$0x1]
    %v9423 = vlaneseq
    %v9424 = vshrl.u32 %v9423, 7
    %v9425 = vsub.s32 0, %v9424
    %v9426 = vrot.slane %v9421, %v9425
    %9428 = vmatprep.subr.bf16.mxu0 0
    %9429 = vmatpush1.bf16.msra.mxu0 %v9325
    %9430 = vmatprep.subr.bf16.mxu0 0
    %9431 = vmatpush1.bf16.msra.mxu0 %v9326
    %9432 = vmatprep.subr.bf16.mxu0 0
    %9433 = vmatpush1.bf16.msra.mxu0 %v9327
    %9434 = vmatprep.subr.bf16.mxu0 0
    %9435 = vmatpush1.bf16.msra.mxu0 %v9328
    %9436 = vmatprep.subr.bf16.mxu0 0
    %9437 = vmatpush1.bf16.msra.mxu0 %v9329
    %9438 = vmatprep.subr.bf16.mxu0 0
    %9439 = vmatpush1.bf16.msra.mxu0 %v9330
    %9440 = vmatprep.subr.bf16.mxu0 0
    %9441 = vmatpush1.bf16.msra.mxu0 %v9331
    %9442 = vmatprep.subr.bf16.mxu0 0
    %9443 = vmatpush1.bf16.msra.mxu0 %v9332
    %9444 = vmatprep.subr.bf16.mxu0 0
    %9445 = vmatpush1.bf16.msra.mxu0 %v9333
    %9446 = vmatprep.subr.bf16.mxu0 0
    %9447 = vmatpush1.bf16.msra.mxu0 %v9334
    %9448 = vmatprep.subr.bf16.mxu0 0
    %9449 = vmatpush1.bf16.msra.mxu0 %v9335
    %9450 = vmatprep.subr.bf16.mxu0 0
    %9451 = vmatpush1.bf16.msra.mxu0 %v9336
    %9452 = vmatprep.subr.bf16.mxu0 0
    %9453 = vmatpush1.bf16.msra.mxu0 %v9337
    %9454 = vmatprep.subr.bf16.mxu0 0
    %9455 = vmatpush1.bf16.msra.mxu0 %v9338
    %9456 = vmatprep.subr.bf16.mxu0 0
    %9457 = vmatpush1.bf16.msra.mxu0 %v9339
    %9458 = vmatprep.subr.bf16.mxu0 0
    %9459 = vmatpush1.bf16.msra.mxu0 %v9340
    %9460 = vmatprep.mubr.bf16.mxu0 %v9307
    %9461 = vmatmul.mubr.bf16.gmra.mrb[0].mxu0 %v9306
    %v9462 = vpop.f32.mrb[0].mxu0
    %v9463 = vadd.f32 %v9426, %v9462
    %v9464 = vpop.f32.mrb[0].mxu0
    %v9465 = vpop.f32.mrb[0].mxu0
    %v9466 = vpop.f32.mrb[0].mxu0
    %9467 = vdwg.mxu0
    %9468 = vmatprep.subr.bf16.mxu0 0
    %9469 = vmatpush1.bf16.msra.mxu0 %v9341
    %9470 = vmatprep.subr.bf16.mxu0 0
    %9471 = vmatpush1.bf16.msra.mxu0 %v9342
    %9472 = vmatprep.subr.bf16.mxu0 0
    %9473 = vmatpush1.bf16.msra.mxu0 %v9343
    %9474 = vmatprep.subr.bf16.mxu0 0
    %9475 = vmatpush1.bf16.msra.mxu0 %v9344
    %9476 = vmatprep.subr.bf16.mxu0 0
    %9477 = vmatpush1.bf16.msra.mxu0 %v9345
    %9478 = vmatprep.subr.bf16.mxu0 0
    %9479 = vmatpush1.bf16.msra.mxu0 %v9346
    %9480 = vmatprep.subr.bf16.mxu0 0
    %9481 = vmatpush1.bf16.msra.mxu0 %v9347
    %9482 = vmatprep.subr.bf16.mxu0 0
    %9483 = vmatpush1.bf16.msra.mxu0 %v9348
    %9484 = vmatprep.subr.bf16.mxu0 0
    %9485 = vmatpush1.bf16.msra.mxu0 %v9349
    %9486 = vmatprep.subr.bf16.mxu0 0
    %9487 = vmatpush1.bf16.msra.mxu0 %v9350
    %9488 = vmatprep.subr.bf16.mxu0 0
    %9489 = vmatpush1.bf16.msra.mxu0 %v9351
    %9490 = vmatprep.subr.bf16.mxu0 0
    %9491 = vmatpush1.bf16.msra.mxu0 %v9352
    %9492 = vmatprep.subr.bf16.mxu0 0
    %9493 = vmatpush1.bf16.msra.mxu0 %v9353
    %9494 = vmatprep.subr.bf16.mxu0 0
    %9495 = vmatpush1.bf16.msra.mxu0 %v9354
    %9496 = vmatprep.subr.bf16.mxu0 0
    %9497 = vmatpush1.bf16.msra.mxu0 %v9355
    %9498 = vmatprep.subr.bf16.mxu0 0
    %9499 = vmatpush1.bf16.msra.mxu0 %v9356
    %9500 = vmatprep.mubr.bf16.mxu0 %v9309
    %9501 = vmatmul.mubr.bf16.gmra.mrb[0].mxu0 %v9308
    %v9502 = vpop.f32.mrb[0].mxu0
    %v9503 = vadd.f32 %v9463, %v9502
    %v9504 = vpop.f32.mrb[0].mxu0
    %v9505 = vpop.f32.mrb[0].mxu0
    %v9506 = vpop.f32.mrb[0].mxu0
    %9507 = vdwg.mxu0
    %9508 = vmatprep.subr.bf16.mxu0 0
    %9509 = vmatpush1.bf16.msra.mxu0 %v9357
    %9510 = vmatprep.subr.bf16.mxu0 0
    %9511 = vmatpush1.bf16.msra.mxu0 %v9358
    %9512 = vmatprep.subr.bf16.mxu0 0
    %9513 = vmatpush1.bf16.msra.mxu0 %v9359
    %9514 = vmatprep.subr.bf16.mxu0 0
    %9515 = vmatpush1.bf16.msra.mxu0 %v9360
    %9516 = vmatprep.subr.bf16.mxu0 0
    %9517 = vmatpush1.bf16.msra.mxu0 %v9361
    %9518 = vmatprep.subr.bf16.mxu0 0
    %9519 = vmatpush1.bf16.msra.mxu0 %v9362
    %9520 = vmatprep.subr.bf16.mxu0 0
    %9521 = vmatpush1.bf16.msra.mxu0 %v9363
    %9522 = vmatprep.subr.bf16.mxu0 0
    %9523 = vmatpush1.bf16.msra.mxu0 %v9364
    %9524 = vmatprep.subr.bf16.mxu0 0
    %9525 = vmatpush1.bf16.msra.mxu0 %v9365
    %9526 = vmatprep.subr.bf16.mxu0 0
    %9527 = vmatpush1.bf16.msra.mxu0 %v9366
    %9528 = vmatprep.subr.bf16.mxu0 0
    %9529 = vmatpush1.bf16.msra.mxu0 %v9367
    %9530 = vmatprep.subr.bf16.mxu0 0
    %9531 = vmatpush1.bf16.msra.mxu0 %v9368
    %9532 = vmatprep.subr.bf16.mxu0 0
    %9533 = vmatpush1.bf16.msra.mxu0 %v9369
    %9534 = vmatprep.subr.bf16.mxu0 0
    %9535 = vmatpush1.bf16.msra.mxu0 %v9370
    %9536 = vmatprep.subr.bf16.mxu0 0
    %9537 = vmatpush1.bf16.msra.mxu0 %v9371
    %9538 = vmatprep.subr.bf16.mxu0 0
    %9539 = vmatpush1.bf16.msra.mxu0 %v9372
    %9540 = vmatprep.mubr.bf16.mxu0 %v9311
    %9541 = vmatmul.mubr.bf16.gmra.mrb[0].mxu0 %v9310
    %v9542 = vpop.f32.mrb[0].mxu0
    %v9543 = vadd.f32 %v9503, %v9542
    %v9544 = vpop.f32.mrb[0].mxu0
    %v9545 = vpop.f32.mrb[0].mxu0
    %v9546 = vpop.f32.mrb[0].mxu0
    %9547 = vdwg.mxu0
    %9548 = vmatprep.subr.bf16.mxu0 0
    %9549 = vmatpush1.bf16.msra.mxu0 %v9373
    %9550 = vmatprep.subr.bf16.mxu0 0
    %9551 = vmatpush1.bf16.msra.mxu0 %v9374
    %9552 = vmatprep.subr.bf16.mxu0 0
    %9553 = vmatpush1.bf16.msra.mxu0 %v9375
    %9554 = vmatprep.subr.bf16.mxu0 0
    %9555 = vmatpush1.bf16.msra.mxu0 %v9376
    %9556 = vmatprep.subr.bf16.mxu0 0
    %9557 = vmatpush1.bf16.msra.mxu0 %v9377
    %9558 = vmatprep.subr.bf16.mxu0 0
    %9559 = vmatpush1.bf16.msra.mxu0 %v9378
    %9560 = vmatprep.subr.bf16.mxu0 0
    %9561 = vmatpush1.bf16.msra.mxu0 %v9379
    %9562 = vmatprep.subr.bf16.mxu0 0
    %9563 = vmatpush1.bf16.msra.mxu0 %v9380
    %9564 = vmatprep.subr.bf16.mxu0 0
    %9565 = vmatpush1.bf16.msra.mxu0 %v9381
    %9566 = vmatprep.subr.bf16.mxu0 0
    %9567 = vmatpush1.bf16.msra.mxu0 %v9382
    %9568 = vmatprep.subr.bf16.mxu0 0
    %9569 = vmatpush1.bf16.msra.mxu0 %v9383
    %9570 = vmatprep.subr.bf16.mxu0 0
    %9571 = vmatpush1.bf16.msra.mxu0 %v9384
    %9572 = vmatprep.subr.bf16.mxu0 0
    %9573 = vmatpush1.bf16.msra.mxu0 %v9385
    %9574 = vmatprep.subr.bf16.mxu0 0
    %9575 = vmatpush1.bf16.msra.mxu0 %v9386
    %9576 = vmatprep.subr.bf16.mxu0 0
    %9577 = vmatpush1.bf16.msra.mxu0 %v9387
    %9578 = vmatprep.subr.bf16.mxu0 0
    %9579 = vmatpush1.bf16.msra.mxu0 %v9388
    %9580 = vmatprep.mubr.bf16.mxu0 %v9313
    %9581 = vmatmul.mubr.bf16.gmra.mrb[0].mxu0 %v9312
    %v9582 = vpop.f32.mrb[0].mxu0
    %v9583 = vadd.f32 %v9543, %v9582
    %v9584 = vpop.f32.mrb[0].mxu0
    %v9585 = vpop.f32.mrb[0].mxu0
    %v9586 = vpop.f32.mrb[0].mxu0
    %9587 = vdwg.mxu0
    %9588 = vmatprep.subr.bf16.mxu0 0
    %9589 = vmatpush1.bf16.msra.mxu0 %v9389
    %9590 = vmatprep.subr.bf16.mxu0 0
    %9591 = vmatpush1.bf16.msra.mxu0 %v9390
    %9592 = vmatprep.subr.bf16.mxu0 0
    %9593 = vmatpush1.bf16.msra.mxu0 %v9391
    %9594 = vmatprep.subr.bf16.mxu0 0
    %9595 = vmatpush1.bf16.msra.mxu0 %v9392
    %9596 = vmatprep.subr.bf16.mxu0 0
    %9597 = vmatpush1.bf16.msra.mxu0 %v9393
    %9598 = vmatprep.subr.bf16.mxu0 0
    %9599 = vmatpush1.bf16.msra.mxu0 %v9394
    %9600 = vmatprep.subr.bf16.mxu0 0
    %9601 = vmatpush1.bf16.msra.mxu0 %v9395
    %9602 = vmatprep.subr.bf16.mxu0 0
    %9603 = vmatpush1.bf16.msra.mxu0 %v9396
    %9604 = vmatprep.subr.bf16.mxu0 0
    %9605 = vmatpush1.bf16.msra.mxu0 %v9397
    %9606 = vmatprep.subr.bf16.mxu0 0
    %9607 = vmatpush1.bf16.msra.mxu0 %v9398
    %9608 = vmatprep.subr.bf16.mxu0 0
    %9609 = vmatpush1.bf16.msra.mxu0 %v9399
    %9610 = vmatprep.subr.bf16.mxu0 0
    %9611 = vmatpush1.bf16.msra.mxu0 %v9400
    %9612 = vmatprep.subr.bf16.mxu0 0
    %9613 = vmatpush1.bf16.msra.mxu0 %v9401
    %9614 = vmatprep.subr.bf16.mxu0 0
    %9615 = vmatpush1.bf16.msra.mxu0 %v9402
    %9616 = vmatprep.subr.bf16.mxu0 0
    %9617 = vmatpush1.bf16.msra.mxu0 %v9403
    %9618 = vmatprep.subr.bf16.mxu0 0
    %9619 = vmatpush1.bf16.msra.mxu0 %v9404
    %9620 = vmatprep.mubr.bf16.mxu0 %v9315
    %9621 = vmatmul.mubr.bf16.gmra.mrb[0].mxu0 %v9314
    %v9622 = vpop.f32.mrb[0].mxu0
    %v9623 = vadd.f32 %v9583, %v9622
    %v9624 = vpop.f32.mrb[0].mxu0
    %v9625 = vpop.f32.mrb[0].mxu0
    %v9626 = vpop.f32.mrb[0].mxu0
    %9627 = vdwg.mxu0
    %9628 = vmatprep.subr.bf16.mxu0 0
    %9629 = vmatpush1.bf16.msra.mxu0 %v9405
    %9630 = vmatprep.subr.bf16.mxu0 0
    %9631 = vmatpush1.bf16.msra.mxu0 %v9406
    %9632 = vmatprep.subr.bf16.mxu0 0
    %9633 = vmatpush1.bf16.msra.mxu0 %v9407
    %9634 = vmatprep.subr.bf16.mxu0 0
    %9635 = vmatpush1.bf16.msra.mxu0 %v9408
    %9636 = vmatprep.subr.bf16.mxu0 0
    %9637 = vmatpush1.bf16.msra.mxu0 %v9409
    %9638 = vmatprep.subr.bf16.mxu0 0
    %9639 = vmatpush1.bf16.msra.mxu0 %v9410
    %9640 = vmatprep.subr.bf16.mxu0 0
    %9641 = vmatpush1.bf16.msra.mxu0 %v9411
    %9642 = vmatprep.subr.bf16.mxu0 0
    %9643 = vmatpush1.bf16.msra.mxu0 %v9412
    %9644 = vmatprep.subr.bf16.mxu0 0
    %9645 = vmatpush1.bf16.msra.mxu0 %v9413
    %9646 = vmatprep.subr.bf16.mxu0 0
    %9647 = vmatpush1.bf16.msra.mxu0 %v9414
    %9648 = vmatprep.subr.bf16.mxu0 0
    %9649 = vmatpush1.bf16.msra.mxu0 %v9415
    %9650 = vmatprep.subr.bf16.mxu0 0
    %9651 = vmatpush1.bf16.msra.mxu0 %v9416
    %9652 = vmatprep.subr.bf16.mxu0 0
    %9653 = vmatpush1.bf16.msra.mxu0 %v9417
    %9654 = vmatprep.subr.bf16.mxu0 0
    %9655 = vmatpush1.bf16.msra.mxu0 %v9418
    %9656 = vmatprep.subr.bf16.mxu0 0
    %9657 = vmatpush1.bf16.msra.mxu0 %v9419
    %9658 = vmatprep.subr.bf16.mxu0 0
    %9659 = vmatpush1.bf16.msra.mxu0 %v9420
    %9660 = vmatprep.mubr.bf16.mxu0 %v9317
    %9661 = vmatmul.mubr.bf16.gmra.mrb[0].mxu0 %v9316
    %v9662 = vpop.f32.mrb[0].mxu0
    %v9663 = vadd.f32 %v9623, %v9662
    %v9664 = vpop.f32.mrb[0].mxu0
    %v9665 = vpop.f32.mrb[0].mxu0
    %v9666 = vpop.f32.mrb[0].mxu0
    %9667 = vdwg.mxu0
    %9668 = vst [vmem:[#allocation14] sm:$0xff] %v9663
    // Predicated region
    $region30: #{tpu_custom_call.1} parent=1 // pred_check
      _
    $region31: #{tpu_custom_call.1} parent=1 // pred_check_branch
      %9670 = sbr.rel (0) target = $region33
    $region32: #{tpu_custom_call.1} parent=1 // pred_region
      %s9672 = ssub.s32 128, 128
      %9673 = vsyncadd [#allocation13], %s9672
      %s9675 = sshll.u32 [#allocation14], 4
      %s9676 = int_to_ptr.vmem [resolvable:$true] %s9675
      %9678 = dma.vmem_to_hbm [thread:$0]  %s9676, 128, %s9, [#allocation13]
    $region33: #{tpu_custom_call.1} parent=1 // pred_fallthru
      _
    // Predicated region
    $region34: #{tpu_custom_call.1} parent=1 // pred_check
      _
    $region35: #{tpu_custom_call.1} parent=1 // pred_check_branch
      %9680 = sbr.rel (0) target = $region37
    $region36: #{tpu_custom_call.1} parent=1 // pred_region
      %9681 = dma.done [#allocation13], 128
    $region37: #{tpu_custom_call.1} parent=1 // pred_fallthru
      _
    %9682 = vsyncpa [#allocation12], 1
    %9683 = vsyncpa [#allocation13], 1
  %9684 = vsyncmov [#allocation10]
  %s9685 = vpop.sfrf %9684
  %p9686 = scmp.eq.s32.totalorder %s9685, 0
  %p9687 = pneg %p9686
  %9689 = shalt.err (%p9687)
  %s9690 = scalar_lea.sflag [#allocation10], 1
  %9691 = vsyncmov %s9690
  %s9692 = vpop.sfrf %9691
  %p9693 = scmp.eq.s32.totalorder %s9692, 0
  %p9694 = pneg %p9693
  %9696 = shalt.err (%p9694)
  %s9697 = scalar_lea.sflag [#allocation10], 2
  %9698 = vsyncmov %s9697
  %s9699 = vpop.sfrf %9698
  %p9700 = scmp.eq.s32.totalorder %s9699, 0
  %p9701 = pneg %p9700
  %9703 = shalt.err (%p9701)
  %s9704 = scalar_lea.sflag [#allocation10], 3
  %9705 = vsyncmov %s9704
  %s9706 = vpop.sfrf %9705
  %p9707 = scmp.eq.s32.totalorder %s9706, 0
  %p9708 = pneg %p9707
  %9710 = shalt.err (%p9708)
  %s9711 = scalar_lea.sflag [#allocation10], 4
  %9712 = vsyncmov %s9711
  %s9713 = vpop.sfrf %9712
  %p9714 = scmp.eq.s32.totalorder %s9713, 0
  %p9715 = pneg %p9714
  %9717 = shalt.err (%p9715)
  %s9718 = scalar_lea.sflag [#allocation10], 5
  %9719 = vsyncmov %s9718
  %s9720 = vpop.sfrf %9719
  %p9721 = scmp.eq.s32.totalorder %s9720, 0
  %p9722 = pneg %p9721
  %9724 = shalt.err (%p9722)
  %s9725 = scalar_lea.sflag [#allocation10], 6
  %9726 = vsyncmov %s9725
  %s9727 = vpop.sfrf %9726
  %p9728 = scmp.eq.s32.totalorder %s9727, 0
  %p9729 = pneg %p9728
  %9731 = shalt.err (%p9729)
  %s9732 = scalar_lea.sflag [#allocation10], 7
  %9733 = vsyncmov %s9732
  %s9734 = vpop.sfrf %9733
  %p9735 = scmp.eq.s32.totalorder %s9734, 0
  %p9736 = pneg %p9735
  %9738 = shalt.err (%p9736)

</llo_original>
